<compile_context>
chip_gen: v7x
topology: tpu7x:2x2x1
jax: 0.10.0
libtpu: 0.0.40
codegen_flags: <defaults>
</compile_context>

<pallas_src>
import jax
import jax.numpy as jnp
from jax import lax
from jax.experimental import pallas as pl
from jax.experimental.pallas import tpu as pltpu


# ----------------------------- Pallas kernels ------------------------------

def _conv_ln_lrelu_kernel(x_ref, w_ref, g_ref, b_ref, o_ref):
    """Per-sample fused conv (implicit GEMM over (th, tw) taps) + LayerNorm + LeakyReLU.

    x_ref: (1, Hs, Ws, K)      tap-layout features (space-to-depth or im2col)
    w_ref: (th, tw, K, Cout)   bf16 weights, one (K, Cout) matrix per tap
    g_ref, b_ref: (Ho*Wo, Cout) f32 LayerNorm affine, (h, w, c)-ordered
    o_ref: (1, Ho, Wo, Cout)   f32
    """
    th, tw, _, cout = w_ref.shape
    _, hs, ws, _ = x_ref.shape
    ho = hs - th + 1
    wo = ws - tw + 1

    acc = None
    for dh in range(th):
        for dw in range(tw):
            tap = x_ref[0, dh:dh + ho, dw:dw + wo, :]              # (ho, wo, K)
            tap = tap.reshape(ho * wo, tap.shape[-1]).astype(jnp.bfloat16)
            part = jnp.dot(tap, w_ref[dh, dw],
                           preferred_element_type=jnp.float32)     # (ho*wo, Cout) f32
            acc = part if acc is None else acc + part

    # LayerNorm over the whole sample (Ho*Wo*Cout elements), biased var, eps=1e-5.
    n_elem = float(ho * wo * cout)
    mu = jnp.sum(jnp.sum(acc, axis=0, keepdims=True),
                 axis=1, keepdims=True) / n_elem                    # (1, 1)
    xc = acc - mu
    var = jnp.sum(jnp.sum(xc * xc, axis=0, keepdims=True),
                  axis=1, keepdims=True) / n_elem
    y = xc * lax.rsqrt(var + 1e-5) * g_ref[...] + b_ref[...]
    y = jnp.where(y >= 0, y, 0.2 * y)                               # LeakyReLU(0.2)
    o_ref[...] = y.reshape(o_ref.shape)


def _conv_head_kernel(x_ref, w_ref, fcw_ref, fcb_ref, z_ref, p_ref):
    """Per-sample fused conv3 (stride 1, 4x4 taps) + spatial mean + fc_out head."""
    th, tw, _, cout = w_ref.shape
    _, hs, ws, _ = x_ref.shape
    ho = hs - th + 1
    wo = ws - tw + 1

    acc = None
    for kh in range(th):
        for kw in range(tw):
            tap = x_ref[0, kh:kh + ho, kw:kw + wo, :]               # (ho, wo, Cin)
            tap = tap.reshape(ho * wo, tap.shape[-1]).astype(jnp.bfloat16)
            part = jnp.dot(tap, w_ref[kh, kw],
                           preferred_element_type=jnp.float32)      # (ho*wo, Cout)
            acc = part if acc is None else acc + part

    z_ref[...] = acc.reshape(z_ref.shape)
    # z.mean(axis=3).mean(axis=2) == mean over all spatial positions.
    zm = jnp.sum(acc, axis=0, keepdims=True) / float(ho * wo)       # (1, Cout)
    p = jnp.dot(zm, fcw_ref[...], preferred_element_type=jnp.float32) + fcb_ref[...]
    p_ref[...] = p.reshape(p_ref.shape)


# ---------------------------- pallas_call wrappers ---------------------------

def _conv_ln_lrelu_layer(x_feat, w, g, b, ho, wo):
    """x_feat: (N, Hs, Ws, K); w: (th, tw, K, Cout) bf16; g/b: (ho*wo, Cout)."""
    n, hs, ws, kc = x_feat.shape
    th, tw, _, cout = w.shape
    return pl.pallas_call(
        _conv_ln_lrelu_kernel,
        out_shape=jax.ShapeDtypeStruct((n, ho, wo, cout), jnp.float32),
        grid=(n,),
        in_specs=[pl.BlockSpec((1, hs, ws, kc), lambda i: (i, 0, 0, 0)),
                  pl.BlockSpec((th, tw, kc, cout), lambda i: (0, 0, 0, 0)),
                  pl.BlockSpec((ho * wo, cout), lambda i: (0, 0)),
                  pl.BlockSpec((ho * wo, cout), lambda i: (0, 0))],
        out_specs=pl.BlockSpec((1, ho, wo, cout), lambda i: (i, 0, 0, 0)),
        compiler_params=pltpu.CompilerParams(dimension_semantics=("parallel",)),
    )(x_feat, w, g, b)


def _conv_head_layer(x, w, fc_w, fc_b):
    """x: (N, Hs, Ws, Cin) NHWC; w: (4, 4, Cin, Cout) bf16; fc_w: (Cout, ncls)."""
    n, hs, ws, cin = x.shape
    th, tw, _, cout = w.shape
    ho, wo = hs - th + 1, ws - tw + 1
    ncls = fc_w.shape[1]
    z, p = pl.pallas_call(
        _conv_head_kernel,
        out_shape=(jax.ShapeDtypeStruct((n, ho, wo, cout), jnp.float32),
                   jax.ShapeDtypeStruct((n, 1, ncls), jnp.float32)),
        grid=(n,),
        in_specs=[pl.BlockSpec((1, hs, ws, cin), lambda i: (i, 0, 0, 0)),
                  pl.BlockSpec((th, tw, cin, cout), lambda i: (0, 0, 0, 0)),
                  pl.BlockSpec((cout, ncls), lambda i: (0, 0)),
                  pl.BlockSpec((1, ncls), lambda i: (0, 0))],
        out_specs=(pl.BlockSpec((1, ho, wo, cout), lambda i: (i, 0, 0, 0)),
                   pl.BlockSpec((1, 1, ncls), lambda i: (i, 0, 0))),
        compiler_params=pltpu.CompilerParams(dimension_semantics=("parallel",)),
    )(x, w, fc_w, fc_b)
    return z, p.reshape(n, ncls)


# ------------------------------- XLA-side glue -------------------------------

def _im2col_4x4_s2(x_nhwc):
    """k=4, stride=2, pad=1 patches of a tiny input; features ordered (kh, kw, c)."""
    n, h, w, c = x_nhwc.shape
    xp = jnp.pad(x_nhwc, ((0, 0), (1, 1), (1, 1), (0, 0)))
    ho, wo = h // 2, w // 2
    cols = []
    for kh in range(4):
        for kw in range(4):
            cols.append(xp[:, kh:kh + 2 * (ho - 1) + 1:2,
                           kw:kw + 2 * (wo - 1) + 1:2, :])
    return jnp.concatenate(cols, axis=-1), ho, wo        # (N, ho, wo, 16*c)


def _pad_space_to_depth(x_nhwc):
    """pad=1, then 2x2 space-to-depth; channels ordered (sh, sw, c)."""
    n, h, w, c = x_nhwc.shape
    assert h % 2 == 0 and w % 2 == 0
    xp = jnp.pad(x_nhwc, ((0, 0), (1, 1), (1, 1), (0, 0)))
    hs, ws = (h + 2) // 2, (w + 2) // 2
    xs = xp.reshape(n, hs, 2, ws, 2, c).transpose(0, 1, 3, 2, 4, 5)
    return xs.reshape(n, hs, ws, 4 * c)                  # (N, hs, ws, 4c)


# ---------------------------- parameters & forward ---------------------------

def init_params(key, input_channel=1, input_length=32, input_dim=128, class_num1=6):
    es = [input_channel, 32, 64, 128, 256]
    keys = jax.random.split(key, 6)
    params = {}
    for i in range(3):
        params[f"conv{i}_w"] = 0.05 * jax.random.normal(
            keys[i], (es[i + 1], es[i], 4, 4), jnp.float32)
        h = input_length // 2 ** (i + 1)
        w = input_dim // 2 ** (i + 1)
        params[f"ln{i}_g"] = jnp.ones((es[i + 1], h, w), jnp.float32)
        params[f"ln{i}_b"] = jnp.zeros((es[i + 1], h, w), jnp.float32)
    params["conv3_w"] = 0.05 * jax.random.normal(
        keys[3], (es[4], es[3], 4, 4), jnp.float32)
    # fc_out: Linear(input_dim*2 -> class_num1); matches z channels (256) when
    # input_dim == 128, exactly as in the PyTorch module defaults.
    params["fc_w"] = 0.05 * jax.random.normal(
        keys[4], (class_num1, input_dim * 2), jnp.float32)     # PyTorch (out, in)
    params["fc_b"] = 0.05 * jax.random.normal(keys[5], (class_num1,), jnp.float32)
    return params


def prepare_params(params):
    """One-time weight / LN-param reshuffle + bf16 cast (hoisted out of forward)."""
    p = {}
    # conv0: wrapper-side im2col -> rows ordered (kh, kw, cin).
    w0 = params["conv0_w"]                                 # (32, Cin, 4, 4)
    cout0, cin0 = w0.shape[0], w0.shape[1]
    p["w0"] = w0.transpose(2, 3, 1, 0).reshape(1, 1, 16 * cin0, cout0).astype(jnp.bfloat16)
    # conv1/conv2: space-to-depth taps; channel order (sh, sw, cin), kh=2*dh+sh, kw=2*dw+sw.
    for i in (1, 2):
        w = params[f"conv{i}_w"]                           # (Cout, Cin, 4, 4)
        cout, cin = w.shape[0], w.shape[1]
        w2 = w.reshape(cout, cin, 2, 2, 2, 2).transpose(2, 4, 3, 5, 1, 0)
        p[f"w{i}"] = w2.reshape(2, 2, 4 * cin, cout).astype(jnp.bfloat16)
    # conv3: (kh, kw, cin, cout).
    p["w3"] = params["conv3_w"].transpose(2, 3, 1, 0).astype(jnp.bfloat16)
    # LayerNorm affine (C, H, W) -> (H*W, C) to match the kernels' (ho*wo, c) tiles.
    for i in range(3):
        g = params[f"ln{i}_g"]
        b = params[f"ln{i}_b"]
        c, h, w = g.shape
        p[f"g{i}"] = g.transpose(1, 2, 0).reshape(h * w, c)
        p[f"b{i}"] = b.transpose(1, 2, 0).reshape(h * w, c)
    p["fc_w"] = params["fc_w"].T                           # (256, class_num1)
    p["fc_b"] = params["fc_b"].reshape(1, -1)
    return p


def conv_encoder_forward(prepped, input_mel, class_vec, coarse_cls=True, fine_cls=False):
    # TODO(synk): ArcMarginProduct (fine_cls=True branch) not implemented.
    if fine_cls:
        raise NotImplementedError("fine_cls / ArcMarginProduct path not implemented")

    x = jnp.transpose(input_mel, (0, 2, 3, 1))             # NCHW -> NHWC, once

    # layer 0: Cin is tiny (K = 16*Cin); wrapper im2col, single in-kernel GEMM tap.
    p0, ho, wo = _im2col_4x4_s2(x)
    x = _conv_ln_lrelu_layer(p0, prepped["w0"], prepped["g0"], prepped["b0"], ho, wo)

    # layers 1, 2: pad + 2x2 space-to-depth (one XLA copy); 2x2 taps in-kernel.
    for i in (1, 2):
        h, w = x.shape[1], x.shape[2]
        xs = _pad_space_to_depth(x)
        x = _conv_ln_lrelu_layer(xs, prepped[f"w{i}"], prepped[f"g{i}"],
                                 prepped[f"b{i}"], h // 2, w // 2)

    # conv3 (stride 1, pad 0) + spatial-mean + fc_out head, fused in one kernel.
    z_nhwc, coarse_pred = _conv_head_layer(x, prepped["w3"],
                                           prepped["fc_w"], prepped["fc_b"])
    z = jnp.transpose(z_nhwc, (0, 3, 1, 2))                # NHWC -> NCHW, once

    if coarse_cls:
        return z, coarse_pred
    return z


# ----------------------------------- main ------------------------------------

if __name__ == "__main__":
    key = jax.random.PRNGKey(0)
    kx, kc, kp = jax.random.split(key, 3)

    # input_channel=1, input_dim=128 (so fc_out in_features=256 matches z's 256
    # channels), input_length reduced to 32 for a small test.
    N, CIN, L, D = 2, 1, 32, 128
    params = init_params(kp, input_channel=CIN, input_length=L, input_dim=D,
                         class_num1=6)
    prepped = prepare_params(params)      # one-time prep, hoisted out of forward

    input_mel = jax.random.normal(kx, (N, CIN, L, D), jnp.float32)
    class_vec = jax.random.normal(kc, (N, 23), jnp.float32)   # unused (fine_cls=False)

    fwd = jax.jit(conv_encoder_forward, static_argnames=("coarse_cls", "fine_cls"))
    z, coarse_pred = fwd(prepped, input_mel, class_vec,
                         coarse_cls=True, fine_cls=False)
    z = jax.block_until_ready(z)
    coarse_pred = jax.block_until_ready(coarse_pred)

    assert z.shape == (N, 256, L // 8 - 3, D // 8 - 3), z.shape
    assert coarse_pred.shape == (N, 6), coarse_pred.shape
    assert z.dtype == jnp.float32 and coarse_pred.dtype == jnp.float32
    assert bool(jnp.all(jnp.isfinite(z))) and bool(jnp.all(jnp.isfinite(coarse_pred)))

    print("KERNEL_OK")
</pallas_src>

<mosaic_0001>
module attributes {stable_mosaic.version = 11 : i64} {
  func.func @_conv_ln_lrelu_kernel(%arg0: i32, %arg1: memref<1x16x64x16xf32, #tpu.memory_space<vmem>>, %arg2: memref<1x1x16x32xbf16, #tpu.memory_space<vmem>>, %arg3: memref<1024x32xf32, #tpu.memory_space<vmem>>, %arg4: memref<1024x32xf32, #tpu.memory_space<vmem>>, %arg5: memref<1x16x64x32xf32, #tpu.memory_space<vmem>>) attributes {dimension_semantics = [#tpu.dimension_semantics<parallel>], iteration_bounds = array<i64: 2>, scalar_prefetch = 0 : i64, scratch_operands = 0 : i64, tpu.core_type = #tpu.core_type<tc>, window_params = [{transform_indices = @transform_0, window_bounds = array<i64: 1, 16, 64, 16>}, {pipeline_mode = #tpu.pipeline_mode<synchronous>, transform_indices = @transform_1, window_bounds = array<i64: 1, 1, 16, 32>}, {pipeline_mode = #tpu.pipeline_mode<synchronous>, transform_indices = @transform_2, window_bounds = array<i64: 1024, 32>}, {pipeline_mode = #tpu.pipeline_mode<synchronous>, transform_indices = @transform_3, window_bounds = array<i64: 1024, 32>}, {transform_indices = @transform_4, window_bounds = array<i64: 1, 16, 64, 32>}]} {
    %c0 = arith.constant 0 : index
    %c0_0 = arith.constant 0 : index
    %c0_1 = arith.constant 0 : index
    %c0_2 = arith.constant 0 : index
    %0 = vector.load %arg1[%c0, %c0_0, %c0_1, %c0_2] : memref<1x16x64x16xf32, #tpu.memory_space<vmem>>, vector<1x16x64x16xf32>
    %1 = vector.shape_cast %0 : vector<1x16x64x16xf32> to vector<16x64x16xf32>
    %2 = vector.shape_cast %1 : vector<16x64x16xf32> to vector<1024x16xf32>
    %3 = arith.truncf %2 : vector<1024x16xf32> to vector<1024x16xbf16>
    %c0_3 = arith.constant 0 : index
    %c0_4 = arith.constant 0 : index
    %c0_5 = arith.constant 0 : index
    %c0_6 = arith.constant 0 : index
    %4 = vector.load %arg2[%c0_3, %c0_4, %c0_5, %c0_6] : memref<1x1x16x32xbf16, #tpu.memory_space<vmem>>, vector<1x1x16x32xbf16>
    %5 = vector.shape_cast %4 : vector<1x1x16x32xbf16> to vector<16x32xbf16>
    %cst = arith.constant dense<0.000000e+00> : vector<1024x32xf32>
    %6 = tpu.matmul %3, %5, %cst {dimension_numbers = #tpu.dot_dimension_numbers<[1], [0], [0], [1], [0, 0, 1, 1], [], []>} : vector<1024x16xbf16>, vector<16x32xbf16>, vector<1024x32xf32> -> vector<1024x32xf32>
    %cst_7 = arith.constant dense<0.000000e+00> : vector<32xf32>
    %7 = vector.multi_reduction <add>, %6, %cst_7 [0] : vector<1024x32xf32> to vector<32xf32>
    %8 = vector.shape_cast %7 : vector<32xf32> to vector<1x32xf32>
    %cst_8 = arith.constant dense<0.000000e+00> : vector<1xf32>
    %9 = vector.multi_reduction <add>, %8, %cst_8 [1] : vector<1x32xf32> to vector<1xf32>
    %10 = vector.shape_cast %9 : vector<1xf32> to vector<1x1xf32>
    %cst_9 = arith.constant 3.276800e+04 : f32
    %11 = vector.broadcast %cst_9 : f32 to vector<1x1xf32>
    %12 = arith.divf %10, %11 : vector<1x1xf32>
    %13 = vector.broadcast %12 : vector<1x1xf32> to vector<1024x32xf32>
    %14 = arith.subf %6, %13 : vector<1024x32xf32>
    %15 = arith.mulf %14, %14 : vector<1024x32xf32>
    %cst_10 = arith.constant dense<0.000000e+00> : vector<32xf32>
    %16 = vector.multi_reduction <add>, %15, %cst_10 [0] : vector<1024x32xf32> to vector<32xf32>
    %17 = vector.shape_cast %16 : vector<32xf32> to vector<1x32xf32>
    %cst_11 = arith.constant dense<0.000000e+00> : vector<1xf32>
    %18 = vector.multi_reduction <add>, %17, %cst_11 [1] : vector<1x32xf32> to vector<1xf32>
    %19 = vector.shape_cast %18 : vector<1xf32> to vector<1x1xf32>
    %cst_12 = arith.constant 3.276800e+04 : f32
    %20 = vector.broadcast %cst_12 : f32 to vector<1x1xf32>
    %21 = arith.divf %19, %20 : vector<1x1xf32>
    %cst_13 = arith.constant 9.99999974E-6 : f32
    %22 = vector.broadcast %cst_13 : f32 to vector<1x1xf32>
    %23 = arith.addf %21, %22 : vector<1x1xf32>
    %24 = math.rsqrt %23 : vector<1x1xf32>
    %25 = vector.broadcast %24 : vector<1x1xf32> to vector<1024x32xf32>
    %26 = arith.mulf %14, %25 : vector<1024x32xf32>
    %c0_14 = arith.constant 0 : index
    %c0_15 = arith.constant 0 : index
    %27 = vector.load %arg3[%c0_14, %c0_15] : memref<1024x32xf32, #tpu.memory_space<vmem>>, vector<1024x32xf32>
    %28 = arith.mulf %26, %27 : vector<1024x32xf32>
    %c0_16 = arith.constant 0 : index
    %c0_17 = arith.constant 0 : index
    %29 = vector.load %arg4[%c0_16, %c0_17] : memref<1024x32xf32, #tpu.memory_space<vmem>>, vector<1024x32xf32>
    %30 = arith.addf %28, %29 : vector<1024x32xf32>
    %cst_18 = arith.constant 0.000000e+00 : f32
    %31 = vector.broadcast %cst_18 : f32 to vector<1024x32xf32>
    %32 = arith.cmpf oge, %30, %31 : vector<1024x32xf32>
    %cst_19 = arith.constant 2.000000e-01 : f32
    %33 = vector.broadcast %cst_19 : f32 to vector<1024x32xf32>
    %34 = arith.mulf %33, %30 : vector<1024x32xf32>
    %35 = arith.select %32, %30, %34 : vector<1024x32xi1>, vector<1024x32xf32>
    %36 = vector.shape_cast %35 : vector<1024x32xf32> to vector<1x16x64x32xf32>
    %c0_20 = arith.constant 0 : index
    %c0_21 = arith.constant 0 : index
    %c0_22 = arith.constant 0 : index
    %c0_23 = arith.constant 0 : index
    %37 = vector.load %arg5[%c0_20, %c0_21, %c0_22, %c0_23] : memref<1x16x64x32xf32, #tpu.memory_space<vmem>>, vector<1x16x64x32xf32>
    tpu.vector_store %arg5[%c0_20, %c0_21, %c0_22, %c0_23], %36 {strides = array<i32>} : memref<1x16x64x32xf32, #tpu.memory_space<vmem>>, vector<1x16x64x32xf32>,
    return
  }
  func.func @transform_0(%arg0: i32) -> (i32, i32, i32, i32) {
    %c0_i32 = arith.constant 0 : i32
    %c0_i32_0 = arith.constant 0 : i32
    %c0_i32_1 = arith.constant 0 : i32
    %c0_i32_2 = arith.constant 0 : i32
    return %arg0, %c0_i32, %c0_i32_0, %c0_i32_1 : i32, i32, i32, i32
  }
  func.func @transform_1(%arg0: i32) -> (i32, i32, i32, i32) {
    %c0_i32 = arith.constant 0 : i32
    %c0_i32_0 = arith.constant 0 : i32
    %c0_i32_1 = arith.constant 0 : i32
    %c0_i32_2 = arith.constant 0 : i32
    %c0_i32_3 = arith.constant 0 : i32
    return %c0_i32, %c0_i32_0, %c0_i32_1, %c0_i32_2 : i32, i32, i32, i32
  }
  func.func @transform_2(%arg0: i32) -> (i32, i32) {
    %c0_i32 = arith.constant 0 : i32
    %c0_i32_0 = arith.constant 0 : i32
    %c0_i32_1 = arith.constant 0 : i32
    return %c0_i32, %c0_i32_0 : i32, i32
  }
  func.func @transform_3(%arg0: i32) -> (i32, i32) {
    %c0_i32 = arith.constant 0 : i32
    %c0_i32_0 = arith.constant 0 : i32
    %c0_i32_1 = arith.constant 0 : i32
    return %c0_i32, %c0_i32_0 : i32, i32
  }
  func.func @transform_4(%arg0: i32) -> (i32, i32, i32, i32) {
    %c0_i32 = arith.constant 0 : i32
    %c0_i32_0 = arith.constant 0 : i32
    %c0_i32_1 = arith.constant 0 : i32
    %c0_i32_2 = arith.constant 0 : i32
    return %arg0, %c0_i32, %c0_i32_0, %c0_i32_1 : i32, i32, i32, i32
  }
}

module attributes {stable_mosaic.version = 11 : i64} {
  func.func @_conv_ln_lrelu_kernel(%arg0: i32, %arg1: memref<1x9x33x128xf32, #tpu.memory_space<vmem>>, %arg2: memref<2x2x128x64xbf16, #tpu.memory_space<vmem>>, %arg3: memref<256x64xf32, #tpu.memory_space<vmem>>, %arg4: memref<256x64xf32, #tpu.memory_space<vmem>>, %arg5: memref<1x8x32x64xf32, #tpu.memory_space<vmem>>) attributes {dimension_semantics = [#tpu.dimension_semantics<parallel>], iteration_bounds = array<i64: 2>, scalar_prefetch = 0 : i64, scratch_operands = 0 : i64, tpu.core_type = #tpu.core_type<tc>, window_params = [{transform_indices = @transform_0, window_bounds = array<i64: 1, 9, 33, 128>}, {pipeline_mode = #tpu.pipeline_mode<synchronous>, transform_indices = @transform_1, window_bounds = array<i64: 2, 2, 128, 64>}, {pipeline_mode = #tpu.pipeline_mode<synchronous>, transform_indices = @transform_2, window_bounds = array<i64: 256, 64>}, {pipeline_mode = #tpu.pipeline_mode<synchronous>, transform_indices = @transform_3, window_bounds = array<i64: 256, 64>}, {transform_indices = @transform_4, window_bounds = array<i64: 1, 8, 32, 64>}]} {
    %c0 = arith.constant 0 : index
    %c0_0 = arith.constant 0 : index
    %c0_1 = arith.constant 0 : index
    %c0_2 = arith.constant 0 : index
    %0 = vector.load %arg1[%c0, %c0_0, %c0_1, %c0_2] : memref<1x9x33x128xf32, #tpu.memory_space<vmem>>, vector<1x8x32x128xf32>
    %1 = vector.shape_cast %0 : vector<1x8x32x128xf32> to vector<8x32x128xf32>
    %2 = vector.shape_cast %1 : vector<8x32x128xf32> to vector<256x128xf32>
    %3 = arith.truncf %2 : vector<256x128xf32> to vector<256x128xbf16>
    %c0_3 = arith.constant 0 : index
    %c0_4 = arith.constant 0 : index
    %c0_5 = arith.constant 0 : index
    %c0_6 = arith.constant 0 : index
    %4 = vector.load %arg2[%c0_3, %c0_4, %c0_5, %c0_6] : memref<2x2x128x64xbf16, #tpu.memory_space<vmem>>, vector<1x1x128x64xbf16>
    %5 = vector.shape_cast %4 : vector<1x1x128x64xbf16> to vector<128x64xbf16>
    %cst = arith.constant dense<0.000000e+00> : vector<256x64xf32>
    %6 = tpu.matmul %3, %5, %cst {dimension_numbers = #tpu.dot_dimension_numbers<[1], [0], [0], [1], [0, 0, 1, 1], [], []>} : vector<256x128xbf16>, vector<128x64xbf16>, vector<256x64xf32> -> vector<256x64xf32>
    %c0_7 = arith.constant 0 : index
    %c0_8 = arith.constant 0 : index
    %c1 = arith.constant 1 : index
    %c0_9 = arith.constant 0 : index
    %7 = vector.load %arg1[%c0_7, %c0_8, %c1, %c0_9] : memref<1x9x33x128xf32, #tpu.memory_space<vmem>>, vector<1x8x32x128xf32>
    %8 = vector.shape_cast %7 : vector<1x8x32x128xf32> to vector<8x32x128xf32>
    %9 = vector.shape_cast %8 : vector<8x32x128xf32> to vector<256x128xf32>
    %10 = arith.truncf %9 : vector<256x128xf32> to vector<256x128xbf16>
    %c0_10 = arith.constant 0 : index
    %c1_11 = arith.constant 1 : index
    %c0_12 = arith.constant 0 : index
    %c0_13 = arith.constant 0 : index
    %11 = vector.load %arg2[%c0_10, %c1_11, %c0_12, %c0_13] : memref<2x2x128x64xbf16, #tpu.memory_space<vmem>>, vector<1x1x128x64xbf16>
    %12 = vector.shape_cast %11 : vector<1x1x128x64xbf16> to vector<128x64xbf16>
    %cst_14 = arith.constant dense<0.000000e+00> : vector<256x64xf32>
    %13 = tpu.matmul %10, %12, %cst_14 {dimension_numbers = #tpu.dot_dimension_numbers<[1], [0], [0], [1], [0, 0, 1, 1], [], []>} : vector<256x128xbf16>, vector<128x64xbf16>, vector<256x64xf32> -> vector<256x64xf32>
    %14 = arith.addf %6, %13 : vector<256x64xf32>
    %c0_15 = arith.constant 0 : index
    %c1_16 = arith.constant 1 : index
    %c0_17 = arith.constant 0 : index
    %c0_18 = arith.constant 0 : index
    %15 = vector.load %arg1[%c0_15, %c1_16, %c0_17, %c0_18] : memref<1x9x33x128xf32, #tpu.memory_space<vmem>>, vector<1x8x32x128xf32>
    %16 = vector.shape_cast %15 : vector<1x8x32x128xf32> to vector<8x32x128xf32>
    %17 = vector.shape_cast %16 : vector<8x32x128xf32> to vector<256x128xf32>
    %18 = arith.truncf %17 : vector<256x128xf32> to vector<256x128xbf16>
    %c1_19 = arith.constant 1 : index
    %c0_20 = arith.constant 0 : index
    %c0_21 = arith.constant 0 : index
    %c0_22 = arith.constant 0 : index
    %19 = vector.load %arg2[%c1_19, %c0_20, %c0_21, %c0_22] : memref<2x2x128x64xbf16, #tpu.memory_space<vmem>>, vector<1x1x128x64xbf16>
    %20 = vector.shape_cast %19 : vector<1x1x128x64xbf16> to vector<128x64xbf16>
    %cst_23 = arith.constant dense<0.000000e+00> : vector<256x64xf32>
    %21 = tpu.matmul %18, %20, %cst_23 {dimension_numbers = #tpu.dot_dimension_numbers<[1], [0], [0], [1], [0, 0, 1, 1], [], []>} : vector<256x128xbf16>, vector<128x64xbf16>, vector<256x64xf32> -> vector<256x64xf32>
    %22 = arith.addf %14, %21 : vector<256x64xf32>
    %c0_24 = arith.constant 0 : index
    %c1_25 = arith.constant 1 : index
    %c1_26 = arith.constant 1 : index
    %c0_27 = arith.constant 0 : index
    %23 = vector.load %arg1[%c0_24, %c1_25, %c1_26, %c0_27] : memref<1x9x33x128xf32, #tpu.memory_space<vmem>>, vector<1x8x32x128xf32>
    %24 = vector.shape_cast %23 : vector<1x8x32x128xf32> to vector<8x32x128xf32>
    %25 = vector.shape_cast %24 : vector<8x32x128xf32> to vector<256x128xf32>
    %26 = arith.truncf %25 : vector<256x128xf32> to vector<256x128xbf16>
    %c1_28 = arith.constant 1 : index
    %c1_29 = arith.constant 1 : index
    %c0_30 = arith.constant 0 : index
    %c0_31 = arith.constant 0 : index
    %27 = vector.load %arg2[%c1_28, %c1_29, %c0_30, %c0_31] : memref<2x2x128x64xbf16, #tpu.memory_space<vmem>>, vector<1x1x128x64xbf16>
    %28 = vector.shape_cast %27 : vector<1x1x128x64xbf16> to vector<128x64xbf16>
    %cst_32 = arith.constant dense<0.000000e+00> : vector<256x64xf32>
    %29 = tpu.matmul %26, %28, %cst_32 {dimension_numbers = #tpu.dot_dimension_numbers<[1], [0], [0], [1], [0, 0, 1, 1], [], []>} : vector<256x128xbf16>, vector<128x64xbf16>, vector<256x64xf32> -> vector<256x64xf32>
    %30 = arith.addf %22, %29 : vector<256x64xf32>
    %cst_33 = arith.constant dense<0.000000e+00> : vector<64xf32>
    %31 = vector.multi_reduction <add>, %30, %cst_33 [0] : vector<256x64xf32> to vector<64xf32>
    %32 = vector.shape_cast %31 : vector<64xf32> to vector<1x64xf32>
    %cst_34 = arith.constant dense<0.000000e+00> : vector<1xf32>
    %33 = vector.multi_reduction <add>, %32, %cst_34 [1] : vector<1x64xf32> to vector<1xf32>
    %34 = vector.shape_cast %33 : vector<1xf32> to vector<1x1xf32>
    %cst_35 = arith.constant 1.638400e+04 : f32
    %35 = vector.broadcast %cst_35 : f32 to vector<1x1xf32>
    %36 = arith.divf %34, %35 : vector<1x1xf32>
    %37 = vector.broadcast %36 : vector<1x1xf32> to vector<256x64xf32>
    %38 = arith.subf %30, %37 : vector<256x64xf32>
    %39 = arith.mulf %38, %38 : vector<256x64xf32>
    %cst_36 = arith.constant dense<0.000000e+00> : vector<64xf32>
    %40 = vector.multi_reduction <add>, %39, %cst_36 [0] : vector<256x64xf32> to vector<64xf32>
    %41 = vector.shape_cast %40 : vector<64xf32> to vector<1x64xf32>
    %cst_37 = arith.constant dense<0.000000e+00> : vector<1xf32>
    %42 = vector.multi_reduction <add>, %41, %cst_37 [1] : vector<1x64xf32> to vector<1xf32>
    %43 = vector.shape_cast %42 : vector<1xf32> to vector<1x1xf32>
    %cst_38 = arith.constant 1.638400e+04 : f32
    %44 = vector.broadcast %cst_38 : f32 to vector<1x1xf32>
    %45 = arith.divf %43, %44 : vector<1x1xf32>
    %cst_39 = arith.constant 9.99999974E-6 : f32
    %46 = vector.broadcast %cst_39 : f32 to vector<1x1xf32>
    %47 = arith.addf %45, %46 : vector<1x1xf32>
    %48 = math.rsqrt %47 : vector<1x1xf32>
    %49 = vector.broadcast %48 : vector<1x1xf32> to vector<256x64xf32>
    %50 = arith.mulf %38, %49 : vector<256x64xf32>
    %c0_40 = arith.constant 0 : index
    %c0_41 = arith.constant 0 : index
    %51 = vector.load %arg3[%c0_40, %c0_41] : memref<256x64xf32, #tpu.memory_space<vmem>>, vector<256x64xf32>
    %52 = arith.mulf %50, %51 : vector<256x64xf32>
    %c0_42 = arith.constant 0 : index
    %c0_43 = arith.constant 0 : index
    %53 = vector.load %arg4[%c0_42, %c0_43] : memref<256x64xf32, #tpu.memory_space<vmem>>, vector<256x64xf32>
    %54 = arith.addf %52, %53 : vector<256x64xf32>
    %cst_44 = arith.constant 0.000000e+00 : f32
    %55 = vector.broadcast %cst_44 : f32 to vector<256x64xf32>
    %56 = arith.cmpf oge, %54, %55 : vector<256x64xf32>
    %cst_45 = arith.constant 2.000000e-01 : f32
    %57 = vector.broadcast %cst_45 : f32 to vector<256x64xf32>
    %58 = arith.mulf %57, %54 : vector<256x64xf32>
    %59 = arith.select %56, %54, %58 : vector<256x64xi1>, vector<256x64xf32>
    %60 = vector.shape_cast %59 : vector<256x64xf32> to vector<1x8x32x64xf32>
    %c0_46 = arith.constant 0 : index
    %c0_47 = arith.constant 0 : index
    %c0_48 = arith.constant 0 : index
    %c0_49 = arith.constant 0 : index
    %61 = vector.load %arg5[%c0_46, %c0_47, %c0_48, %c0_49] : memref<1x8x32x64xf32, #tpu.memory_space<vmem>>, vector<1x8x32x64xf32>
    tpu.vector_store %arg5[%c0_46, %c0_47, %c0_48, %c0_49], %60 {strides = array<i32>} : memref<1x8x32x64xf32, #tpu.memory_space<vmem>>, vector<1x8x32x64xf32>,
    return
  }
  func.func @transform_0(%arg0: i32) -> (i32, i32, i32, i32) {
    %c0_i32 = arith.constant 0 : i32
    %c0_i32_0 = arith.constant 0 : i32
    %c0_i32_1 = arith.constant 0 : i32
    %c0_i32_2 = arith.constant 0 : i32
    return %arg0, %c0_i32, %c0_i32_0, %c0_i32_1 : i32, i32, i32, i32
  }
  func.func @transform_1(%arg0: i32) -> (i32, i32, i32, i32) {
    %c0_i32 = arith.constant 0 : i32
    %c0_i32_0 = arith.constant 0 : i32
    %c0_i32_1 = arith.constant 0 : i32
    %c0_i32_2 = arith.constant 0 : i32
    %c0_i32_3 = arith.constant 0 : i32
    return %c0_i32, %c0_i32_0, %c0_i32_1, %c0_i32_2 : i32, i32, i32, i32
  }
  func.func @transform_2(%arg0: i32) -> (i32, i32) {
    %c0_i32 = arith.constant 0 : i32
    %c0_i32_0 = arith.constant 0 : i32
    %c0_i32_1 = arith.constant 0 : i32
    return %c0_i32, %c0_i32_0 : i32, i32
  }
  func.func @transform_3(%arg0: i32) -> (i32, i32) {
    %c0_i32 = arith.constant 0 : i32
    %c0_i32_0 = arith.constant 0 : i32
    %c0_i32_1 = arith.constant 0 : i32
    return %c0_i32, %c0_i32_0 : i32, i32
  }
  func.func @transform_4(%arg0: i32) -> (i32, i32, i32, i32) {
    %c0_i32 = arith.constant 0 : i32
    %c0_i32_0 = arith.constant 0 : i32
    %c0_i32_1 = arith.constant 0 : i32
    %c0_i32_2 = arith.constant 0 : i32
    return %arg0, %c0_i32, %c0_i32_0, %c0_i32_1 : i32, i32, i32, i32
  }
}

module attributes {stable_mosaic.version = 11 : i64} {
  func.func @_conv_ln_lrelu_kernel(%arg0: i32, %arg1: memref<1x5x17x256xf32, #tpu.memory_space<vmem>>, %arg2: memref<2x2x256x128xbf16, #tpu.memory_space<vmem>>, %arg3: memref<64x128xf32, #tpu.memory_space<vmem>>, %arg4: memref<64x128xf32, #tpu.memory_space<vmem>>, %arg5: memref<1x4x16x128xf32, #tpu.memory_space<vmem>>) attributes {dimension_semantics = [#tpu.dimension_semantics<parallel>], iteration_bounds = array<i64: 2>, scalar_prefetch = 0 : i64, scratch_operands = 0 : i64, tpu.core_type = #tpu.core_type<tc>, window_params = [{transform_indices = @transform_0, window_bounds = array<i64: 1, 5, 17, 256>}, {pipeline_mode = #tpu.pipeline_mode<synchronous>, transform_indices = @transform_1, window_bounds = array<i64: 2, 2, 256, 128>}, {pipeline_mode = #tpu.pipeline_mode<synchronous>, transform_indices = @transform_2, window_bounds = array<i64: 64, 128>}, {pipeline_mode = #tpu.pipeline_mode<synchronous>, transform_indices = @transform_3, window_bounds = array<i64: 64, 128>}, {transform_indices = @transform_4, window_bounds = array<i64: 1, 4, 16, 128>}]} {
    %c0 = arith.constant 0 : index
    %c0_0 = arith.constant 0 : index
    %c0_1 = arith.constant 0 : index
    %c0_2 = arith.constant 0 : index
    %0 = vector.load %arg1[%c0, %c0_0, %c0_1, %c0_2] : memref<1x5x17x256xf32, #tpu.memory_space<vmem>>, vector<1x4x16x256xf32>
    %1 = vector.shape_cast %0 : vector<1x4x16x256xf32> to vector<4x16x256xf32>
    %2 = vector.shape_cast %1 : vector<4x16x256xf32> to vector<64x256xf32>
    %3 = arith.truncf %2 : vector<64x256xf32> to vector<64x256xbf16>
    %c0_3 = arith.constant 0 : index
    %c0_4 = arith.constant 0 : index
    %c0_5 = arith.constant 0 : index
    %c0_6 = arith.constant 0 : index
    %4 = vector.load %arg2[%c0_3, %c0_4, %c0_5, %c0_6] : memref<2x2x256x128xbf16, #tpu.memory_space<vmem>>, vector<1x1x256x128xbf16>
    %5 = vector.shape_cast %4 : vector<1x1x256x128xbf16> to vector<256x128xbf16>
    %cst = arith.constant dense<0.000000e+00> : vector<64x128xf32>
    %6 = tpu.matmul %3, %5, %cst {dimension_numbers = #tpu.dot_dimension_numbers<[1], [0], [0], [1], [0, 0, 1, 1], [], []>} : vector<64x256xbf16>, vector<256x128xbf16>, vector<64x128xf32> -> vector<64x128xf32>
    %c0_7 = arith.constant 0 : index
    %c0_8 = arith.constant 0 : index
    %c1 = arith.constant 1 : index
    %c0_9 = arith.constant 0 : index
    %7 = vector.load %arg1[%c0_7, %c0_8, %c1, %c0_9] : memref<1x5x17x256xf32, #tpu.memory_space<vmem>>, vector<1x4x16x256xf32>
    %8 = vector.shape_cast %7 : vector<1x4x16x256xf32> to vector<4x16x256xf32>
    %9 = vector.shape_cast %8 : vector<4x16x256xf32> to vector<64x256xf32>
    %10 = arith.truncf %9 : vector<64x256xf32> to vector<64x256xbf16>
    %c0_10 = arith.constant 0 : index
    %c1_11 = arith.constant 1 : index
    %c0_12 = arith.constant 0 : index
    %c0_13 = arith.constant 0 : index
    %11 = vector.load %arg2[%c0_10, %c1_11, %c0_12, %c0_13] : memref<2x2x256x128xbf16, #tpu.memory_space<vmem>>, vector<1x1x256x128xbf16>
    %12 = vector.shape_cast %11 : vector<1x1x256x128xbf16> to vector<256x128xbf16>
    %cst_14 = arith.constant dense<0.000000e+00> : vector<64x128xf32>
    %13 = tpu.matmul %10, %12, %cst_14 {dimension_numbers = #tpu.dot_dimension_numbers<[1], [0], [0], [1], [0, 0, 1, 1], [], []>} : vector<64x256xbf16>, vector<256x128xbf16>, vector<64x128xf32> -> vector<64x128xf32>
    %14 = arith.addf %6, %13 : vector<64x128xf32>
    %c0_15 = arith.constant 0 : index
    %c1_16 = arith.constant 1 : index
    %c0_17 = arith.constant 0 : index
    %c0_18 = arith.constant 0 : index
    %15 = vector.load %arg1[%c0_15, %c1_16, %c0_17, %c0_18] : memref<1x5x17x256xf32, #tpu.memory_space<vmem>>, vector<1x4x16x256xf32>
    %16 = vector.shape_cast %15 : vector<1x4x16x256xf32> to vector<4x16x256xf32>
    %17 = vector.shape_cast %16 : vector<4x16x256xf32> to vector<64x256xf32>
    %18 = arith.truncf %17 : vector<64x256xf32> to vector<64x256xbf16>
    %c1_19 = arith.constant 1 : index
    %c0_20 = arith.constant 0 : index
    %c0_21 = arith.constant 0 : index
    %c0_22 = arith.constant 0 : index
    %19 = vector.load %arg2[%c1_19, %c0_20, %c0_21, %c0_22] : memref<2x2x256x128xbf16, #tpu.memory_space<vmem>>, vector<1x1x256x128xbf16>
    %20 = vector.shape_cast %19 : vector<1x1x256x128xbf16> to vector<256x128xbf16>
    %cst_23 = arith.constant dense<0.000000e+00> : vector<64x128xf32>
    %21 = tpu.matmul %18, %20, %cst_23 {dimension_numbers = #tpu.dot_dimension_numbers<[1], [0], [0], [1], [0, 0, 1, 1], [], []>} : vector<64x256xbf16>, vector<256x128xbf16>, vector<64x128xf32> -> vector<64x128xf32>
    %22 = arith.addf %14, %21 : vector<64x128xf32>
    %c0_24 = arith.constant 0 : index
    %c1_25 = arith.constant 1 : index
    %c1_26 = arith.constant 1 : index
    %c0_27 = arith.constant 0 : index
    %23 = vector.load %arg1[%c0_24, %c1_25, %c1_26, %c0_27] : memref<1x5x17x256xf32, #tpu.memory_space<vmem>>, vector<1x4x16x256xf32>
    %24 = vector.shape_cast %23 : vector<1x4x16x256xf32> to vector<4x16x256xf32>
    %25 = vector.shape_cast %24 : vector<4x16x256xf32> to vector<64x256xf32>
    %26 = arith.truncf %25 : vector<64x256xf32> to vector<64x256xbf16>
    %c1_28 = arith.constant 1 : index
    %c1_29 = arith.constant 1 : index
    %c0_30 = arith.constant 0 : index
    %c0_31 = arith.constant 0 : index
    %27 = vector.load %arg2[%c1_28, %c1_29, %c0_30, %c0_31] : memref<2x2x256x128xbf16, #tpu.memory_space<vmem>>, vector<1x1x256x128xbf16>
    %28 = vector.shape_cast %27 : vector<1x1x256x128xbf16> to vector<256x128xbf16>
    %cst_32 = arith.constant dense<0.000000e+00> : vector<64x128xf32>
    %29 = tpu.matmul %26, %28, %cst_32 {dimension_numbers = #tpu.dot_dimension_numbers<[1], [0], [0], [1], [0, 0, 1, 1], [], []>} : vector<64x256xbf16>, vector<256x128xbf16>, vector<64x128xf32> -> vector<64x128xf32>
    %30 = arith.addf %22, %29 : vector<64x128xf32>
    %cst_33 = arith.constant dense<0.000000e+00> : vector<128xf32>
    %31 = vector.multi_reduction <add>, %30, %cst_33 [0] : vector<64x128xf32> to vector<128xf32>
    %32 = vector.shape_cast %31 : vector<128xf32> to vector<1x128xf32>
    %cst_34 = arith.constant dense<0.000000e+00> : vector<1xf32>
    %33 = vector.multi_reduction <add>, %32, %cst_34 [1] : vector<1x128xf32> to vector<1xf32>
    %34 = vector.shape_cast %33 : vector<1xf32> to vector<1x1xf32>
    %cst_35 = arith.constant 8.192000e+03 : f32
    %35 = vector.broadcast %cst_35 : f32 to vector<1x1xf32>
    %36 = arith.divf %34, %35 : vector<1x1xf32>
    %37 = vector.broadcast %36 : vector<1x1xf32> to vector<64x128xf32>
    %38 = arith.subf %30, %37 : vector<64x128xf32>
    %39 = arith.mulf %38, %38 : vector<64x128xf32>
    %cst_36 = arith.constant dense<0.000000e+00> : vector<128xf32>
    %40 = vector.multi_reduction <add>, %39, %cst_36 [0] : vector<64x128xf32> to vector<128xf32>
    %41 = vector.shape_cast %40 : vector<128xf32> to vector<1x128xf32>
    %cst_37 = arith.constant dense<0.000000e+00> : vector<1xf32>
    %42 = vector.multi_reduction <add>, %41, %cst_37 [1] : vector<1x128xf32> to vector<1xf32>
    %43 = vector.shape_cast %42 : vector<1xf32> to vector<1x1xf32>
    %cst_38 = arith.constant 8.192000e+03 : f32
    %44 = vector.broadcast %cst_38 : f32 to vector<1x1xf32>
    %45 = arith.divf %43, %44 : vector<1x1xf32>
    %cst_39 = arith.constant 9.99999974E-6 : f32
    %46 = vector.broadcast %cst_39 : f32 to vector<1x1xf32>
    %47 = arith.addf %45, %46 : vector<1x1xf32>
    %48 = math.rsqrt %47 : vector<1x1xf32>
    %49 = vector.broadcast %48 : vector<1x1xf32> to vector<64x128xf32>
    %50 = arith.mulf %38, %49 : vector<64x128xf32>
    %c0_40 = arith.constant 0 : index
    %c0_41 = arith.constant 0 : index
    %51 = vector.load %arg3[%c0_40, %c0_41] : memref<64x128xf32, #tpu.memory_space<vmem>>, vector<64x128xf32>
    %52 = arith.mulf %50, %51 : vector<64x128xf32>
    %c0_42 = arith.constant 0 : index
    %c0_43 = arith.constant 0 : index
    %53 = vector.load %arg4[%c0_42, %c0_43] : memref<64x128xf32, #tpu.memory_space<vmem>>, vector<64x128xf32>
    %54 = arith.addf %52, %53 : vector<64x128xf32>
    %cst_44 = arith.constant 0.000000e+00 : f32
    %55 = vector.broadcast %cst_44 : f32 to vector<64x128xf32>
    %56 = arith.cmpf oge, %54, %55 : vector<64x128xf32>
    %cst_45 = arith.constant 2.000000e-01 : f32
    %57 = vector.broadcast %cst_45 : f32 to vector<64x128xf32>
    %58 = arith.mulf %57, %54 : vector<64x128xf32>
    %59 = arith.select %56, %54, %58 : vector<64x128xi1>, vector<64x128xf32>
    %60 = vector.shape_cast %59 : vector<64x128xf32> to vector<1x4x16x128xf32>
    %c0_46 = arith.constant 0 : index
    %c0_47 = arith.constant 0 : index
    %c0_48 = arith.constant 0 : index
    %c0_49 = arith.constant 0 : index
    %61 = vector.load %arg5[%c0_46, %c0_47, %c0_48, %c0_49] : memref<1x4x16x128xf32, #tpu.memory_space<vmem>>, vector<1x4x16x128xf32>
    tpu.vector_store %arg5[%c0_46, %c0_47, %c0_48, %c0_49], %60 {strides = array<i32>} : memref<1x4x16x128xf32, #tpu.memory_space<vmem>>, vector<1x4x16x128xf32>,
    return
  }
  func.func @transform_0(%arg0: i32) -> (i32, i32, i32, i32) {
    %c0_i32 = arith.constant 0 : i32
    %c0_i32_0 = arith.constant 0 : i32
    %c0_i32_1 = arith.constant 0 : i32
    %c0_i32_2 = arith.constant 0 : i32
    return %arg0, %c0_i32, %c0_i32_0, %c0_i32_1 : i32, i32, i32, i32
  }
  func.func @transform_1(%arg0: i32) -> (i32, i32, i32, i32) {
    %c0_i32 = arith.constant 0 : i32
    %c0_i32_0 = arith.constant 0 : i32
    %c0_i32_1 = arith.constant 0 : i32
    %c0_i32_2 = arith.constant 0 : i32
    %c0_i32_3 = arith.constant 0 : i32
    return %c0_i32, %c0_i32_0, %c0_i32_1, %c0_i32_2 : i32, i32, i32, i32
  }
  func.func @transform_2(%arg0: i32) -> (i32, i32) {
    %c0_i32 = arith.constant 0 : i32
    %c0_i32_0 = arith.constant 0 : i32
    %c0_i32_1 = arith.constant 0 : i32
    return %c0_i32, %c0_i32_0 : i32, i32
  }
  func.func @transform_3(%arg0: i32) -> (i32, i32) {
    %c0_i32 = arith.constant 0 : i32
    %c0_i32_0 = arith.constant 0 : i32
    %c0_i32_1 = arith.constant 0 : i32
    return %c0_i32, %c0_i32_0 : i32, i32
  }
  func.func @transform_4(%arg0: i32) -> (i32, i32, i32, i32) {
    %c0_i32 = arith.constant 0 : i32
    %c0_i32_0 = arith.constant 0 : i32
    %c0_i32_1 = arith.constant 0 : i32
    %c0_i32_2 = arith.constant 0 : i32
    return %arg0, %c0_i32, %c0_i32_0, %c0_i32_1 : i32, i32, i32, i32
  }
}

module attributes {stable_mosaic.version = 11 : i64} {
  func.func @_conv_head_kernel(%arg0: i32, %arg1: memref<1x4x16x128xf32, #tpu.memory_space<vmem>>, %arg2: memref<4x4x128x256xbf16, #tpu.memory_space<vmem>>, %arg3: memref<256x6xf32, #tpu.memory_space<vmem>>, %arg4: memref<1x6xf32, #tpu.memory_space<vmem>>, %arg5: memref<1x1x13x256xf32, #tpu.memory_space<vmem>>, %arg6: memref<1x1x6xf32, #tpu.memory_space<vmem>>) attributes {dimension_semantics = [#tpu.dimension_semantics<parallel>], iteration_bounds = array<i64: 2>, scalar_prefetch = 0 : i64, scratch_operands = 0 : i64, tpu.core_type = #tpu.core_type<tc>, window_params = [{transform_indices = @transform_0, window_bounds = array<i64: 1, 4, 16, 128>}, {pipeline_mode = #tpu.pipeline_mode<synchronous>, transform_indices = @transform_1, window_bounds = array<i64: 4, 4, 128, 256>}, {pipeline_mode = #tpu.pipeline_mode<synchronous>, transform_indices = @transform_2, window_bounds = array<i64: 256, 6>}, {pipeline_mode = #tpu.pipeline_mode<synchronous>, transform_indices = @transform_3, window_bounds = array<i64: 1, 6>}, {transform_indices = @transform_4, window_bounds = array<i64: 1, 1, 13, 256>}, {transform_indices = @transform_5, window_bounds = array<i64: 1, 1, 6>}]} {
    %c0 = arith.constant 0 : index
    %c0_0 = arith.constant 0 : index
    %c0_1 = arith.constant 0 : index
    %c0_2 = arith.constant 0 : index
    %0 = vector.load %arg1[%c0, %c0_0, %c0_1, %c0_2] : memref<1x4x16x128xf32, #tpu.memory_space<vmem>>, vector<1x1x13x128xf32>
    %1 = vector.shape_cast %0 : vector<1x1x13x128xf32> to vector<1x13x128xf32>
    %2 = vector.shape_cast %1 : vector<1x13x128xf32> to vector<13x128xf32>
    %3 = arith.truncf %2 : vector<13x128xf32> to vector<13x128xbf16>
    %c0_3 = arith.constant 0 : index
    %c0_4 = arith.constant 0 : index
    %c0_5 = arith.constant 0 : index
    %c0_6 = arith.constant 0 : index
    %4 = vector.load %arg2[%c0_3, %c0_4, %c0_5, %c0_6] : memref<4x4x128x256xbf16, #tpu.memory_space<vmem>>, vector<1x1x128x256xbf16>
    %5 = vector.shape_cast %4 : vector<1x1x128x256xbf16> to vector<128x256xbf16>
    %cst = arith.constant dense<0.000000e+00> : vector<13x256xf32>
    %6 = tpu.matmul %3, %5, %cst {dimension_numbers = #tpu.dot_dimension_numbers<[1], [0], [0], [1], [0, 0, 1, 1], [], []>} : vector<13x128xbf16>, vector<128x256xbf16>, vector<13x256xf32> -> vector<13x256xf32>
    %c0_7 = arith.constant 0 : index
    %c0_8 = arith.constant 0 : index
    %c1 = arith.constant 1 : index
    %c0_9 = arith.constant 0 : index
    %7 = vector.load %arg1[%c0_7, %c0_8, %c1, %c0_9] : memref<1x4x16x128xf32, #tpu.memory_space<vmem>>, vector<1x1x13x128xf32>
    %8 = vector.shape_cast %7 : vector<1x1x13x128xf32> to vector<1x13x128xf32>
    %9 = vector.shape_cast %8 : vector<1x13x128xf32> to vector<13x128xf32>
    %10 = arith.truncf %9 : vector<13x128xf32> to vector<13x128xbf16>
    %c0_10 = arith.constant 0 : index
    %c1_11 = arith.constant 1 : index
    %c0_12 = arith.constant 0 : index
    %c0_13 = arith.constant 0 : index
    %11 = vector.load %arg2[%c0_10, %c1_11, %c0_12, %c0_13] : memref<4x4x128x256xbf16, #tpu.memory_space<vmem>>, vector<1x1x128x256xbf16>
    %12 = vector.shape_cast %11 : vector<1x1x128x256xbf16> to vector<128x256xbf16>
    %cst_14 = arith.constant dense<0.000000e+00> : vector<13x256xf32>
    %13 = tpu.matmul %10, %12, %cst_14 {dimension_numbers = #tpu.dot_dimension_numbers<[1], [0], [0], [1], [0, 0, 1, 1], [], []>} : vector<13x128xbf16>, vector<128x256xbf16>, vector<13x256xf32> -> vector<13x256xf32>
    %14 = arith.addf %6, %13 : vector<13x256xf32>
    %c0_15 = arith.constant 0 : index
    %c0_16 = arith.constant 0 : index
    %c2 = arith.constant 2 : index
    %c0_17 = arith.constant 0 : index
    %15 = vector.load %arg1[%c0_15, %c0_16, %c2, %c0_17] : memref<1x4x16x128xf32, #tpu.memory_space<vmem>>, vector<1x1x13x128xf32>
    %16 = vector.shape_cast %15 : vector<1x1x13x128xf32> to vector<1x13x128xf32>
    %17 = vector.shape_cast %16 : vector<1x13x128xf32> to vector<13x128xf32>
    %18 = arith.truncf %17 : vector<13x128xf32> to vector<13x128xbf16>
    %c0_18 = arith.constant 0 : index
    %c2_19 = arith.constant 2 : index
    %c0_20 = arith.constant 0 : index
    %c0_21 = arith.constant 0 : index
    %19 = vector.load %arg2[%c0_18, %c2_19, %c0_20, %c0_21] : memref<4x4x128x256xbf16, #tpu.memory_space<vmem>>, vector<1x1x128x256xbf16>
    %20 = vector.shape_cast %19 : vector<1x1x128x256xbf16> to vector<128x256xbf16>
    %cst_22 = arith.constant dense<0.000000e+00> : vector<13x256xf32>
    %21 = tpu.matmul %18, %20, %cst_22 {dimension_numbers = #tpu.dot_dimension_numbers<[1], [0], [0], [1], [0, 0, 1, 1], [], []>} : vector<13x128xbf16>, vector<128x256xbf16>, vector<13x256xf32> -> vector<13x256xf32>
    %22 = arith.addf %14, %21 : vector<13x256xf32>
    %c0_23 = arith.constant 0 : index
    %c0_24 = arith.constant 0 : index
    %c3 = arith.constant 3 : index
    %c0_25 = arith.constant 0 : index
    %23 = vector.load %arg1[%c0_23, %c0_24, %c3, %c0_25] : memref<1x4x16x128xf32, #tpu.memory_space<vmem>>, vector<1x1x13x128xf32>
    %24 = vector.shape_cast %23 : vector<1x1x13x128xf32> to vector<1x13x128xf32>
    %25 = vector.shape_cast %24 : vector<1x13x128xf32> to vector<13x128xf32>
    %26 = arith.truncf %25 : vector<13x128xf32> to vector<13x128xbf16>
    %c0_26 = arith.constant 0 : index
    %c3_27 = arith.constant 3 : index
    %c0_28 = arith.constant 0 : index
    %c0_29 = arith.constant 0 : index
    %27 = vector.load %arg2[%c0_26, %c3_27, %c0_28, %c0_29] : memref<4x4x128x256xbf16, #tpu.memory_space<vmem>>, vector<1x1x128x256xbf16>
    %28 = vector.shape_cast %27 : vector<1x1x128x256xbf16> to vector<128x256xbf16>
    %cst_30 = arith.constant dense<0.000000e+00> : vector<13x256xf32>
    %29 = tpu.matmul %26, %28, %cst_30 {dimension_numbers = #tpu.dot_dimension_numbers<[1], [0], [0], [1], [0, 0, 1, 1], [], []>} : vector<13x128xbf16>, vector<128x256xbf16>, vector<13x256xf32> -> vector<13x256xf32>
    %30 = arith.addf %22, %29 : vector<13x256xf32>
    %c0_31 = arith.constant 0 : index
    %c1_32 = arith.constant 1 : index
    %c0_33 = arith.constant 0 : index
    %c0_34 = arith.constant 0 : index
    %31 = vector.load %arg1[%c0_31, %c1_32, %c0_33, %c0_34] : memref<1x4x16x128xf32, #tpu.memory_space<vmem>>, vector<1x1x13x128xf32>
    %32 = vector.shape_cast %31 : vector<1x1x13x128xf32> to vector<1x13x128xf32>
    %33 = vector.shape_cast %32 : vector<1x13x128xf32> to vector<13x128xf32>
    %34 = arith.truncf %33 : vector<13x128xf32> to vector<13x128xbf16>
    %c1_35 = arith.constant 1 : index
    %c0_36 = arith.constant 0 : index
    %c0_37 = arith.constant 0 : index
    %c0_38 = arith.constant 0 : index
    %35 = vector.load %arg2[%c1_35, %c0_36, %c0_37, %c0_38] : memref<4x4x128x256xbf16, #tpu.memory_space<vmem>>, vector<1x1x128x256xbf16>
    %36 = vector.shape_cast %35 : vector<1x1x128x256xbf16> to vector<128x256xbf16>
    %cst_39 = arith.constant dense<0.000000e+00> : vector<13x256xf32>
    %37 = tpu.matmul %34, %36, %cst_39 {dimension_numbers = #tpu.dot_dimension_numbers<[1], [0], [0], [1], [0, 0, 1, 1], [], []>} : vector<13x128xbf16>, vector<128x256xbf16>, vector<13x256xf32> -> vector<13x256xf32>
    %38 = arith.addf %30, %37 : vector<13x256xf32>
    %c0_40 = arith.constant 0 : index
    %c1_41 = arith.constant 1 : index
    %c1_42 = arith.constant 1 : index
    %c0_43 = arith.constant 0 : index
    %39 = vector.load %arg1[%c0_40, %c1_41, %c1_42, %c0_43] : memref<1x4x16x128xf32, #tpu.memory_space<vmem>>, vector<1x1x13x128xf32>
    %40 = vector.shape_cast %39 : vector<1x1x13x128xf32> to vector<1x13x128xf32>
    %41 = vector.shape_cast %40 : vector<1x13x128xf32> to vector<13x128xf32>
    %42 = arith.truncf %41 : vector<13x128xf32> to vector<13x128xbf16>
    %c1_44 = arith.constant 1 : index
    %c1_45 = arith.constant 1 : index
    %c0_46 = arith.constant 0 : index
    %c0_47 = arith.constant 0 : index
    %43 = vector.load %arg2[%c1_44, %c1_45, %c0_46, %c0_47] : memref<4x4x128x256xbf16, #tpu.memory_space<vmem>>, vector<1x1x128x256xbf16>
    %44 = vector.shape_cast %43 : vector<1x1x128x256xbf16> to vector<128x256xbf16>
    %cst_48 = arith.constant dense<0.000000e+00> : vector<13x256xf32>
    %45 = tpu.matmul %42, %44, %cst_48 {dimension_numbers = #tpu.dot_dimension_numbers<[1], [0], [0], [1], [0, 0, 1, 1], [], []>} : vector<13x128xbf16>, vector<128x256xbf16>, vector<13x256xf32> -> vector<13x256xf32>
    %46 = arith.addf %38, %45 : vector<13x256xf32>
    %c0_49 = arith.constant 0 : index
    %c1_50 = arith.constant 1 : index
    %c2_51 = arith.constant 2 : index
    %c0_52 = arith.constant 0 : index
    %47 = vector.load %arg1[%c0_49, %c1_50, %c2_51, %c0_52] : memref<1x4x16x128xf32, #tpu.memory_space<vmem>>, vector<1x1x13x128xf32>
    %48 = vector.shape_cast %47 : vector<1x1x13x128xf32> to vector<1x13x128xf32>
    %49 = vector.shape_cast %48 : vector<1x13x128xf32> to vector<13x128xf32>
    %50 = arith.truncf %49 : vector<13x128xf32> to vector<13x128xbf16>
    %c1_53 = arith.constant 1 : index
    %c2_54 = arith.constant 2 : index
    %c0_55 = arith.constant 0 : index
    %c0_56 = arith.constant 0 : index
    %51 = vector.load %arg2[%c1_53, %c2_54, %c0_55, %c0_56] : memref<4x4x128x256xbf16, #tpu.memory_space<vmem>>, vector<1x1x128x256xbf16>
    %52 = vector.shape_cast %51 : vector<1x1x128x256xbf16> to vector<128x256xbf16>
    %cst_57 = arith.constant dense<0.000000e+00> : vector<13x256xf32>
    %53 = tpu.matmul %50, %52, %cst_57 {dimension_numbers = #tpu.dot_dimension_numbers<[1], [0], [0], [1], [0, 0, 1, 1], [], []>} : vector<13x128xbf16>, vector<128x256xbf16>, vector<13x256xf32> -> vector<13x256xf32>
    %54 = arith.addf %46, %53 : vector<13x256xf32>
    %c0_58 = arith.constant 0 : index
    %c1_59 = arith.constant 1 : index
    %c3_60 = arith.constant 3 : index
    %c0_61 = arith.constant 0 : index
    %55 = vector.load %arg1[%c0_58, %c1_59, %c3_60, %c0_61] : memref<1x4x16x128xf32, #tpu.memory_space<vmem>>, vector<1x1x13x128xf32>
    %56 = vector.shape_cast %55 : vector<1x1x13x128xf32> to vector<1x13x128xf32>
    %57 = vector.shape_cast %56 : vector<1x13x128xf32> to vector<13x128xf32>
    %58 = arith.truncf %57 : vector<13x128xf32> to vector<13x128xbf16>
    %c1_62 = arith.constant 1 : index
    %c3_63 = arith.constant 3 : index
    %c0_64 = arith.constant 0 : index
    %c0_65 = arith.constant 0 : index
    %59 = vector.load %arg2[%c1_62, %c3_63, %c0_64, %c0_65] : memref<4x4x128x256xbf16, #tpu.memory_space<vmem>>, vector<1x1x128x256xbf16>
    %60 = vector.shape_cast %59 : vector<1x1x128x256xbf16> to vector<128x256xbf16>
    %cst_66 = arith.constant dense<0.000000e+00> : vector<13x256xf32>
    %61 = tpu.matmul %58, %60, %cst_66 {dimension_numbers = #tpu.dot_dimension_numbers<[1], [0], [0], [1], [0, 0, 1, 1], [], []>} : vector<13x128xbf16>, vector<128x256xbf16>, vector<13x256xf32> -> vector<13x256xf32>
    %62 = arith.addf %54, %61 : vector<13x256xf32>
    %c0_67 = arith.constant 0 : index
    %c2_68 = arith.constant 2 : index
    %c0_69 = arith.constant 0 : index
    %c0_70 = arith.constant 0 : index
    %63 = vector.load %arg1[%c0_67, %c2_68, %c0_69, %c0_70] : memref<1x4x16x128xf32, #tpu.memory_space<vmem>>, vector<1x1x13x128xf32>
    %64 = vector.shape_cast %63 : vector<1x1x13x128xf32> to vector<1x13x128xf32>
    %65 = vector.shape_cast %64 : vector<1x13x128xf32> to vector<13x128xf32>
    %66 = arith.truncf %65 : vector<13x128xf32> to vector<13x128xbf16>
    %c2_71 = arith.constant 2 : index
    %c0_72 = arith.constant 0 : index
    %c0_73 = arith.constant 0 : index
    %c0_74 = arith.constant 0 : index
    %67 = vector.load %arg2[%c2_71, %c0_72, %c0_73, %c0_74] : memref<4x4x128x256xbf16, #tpu.memory_space<vmem>>, vector<1x1x128x256xbf16>
    %68 = vector.shape_cast %67 : vector<1x1x128x256xbf16> to vector<128x256xbf16>
    %cst_75 = arith.constant dense<0.000000e+00> : vector<13x256xf32>
    %69 = tpu.matmul %66, %68, %cst_75 {dimension_numbers = #tpu.dot_dimension_numbers<[1], [0], [0], [1], [0, 0, 1, 1], [], []>} : vector<13x128xbf16>, vector<128x256xbf16>, vector<13x256xf32> -> vector<13x256xf32>
    %70 = arith.addf %62, %69 : vector<13x256xf32>
    %c0_76 = arith.constant 0 : index
    %c2_77 = arith.constant 2 : index
    %c1_78 = arith.constant 1 : index
    %c0_79 = arith.constant 0 : index
    %71 = vector.load %arg1[%c0_76, %c2_77, %c1_78, %c0_79] : memref<1x4x16x128xf32, #tpu.memory_space<vmem>>, vector<1x1x13x128xf32>
    %72 = vector.shape_cast %71 : vector<1x1x13x128xf32> to vector<1x13x128xf32>
    %73 = vector.shape_cast %72 : vector<1x13x128xf32> to vector<13x128xf32>
    %74 = arith.truncf %73 : vector<13x128xf32> to vector<13x128xbf16>
    %c2_80 = arith.constant 2 : index
    %c1_81 = arith.constant 1 : index
    %c0_82 = arith.constant 0 : index
    %c0_83 = arith.constant 0 : index
    %75 = vector.load %arg2[%c2_80, %c1_81, %c0_82, %c0_83] : memref<4x4x128x256xbf16, #tpu.memory_space<vmem>>, vector<1x1x128x256xbf16>
    %76 = vector.shape_cast %75 : vector<1x1x128x256xbf16> to vector<128x256xbf16>
    %cst_84 = arith.constant dense<0.000000e+00> : vector<13x256xf32>
    %77 = tpu.matmul %74, %76, %cst_84 {dimension_numbers = #tpu.dot_dimension_numbers<[1], [0], [0], [1], [0, 0, 1, 1], [], []>} : vector<13x128xbf16>, vector<128x256xbf16>, vector<13x256xf32> -> vector<13x256xf32>
    %78 = arith.addf %70, %77 : vector<13x256xf32>
    %c0_85 = arith.constant 0 : index
    %c2_86 = arith.constant 2 : index
    %c2_87 = arith.constant 2 : index
    %c0_88 = arith.constant 0 : index
    %79 = vector.load %arg1[%c0_85, %c2_86, %c2_87, %c0_88] : memref<1x4x16x128xf32, #tpu.memory_space<vmem>>, vector<1x1x13x128xf32>
    %80 = vector.shape_cast %79 : vector<1x1x13x128xf32> to vector<1x13x128xf32>
    %81 = vector.shape_cast %80 : vector<1x13x128xf32> to vector<13x128xf32>
    %82 = arith.truncf %81 : vector<13x128xf32> to vector<13x128xbf16>
    %c2_89 = arith.constant 2 : index
    %c2_90 = arith.constant 2 : index
    %c0_91 = arith.constant 0 : index
    %c0_92 = arith.constant 0 : index
    %83 = vector.load %arg2[%c2_89, %c2_90, %c0_91, %c0_92] : memref<4x4x128x256xbf16, #tpu.memory_space<vmem>>, vector<1x1x128x256xbf16>
    %84 = vector.shape_cast %83 : vector<1x1x128x256xbf16> to vector<128x256xbf16>
    %cst_93 = arith.constant dense<0.000000e+00> : vector<13x256xf32>
    %85 = tpu.matmul %82, %84, %cst_93 {dimension_numbers = #tpu.dot_dimension_numbers<[1], [0], [0], [1], [0, 0, 1, 1], [], []>} : vector<13x128xbf16>, vector<128x256xbf16>, vector<13x256xf32> -> vector<13x256xf32>
    %86 = arith.addf %78, %85 : vector<13x256xf32>
    %c0_94 = arith.constant 0 : index
    %c2_95 = arith.constant 2 : index
    %c3_96 = arith.constant 3 : index
    %c0_97 = arith.constant 0 : index
    %87 = vector.load %arg1[%c0_94, %c2_95, %c3_96, %c0_97] : memref<1x4x16x128xf32, #tpu.memory_space<vmem>>, vector<1x1x13x128xf32>
    %88 = vector.shape_cast %87 : vector<1x1x13x128xf32> to vector<1x13x128xf32>
    %89 = vector.shape_cast %88 : vector<1x13x128xf32> to vector<13x128xf32>
    %90 = arith.truncf %89 : vector<13x128xf32> to vector<13x128xbf16>
    %c2_98 = arith.constant 2 : index
    %c3_99 = arith.constant 3 : index
    %c0_100 = arith.constant 0 : index
    %c0_101 = arith.constant 0 : index
    %91 = vector.load %arg2[%c2_98, %c3_99, %c0_100, %c0_101] : memref<4x4x128x256xbf16, #tpu.memory_space<vmem>>, vector<1x1x128x256xbf16>
    %92 = vector.shape_cast %91 : vector<1x1x128x256xbf16> to vector<128x256xbf16>
    %cst_102 = arith.constant dense<0.000000e+00> : vector<13x256xf32>
    %93 = tpu.matmul %90, %92, %cst_102 {dimension_numbers = #tpu.dot_dimension_numbers<[1], [0], [0], [1], [0, 0, 1, 1], [], []>} : vector<13x128xbf16>, vector<128x256xbf16>, vector<13x256xf32> -> vector<13x256xf32>
    %94 = arith.addf %86, %93 : vector<13x256xf32>
    %c0_103 = arith.constant 0 : index
    %c3_104 = arith.constant 3 : index
    %c0_105 = arith.constant 0 : index
    %c0_106 = arith.constant 0 : index
    %95 = vector.load %arg1[%c0_103, %c3_104, %c0_105, %c0_106] : memref<1x4x16x128xf32, #tpu.memory_space<vmem>>, vector<1x1x13x128xf32>
    %96 = vector.shape_cast %95 : vector<1x1x13x128xf32> to vector<1x13x128xf32>
    %97 = vector.shape_cast %96 : vector<1x13x128xf32> to vector<13x128xf32>
    %98 = arith.truncf %97 : vector<13x128xf32> to vector<13x128xbf16>
    %c3_107 = arith.constant 3 : index
    %c0_108 = arith.constant 0 : index
    %c0_109 = arith.constant 0 : index
    %c0_110 = arith.constant 0 : index
    %99 = vector.load %arg2[%c3_107, %c0_108, %c0_109, %c0_110] : memref<4x4x128x256xbf16, #tpu.memory_space<vmem>>, vector<1x1x128x256xbf16>
    %100 = vector.shape_cast %99 : vector<1x1x128x256xbf16> to vector<128x256xbf16>
    %cst_111 = arith.constant dense<0.000000e+00> : vector<13x256xf32>
    %101 = tpu.matmul %98, %100, %cst_111 {dimension_numbers = #tpu.dot_dimension_numbers<[1], [0], [0], [1], [0, 0, 1, 1], [], []>} : vector<13x128xbf16>, vector<128x256xbf16>, vector<13x256xf32> -> vector<13x256xf32>
    %102 = arith.addf %94, %101 : vector<13x256xf32>
    %c0_112 = arith.constant 0 : index
    %c3_113 = arith.constant 3 : index
    %c1_114 = arith.constant 1 : index
    %c0_115 = arith.constant 0 : index
    %103 = vector.load %arg1[%c0_112, %c3_113, %c1_114, %c0_115] : memref<1x4x16x128xf32, #tpu.memory_space<vmem>>, vector<1x1x13x128xf32>
    %104 = vector.shape_cast %103 : vector<1x1x13x128xf32> to vector<1x13x128xf32>
    %105 = vector.shape_cast %104 : vector<1x13x128xf32> to vector<13x128xf32>
    %106 = arith.truncf %105 : vector<13x128xf32> to vector<13x128xbf16>
    %c3_116 = arith.constant 3 : index
    %c1_117 = arith.constant 1 : index
    %c0_118 = arith.constant 0 : index
    %c0_119 = arith.constant 0 : index
    %107 = vector.load %arg2[%c3_116, %c1_117, %c0_118, %c0_119] : memref<4x4x128x256xbf16, #tpu.memory_space<vmem>>, vector<1x1x128x256xbf16>
    %108 = vector.shape_cast %107 : vector<1x1x128x256xbf16> to vector<128x256xbf16>
    %cst_120 = arith.constant dense<0.000000e+00> : vector<13x256xf32>
    %109 = tpu.matmul %106, %108, %cst_120 {dimension_numbers = #tpu.dot_dimension_numbers<[1], [0], [0], [1], [0, 0, 1, 1], [], []>} : vector<13x128xbf16>, vector<128x256xbf16>, vector<13x256xf32> -> vector<13x256xf32>
    %110 = arith.addf %102, %109 : vector<13x256xf32>
    %c0_121 = arith.constant 0 : index
    %c3_122 = arith.constant 3 : index
    %c2_123 = arith.constant 2 : index
    %c0_124 = arith.constant 0 : index
    %111 = vector.load %arg1[%c0_121, %c3_122, %c2_123, %c0_124] : memref<1x4x16x128xf32, #tpu.memory_space<vmem>>, vector<1x1x13x128xf32>
    %112 = vector.shape_cast %111 : vector<1x1x13x128xf32> to vector<1x13x128xf32>
    %113 = vector.shape_cast %112 : vector<1x13x128xf32> to vector<13x128xf32>
    %114 = arith.truncf %113 : vector<13x128xf32> to vector<13x128xbf16>
    %c3_125 = arith.constant 3 : index
    %c2_126 = arith.constant 2 : index
    %c0_127 = arith.constant 0 : index
    %c0_128 = arith.constant 0 : index
    %115 = vector.load %arg2[%c3_125, %c2_126, %c0_127, %c0_128] : memref<4x4x128x256xbf16, #tpu.memory_space<vmem>>, vector<1x1x128x256xbf16>
    %116 = vector.shape_cast %115 : vector<1x1x128x256xbf16> to vector<128x256xbf16>
    %cst_129 = arith.constant dense<0.000000e+00> : vector<13x256xf32>
    %117 = tpu.matmul %114, %116, %cst_129 {dimension_numbers = #tpu.dot_dimension_numbers<[1], [0], [0], [1], [0, 0, 1, 1], [], []>} : vector<13x128xbf16>, vector<128x256xbf16>, vector<13x256xf32> -> vector<13x256xf32>
    %118 = arith.addf %110, %117 : vector<13x256xf32>
    %c0_130 = arith.constant 0 : index
    %c3_131 = arith.constant 3 : index
    %c3_132 = arith.constant 3 : index
    %c0_133 = arith.constant 0 : index
    %119 = vector.load %arg1[%c0_130, %c3_131, %c3_132, %c0_133] : memref<1x4x16x128xf32, #tpu.memory_space<vmem>>, vector<1x1x13x128xf32>
    %120 = vector.shape_cast %119 : vector<1x1x13x128xf32> to vector<1x13x128xf32>
    %121 = vector.shape_cast %120 : vector<1x13x128xf32> to vector<13x128xf32>
    %122 = arith.truncf %121 : vector<13x128xf32> to vector<13x128xbf16>
    %c3_134 = arith.constant 3 : index
    %c3_135 = arith.constant 3 : index
    %c0_136 = arith.constant 0 : index
    %c0_137 = arith.constant 0 : index
    %123 = vector.load %arg2[%c3_134, %c3_135, %c0_136, %c0_137] : memref<4x4x128x256xbf16, #tpu.memory_space<vmem>>, vector<1x1x128x256xbf16>
    %124 = vector.shape_cast %123 : vector<1x1x128x256xbf16> to vector<128x256xbf16>
    %cst_138 = arith.constant dense<0.000000e+00> : vector<13x256xf32>
    %125 = tpu.matmul %122, %124, %cst_138 {dimension_numbers = #tpu.dot_dimension_numbers<[1], [0], [0], [1], [0, 0, 1, 1], [], []>} : vector<13x128xbf16>, vector<128x256xbf16>, vector<13x256xf32> -> vector<13x256xf32>
    %126 = arith.addf %118, %125 : vector<13x256xf32>
    %127 = vector.shape_cast %126 : vector<13x256xf32> to vector<1x1x13x256xf32>
    %c0_139 = arith.constant 0 : index
    %c0_140 = arith.constant 0 : index
    %c0_141 = arith.constant 0 : index
    %c0_142 = arith.constant 0 : index
    %128 = vector.load %arg5[%c0_139, %c0_140, %c0_141, %c0_142] : memref<1x1x13x256xf32, #tpu.memory_space<vmem>>, vector<1x1x13x256xf32>
    tpu.vector_store %arg5[%c0_139, %c0_140, %c0_141, %c0_142], %127 {strides = array<i32>} : memref<1x1x13x256xf32, #tpu.memory_space<vmem>>, vector<1x1x13x256xf32>,
    %cst_143 = arith.constant dense<0.000000e+00> : vector<256xf32>
    %129 = vector.multi_reduction <add>, %126, %cst_143 [0] : vector<13x256xf32> to vector<256xf32>
    %130 = vector.shape_cast %129 : vector<256xf32> to vector<1x256xf32>
    %cst_144 = arith.constant 1.300000e+01 : f32
    %131 = vector.broadcast %cst_144 : f32 to vector<1x256xf32>
    %132 = arith.divf %130, %131 : vector<1x256xf32>
    %c0_145 = arith.constant 0 : index
    %c0_146 = arith.constant 0 : index
    %133 = vector.load %arg3[%c0_145, %c0_146] : memref<256x6xf32, #tpu.memory_space<vmem>>, vector<256x6xf32>
    %cst_147 = arith.constant dense<0.000000e+00> : vector<1x6xf32>
    %134 = tpu.matmul %132, %133, %cst_147 {dimension_numbers = #tpu.dot_dimension_numbers<[1], [0], [0], [1], [0, 0, 1, 1], [], []>} : vector<1x256xf32>, vector<256x6xf32>, vector<1x6xf32> -> vector<1x6xf32>
    %c0_148 = arith.constant 0 : index
    %c0_149 = arith.constant 0 : index
    %135 = vector.load %arg4[%c0_148, %c0_149] : memref<1x6xf32, #tpu.memory_space<vmem>>, vector<1x6xf32>
    %136 = arith.addf %134, %135 : vector<1x6xf32>
    %137 = vector.shape_cast %136 : vector<1x6xf32> to vector<1x1x6xf32>
    %c0_150 = arith.constant 0 : index
    %c0_151 = arith.constant 0 : index
    %c0_152 = arith.constant 0 : index
    %138 = vector.load %arg6[%c0_150, %c0_151, %c0_152] : memref<1x1x6xf32, #tpu.memory_space<vmem>>, vector<1x1x6xf32>
    tpu.vector_store %arg6[%c0_150, %c0_151, %c0_152], %137 {strides = array<i32>} : memref<1x1x6xf32, #tpu.memory_space<vmem>>, vector<1x1x6xf32>,
    return
  }
  func.func @transform_0(%arg0: i32) -> (i32, i32, i32, i32) {
    %c0_i32 = arith.constant 0 : i32
    %c0_i32_0 = arith.constant 0 : i32
    %c0_i32_1 = arith.constant 0 : i32
    %c0_i32_2 = arith.constant 0 : i32
    return %arg0, %c0_i32, %c0_i32_0, %c0_i32_1 : i32, i32, i32, i32
  }
  func.func @transform_1(%arg0: i32) -> (i32, i32, i32, i32) {
    %c0_i32 = arith.constant 0 : i32
    %c0_i32_0 = arith.constant 0 : i32
    %c0_i32_1 = arith.constant 0 : i32
    %c0_i32_2 = arith.constant 0 : i32
    %c0_i32_3 = arith.constant 0 : i32
    return %c0_i32, %c0_i32_0, %c0_i32_1, %c0_i32_2 : i32, i32, i32, i32
  }
  func.func @transform_2(%arg0: i32) -> (i32, i32) {
    %c0_i32 = arith.constant 0 : i32
    %c0_i32_0 = arith.constant 0 : i32
    %c0_i32_1 = arith.constant 0 : i32
    return %c0_i32, %c0_i32_0 : i32, i32
  }
  func.func @transform_3(%arg0: i32) -> (i32, i32) {
    %c0_i32 = arith.constant 0 : i32
    %c0_i32_0 = arith.constant 0 : i32
    %c0_i32_1 = arith.constant 0 : i32
    return %c0_i32, %c0_i32_0 : i32, i32
  }
  func.func @transform_4(%arg0: i32) -> (i32, i32, i32, i32) {
    %c0_i32 = arith.constant 0 : i32
    %c0_i32_0 = arith.constant 0 : i32
    %c0_i32_1 = arith.constant 0 : i32
    %c0_i32_2 = arith.constant 0 : i32
    return %arg0, %c0_i32, %c0_i32_0, %c0_i32_1 : i32, i32, i32, i32
  }
  func.func @transform_5(%arg0: i32) -> (i32, i32, i32) {
    %c0_i32 = arith.constant 0 : i32
    %c0_i32_0 = arith.constant 0 : i32
    %c0_i32_1 = arith.constant 0 : i32
    return %arg0, %c0_i32, %c0_i32_0 : i32, i32, i32
  }
}

</mosaic_0001>

<llo_original>
// kernel: conv_encoder_forward.4
$region0: #{conv_encoder_forward.4}
  #allocation0 [shape = 'u32[]', space=smem, size = 0x4, offset = 0x4, fixed_abs, tag = 'smem constant byte address 0x4 - core index']
  #allocation1 [shape = 'u32[144,128]{1,0:T(1,128)}', space=vmem, size = 0x12000, scoped, tag = 'internal scratch']
  %s0 = inlined_call_operand.vmem [shape: f32[2,16,64,16], index: 0, kind: input, shape index: {}]
  %s1 = inlined_call_operand.vmem [shape: bf16[1,1,16,32], index: 1, kind: input, shape index: {}]
  %s2 = inlined_call_operand.vmem [shape: f32[1024,32], index: 2, kind: input, shape index: {}]
  %s3 = inlined_call_operand.vmem [shape: f32[1024,32], index: 3, kind: input, shape index: {}]
  %s4 = inlined_call_operand.vmem [shape: f32[2,16,64,32], index: 4, kind: output, shape index: {}]
  %s5 = sld [smem:[#allocation0]]
  $region49: #{conv_encoder_forward.4} parent=0
    _
  %s7 = ssub.s32 1, %s5
  %s8 = scalar_select 0, %s7, %s5
  loop: start=0, step=1, limit=4
  $region2: #{conv_encoder_forward.4} parent=0 // loop_pre_header
    _
  $region3: #{conv_encoder_forward.4} parent=0 // loop_header
    %s10 = sphi 0, %s14
    %p11 = scmp.ge.s32.totalorder %s10, 4
    %s20 = sphi 0, %s22
    %s23 = sphi 0, %s20
    %s24 = sphi 0, %s23
    %s40 = sphi 0, %s24
    %s44 = sphi 0, %s44
    %s46 = sphi 0, %s44
    %s47 = sphi 0, %s46
    %s61 = sphi 0, %s47
    %s65 = sphi 0, %s65
    %s67 = sphi 0, %s65
    %s68 = sphi 0, %s67
    %s82 = sphi 0, %s68
    %s86 = sphi 0, %s86
    %s88 = sphi 0, %s86
    %s89 = sphi 0, %s88
    %s103 = sphi 0, %s89
    %s109 = sphi 0, %s111
    %s112 = sphi 0, %s109
    %s113 = sphi 0, %s112
    %s129 = sphi 0, %s113
  $region4: #{conv_encoder_forward.4} parent=0 // loop_header_branch
    %13 = sbr.rel (%p11) target = $region8
  $region5: #{conv_encoder_forward.4} parent=0 // loop_body
    %s15 = ssub.s32 %s10, 1
    %s16 = ssub.s32 %s10, 2
    %s17 = sadd.s32 %s10, 1
    %s18 = ssub.s32 %s10, %s17
    %p19 = scmp.eq.s32.totalorder %s18, 0
    %s21 = sadd.s32 %s20, 1
    %s22 = scalar_select %p19, %s20, %s21
    %p25 = pneg %p19
    %p26 = scmp.eq.s32.totalorder %s10, 1
    %p27 = por %p25, %p26
    %p28 = scmp.ne.s32.totalorder %s20, %s23
    %p29 = scmp.eq.s32.totalorder %s10, 0
    %p30 = por %p28, %p29
    %p31 = scmp.ne.s32.totalorder %s20, %s23
    %p32 = scmp.eq.s32.totalorder %s15, 1
    %p33 = por %p31, %p32
    %p34 = scmp.ne.s32.totalorder %s23, %s24
    %p35 = scmp.eq.s32.totalorder %s15, 0
    %p36 = por %p34, %p35
    %p37 = scmp.ne.s32.totalorder %s23, %s24
    %p38 = scmp.eq.s32.totalorder %s16, 1
    %p39 = por %p37, %p38
    %p41 = scmp.ne.s32.totalorder %s24, %s40
    %p42 = scmp.eq.s32.totalorder %s16, 0
    %p43 = por %p41, %p42
    %s45 = sadd.s32 %s44, 1
    %p48 = scmp.eq.s32.totalorder %s10, 1
    %p49 = scmp.ne.s32.totalorder %s44, %s46
    %p50 = scmp.eq.s32.totalorder %s10, 0
    %p51 = por %p49, %p50
    %p52 = scmp.ne.s32.totalorder %s44, %s46
    %p53 = scmp.eq.s32.totalorder %s15, 1
    %p54 = por %p52, %p53
    %p55 = scmp.ne.s32.totalorder %s46, %s47
    %p56 = scmp.eq.s32.totalorder %s15, 0
    %p57 = por %p55, %p56
    %p58 = scmp.ne.s32.totalorder %s46, %s47
    %p59 = scmp.eq.s32.totalorder %s16, 1
    %p60 = por %p58, %p59
    %p62 = scmp.ne.s32.totalorder %s47, %s61
    %p63 = scmp.eq.s32.totalorder %s16, 0
    %p64 = por %p62, %p63
    %s66 = sadd.s32 %s65, 1
    %p69 = scmp.eq.s32.totalorder %s10, 1
    %p70 = scmp.ne.s32.totalorder %s65, %s67
    %p71 = scmp.eq.s32.totalorder %s10, 0
    %p72 = por %p70, %p71
    %p73 = scmp.ne.s32.totalorder %s65, %s67
    %p74 = scmp.eq.s32.totalorder %s15, 1
    %p75 = por %p73, %p74
    %p76 = scmp.ne.s32.totalorder %s67, %s68
    %p77 = scmp.eq.s32.totalorder %s15, 0
    %p78 = por %p76, %p77
    %p79 = scmp.ne.s32.totalorder %s67, %s68
    %p80 = scmp.eq.s32.totalorder %s16, 1
    %p81 = por %p79, %p80
    %p83 = scmp.ne.s32.totalorder %s68, %s82
    %p84 = scmp.eq.s32.totalorder %s16, 0
    %p85 = por %p83, %p84
    %s87 = sadd.s32 %s86, 1
    %p90 = scmp.eq.s32.totalorder %s10, 1
    %p91 = scmp.ne.s32.totalorder %s86, %s88
    %p92 = scmp.eq.s32.totalorder %s10, 0
    %p93 = por %p91, %p92
    %p94 = scmp.ne.s32.totalorder %s86, %s88
    %p95 = scmp.eq.s32.totalorder %s15, 1
    %p96 = por %p94, %p95
    %p97 = scmp.ne.s32.totalorder %s88, %s89
    %p98 = scmp.eq.s32.totalorder %s15, 0
    %p99 = por %p97, %p98
    %p100 = scmp.ne.s32.totalorder %s88, %s89
    %p101 = scmp.eq.s32.totalorder %s16, 1
    %p102 = por %p100, %p101
    %p104 = scmp.ne.s32.totalorder %s89, %s103
    %p105 = scmp.eq.s32.totalorder %s16, 0
    %p106 = por %p104, %p105
    %s107 = ssub.s32 %s10, %s17
    %p108 = scmp.eq.s32.totalorder %s107, 0
    %s110 = sadd.s32 %s109, 1
    %s111 = scalar_select %p108, %s109, %s110
    %p114 = pneg %p108
    %p115 = scmp.eq.s32.totalorder %s10, 1
    %p116 = por %p114, %p115
    %p117 = scmp.ne.s32.totalorder %s109, %s112
    %p118 = scmp.eq.s32.totalorder %s10, 0
    %p119 = por %p117, %p118
    %p120 = scmp.ne.s32.totalorder %s109, %s112
    %p121 = scmp.eq.s32.totalorder %s15, 1
    %p122 = por %p120, %p121
    %p123 = scmp.ne.s32.totalorder %s112, %s113
    %p124 = scmp.eq.s32.totalorder %s15, 0
    %p125 = por %p123, %p124
    %p126 = scmp.ne.s32.totalorder %s112, %s113
    %p127 = scmp.eq.s32.totalorder %s16, 1
    %p128 = por %p126, %p127
    %p130 = scmp.ne.s32.totalorder %s113, %s129
    %p131 = scmp.eq.s32.totalorder %s16, 0
    %p132 = por %p130, %p131
    %p133 = scmp.le.s32.totalorder 1, %s10
    %p134 = scmp.lt.s32.totalorder %s10, 3
    %p135 = pnand %p133, %p134
    %p136 = pneg %p135
    // Predicated region
    $region9: #{conv_encoder_forward.4} parent=5 // pred_check
      _
    $region10: #{conv_encoder_forward.4} parent=5 // pred_check_branch
      %138 = sbr.rel (%p135) target = $region12
    $region11: #{conv_encoder_forward.4} parent=5 // pred_region
      %s139 = ssub.s32 %s10, 1
      // Predicated region
      $region13: #{conv_encoder_forward.4} parent=11 // pred_check
        %p140 = pneg %p57
      $region14: #{conv_encoder_forward.4} parent=11 // pred_check_branch
        %142 = sbr.rel (%p140) target = $region16
      $region15: #{conv_encoder_forward.4} parent=11 // pred_region
        _
      $region16: #{conv_encoder_forward.4} parent=11 // pred_fallthru
        _
      // Predicated region
      $region17: #{conv_encoder_forward.4} parent=11 // pred_check
        %p143 = pneg %p78
      $region18: #{conv_encoder_forward.4} parent=11 // pred_check_branch
        %145 = sbr.rel (%p143) target = $region20
      $region19: #{conv_encoder_forward.4} parent=11 // pred_region
        _
      $region20: #{conv_encoder_forward.4} parent=11 // pred_fallthru
        _
      // Predicated region
      $region21: #{conv_encoder_forward.4} parent=11 // pred_check
        %p146 = pneg %p99
      $region22: #{conv_encoder_forward.4} parent=11 // pred_check_branch
        %148 = sbr.rel (%p146) target = $region24
      $region23: #{conv_encoder_forward.4} parent=11 // pred_region
        _
      $region24: #{conv_encoder_forward.4} parent=11 // pred_fallthru
        _
    $region12: #{conv_encoder_forward.4} parent=5 // pred_fallthru
      _
    %p149 = scmp.lt.s32.totalorder %s10, 2
    // Predicated region
    $region25: #{conv_encoder_forward.4} parent=5 // pred_check
      %p150 = pneg %p149
    $region26: #{conv_encoder_forward.4} parent=5 // pred_check_branch
      %152 = sbr.rel (%p150) target = $region28
    $region27: #{conv_encoder_forward.4} parent=5 // pred_region
      // Predicated region
      $region29: #{conv_encoder_forward.4} parent=27 // pred_check
        %p153 = pneg %p30
      $region30: #{conv_encoder_forward.4} parent=27 // pred_check_branch
        %155 = sbr.rel (%p153) target = $region32
      $region31: #{conv_encoder_forward.4} parent=27 // pred_region
        %p156 = scmp.lt.s32.totalorder %s10, 1
        %s157 = scalar_select %p156, %s10, 1
        %s158 = smul.addr %s157, 128
        %s159 = smul.addr %s158, 8
        %s160 = scalar_lea.vmem %s0, %s159
      $region32: #{conv_encoder_forward.4} parent=27 // pred_fallthru
        _
    $region28: #{conv_encoder_forward.4} parent=5 // pred_fallthru
      _
    %p161 = scmp.le.s32.totalorder 1, %s10
    %p162 = scmp.lt.s32.totalorder %s10, 3
    %p163 = pnand %p161, %p162
    %p164 = pneg %p163
    // Predicated region
    $region33: #{conv_encoder_forward.4} parent=5 // pred_check
      _
    $region34: #{conv_encoder_forward.4} parent=5 // pred_check_branch
      %166 = sbr.rel (%p163) target = $region36
    $region35: #{conv_encoder_forward.4} parent=5 // pred_region
      %s167 = ssub.s32 %s10, 1
      %p168 = scmp.lt.s32.totalorder %s15, 1
      %s169 = scalar_select %p168, %s15, 1
      %s170 = smul.addr %s169, 128
      %s171 = smul.addr %s170, 8
      %s172 = scalar_lea.vmem %s0, %s171
      %p173 = pneg %p36
      %p174 = pneg %p33
      %p175 = pneg %p57
      %p176 = pneg %p54
      %p177 = pneg %p78
      %p178 = pneg %p75
      %p179 = pneg %p99
      %p180 = pneg %p96
      %p181 = pneg %p125
      %p182 = pneg %p122
      %p183 = scmp.lt.s32.totalorder %s15, 1
      %s184 = scalar_select %p183, %s15, 1
      %s185 = smul.addr %s184, 128
      %s186 = smul.addr %s185, 8
      %s187 = scalar_lea.vmem %s4, %s186
      %p188 = scmp.lt.s32.totalorder %s15, 1
      %s189 = scalar_select %p188, %s15, 1
      %s190 = smul.addr %s189, 128
      %s191 = smul.addr %s190, 8
      %s192 = scalar_lea.vmem %s0, %s191
      %p193 = scmp.lt.s32.totalorder %s15, 1
      %s194 = scalar_select %p193, %s15, 1
      %s195 = smul.addr %s194, 128
      %s196 = smul.addr %s195, 8
      %s197 = scalar_lea.vmem %s4, %s196
      %v199 = vld [vmem:[%s192] sm:$0xff]
      %v200 = vld [vmem:[%s192 + $0x8] sm:$0xff]
      %v201 = vld [vmem:[%s192 + $0x10] sm:$0xff]
      %v202 = vld [vmem:[%s192 + $0x18] sm:$0xff]
      %v203 = vld [vmem:[%s192 + $0x20] sm:$0xff]
      %v204 = vld [vmem:[%s192 + $0x28] sm:$0xff]
      %v205 = vld [vmem:[%s192 + $0x30] sm:$0xff]
      %v206 = vld [vmem:[%s192 + $0x38] sm:$0xff]
      %v207 = vld [vmem:[%s192 + $0x40] sm:$0xff]
      %v208 = vld [vmem:[%s192 + $0x48] sm:$0xff]
      %v209 = vld [vmem:[%s192 + $0x50] sm:$0xff]
      %v210 = vld [vmem:[%s192 + $0x58] sm:$0xff]
      %v211 = vld [vmem:[%s192 + $0x60] sm:$0xff]
      %v212 = vld [vmem:[%s192 + $0x68] sm:$0xff]
      %v213 = vld [vmem:[%s192 + $0x70] sm:$0xff]
      %v214 = vld [vmem:[%s192 + $0x78] sm:$0xff]
      %v215 = vld [vmem:[%s192 + $0x80] sm:$0xff]
      %v216 = vld [vmem:[%s192 + $0x88] sm:$0xff]
      %v217 = vld [vmem:[%s192 + $0x90] sm:$0xff]
      %v218 = vld [vmem:[%s192 + $0x98] sm:$0xff]
      %v219 = vld [vmem:[%s192 + $0xa0] sm:$0xff]
      %v220 = vld [vmem:[%s192 + $0xa8] sm:$0xff]
      %v221 = vld [vmem:[%s192 + $0xb0] sm:$0xff]
      %v222 = vld [vmem:[%s192 + $0xb8] sm:$0xff]
      %v223 = vld [vmem:[%s192 + $0xc0] sm:$0xff]
      %v224 = vld [vmem:[%s192 + $0xc8] sm:$0xff]
      %v225 = vld [vmem:[%s192 + $0xd0] sm:$0xff]
      %v226 = vld [vmem:[%s192 + $0xd8] sm:$0xff]
      %v227 = vld [vmem:[%s192 + $0xe0] sm:$0xff]
      %v228 = vld [vmem:[%s192 + $0xe8] sm:$0xff]
      %v229 = vld [vmem:[%s192 + $0xf0] sm:$0xff]
      %v230 = vld [vmem:[%s192 + $0xf8] sm:$0xff]
      %v231 = vld [vmem:[%s192 + $0x100] sm:$0xff]
      %v232 = vld [vmem:[%s192 + $0x108] sm:$0xff]
      %v233 = vld [vmem:[%s192 + $0x110] sm:$0xff]
      %v234 = vld [vmem:[%s192 + $0x118] sm:$0xff]
      %v235 = vld [vmem:[%s192 + $0x120] sm:$0xff]
      %v236 = vld [vmem:[%s192 + $0x128] sm:$0xff]
      %v237 = vld [vmem:[%s192 + $0x130] sm:$0xff]
      %v238 = vld [vmem:[%s192 + $0x138] sm:$0xff]
      %v239 = vld [vmem:[%s192 + $0x140] sm:$0xff]
      %v240 = vld [vmem:[%s192 + $0x148] sm:$0xff]
      %v241 = vld [vmem:[%s192 + $0x150] sm:$0xff]
      %v242 = vld [vmem:[%s192 + $0x158] sm:$0xff]
      %v243 = vld [vmem:[%s192 + $0x160] sm:$0xff]
      %v244 = vld [vmem:[%s192 + $0x168] sm:$0xff]
      %v245 = vld [vmem:[%s192 + $0x170] sm:$0xff]
      %v246 = vld [vmem:[%s192 + $0x178] sm:$0xff]
      %v247 = vld [vmem:[%s192 + $0x180] sm:$0xff]
      %v248 = vld [vmem:[%s192 + $0x188] sm:$0xff]
      %v249 = vld [vmem:[%s192 + $0x190] sm:$0xff]
      %v250 = vld [vmem:[%s192 + $0x198] sm:$0xff]
      %v251 = vld [vmem:[%s192 + $0x1a0] sm:$0xff]
      %v252 = vld [vmem:[%s192 + $0x1a8] sm:$0xff]
      %v253 = vld [vmem:[%s192 + $0x1b0] sm:$0xff]
      %v254 = vld [vmem:[%s192 + $0x1b8] sm:$0xff]
      %v255 = vld [vmem:[%s192 + $0x1c0] sm:$0xff]
      %v256 = vld [vmem:[%s192 + $0x1c8] sm:$0xff]
      %v257 = vld [vmem:[%s192 + $0x1d0] sm:$0xff]
      %v258 = vld [vmem:[%s192 + $0x1d8] sm:$0xff]
      %v259 = vld [vmem:[%s192 + $0x1e0] sm:$0xff]
      %v260 = vld [vmem:[%s192 + $0x1e8] sm:$0xff]
      %v261 = vld [vmem:[%s192 + $0x1f0] sm:$0xff]
      %v262 = vld [vmem:[%s192 + $0x1f8] sm:$0xff]
      %v263 = vld [vmem:[%s192 + $0x200] sm:$0xff]
      %v264 = vld [vmem:[%s192 + $0x208] sm:$0xff]
      %v265 = vld [vmem:[%s192 + $0x210] sm:$0xff]
      %v266 = vld [vmem:[%s192 + $0x218] sm:$0xff]
      %v267 = vld [vmem:[%s192 + $0x220] sm:$0xff]
      %v268 = vld [vmem:[%s192 + $0x228] sm:$0xff]
      %v269 = vld [vmem:[%s192 + $0x230] sm:$0xff]
      %v270 = vld [vmem:[%s192 + $0x238] sm:$0xff]
      %v271 = vld [vmem:[%s192 + $0x240] sm:$0xff]
      %v272 = vld [vmem:[%s192 + $0x248] sm:$0xff]
      %v273 = vld [vmem:[%s192 + $0x250] sm:$0xff]
      %v274 = vld [vmem:[%s192 + $0x258] sm:$0xff]
      %v275 = vld [vmem:[%s192 + $0x260] sm:$0xff]
      %v276 = vld [vmem:[%s192 + $0x268] sm:$0xff]
      %v277 = vld [vmem:[%s192 + $0x270] sm:$0xff]
      %v278 = vld [vmem:[%s192 + $0x278] sm:$0xff]
      %v279 = vld [vmem:[%s192 + $0x280] sm:$0xff]
      %v280 = vld [vmem:[%s192 + $0x288] sm:$0xff]
      %v281 = vld [vmem:[%s192 + $0x290] sm:$0xff]
      %v282 = vld [vmem:[%s192 + $0x298] sm:$0xff]
      %v283 = vld [vmem:[%s192 + $0x2a0] sm:$0xff]
      %v284 = vld [vmem:[%s192 + $0x2a8] sm:$0xff]
      %v285 = vld [vmem:[%s192 + $0x2b0] sm:$0xff]
      %v286 = vld [vmem:[%s192 + $0x2b8] sm:$0xff]
      %v287 = vld [vmem:[%s192 + $0x2c0] sm:$0xff]
      %v288 = vld [vmem:[%s192 + $0x2c8] sm:$0xff]
      %v289 = vld [vmem:[%s192 + $0x2d0] sm:$0xff]
      %v290 = vld [vmem:[%s192 + $0x2d8] sm:$0xff]
      %v291 = vld [vmem:[%s192 + $0x2e0] sm:$0xff]
      %v292 = vld [vmem:[%s192 + $0x2e8] sm:$0xff]
      %v293 = vld [vmem:[%s192 + $0x2f0] sm:$0xff]
      %v294 = vld [vmem:[%s192 + $0x2f8] sm:$0xff]
      %v295 = vld [vmem:[%s192 + $0x300] sm:$0xff]
      %v296 = vld [vmem:[%s192 + $0x308] sm:$0xff]
      %v297 = vld [vmem:[%s192 + $0x310] sm:$0xff]
      %v298 = vld [vmem:[%s192 + $0x318] sm:$0xff]
      %v299 = vld [vmem:[%s192 + $0x320] sm:$0xff]
      %v300 = vld [vmem:[%s192 + $0x328] sm:$0xff]
      %v301 = vld [vmem:[%s192 + $0x330] sm:$0xff]
      %v302 = vld [vmem:[%s192 + $0x338] sm:$0xff]
      %v303 = vld [vmem:[%s192 + $0x340] sm:$0xff]
      %v304 = vld [vmem:[%s192 + $0x348] sm:$0xff]
      %v305 = vld [vmem:[%s192 + $0x350] sm:$0xff]
      %v306 = vld [vmem:[%s192 + $0x358] sm:$0xff]
      %v307 = vld [vmem:[%s192 + $0x360] sm:$0xff]
      %v308 = vld [vmem:[%s192 + $0x368] sm:$0xff]
      %v309 = vld [vmem:[%s192 + $0x370] sm:$0xff]
      %v310 = vld [vmem:[%s192 + $0x378] sm:$0xff]
      %v311 = vld [vmem:[%s192 + $0x380] sm:$0xff]
      %v312 = vld [vmem:[%s192 + $0x388] sm:$0xff]
      %v313 = vld [vmem:[%s192 + $0x390] sm:$0xff]
      %v314 = vld [vmem:[%s192 + $0x398] sm:$0xff]
      %v315 = vld [vmem:[%s192 + $0x3a0] sm:$0xff]
      %v316 = vld [vmem:[%s192 + $0x3a8] sm:$0xff]
      %v317 = vld [vmem:[%s192 + $0x3b0] sm:$0xff]
      %v318 = vld [vmem:[%s192 + $0x3b8] sm:$0xff]
      %v319 = vld [vmem:[%s192 + $0x3c0] sm:$0xff]
      %v320 = vld [vmem:[%s192 + $0x3c8] sm:$0xff]
      %v321 = vld [vmem:[%s192 + $0x3d0] sm:$0xff]
      %v322 = vld [vmem:[%s192 + $0x3d8] sm:$0xff]
      %v323 = vld [vmem:[%s192 + $0x3e0] sm:$0xff]
      %v324 = vld [vmem:[%s192 + $0x3e8] sm:$0xff]
      %v325 = vld [vmem:[%s192 + $0x3f0] sm:$0xff]
      %v326 = vld [vmem:[%s192 + $0x3f8] sm:$0xff]
      %v327 = vpack.c.bf16 %v200, %v199
      %v328 = vpack.c.bf16 %v202, %v201
      %v329 = vpack.c.bf16 %v204, %v203
      %v330 = vpack.c.bf16 %v206, %v205
      %v331 = vpack.c.bf16 %v208, %v207
      %v332 = vpack.c.bf16 %v210, %v209
      %v333 = vpack.c.bf16 %v212, %v211
      %v334 = vpack.c.bf16 %v214, %v213
      %v335 = vpack.c.bf16 %v216, %v215
      %v336 = vpack.c.bf16 %v218, %v217
      %v337 = vpack.c.bf16 %v220, %v219
      %v338 = vpack.c.bf16 %v222, %v221
      %v339 = vpack.c.bf16 %v224, %v223
      %v340 = vpack.c.bf16 %v226, %v225
      %v341 = vpack.c.bf16 %v228, %v227
      %v342 = vpack.c.bf16 %v230, %v229
      %v343 = vpack.c.bf16 %v232, %v231
      %v344 = vpack.c.bf16 %v234, %v233
      %v345 = vpack.c.bf16 %v236, %v235
      %v346 = vpack.c.bf16 %v238, %v237
      %v347 = vpack.c.bf16 %v240, %v239
      %v348 = vpack.c.bf16 %v242, %v241
      %v349 = vpack.c.bf16 %v244, %v243
      %v350 = vpack.c.bf16 %v246, %v245
      %v351 = vpack.c.bf16 %v248, %v247
      %v352 = vpack.c.bf16 %v250, %v249
      %v353 = vpack.c.bf16 %v252, %v251
      %v354 = vpack.c.bf16 %v254, %v253
      %v355 = vpack.c.bf16 %v256, %v255
      %v356 = vpack.c.bf16 %v258, %v257
      %v357 = vpack.c.bf16 %v260, %v259
      %v358 = vpack.c.bf16 %v262, %v261
      %v359 = vpack.c.bf16 %v264, %v263
      %v360 = vpack.c.bf16 %v266, %v265
      %v361 = vpack.c.bf16 %v268, %v267
      %v362 = vpack.c.bf16 %v270, %v269
      %v363 = vpack.c.bf16 %v272, %v271
      %v364 = vpack.c.bf16 %v274, %v273
      %v365 = vpack.c.bf16 %v276, %v275
      %v366 = vpack.c.bf16 %v278, %v277
      %v367 = vpack.c.bf16 %v280, %v279
      %v368 = vpack.c.bf16 %v282, %v281
      %v369 = vpack.c.bf16 %v284, %v283
      %v370 = vpack.c.bf16 %v286, %v285
      %v371 = vpack.c.bf16 %v288, %v287
      %v372 = vpack.c.bf16 %v290, %v289
      %v373 = vpack.c.bf16 %v292, %v291
      %v374 = vpack.c.bf16 %v294, %v293
      %v375 = vpack.c.bf16 %v296, %v295
      %v376 = vpack.c.bf16 %v298, %v297
      %v377 = vpack.c.bf16 %v300, %v299
      %v378 = vpack.c.bf16 %v302, %v301
      %v379 = vpack.c.bf16 %v304, %v303
      %v380 = vpack.c.bf16 %v306, %v305
      %v381 = vpack.c.bf16 %v308, %v307
      %v382 = vpack.c.bf16 %v310, %v309
      %v383 = vpack.c.bf16 %v312, %v311
      %v384 = vpack.c.bf16 %v314, %v313
      %v385 = vpack.c.bf16 %v316, %v315
      %v386 = vpack.c.bf16 %v318, %v317
      %v387 = vpack.c.bf16 %v320, %v319
      %v388 = vpack.c.bf16 %v322, %v321
      %v389 = vpack.c.bf16 %v324, %v323
      %v390 = vpack.c.bf16 %v326, %v325
      %v391 = vld [vmem:[%s1] sm:$0xf]
      %v392 = vld [vmem:[%s1 + $0x4] sm:$0xf]
      %v395 = vunpack.c.l.b16 %v391
      %v396 = vunpack.c.l.b16 %v392
      %v397 = vpack.c.b16 %v396, %v395
      %vm399 = vcmask 130048
      %v401 = vsel %vm399, %v327, 0
      %v404 = vsel %vm399, %v328, 0
      %v407 = vsel %vm399, %v329, 0
      %v410 = vsel %vm399, %v330, 0
      %v413 = vsel %vm399, %v331, 0
      %v416 = vsel %vm399, %v332, 0
      %v419 = vsel %vm399, %v333, 0
      %v422 = vsel %vm399, %v334, 0
      %v425 = vsel %vm399, %v335, 0
      %v428 = vsel %vm399, %v336, 0
      %v431 = vsel %vm399, %v337, 0
      %v434 = vsel %vm399, %v338, 0
      %v437 = vsel %vm399, %v339, 0
      %v440 = vsel %vm399, %v340, 0
      %v443 = vsel %vm399, %v341, 0
      %v446 = vsel %vm399, %v342, 0
      %v449 = vsel %vm399, %v343, 0
      %v452 = vsel %vm399, %v344, 0
      %v455 = vsel %vm399, %v345, 0
      %v458 = vsel %vm399, %v346, 0
      %v461 = vsel %vm399, %v347, 0
      %v464 = vsel %vm399, %v348, 0
      %v467 = vsel %vm399, %v349, 0
      %v470 = vsel %vm399, %v350, 0
      %v473 = vsel %vm399, %v351, 0
      %v476 = vsel %vm399, %v352, 0
      %v479 = vsel %vm399, %v353, 0
      %v482 = vsel %vm399, %v354, 0
      %v485 = vsel %vm399, %v355, 0
      %v488 = vsel %vm399, %v356, 0
      %v491 = vsel %vm399, %v357, 0
      %v494 = vsel %vm399, %v358, 0
      %v497 = vsel %vm399, %v359, 0
      %v500 = vsel %vm399, %v360, 0
      %v503 = vsel %vm399, %v361, 0
      %v506 = vsel %vm399, %v362, 0
      %v509 = vsel %vm399, %v363, 0
      %v512 = vsel %vm399, %v364, 0
      %v515 = vsel %vm399, %v365, 0
      %v518 = vsel %vm399, %v366, 0
      %v521 = vsel %vm399, %v367, 0
      %v524 = vsel %vm399, %v368, 0
      %v527 = vsel %vm399, %v369, 0
      %v530 = vsel %vm399, %v370, 0
      %v533 = vsel %vm399, %v371, 0
      %v536 = vsel %vm399, %v372, 0
      %v539 = vsel %vm399, %v373, 0
      %v542 = vsel %vm399, %v374, 0
      %v545 = vsel %vm399, %v375, 0
      %v548 = vsel %vm399, %v376, 0
      %v551 = vsel %vm399, %v377, 0
      %v554 = vsel %vm399, %v378, 0
      %v557 = vsel %vm399, %v379, 0
      %v560 = vsel %vm399, %v380, 0
      %v563 = vsel %vm399, %v381, 0
      %v566 = vsel %vm399, %v382, 0
      %v569 = vsel %vm399, %v383, 0
      %v572 = vsel %vm399, %v384, 0
      %v575 = vsel %vm399, %v385, 0
      %v578 = vsel %vm399, %v386, 0
      %v581 = vsel %vm399, %v387, 0
      %v584 = vsel %vm399, %v388, 0
      %v587 = vsel %vm399, %v389, 0
      %v590 = vsel %vm399, %v390, 0
      %592 = vmatprep.subr.bf16.mxu0 0
      %593 = vmatpush1.bf16.msra.mxu0 %v397
      %594 = vmatprep.subr.bf16.mxu0 0
      %595 = vmatpush1.bf16.msra.mxu0 0
      %596 = vmatprep.subr.bf16.mxu0 0
      %597 = vmatpush1.bf16.msra.mxu0 0
      %598 = vmatprep.subr.bf16.mxu0 0
      %599 = vmatpush1.bf16.msra.mxu0 0
      %600 = vmatprep.subr.bf16.mxu0 0
      %601 = vmatpush1.bf16.msra.mxu0 0
      %602 = vmatprep.subr.bf16.mxu0 0
      %603 = vmatpush1.bf16.msra.mxu0 0
      %604 = vmatprep.subr.bf16.mxu0 0
      %605 = vmatpush1.bf16.msra.mxu0 0
      %606 = vmatprep.subr.bf16.mxu0 0
      %607 = vmatpush1.bf16.msra.mxu0 0
      %608 = vmatprep.subr.bf16.mxu0 0
      %609 = vmatpush1.bf16.msra.mxu0 0
      %610 = vmatprep.subr.bf16.mxu0 0
      %611 = vmatpush1.bf16.msra.mxu0 0
      %612 = vmatprep.subr.bf16.mxu0 0
      %613 = vmatpush1.bf16.msra.mxu0 0
      %614 = vmatprep.subr.bf16.mxu0 0
      %615 = vmatpush1.bf16.msra.mxu0 0
      %616 = vmatprep.subr.bf16.mxu0 0
      %617 = vmatpush1.bf16.msra.mxu0 0
      %618 = vmatprep.subr.bf16.mxu0 0
      %619 = vmatpush1.bf16.msra.mxu0 0
      %620 = vmatprep.subr.bf16.mxu0 0
      %621 = vmatpush1.bf16.msra.mxu0 0
      %622 = vmatprep.subr.bf16.mxu0 0
      %623 = vmatpush1.bf16.msra.mxu0 0
      %624 = vmatprep.mubr.bf16.mxu0 0
      %625 = vmatmul.mubr.bf16.gmra.mrb[0].mxu0 %v401
      %v626 = vpop.f32.mrb[0].mxu0
      %v627 = vadd.f32 0.0, %v626
      %v628 = vpop.f32.mrb[0].mxu0
      %v629 = vpop.f32.mrb[0].mxu0
      %v630 = vadd.f32 0.0, %v629
      %v631 = vpop.f32.mrb[0].mxu0
      %632 = vmatprep.mubr.bf16.mxu0 0
      %633 = vmatmul.mubr.bf16.gmra.mrb[0].mxu0 %v404
      %v634 = vpop.f32.mrb[0].mxu0
      %v635 = vadd.f32 0.0, %v634
      %v636 = vpop.f32.mrb[0].mxu0
      %v637 = vpop.f32.mrb[0].mxu0
      %v638 = vadd.f32 0.0, %v637
      %v639 = vpop.f32.mrb[0].mxu0
      %640 = vmatprep.mubr.bf16.mxu0 0
      %641 = vmatmul.mubr.bf16.gmra.mrb[0].mxu0 %v407
      %v642 = vpop.f32.mrb[0].mxu0
      %v643 = vadd.f32 0.0, %v642
      %v644 = vpop.f32.mrb[0].mxu0
      %v645 = vpop.f32.mrb[0].mxu0
      %v646 = vadd.f32 0.0, %v645
      %v647 = vpop.f32.mrb[0].mxu0
      %648 = vmatprep.mubr.bf16.mxu0 0
      %649 = vmatmul.mubr.bf16.gmra.mrb[0].mxu0 %v410
      %v650 = vpop.f32.mrb[0].mxu0
      %v651 = vadd.f32 0.0, %v650
      %v652 = vpop.f32.mrb[0].mxu0
      %v653 = vpop.f32.mrb[0].mxu0
      %v654 = vadd.f32 0.0, %v653
      %v655 = vpop.f32.mrb[0].mxu0
      %656 = vmatprep.mubr.bf16.mxu0 0
      %657 = vmatmul.mubr.bf16.gmra.mrb[0].mxu0 %v413
      %v658 = vpop.f32.mrb[0].mxu0
      %v659 = vadd.f32 0.0, %v658
      %v660 = vpop.f32.mrb[0].mxu0
      %v661 = vpop.f32.mrb[0].mxu0
      %v662 = vadd.f32 0.0, %v661
      %v663 = vpop.f32.mrb[0].mxu0
      %664 = vmatprep.mubr.bf16.mxu0 0
      %665 = vmatmul.mubr.bf16.gmra.mrb[0].mxu0 %v416
      %v666 = vpop.f32.mrb[0].mxu0
      %v667 = vadd.f32 0.0, %v666
      %v668 = vpop.f32.mrb[0].mxu0
      %v669 = vpop.f32.mrb[0].mxu0
      %v670 = vadd.f32 0.0, %v669
      %v671 = vpop.f32.mrb[0].mxu0
      %672 = vmatprep.mubr.bf16.mxu0 0
      %673 = vmatmul.mubr.bf16.gmra.mrb[0].mxu0 %v419
      %v674 = vpop.f32.mrb[0].mxu0
      %v675 = vadd.f32 0.0, %v674
      %v676 = vpop.f32.mrb[0].mxu0
      %v677 = vpop.f32.mrb[0].mxu0
      %v678 = vadd.f32 0.0, %v677
      %v679 = vpop.f32.mrb[0].mxu0
      %680 = vmatprep.mubr.bf16.mxu0 0
      %681 = vmatmul.mubr.bf16.gmra.mrb[0].mxu0 %v422
      %v682 = vpop.f32.mrb[0].mxu0
      %v683 = vadd.f32 0.0, %v682
      %v684 = vpop.f32.mrb[0].mxu0
      %v685 = vpop.f32.mrb[0].mxu0
      %v686 = vadd.f32 0.0, %v685
      %v687 = vpop.f32.mrb[0].mxu0
      %688 = vmatprep.mubr.bf16.mxu0 0
      %689 = vmatmul.mubr.bf16.gmra.mrb[0].mxu0 %v425
      %v690 = vpop.f32.mrb[0].mxu0
      %v691 = vadd.f32 0.0, %v690
      %v692 = vpop.f32.mrb[0].mxu0
      %v693 = vpop.f32.mrb[0].mxu0
      %v694 = vadd.f32 0.0, %v693
      %v695 = vpop.f32.mrb[0].mxu0
      %696 = vmatprep.mubr.bf16.mxu0 0
      %697 = vmatmul.mubr.bf16.gmra.mrb[0].mxu0 %v428
      %v698 = vpop.f32.mrb[0].mxu0
      %v699 = vadd.f32 0.0, %v698
      %v700 = vpop.f32.mrb[0].mxu0
      %v701 = vpop.f32.mrb[0].mxu0
      %v702 = vadd.f32 0.0, %v701
      %v703 = vpop.f32.mrb[0].mxu0
      %704 = vmatprep.mubr.bf16.mxu0 0
      %705 = vmatmul.mubr.bf16.gmra.mrb[0].mxu0 %v431
      %v706 = vpop.f32.mrb[0].mxu0
      %v707 = vadd.f32 0.0, %v706
      %v708 = vpop.f32.mrb[0].mxu0
      %v709 = vpop.f32.mrb[0].mxu0
      %v710 = vadd.f32 0.0, %v709
      %v711 = vpop.f32.mrb[0].mxu0
      %712 = vmatprep.mubr.bf16.mxu0 0
      %713 = vmatmul.mubr.bf16.gmra.mrb[0].mxu0 %v434
      %v714 = vpop.f32.mrb[0].mxu0
      %v715 = vadd.f32 0.0, %v714
      %v716 = vpop.f32.mrb[0].mxu0
      %v717 = vpop.f32.mrb[0].mxu0
      %v718 = vadd.f32 0.0, %v717
      %v719 = vpop.f32.mrb[0].mxu0
      %720 = vmatprep.mubr.bf16.mxu0 0
      %721 = vmatmul.mubr.bf16.gmra.mrb[0].mxu0 %v437
      %v722 = vpop.f32.mrb[0].mxu0
      %v723 = vadd.f32 0.0, %v722
      %v724 = vpop.f32.mrb[0].mxu0
      %v725 = vpop.f32.mrb[0].mxu0
      %v726 = vadd.f32 0.0, %v725
      %v727 = vpop.f32.mrb[0].mxu0
      %728 = vmatprep.mubr.bf16.mxu0 0
      %729 = vmatmul.mubr.bf16.gmra.mrb[0].mxu0 %v440
      %v730 = vpop.f32.mrb[0].mxu0
      %v731 = vadd.f32 0.0, %v730
      %v732 = vpop.f32.mrb[0].mxu0
      %v733 = vpop.f32.mrb[0].mxu0
      %v734 = vadd.f32 0.0, %v733
      %v735 = vpop.f32.mrb[0].mxu0
      %736 = vmatprep.mubr.bf16.mxu0 0
      %737 = vmatmul.mubr.bf16.gmra.mrb[0].mxu0 %v443
      %v738 = vpop.f32.mrb[0].mxu0
      %v739 = vadd.f32 0.0, %v738
      %v740 = vpop.f32.mrb[0].mxu0
      %v741 = vpop.f32.mrb[0].mxu0
      %v742 = vadd.f32 0.0, %v741
      %v743 = vpop.f32.mrb[0].mxu0
      %744 = vmatprep.mubr.bf16.mxu0 0
      %745 = vmatmul.mubr.bf16.gmra.mrb[0].mxu0 %v446
      %v746 = vpop.f32.mrb[0].mxu0
      %v747 = vadd.f32 0.0, %v746
      %v748 = vpop.f32.mrb[0].mxu0
      %v749 = vpop.f32.mrb[0].mxu0
      %v750 = vadd.f32 0.0, %v749
      %v751 = vpop.f32.mrb[0].mxu0
      %752 = vmatprep.mubr.bf16.mxu0 0
      %753 = vmatmul.mubr.bf16.gmra.mrb[0].mxu0 %v449
      %v754 = vpop.f32.mrb[0].mxu0
      %v755 = vadd.f32 0.0, %v754
      %v756 = vpop.f32.mrb[0].mxu0
      %v757 = vpop.f32.mrb[0].mxu0
      %v758 = vadd.f32 0.0, %v757
      %v759 = vpop.f32.mrb[0].mxu0
      %760 = vmatprep.mubr.bf16.mxu0 0
      %761 = vmatmul.mubr.bf16.gmra.mrb[0].mxu0 %v452
      %v762 = vpop.f32.mrb[0].mxu0
      %v763 = vadd.f32 0.0, %v762
      %v764 = vpop.f32.mrb[0].mxu0
      %v765 = vpop.f32.mrb[0].mxu0
      %v766 = vadd.f32 0.0, %v765
      %v767 = vpop.f32.mrb[0].mxu0
      %768 = vmatprep.mubr.bf16.mxu0 0
      %769 = vmatmul.mubr.bf16.gmra.mrb[0].mxu0 %v455
      %v770 = vpop.f32.mrb[0].mxu0
      %v771 = vadd.f32 0.0, %v770
      %v772 = vpop.f32.mrb[0].mxu0
      %v773 = vpop.f32.mrb[0].mxu0
      %v774 = vadd.f32 0.0, %v773
      %v775 = vpop.f32.mrb[0].mxu0
      %776 = vmatprep.mubr.bf16.mxu0 0
      %777 = vmatmul.mubr.bf16.gmra.mrb[0].mxu0 %v458
      %v778 = vpop.f32.mrb[0].mxu0
      %v779 = vadd.f32 0.0, %v778
      %v780 = vpop.f32.mrb[0].mxu0
      %v781 = vpop.f32.mrb[0].mxu0
      %v782 = vadd.f32 0.0, %v781
      %v783 = vpop.f32.mrb[0].mxu0
      %784 = vmatprep.mubr.bf16.mxu0 0
      %785 = vmatmul.mubr.bf16.gmra.mrb[0].mxu0 %v461
      %v786 = vpop.f32.mrb[0].mxu0
      %v787 = vadd.f32 0.0, %v786
      %v788 = vpop.f32.mrb[0].mxu0
      %v789 = vpop.f32.mrb[0].mxu0
      %v790 = vadd.f32 0.0, %v789
      %v791 = vpop.f32.mrb[0].mxu0
      %792 = vmatprep.mubr.bf16.mxu0 0
      %793 = vmatmul.mubr.bf16.gmra.mrb[0].mxu0 %v464
      %v794 = vpop.f32.mrb[0].mxu0
      %v795 = vadd.f32 0.0, %v794
      %v796 = vpop.f32.mrb[0].mxu0
      %v797 = vpop.f32.mrb[0].mxu0
      %v798 = vadd.f32 0.0, %v797
      %v799 = vpop.f32.mrb[0].mxu0
      %800 = vmatprep.mubr.bf16.mxu0 0
      %801 = vmatmul.mubr.bf16.gmra.mrb[0].mxu0 %v467
      %v802 = vpop.f32.mrb[0].mxu0
      %v803 = vadd.f32 0.0, %v802
      %v804 = vpop.f32.mrb[0].mxu0
      %v805 = vpop.f32.mrb[0].mxu0
      %v806 = vadd.f32 0.0, %v805
      %v807 = vpop.f32.mrb[0].mxu0
      %808 = vmatprep.mubr.bf16.mxu0 0
      %809 = vmatmul.mubr.bf16.gmra.mrb[0].mxu0 %v470
      %v810 = vpop.f32.mrb[0].mxu0
      %v811 = vadd.f32 0.0, %v810
      %v812 = vpop.f32.mrb[0].mxu0
      %v813 = vpop.f32.mrb[0].mxu0
      %v814 = vadd.f32 0.0, %v813
      %v815 = vpop.f32.mrb[0].mxu0
      %816 = vmatprep.mubr.bf16.mxu0 0
      %817 = vmatmul.mubr.bf16.gmra.mrb[0].mxu0 %v473
      %v818 = vpop.f32.mrb[0].mxu0
      %v819 = vadd.f32 0.0, %v818
      %v820 = vpop.f32.mrb[0].mxu0
      %v821 = vpop.f32.mrb[0].mxu0
      %v822 = vadd.f32 0.0, %v821
      %v823 = vpop.f32.mrb[0].mxu0
      %824 = vmatprep.mubr.bf16.mxu0 0
      %825 = vmatmul.mubr.bf16.gmra.mrb[0].mxu0 %v476
      %v826 = vpop.f32.mrb[0].mxu0
      %v827 = vadd.f32 0.0, %v826
      %v828 = vpop.f32.mrb[0].mxu0
      %v829 = vpop.f32.mrb[0].mxu0
      %v830 = vadd.f32 0.0, %v829
      %v831 = vpop.f32.mrb[0].mxu0
      %832 = vmatprep.mubr.bf16.mxu0 0
      %833 = vmatmul.mubr.bf16.gmra.mrb[0].mxu0 %v479
      %v834 = vpop.f32.mrb[0].mxu0
      %v835 = vadd.f32 0.0, %v834
      %v836 = vpop.f32.mrb[0].mxu0
      %v837 = vpop.f32.mrb[0].mxu0
      %v838 = vadd.f32 0.0, %v837
      %v839 = vpop.f32.mrb[0].mxu0
      %840 = vmatprep.mubr.bf16.mxu0 0
      %841 = vmatmul.mubr.bf16.gmra.mrb[0].mxu0 %v482
      %v842 = vpop.f32.mrb[0].mxu0
      %v843 = vadd.f32 0.0, %v842
      %v844 = vpop.f32.mrb[0].mxu0
      %v845 = vpop.f32.mrb[0].mxu0
      %v846 = vadd.f32 0.0, %v845
      %v847 = vpop.f32.mrb[0].mxu0
      %848 = vmatprep.mubr.bf16.mxu0 0
      %849 = vmatmul.mubr.bf16.gmra.mrb[0].mxu0 %v485
      %v850 = vpop.f32.mrb[0].mxu0
      %v851 = vadd.f32 0.0, %v850
      %v852 = vpop.f32.mrb[0].mxu0
      %v853 = vpop.f32.mrb[0].mxu0
      %v854 = vadd.f32 0.0, %v853
      %v855 = vpop.f32.mrb[0].mxu0
      %856 = vmatprep.mubr.bf16.mxu0 0
      %857 = vmatmul.mubr.bf16.gmra.mrb[0].mxu0 %v488
      %v858 = vpop.f32.mrb[0].mxu0
      %v859 = vadd.f32 0.0, %v858
      %v860 = vpop.f32.mrb[0].mxu0
      %v861 = vpop.f32.mrb[0].mxu0
      %v862 = vadd.f32 0.0, %v861
      %v863 = vpop.f32.mrb[0].mxu0
      %864 = vmatprep.mubr.bf16.mxu0 0
      %865 = vmatmul.mubr.bf16.gmra.mrb[0].mxu0 %v491
      %v866 = vpop.f32.mrb[0].mxu0
      %v867 = vadd.f32 0.0, %v866
      %v868 = vpop.f32.mrb[0].mxu0
      %v869 = vpop.f32.mrb[0].mxu0
      %v870 = vadd.f32 0.0, %v869
      %v871 = vpop.f32.mrb[0].mxu0
      %872 = vmatprep.mubr.bf16.mxu0 0
      %873 = vmatmul.mubr.bf16.gmra.mrb[0].mxu0 %v494
      %v874 = vpop.f32.mrb[0].mxu0
      %v875 = vadd.f32 0.0, %v874
      %v876 = vpop.f32.mrb[0].mxu0
      %v877 = vpop.f32.mrb[0].mxu0
      %v878 = vadd.f32 0.0, %v877
      %v879 = vpop.f32.mrb[0].mxu0
      %880 = vmatprep.mubr.bf16.mxu0 0
      %881 = vmatmul.mubr.bf16.gmra.mrb[0].mxu0 %v497
      %v882 = vpop.f32.mrb[0].mxu0
      %v883 = vadd.f32 0.0, %v882
      %v884 = vpop.f32.mrb[0].mxu0
      %v885 = vpop.f32.mrb[0].mxu0
      %v886 = vadd.f32 0.0, %v885
      %v887 = vpop.f32.mrb[0].mxu0
      %888 = vmatprep.mubr.bf16.mxu0 0
      %889 = vmatmul.mubr.bf16.gmra.mrb[0].mxu0 %v500
      %v890 = vpop.f32.mrb[0].mxu0
      %v891 = vadd.f32 0.0, %v890
      %v892 = vpop.f32.mrb[0].mxu0
      %v893 = vpop.f32.mrb[0].mxu0
      %v894 = vadd.f32 0.0, %v893
      %v895 = vpop.f32.mrb[0].mxu0
      %896 = vmatprep.mubr.bf16.mxu0 0
      %897 = vmatmul.mubr.bf16.gmra.mrb[0].mxu0 %v503
      %v898 = vpop.f32.mrb[0].mxu0
      %v899 = vadd.f32 0.0, %v898
      %v900 = vpop.f32.mrb[0].mxu0
      %v901 = vpop.f32.mrb[0].mxu0
      %v902 = vadd.f32 0.0, %v901
      %v903 = vpop.f32.mrb[0].mxu0
      %904 = vmatprep.mubr.bf16.mxu0 0
      %905 = vmatmul.mubr.bf16.gmra.mrb[0].mxu0 %v506
      %v906 = vpop.f32.mrb[0].mxu0
      %v907 = vadd.f32 0.0, %v906
      %v908 = vpop.f32.mrb[0].mxu0
      %v909 = vpop.f32.mrb[0].mxu0
      %v910 = vadd.f32 0.0, %v909
      %v911 = vpop.f32.mrb[0].mxu0
      %912 = vmatprep.mubr.bf16.mxu0 0
      %913 = vmatmul.mubr.bf16.gmra.mrb[0].mxu0 %v509
      %v914 = vpop.f32.mrb[0].mxu0
      %v915 = vadd.f32 0.0, %v914
      %v916 = vpop.f32.mrb[0].mxu0
      %v917 = vpop.f32.mrb[0].mxu0
      %v918 = vadd.f32 0.0, %v917
      %v919 = vpop.f32.mrb[0].mxu0
      %920 = vmatprep.mubr.bf16.mxu0 0
      %921 = vmatmul.mubr.bf16.gmra.mrb[0].mxu0 %v512
      %v922 = vpop.f32.mrb[0].mxu0
      %v923 = vadd.f32 0.0, %v922
      %v924 = vpop.f32.mrb[0].mxu0
      %v925 = vpop.f32.mrb[0].mxu0
      %v926 = vadd.f32 0.0, %v925
      %v927 = vpop.f32.mrb[0].mxu0
      %928 = vmatprep.mubr.bf16.mxu0 0
      %929 = vmatmul.mubr.bf16.gmra.mrb[0].mxu0 %v515
      %v930 = vpop.f32.mrb[0].mxu0
      %v931 = vadd.f32 0.0, %v930
      %v932 = vpop.f32.mrb[0].mxu0
      %v933 = vpop.f32.mrb[0].mxu0
      %v934 = vadd.f32 0.0, %v933
      %v935 = vpop.f32.mrb[0].mxu0
      %936 = vmatprep.mubr.bf16.mxu0 0
      %937 = vmatmul.mubr.bf16.gmra.mrb[0].mxu0 %v518
      %v938 = vpop.f32.mrb[0].mxu0
      %v939 = vadd.f32 0.0, %v938
      %v940 = vpop.f32.mrb[0].mxu0
      %v941 = vpop.f32.mrb[0].mxu0
      %v942 = vadd.f32 0.0, %v941
      %v943 = vpop.f32.mrb[0].mxu0
      %944 = vmatprep.mubr.bf16.mxu0 0
      %945 = vmatmul.mubr.bf16.gmra.mrb[0].mxu0 %v521
      %v946 = vpop.f32.mrb[0].mxu0
      %v947 = vadd.f32 0.0, %v946
      %v948 = vpop.f32.mrb[0].mxu0
      %v949 = vpop.f32.mrb[0].mxu0
      %v950 = vadd.f32 0.0, %v949
      %v951 = vpop.f32.mrb[0].mxu0
      %952 = vmatprep.mubr.bf16.mxu0 0
      %953 = vmatmul.mubr.bf16.gmra.mrb[0].mxu0 %v524
      %v954 = vpop.f32.mrb[0].mxu0
      %v955 = vadd.f32 0.0, %v954
      %v956 = vpop.f32.mrb[0].mxu0
      %v957 = vpop.f32.mrb[0].mxu0
      %v958 = vadd.f32 0.0, %v957
      %v959 = vpop.f32.mrb[0].mxu0
      %960 = vmatprep.mubr.bf16.mxu0 0
      %961 = vmatmul.mubr.bf16.gmra.mrb[0].mxu0 %v527
      %v962 = vpop.f32.mrb[0].mxu0
      %v963 = vadd.f32 0.0, %v962
      %v964 = vpop.f32.mrb[0].mxu0
      %v965 = vpop.f32.mrb[0].mxu0
      %v966 = vadd.f32 0.0, %v965
      %v967 = vpop.f32.mrb[0].mxu0
      %968 = vmatprep.mubr.bf16.mxu0 0
      %969 = vmatmul.mubr.bf16.gmra.mrb[0].mxu0 %v530
      %v970 = vpop.f32.mrb[0].mxu0
      %v971 = vadd.f32 0.0, %v970
      %v972 = vpop.f32.mrb[0].mxu0
      %v973 = vpop.f32.mrb[0].mxu0
      %v974 = vadd.f32 0.0, %v973
      %v975 = vpop.f32.mrb[0].mxu0
      %976 = vmatprep.mubr.bf16.mxu0 0
      %977 = vmatmul.mubr.bf16.gmra.mrb[0].mxu0 %v533
      %v978 = vpop.f32.mrb[0].mxu0
      %v979 = vadd.f32 0.0, %v978
      %v980 = vpop.f32.mrb[0].mxu0
      %v981 = vpop.f32.mrb[0].mxu0
      %v982 = vadd.f32 0.0, %v981
      %v983 = vpop.f32.mrb[0].mxu0
      %984 = vmatprep.mubr.bf16.mxu0 0
      %985 = vmatmul.mubr.bf16.gmra.mrb[0].mxu0 %v536
      %v986 = vpop.f32.mrb[0].mxu0
      %v987 = vadd.f32 0.0, %v986
      %v988 = vpop.f32.mrb[0].mxu0
      %v989 = vpop.f32.mrb[0].mxu0
      %v990 = vadd.f32 0.0, %v989
      %v991 = vpop.f32.mrb[0].mxu0
      %992 = vmatprep.mubr.bf16.mxu0 0
      %993 = vmatmul.mubr.bf16.gmra.mrb[0].mxu0 %v539
      %v994 = vpop.f32.mrb[0].mxu0
      %v995 = vadd.f32 0.0, %v994
      %v996 = vpop.f32.mrb[0].mxu0
      %v997 = vpop.f32.mrb[0].mxu0
      %v998 = vadd.f32 0.0, %v997
      %v999 = vpop.f32.mrb[0].mxu0
      %1000 = vmatprep.mubr.bf16.mxu0 0
      %1001 = vmatmul.mubr.bf16.gmra.mrb[0].mxu0 %v542
      %v1002 = vpop.f32.mrb[0].mxu0
      %v1003 = vadd.f32 0.0, %v1002
      %v1004 = vpop.f32.mrb[0].mxu0
      %v1005 = vpop.f32.mrb[0].mxu0
      %v1006 = vadd.f32 0.0, %v1005
      %v1007 = vpop.f32.mrb[0].mxu0
      %1008 = vmatprep.mubr.bf16.mxu0 0
      %1009 = vmatmul.mubr.bf16.gmra.mrb[0].mxu0 %v545
      %v1010 = vpop.f32.mrb[0].mxu0
      %v1011 = vadd.f32 0.0, %v1010
      %v1012 = vpop.f32.mrb[0].mxu0
      %v1013 = vpop.f32.mrb[0].mxu0
      %v1014 = vadd.f32 0.0, %v1013
      %v1015 = vpop.f32.mrb[0].mxu0
      %1016 = vmatprep.mubr.bf16.mxu0 0
      %1017 = vmatmul.mubr.bf16.gmra.mrb[0].mxu0 %v548
      %v1018 = vpop.f32.mrb[0].mxu0
      %v1019 = vadd.f32 0.0, %v1018
      %v1020 = vpop.f32.mrb[0].mxu0
      %v1021 = vpop.f32.mrb[0].mxu0
      %v1022 = vadd.f32 0.0, %v1021
      %v1023 = vpop.f32.mrb[0].mxu0
      %1024 = vmatprep.mubr.bf16.mxu0 0
      %1025 = vmatmul.mubr.bf16.gmra.mrb[0].mxu0 %v551
      %v1026 = vpop.f32.mrb[0].mxu0
      %v1027 = vadd.f32 0.0, %v1026
      %v1028 = vpop.f32.mrb[0].mxu0
      %v1029 = vpop.f32.mrb[0].mxu0
      %v1030 = vadd.f32 0.0, %v1029
      %v1031 = vpop.f32.mrb[0].mxu0
      %1032 = vmatprep.mubr.bf16.mxu0 0
      %1033 = vmatmul.mubr.bf16.gmra.mrb[0].mxu0 %v554
      %v1034 = vpop.f32.mrb[0].mxu0
      %v1035 = vadd.f32 0.0, %v1034
      %v1036 = vpop.f32.mrb[0].mxu0
      %v1037 = vpop.f32.mrb[0].mxu0
      %v1038 = vadd.f32 0.0, %v1037
      %v1039 = vpop.f32.mrb[0].mxu0
      %1040 = vmatprep.mubr.bf16.mxu0 0
      %1041 = vmatmul.mubr.bf16.gmra.mrb[0].mxu0 %v557
      %v1042 = vpop.f32.mrb[0].mxu0
      %v1043 = vadd.f32 0.0, %v1042
      %v1044 = vpop.f32.mrb[0].mxu0
      %v1045 = vpop.f32.mrb[0].mxu0
      %v1046 = vadd.f32 0.0, %v1045
      %v1047 = vpop.f32.mrb[0].mxu0
      %1048 = vmatprep.mubr.bf16.mxu0 0
      %1049 = vmatmul.mubr.bf16.gmra.mrb[0].mxu0 %v560
      %v1050 = vpop.f32.mrb[0].mxu0
      %v1051 = vadd.f32 0.0, %v1050
      %v1052 = vpop.f32.mrb[0].mxu0
      %v1053 = vpop.f32.mrb[0].mxu0
      %v1054 = vadd.f32 0.0, %v1053
      %v1055 = vpop.f32.mrb[0].mxu0
      %1056 = vmatprep.mubr.bf16.mxu0 0
      %1057 = vmatmul.mubr.bf16.gmra.mrb[0].mxu0 %v563
      %v1058 = vpop.f32.mrb[0].mxu0
      %v1059 = vadd.f32 0.0, %v1058
      %v1060 = vpop.f32.mrb[0].mxu0
      %v1061 = vpop.f32.mrb[0].mxu0
      %v1062 = vadd.f32 0.0, %v1061
      %v1063 = vpop.f32.mrb[0].mxu0
      %1064 = vmatprep.mubr.bf16.mxu0 0
      %1065 = vmatmul.mubr.bf16.gmra.mrb[0].mxu0 %v566
      %v1066 = vpop.f32.mrb[0].mxu0
      %v1067 = vadd.f32 0.0, %v1066
      %v1068 = vpop.f32.mrb[0].mxu0
      %v1069 = vpop.f32.mrb[0].mxu0
      %v1070 = vadd.f32 0.0, %v1069
      %v1071 = vpop.f32.mrb[0].mxu0
      %1072 = vmatprep.mubr.bf16.mxu0 0
      %1073 = vmatmul.mubr.bf16.gmra.mrb[0].mxu0 %v569
      %v1074 = vpop.f32.mrb[0].mxu0
      %v1075 = vadd.f32 0.0, %v1074
      %v1076 = vpop.f32.mrb[0].mxu0
      %v1077 = vpop.f32.mrb[0].mxu0
      %v1078 = vadd.f32 0.0, %v1077
      %v1079 = vpop.f32.mrb[0].mxu0
      %1080 = vmatprep.mubr.bf16.mxu0 0
      %1081 = vmatmul.mubr.bf16.gmra.mrb[0].mxu0 %v572
      %v1082 = vpop.f32.mrb[0].mxu0
      %v1083 = vadd.f32 0.0, %v1082
      %v1084 = vpop.f32.mrb[0].mxu0
      %v1085 = vpop.f32.mrb[0].mxu0
      %v1086 = vadd.f32 0.0, %v1085
      %v1087 = vpop.f32.mrb[0].mxu0
      %1088 = vmatprep.mubr.bf16.mxu0 0
      %1089 = vmatmul.mubr.bf16.gmra.mrb[0].mxu0 %v575
      %v1090 = vpop.f32.mrb[0].mxu0
      %v1091 = vadd.f32 0.0, %v1090
      %v1092 = vpop.f32.mrb[0].mxu0
      %v1093 = vpop.f32.mrb[0].mxu0
      %v1094 = vadd.f32 0.0, %v1093
      %v1095 = vpop.f32.mrb[0].mxu0
      %1096 = vmatprep.mubr.bf16.mxu0 0
      %1097 = vmatmul.mubr.bf16.gmra.mrb[0].mxu0 %v578
      %v1098 = vpop.f32.mrb[0].mxu0
      %v1099 = vadd.f32 0.0, %v1098
      %v1100 = vpop.f32.mrb[0].mxu0
      %v1101 = vpop.f32.mrb[0].mxu0
      %v1102 = vadd.f32 0.0, %v1101
      %v1103 = vpop.f32.mrb[0].mxu0
      %1104 = vmatprep.mubr.bf16.mxu0 0
      %1105 = vmatmul.mubr.bf16.gmra.mrb[0].mxu0 %v581
      %v1106 = vpop.f32.mrb[0].mxu0
      %v1107 = vadd.f32 0.0, %v1106
      %v1108 = vpop.f32.mrb[0].mxu0
      %v1109 = vpop.f32.mrb[0].mxu0
      %v1110 = vadd.f32 0.0, %v1109
      %v1111 = vpop.f32.mrb[0].mxu0
      %1112 = vmatprep.mubr.bf16.mxu0 0
      %1113 = vmatmul.mubr.bf16.gmra.mrb[0].mxu0 %v584
      %v1114 = vpop.f32.mrb[0].mxu0
      %v1115 = vadd.f32 0.0, %v1114
      %v1116 = vpop.f32.mrb[0].mxu0
      %v1117 = vpop.f32.mrb[0].mxu0
      %v1118 = vadd.f32 0.0, %v1117
      %v1119 = vpop.f32.mrb[0].mxu0
      %1120 = vmatprep.mubr.bf16.mxu0 0
      %1121 = vmatmul.mubr.bf16.gmra.mrb[0].mxu0 %v587
      %v1122 = vpop.f32.mrb[0].mxu0
      %v1123 = vadd.f32 0.0, %v1122
      %v1124 = vpop.f32.mrb[0].mxu0
      %v1125 = vpop.f32.mrb[0].mxu0
      %v1126 = vadd.f32 0.0, %v1125
      %v1127 = vpop.f32.mrb[0].mxu0
      %1128 = vmatprep.mubr.bf16.mxu0 0
      %1129 = vmatmul.mubr.bf16.gmra.mrb[0].mxu0 %v590
      %v1130 = vpop.f32.mrb[0].mxu0
      %v1131 = vadd.f32 0.0, %v1130
      %v1132 = vpop.f32.mrb[0].mxu0
      %v1133 = vpop.f32.mrb[0].mxu0
      %v1134 = vadd.f32 0.0, %v1133
      %v1135 = vpop.f32.mrb[0].mxu0
      %1136 = vdwg.mxu0
      %vm1137 = vcmask 261120
      %v1138 = vsel %vm1137, %v627, 0.0
      %v1139 = vsel %vm1137, %v630, 0.0
      %v1140 = vadd.f32 %v1138, %v1139
      %v1141 = vsel %vm1137, %v635, 0.0
      %v1142 = vadd.f32 %v1140, %v1141
      %v1143 = vsel %vm1137, %v638, 0.0
      %v1144 = vadd.f32 %v1142, %v1143
      %v1145 = vsel %vm1137, %v643, 0.0
      %v1146 = vadd.f32 %v1144, %v1145
      %v1147 = vsel %vm1137, %v646, 0.0
      %v1148 = vadd.f32 %v1146, %v1147
      %v1149 = vsel %vm1137, %v651, 0.0
      %v1150 = vadd.f32 %v1148, %v1149
      %v1151 = vsel %vm1137, %v654, 0.0
      %v1152 = vadd.f32 %v1150, %v1151
      %v1153 = vsel %vm1137, %v659, 0.0
      %v1154 = vadd.f32 %v1152, %v1153
      %v1155 = vsel %vm1137, %v662, 0.0
      %v1156 = vadd.f32 %v1154, %v1155
      %v1157 = vsel %vm1137, %v667, 0.0
      %v1158 = vadd.f32 %v1156, %v1157
      %v1159 = vsel %vm1137, %v670, 0.0
      %v1160 = vadd.f32 %v1158, %v1159
      %v1161 = vsel %vm1137, %v675, 0.0
      %v1162 = vadd.f32 %v1160, %v1161
      %v1163 = vsel %vm1137, %v678, 0.0
      %v1164 = vadd.f32 %v1162, %v1163
      %v1165 = vsel %vm1137, %v683, 0.0
      %v1166 = vadd.f32 %v1164, %v1165
      %v1167 = vsel %vm1137, %v686, 0.0
      %v1168 = vadd.f32 %v1166, %v1167
      %v1169 = vsel %vm1137, %v691, 0.0
      %v1170 = vadd.f32 %v1168, %v1169
      %v1171 = vsel %vm1137, %v694, 0.0
      %v1172 = vadd.f32 %v1170, %v1171
      %v1173 = vsel %vm1137, %v699, 0.0
      %v1174 = vadd.f32 %v1172, %v1173
      %v1175 = vsel %vm1137, %v702, 0.0
      %v1176 = vadd.f32 %v1174, %v1175
      %v1177 = vsel %vm1137, %v707, 0.0
      %v1178 = vadd.f32 %v1176, %v1177
      %v1179 = vsel %vm1137, %v710, 0.0
      %v1180 = vadd.f32 %v1178, %v1179
      %v1181 = vsel %vm1137, %v715, 0.0
      %v1182 = vadd.f32 %v1180, %v1181
      %v1183 = vsel %vm1137, %v718, 0.0
      %v1184 = vadd.f32 %v1182, %v1183
      %v1185 = vsel %vm1137, %v723, 0.0
      %v1186 = vadd.f32 %v1184, %v1185
      %v1187 = vsel %vm1137, %v726, 0.0
      %v1188 = vadd.f32 %v1186, %v1187
      %v1189 = vsel %vm1137, %v731, 0.0
      %v1190 = vadd.f32 %v1188, %v1189
      %v1191 = vsel %vm1137, %v734, 0.0
      %v1192 = vadd.f32 %v1190, %v1191
      %v1193 = vsel %vm1137, %v739, 0.0
      %v1194 = vadd.f32 %v1192, %v1193
      %v1195 = vsel %vm1137, %v742, 0.0
      %v1196 = vadd.f32 %v1194, %v1195
      %v1197 = vsel %vm1137, %v747, 0.0
      %v1198 = vadd.f32 %v1196, %v1197
      %v1199 = vsel %vm1137, %v750, 0.0
      %v1200 = vadd.f32 %v1198, %v1199
      %v1201 = vsel %vm1137, %v755, 0.0
      %v1202 = vadd.f32 %v1200, %v1201
      %v1203 = vsel %vm1137, %v758, 0.0
      %v1204 = vadd.f32 %v1202, %v1203
      %v1205 = vsel %vm1137, %v763, 0.0
      %v1206 = vadd.f32 %v1204, %v1205
      %v1207 = vsel %vm1137, %v766, 0.0
      %v1208 = vadd.f32 %v1206, %v1207
      %v1209 = vsel %vm1137, %v771, 0.0
      %v1210 = vadd.f32 %v1208, %v1209
      %v1211 = vsel %vm1137, %v774, 0.0
      %v1212 = vadd.f32 %v1210, %v1211
      %v1213 = vsel %vm1137, %v779, 0.0
      %v1214 = vadd.f32 %v1212, %v1213
      %v1215 = vsel %vm1137, %v782, 0.0
      %v1216 = vadd.f32 %v1214, %v1215
      %v1217 = vsel %vm1137, %v787, 0.0
      %v1218 = vadd.f32 %v1216, %v1217
      %v1219 = vsel %vm1137, %v790, 0.0
      %v1220 = vadd.f32 %v1218, %v1219
      %v1221 = vsel %vm1137, %v795, 0.0
      %v1222 = vadd.f32 %v1220, %v1221
      %v1223 = vsel %vm1137, %v798, 0.0
      %v1224 = vadd.f32 %v1222, %v1223
      %v1225 = vsel %vm1137, %v803, 0.0
      %v1226 = vadd.f32 %v1224, %v1225
      %v1227 = vsel %vm1137, %v806, 0.0
      %v1228 = vadd.f32 %v1226, %v1227
      %v1229 = vsel %vm1137, %v811, 0.0
      %v1230 = vadd.f32 %v1228, %v1229
      %v1231 = vsel %vm1137, %v814, 0.0
      %v1232 = vadd.f32 %v1230, %v1231
      %v1233 = vsel %vm1137, %v819, 0.0
      %v1234 = vadd.f32 %v1232, %v1233
      %v1235 = vsel %vm1137, %v822, 0.0
      %v1236 = vadd.f32 %v1234, %v1235
      %v1237 = vsel %vm1137, %v827, 0.0
      %v1238 = vadd.f32 %v1236, %v1237
      %v1239 = vsel %vm1137, %v830, 0.0
      %v1240 = vadd.f32 %v1238, %v1239
      %v1241 = vsel %vm1137, %v835, 0.0
      %v1242 = vadd.f32 %v1240, %v1241
      %v1243 = vsel %vm1137, %v838, 0.0
      %v1244 = vadd.f32 %v1242, %v1243
      %v1245 = vsel %vm1137, %v843, 0.0
      %v1246 = vadd.f32 %v1244, %v1245
      %v1247 = vsel %vm1137, %v846, 0.0
      %v1248 = vadd.f32 %v1246, %v1247
      %v1249 = vsel %vm1137, %v851, 0.0
      %v1250 = vadd.f32 %v1248, %v1249
      %v1251 = vsel %vm1137, %v854, 0.0
      %v1252 = vadd.f32 %v1250, %v1251
      %v1253 = vsel %vm1137, %v859, 0.0
      %v1254 = vadd.f32 %v1252, %v1253
      %v1255 = vsel %vm1137, %v862, 0.0
      %v1256 = vadd.f32 %v1254, %v1255
      %v1257 = vsel %vm1137, %v867, 0.0
      %v1258 = vadd.f32 %v1256, %v1257
      %v1259 = vsel %vm1137, %v870, 0.0
      %v1260 = vadd.f32 %v1258, %v1259
      %v1261 = vsel %vm1137, %v875, 0.0
      %v1262 = vadd.f32 %v1260, %v1261
      %v1263 = vsel %vm1137, %v878, 0.0
      %v1264 = vadd.f32 %v1262, %v1263
      %v1265 = vsel %vm1137, %v883, 0.0
      %v1266 = vadd.f32 %v1264, %v1265
      %v1267 = vsel %vm1137, %v886, 0.0
      %v1268 = vadd.f32 %v1266, %v1267
      %v1269 = vsel %vm1137, %v891, 0.0
      %v1270 = vadd.f32 %v1268, %v1269
      %v1271 = vsel %vm1137, %v894, 0.0
      %v1272 = vadd.f32 %v1270, %v1271
      %v1273 = vsel %vm1137, %v899, 0.0
      %v1274 = vadd.f32 %v1272, %v1273
      %v1275 = vsel %vm1137, %v902, 0.0
      %v1276 = vadd.f32 %v1274, %v1275
      %v1277 = vsel %vm1137, %v907, 0.0
      %v1278 = vadd.f32 %v1276, %v1277
      %v1279 = vsel %vm1137, %v910, 0.0
      %v1280 = vadd.f32 %v1278, %v1279
      %v1281 = vsel %vm1137, %v915, 0.0
      %v1282 = vadd.f32 %v1280, %v1281
      %v1283 = vsel %vm1137, %v918, 0.0
      %v1284 = vadd.f32 %v1282, %v1283
      %v1285 = vsel %vm1137, %v923, 0.0
      %v1286 = vadd.f32 %v1284, %v1285
      %v1287 = vsel %vm1137, %v926, 0.0
      %v1288 = vadd.f32 %v1286, %v1287
      %v1289 = vsel %vm1137, %v931, 0.0
      %v1290 = vadd.f32 %v1288, %v1289
      %v1291 = vsel %vm1137, %v934, 0.0
      %v1292 = vadd.f32 %v1290, %v1291
      %v1293 = vsel %vm1137, %v939, 0.0
      %v1294 = vadd.f32 %v1292, %v1293
      %v1295 = vsel %vm1137, %v942, 0.0
      %v1296 = vadd.f32 %v1294, %v1295
      %v1297 = vsel %vm1137, %v947, 0.0
      %v1298 = vadd.f32 %v1296, %v1297
      %v1299 = vsel %vm1137, %v950, 0.0
      %v1300 = vadd.f32 %v1298, %v1299
      %v1301 = vsel %vm1137, %v955, 0.0
      %v1302 = vadd.f32 %v1300, %v1301
      %v1303 = vsel %vm1137, %v958, 0.0
      %v1304 = vadd.f32 %v1302, %v1303
      %v1305 = vsel %vm1137, %v963, 0.0
      %v1306 = vadd.f32 %v1304, %v1305
      %v1307 = vsel %vm1137, %v966, 0.0
      %v1308 = vadd.f32 %v1306, %v1307
      %v1309 = vsel %vm1137, %v971, 0.0
      %v1310 = vadd.f32 %v1308, %v1309
      %v1311 = vsel %vm1137, %v974, 0.0
      %v1312 = vadd.f32 %v1310, %v1311
      %v1313 = vsel %vm1137, %v979, 0.0
      %v1314 = vadd.f32 %v1312, %v1313
      %v1315 = vsel %vm1137, %v982, 0.0
      %v1316 = vadd.f32 %v1314, %v1315
      %v1317 = vsel %vm1137, %v987, 0.0
      %v1318 = vadd.f32 %v1316, %v1317
      %v1319 = vsel %vm1137, %v990, 0.0
      %v1320 = vadd.f32 %v1318, %v1319
      %v1321 = vsel %vm1137, %v995, 0.0
      %v1322 = vadd.f32 %v1320, %v1321
      %v1323 = vsel %vm1137, %v998, 0.0
      %v1324 = vadd.f32 %v1322, %v1323
      %v1325 = vsel %vm1137, %v1003, 0.0
      %v1326 = vadd.f32 %v1324, %v1325
      %v1327 = vsel %vm1137, %v1006, 0.0
      %v1328 = vadd.f32 %v1326, %v1327
      %v1329 = vsel %vm1137, %v1011, 0.0
      %v1330 = vadd.f32 %v1328, %v1329
      %v1331 = vsel %vm1137, %v1014, 0.0
      %v1332 = vadd.f32 %v1330, %v1331
      %v1333 = vsel %vm1137, %v1019, 0.0
      %v1334 = vadd.f32 %v1332, %v1333
      %v1335 = vsel %vm1137, %v1022, 0.0
      %v1336 = vadd.f32 %v1334, %v1335
      %v1337 = vsel %vm1137, %v1027, 0.0
      %v1338 = vadd.f32 %v1336, %v1337
      %v1339 = vsel %vm1137, %v1030, 0.0
      %v1340 = vadd.f32 %v1338, %v1339
      %v1341 = vsel %vm1137, %v1035, 0.0
      %v1342 = vadd.f32 %v1340, %v1341
      %v1343 = vsel %vm1137, %v1038, 0.0
      %v1344 = vadd.f32 %v1342, %v1343
      %v1345 = vsel %vm1137, %v1043, 0.0
      %v1346 = vadd.f32 %v1344, %v1345
      %v1347 = vsel %vm1137, %v1046, 0.0
      %v1348 = vadd.f32 %v1346, %v1347
      %v1349 = vsel %vm1137, %v1051, 0.0
      %v1350 = vadd.f32 %v1348, %v1349
      %v1351 = vsel %vm1137, %v1054, 0.0
      %v1352 = vadd.f32 %v1350, %v1351
      %v1353 = vsel %vm1137, %v1059, 0.0
      %v1354 = vadd.f32 %v1352, %v1353
      %v1355 = vsel %vm1137, %v1062, 0.0
      %v1356 = vadd.f32 %v1354, %v1355
      %v1357 = vsel %vm1137, %v1067, 0.0
      %v1358 = vadd.f32 %v1356, %v1357
      %v1359 = vsel %vm1137, %v1070, 0.0
      %v1360 = vadd.f32 %v1358, %v1359
      %v1361 = vsel %vm1137, %v1075, 0.0
      %v1362 = vadd.f32 %v1360, %v1361
      %v1363 = vsel %vm1137, %v1078, 0.0
      %v1364 = vadd.f32 %v1362, %v1363
      %v1365 = vsel %vm1137, %v1083, 0.0
      %v1366 = vadd.f32 %v1364, %v1365
      %v1367 = vsel %vm1137, %v1086, 0.0
      %v1368 = vadd.f32 %v1366, %v1367
      %v1369 = vsel %vm1137, %v1091, 0.0
      %v1370 = vadd.f32 %v1368, %v1369
      %v1371 = vsel %vm1137, %v1094, 0.0
      %v1372 = vadd.f32 %v1370, %v1371
      %v1373 = vsel %vm1137, %v1099, 0.0
      %v1374 = vadd.f32 %v1372, %v1373
      %v1375 = vsel %vm1137, %v1102, 0.0
      %v1376 = vadd.f32 %v1374, %v1375
      %v1377 = vsel %vm1137, %v1107, 0.0
      %v1378 = vadd.f32 %v1376, %v1377
      %v1379 = vsel %vm1137, %v1110, 0.0
      %v1380 = vadd.f32 %v1378, %v1379
      %v1381 = vsel %vm1137, %v1115, 0.0
      %v1382 = vadd.f32 %v1380, %v1381
      %v1383 = vsel %vm1137, %v1118, 0.0
      %v1384 = vadd.f32 %v1382, %v1383
      %v1385 = vsel %vm1137, %v1123, 0.0
      %v1386 = vadd.f32 %v1384, %v1385
      %v1387 = vsel %vm1137, %v1126, 0.0
      %v1388 = vadd.f32 %v1386, %v1387
      %v1389 = vsel %vm1137, %v1131, 0.0
      %v1390 = vadd.f32 %v1388, %v1389
      %v1391 = vsel %vm1137, %v1134, 0.0
      %v1392 = vadd.f32 %v1390, %v1391
      %v1393 = vrot.slane %v1392, 4
      %v1394 = vadd.f32 %v1392, %v1393
      %v1395 = vrot.slane %v1394, 2
      %v1396 = vadd.f32 %v1394, %v1395
      %v1397 = vrot.slane %v1396, 1
      %v1398 = vadd.f32 %v1396, %v1397
      %v1399 = vsel %vm1137, %v1398, 0.0
      %1400 = vadd.xlane.f32.xlu0 %v1399
      %v1401 = vpop.xlane.xlu0 %1400
      %v1402 = vrcp.pop 32768.0
      %v1403 = vmul.f32 %v1401, %v1402
      %v1404 = vsub.f32 %v627, %v1403
      %v1405 = vsub.f32 %v630, %v1403
      %v1406 = vsub.f32 %v635, %v1403
      %v1407 = vsub.f32 %v638, %v1403
      %v1408 = vsub.f32 %v643, %v1403
      %v1409 = vsub.f32 %v646, %v1403
      %v1410 = vsub.f32 %v651, %v1403
      %v1411 = vsub.f32 %v654, %v1403
      %v1412 = vsub.f32 %v659, %v1403
      %v1413 = vsub.f32 %v662, %v1403
      %v1414 = vsub.f32 %v667, %v1403
      %v1415 = vsub.f32 %v670, %v1403
      %v1416 = vsub.f32 %v675, %v1403
      %v1417 = vsub.f32 %v678, %v1403
      %v1418 = vsub.f32 %v683, %v1403
      %v1419 = vsub.f32 %v686, %v1403
      %v1420 = vsub.f32 %v691, %v1403
      %v1421 = vsub.f32 %v694, %v1403
      %v1422 = vsub.f32 %v699, %v1403
      %v1423 = vsub.f32 %v702, %v1403
      %v1424 = vsub.f32 %v707, %v1403
      %v1425 = vsub.f32 %v710, %v1403
      %v1426 = vsub.f32 %v715, %v1403
      %v1427 = vsub.f32 %v718, %v1403
      %v1428 = vsub.f32 %v723, %v1403
      %v1429 = vsub.f32 %v726, %v1403
      %v1430 = vsub.f32 %v731, %v1403
      %v1431 = vsub.f32 %v734, %v1403
      %v1432 = vsub.f32 %v739, %v1403
      %v1433 = vsub.f32 %v742, %v1403
      %v1434 = vsub.f32 %v747, %v1403
      %v1435 = vsub.f32 %v750, %v1403
      %v1436 = vsub.f32 %v755, %v1403
      %v1437 = vsub.f32 %v758, %v1403
      %v1438 = vsub.f32 %v763, %v1403
      %v1439 = vsub.f32 %v766, %v1403
      %v1440 = vsub.f32 %v771, %v1403
      %v1441 = vsub.f32 %v774, %v1403
      %v1442 = vsub.f32 %v779, %v1403
      %v1443 = vsub.f32 %v782, %v1403
      %v1444 = vsub.f32 %v787, %v1403
      %v1445 = vsub.f32 %v790, %v1403
      %v1446 = vsub.f32 %v795, %v1403
      %v1447 = vsub.f32 %v798, %v1403
      %v1448 = vsub.f32 %v803, %v1403
      %v1449 = vsub.f32 %v806, %v1403
      %v1450 = vsub.f32 %v811, %v1403
      %v1451 = vsub.f32 %v814, %v1403
      %v1452 = vsub.f32 %v819, %v1403
      %v1453 = vsub.f32 %v822, %v1403
      %v1454 = vsub.f32 %v827, %v1403
      %v1455 = vsub.f32 %v830, %v1403
      %v1456 = vsub.f32 %v835, %v1403
      %v1457 = vsub.f32 %v838, %v1403
      %v1458 = vsub.f32 %v843, %v1403
      %v1459 = vsub.f32 %v846, %v1403
      %v1460 = vsub.f32 %v851, %v1403
      %v1461 = vsub.f32 %v854, %v1403
      %v1462 = vsub.f32 %v859, %v1403
      %v1463 = vsub.f32 %v862, %v1403
      %v1464 = vsub.f32 %v867, %v1403
      %v1465 = vsub.f32 %v870, %v1403
      %v1466 = vsub.f32 %v875, %v1403
      %v1467 = vsub.f32 %v878, %v1403
      %v1468 = vsub.f32 %v883, %v1403
      %v1469 = vsub.f32 %v886, %v1403
      %v1470 = vsub.f32 %v891, %v1403
      %v1471 = vsub.f32 %v894, %v1403
      %v1472 = vsub.f32 %v899, %v1403
      %v1473 = vsub.f32 %v902, %v1403
      %v1474 = vsub.f32 %v907, %v1403
      %v1475 = vsub.f32 %v910, %v1403
      %v1476 = vsub.f32 %v915, %v1403
      %v1477 = vsub.f32 %v918, %v1403
      %v1478 = vsub.f32 %v923, %v1403
      %v1479 = vsub.f32 %v926, %v1403
      %v1480 = vsub.f32 %v931, %v1403
      %v1481 = vsub.f32 %v934, %v1403
      %v1482 = vsub.f32 %v939, %v1403
      %v1483 = vsub.f32 %v942, %v1403
      %v1484 = vsub.f32 %v947, %v1403
      %v1485 = vsub.f32 %v950, %v1403
      %v1486 = vsub.f32 %v955, %v1403
      %v1487 = vsub.f32 %v958, %v1403
      %v1488 = vsub.f32 %v963, %v1403
      %v1489 = vsub.f32 %v966, %v1403
      %v1490 = vsub.f32 %v971, %v1403
      %v1491 = vsub.f32 %v974, %v1403
      %v1492 = vsub.f32 %v979, %v1403
      %v1493 = vsub.f32 %v982, %v1403
      %v1494 = vsub.f32 %v987, %v1403
      %v1495 = vsub.f32 %v990, %v1403
      %v1496 = vsub.f32 %v995, %v1403
      %v1497 = vsub.f32 %v998, %v1403
      %v1498 = vsub.f32 %v1003, %v1403
      %v1499 = vsub.f32 %v1006, %v1403
      %v1500 = vsub.f32 %v1011, %v1403
      %v1501 = vsub.f32 %v1014, %v1403
      %v1502 = vsub.f32 %v1019, %v1403
      %v1503 = vsub.f32 %v1022, %v1403
      %v1504 = vsub.f32 %v1027, %v1403
      %v1505 = vsub.f32 %v1030, %v1403
      %v1506 = vsub.f32 %v1035, %v1403
      %v1507 = vsub.f32 %v1038, %v1403
      %v1508 = vsub.f32 %v1043, %v1403
      %v1509 = vsub.f32 %v1046, %v1403
      %v1510 = vsub.f32 %v1051, %v1403
      %v1511 = vsub.f32 %v1054, %v1403
      %v1512 = vsub.f32 %v1059, %v1403
      %v1513 = vsub.f32 %v1062, %v1403
      %v1514 = vsub.f32 %v1067, %v1403
      %v1515 = vsub.f32 %v1070, %v1403
      %v1516 = vsub.f32 %v1075, %v1403
      %v1517 = vsub.f32 %v1078, %v1403
      %v1518 = vsub.f32 %v1083, %v1403
      %v1519 = vsub.f32 %v1086, %v1403
      %v1520 = vsub.f32 %v1091, %v1403
      %v1521 = vsub.f32 %v1094, %v1403
      %v1522 = vsub.f32 %v1099, %v1403
      %v1523 = vsub.f32 %v1102, %v1403
      %v1524 = vsub.f32 %v1107, %v1403
      %v1525 = vsub.f32 %v1110, %v1403
      %v1526 = vsub.f32 %v1115, %v1403
      %v1527 = vsub.f32 %v1118, %v1403
      %v1528 = vsub.f32 %v1123, %v1403
      %v1529 = vsub.f32 %v1126, %v1403
      %v1530 = vsub.f32 %v1131, %v1403
      %v1531 = vsub.f32 %v1134, %v1403
      %v1532 = vmul.f32 %v1404, %v1404
      %v1533 = vmul.f32 %v1405, %v1405
      %v1534 = vmul.f32 %v1406, %v1406
      %v1535 = vmul.f32 %v1407, %v1407
      %v1536 = vmul.f32 %v1408, %v1408
      %v1537 = vmul.f32 %v1409, %v1409
      %v1538 = vmul.f32 %v1410, %v1410
      %v1539 = vmul.f32 %v1411, %v1411
      %v1540 = vmul.f32 %v1412, %v1412
      %v1541 = vmul.f32 %v1413, %v1413
      %v1542 = vmul.f32 %v1414, %v1414
      %v1543 = vmul.f32 %v1415, %v1415
      %v1544 = vmul.f32 %v1416, %v1416
      %v1545 = vmul.f32 %v1417, %v1417
      %v1546 = vmul.f32 %v1418, %v1418
      %v1547 = vmul.f32 %v1419, %v1419
      %v1548 = vmul.f32 %v1420, %v1420
      %v1549 = vmul.f32 %v1421, %v1421
      %v1550 = vmul.f32 %v1422, %v1422
      %v1551 = vmul.f32 %v1423, %v1423
      %v1552 = vmul.f32 %v1424, %v1424
      %v1553 = vmul.f32 %v1425, %v1425
      %v1554 = vmul.f32 %v1426, %v1426
      %v1555 = vmul.f32 %v1427, %v1427
      %v1556 = vmul.f32 %v1428, %v1428
      %v1557 = vmul.f32 %v1429, %v1429
      %v1558 = vmul.f32 %v1430, %v1430
      %v1559 = vmul.f32 %v1431, %v1431
      %v1560 = vmul.f32 %v1432, %v1432
      %v1561 = vmul.f32 %v1433, %v1433
      %v1562 = vmul.f32 %v1434, %v1434
      %v1563 = vmul.f32 %v1435, %v1435
      %v1564 = vmul.f32 %v1436, %v1436
      %v1565 = vmul.f32 %v1437, %v1437
      %v1566 = vmul.f32 %v1438, %v1438
      %v1567 = vmul.f32 %v1439, %v1439
      %v1568 = vmul.f32 %v1440, %v1440
      %v1569 = vmul.f32 %v1441, %v1441
      %v1570 = vmul.f32 %v1442, %v1442
      %v1571 = vmul.f32 %v1443, %v1443
      %v1572 = vmul.f32 %v1444, %v1444
      %v1573 = vmul.f32 %v1445, %v1445
      %v1574 = vmul.f32 %v1446, %v1446
      %v1575 = vmul.f32 %v1447, %v1447
      %v1576 = vmul.f32 %v1448, %v1448
      %v1577 = vmul.f32 %v1449, %v1449
      %v1578 = vmul.f32 %v1450, %v1450
      %v1579 = vmul.f32 %v1451, %v1451
      %v1580 = vmul.f32 %v1452, %v1452
      %v1581 = vmul.f32 %v1453, %v1453
      %v1582 = vmul.f32 %v1454, %v1454
      %v1583 = vmul.f32 %v1455, %v1455
      %v1584 = vmul.f32 %v1456, %v1456
      %v1585 = vmul.f32 %v1457, %v1457
      %v1586 = vmul.f32 %v1458, %v1458
      %v1587 = vmul.f32 %v1459, %v1459
      %v1588 = vmul.f32 %v1460, %v1460
      %v1589 = vmul.f32 %v1461, %v1461
      %v1590 = vmul.f32 %v1462, %v1462
      %v1591 = vmul.f32 %v1463, %v1463
      %v1592 = vmul.f32 %v1464, %v1464
      %v1593 = vmul.f32 %v1465, %v1465
      %v1594 = vmul.f32 %v1466, %v1466
      %v1595 = vmul.f32 %v1467, %v1467
      %v1596 = vmul.f32 %v1468, %v1468
      %v1597 = vmul.f32 %v1469, %v1469
      %v1598 = vmul.f32 %v1470, %v1470
      %v1599 = vmul.f32 %v1471, %v1471
      %v1600 = vmul.f32 %v1472, %v1472
      %v1601 = vmul.f32 %v1473, %v1473
      %v1602 = vmul.f32 %v1474, %v1474
      %v1603 = vmul.f32 %v1475, %v1475
      %v1604 = vmul.f32 %v1476, %v1476
      %v1605 = vmul.f32 %v1477, %v1477
      %v1606 = vmul.f32 %v1478, %v1478
      %v1607 = vmul.f32 %v1479, %v1479
      %v1608 = vmul.f32 %v1480, %v1480
      %v1609 = vmul.f32 %v1481, %v1481
      %v1610 = vmul.f32 %v1482, %v1482
      %v1611 = vmul.f32 %v1483, %v1483
      %v1612 = vmul.f32 %v1484, %v1484
      %v1613 = vmul.f32 %v1485, %v1485
      %v1614 = vmul.f32 %v1486, %v1486
      %v1615 = vmul.f32 %v1487, %v1487
      %v1616 = vmul.f32 %v1488, %v1488
      %v1617 = vmul.f32 %v1489, %v1489
      %v1618 = vmul.f32 %v1490, %v1490
      %v1619 = vmul.f32 %v1491, %v1491
      %v1620 = vmul.f32 %v1492, %v1492
      %v1621 = vmul.f32 %v1493, %v1493
      %v1622 = vmul.f32 %v1494, %v1494
      %v1623 = vmul.f32 %v1495, %v1495
      %v1624 = vmul.f32 %v1496, %v1496
      %v1625 = vmul.f32 %v1497, %v1497
      %v1626 = vmul.f32 %v1498, %v1498
      %v1627 = vmul.f32 %v1499, %v1499
      %v1628 = vmul.f32 %v1500, %v1500
      %v1629 = vmul.f32 %v1501, %v1501
      %v1630 = vmul.f32 %v1502, %v1502
      %v1631 = vmul.f32 %v1503, %v1503
      %v1632 = vmul.f32 %v1504, %v1504
      %v1633 = vmul.f32 %v1505, %v1505
      %v1634 = vmul.f32 %v1506, %v1506
      %v1635 = vmul.f32 %v1507, %v1507
      %v1636 = vmul.f32 %v1508, %v1508
      %v1637 = vmul.f32 %v1509, %v1509
      %v1638 = vmul.f32 %v1510, %v1510
      %v1639 = vmul.f32 %v1511, %v1511
      %v1640 = vmul.f32 %v1512, %v1512
      %v1641 = vmul.f32 %v1513, %v1513
      %v1642 = vmul.f32 %v1514, %v1514
      %v1643 = vmul.f32 %v1515, %v1515
      %v1644 = vmul.f32 %v1516, %v1516
      %v1645 = vmul.f32 %v1517, %v1517
      %v1646 = vmul.f32 %v1518, %v1518
      %v1647 = vmul.f32 %v1519, %v1519
      %v1648 = vmul.f32 %v1520, %v1520
      %v1649 = vmul.f32 %v1521, %v1521
      %v1650 = vmul.f32 %v1522, %v1522
      %v1651 = vmul.f32 %v1523, %v1523
      %v1652 = vmul.f32 %v1524, %v1524
      %v1653 = vmul.f32 %v1525, %v1525
      %v1654 = vmul.f32 %v1526, %v1526
      %v1655 = vmul.f32 %v1527, %v1527
      %v1656 = vmul.f32 %v1528, %v1528
      %v1657 = vmul.f32 %v1529, %v1529
      %v1658 = vmul.f32 %v1530, %v1530
      %v1659 = vmul.f32 %v1531, %v1531
      %v1660 = vsel %vm1137, %v1532, 0.0
      %v1661 = vsel %vm1137, %v1533, 0.0
      %v1662 = vadd.f32 %v1660, %v1661
      %v1663 = vsel %vm1137, %v1534, 0.0
      %v1664 = vadd.f32 %v1662, %v1663
      %v1665 = vsel %vm1137, %v1535, 0.0
      %v1666 = vadd.f32 %v1664, %v1665
      %v1667 = vsel %vm1137, %v1536, 0.0
      %v1668 = vadd.f32 %v1666, %v1667
      %v1669 = vsel %vm1137, %v1537, 0.0
      %v1670 = vadd.f32 %v1668, %v1669
      %v1671 = vsel %vm1137, %v1538, 0.0
      %v1672 = vadd.f32 %v1670, %v1671
      %v1673 = vsel %vm1137, %v1539, 0.0
      %v1674 = vadd.f32 %v1672, %v1673
      %v1675 = vsel %vm1137, %v1540, 0.0
      %v1676 = vadd.f32 %v1674, %v1675
      %v1677 = vsel %vm1137, %v1541, 0.0
      %v1678 = vadd.f32 %v1676, %v1677
      %v1679 = vsel %vm1137, %v1542, 0.0
      %v1680 = vadd.f32 %v1678, %v1679
      %v1681 = vsel %vm1137, %v1543, 0.0
      %v1682 = vadd.f32 %v1680, %v1681
      %v1683 = vsel %vm1137, %v1544, 0.0
      %v1684 = vadd.f32 %v1682, %v1683
      %v1685 = vsel %vm1137, %v1545, 0.0
      %v1686 = vadd.f32 %v1684, %v1685
      %v1687 = vsel %vm1137, %v1546, 0.0
      %v1688 = vadd.f32 %v1686, %v1687
      %v1689 = vsel %vm1137, %v1547, 0.0
      %v1690 = vadd.f32 %v1688, %v1689
      %v1691 = vsel %vm1137, %v1548, 0.0
      %v1692 = vadd.f32 %v1690, %v1691
      %v1693 = vsel %vm1137, %v1549, 0.0
      %v1694 = vadd.f32 %v1692, %v1693
      %v1695 = vsel %vm1137, %v1550, 0.0
      %v1696 = vadd.f32 %v1694, %v1695
      %v1697 = vsel %vm1137, %v1551, 0.0
      %v1698 = vadd.f32 %v1696, %v1697
      %v1699 = vsel %vm1137, %v1552, 0.0
      %v1700 = vadd.f32 %v1698, %v1699
      %v1701 = vsel %vm1137, %v1553, 0.0
      %v1702 = vadd.f32 %v1700, %v1701
      %v1703 = vsel %vm1137, %v1554, 0.0
      %v1704 = vadd.f32 %v1702, %v1703
      %v1705 = vsel %vm1137, %v1555, 0.0
      %v1706 = vadd.f32 %v1704, %v1705
      %v1707 = vsel %vm1137, %v1556, 0.0
      %v1708 = vadd.f32 %v1706, %v1707
      %v1709 = vsel %vm1137, %v1557, 0.0
      %v1710 = vadd.f32 %v1708, %v1709
      %v1711 = vsel %vm1137, %v1558, 0.0
      %v1712 = vadd.f32 %v1710, %v1711
      %v1713 = vsel %vm1137, %v1559, 0.0
      %v1714 = vadd.f32 %v1712, %v1713
      %v1715 = vsel %vm1137, %v1560, 0.0
      %v1716 = vadd.f32 %v1714, %v1715
      %v1717 = vsel %vm1137, %v1561, 0.0
      %v1718 = vadd.f32 %v1716, %v1717
      %v1719 = vsel %vm1137, %v1562, 0.0
      %v1720 = vadd.f32 %v1718, %v1719
      %v1721 = vsel %vm1137, %v1563, 0.0
      %v1722 = vadd.f32 %v1720, %v1721
      %v1723 = vsel %vm1137, %v1564, 0.0
      %v1724 = vadd.f32 %v1722, %v1723
      %v1725 = vsel %vm1137, %v1565, 0.0
      %v1726 = vadd.f32 %v1724, %v1725
      %v1727 = vsel %vm1137, %v1566, 0.0
      %v1728 = vadd.f32 %v1726, %v1727
      %v1729 = vsel %vm1137, %v1567, 0.0
      %v1730 = vadd.f32 %v1728, %v1729
      %v1731 = vsel %vm1137, %v1568, 0.0
      %v1732 = vadd.f32 %v1730, %v1731
      %v1733 = vsel %vm1137, %v1569, 0.0
      %v1734 = vadd.f32 %v1732, %v1733
      %v1735 = vsel %vm1137, %v1570, 0.0
      %v1736 = vadd.f32 %v1734, %v1735
      %v1737 = vsel %vm1137, %v1571, 0.0
      %v1738 = vadd.f32 %v1736, %v1737
      %v1739 = vsel %vm1137, %v1572, 0.0
      %v1740 = vadd.f32 %v1738, %v1739
      %v1741 = vsel %vm1137, %v1573, 0.0
      %v1742 = vadd.f32 %v1740, %v1741
      %v1743 = vsel %vm1137, %v1574, 0.0
      %v1744 = vadd.f32 %v1742, %v1743
      %v1745 = vsel %vm1137, %v1575, 0.0
      %v1746 = vadd.f32 %v1744, %v1745
      %v1747 = vsel %vm1137, %v1576, 0.0
      %v1748 = vadd.f32 %v1746, %v1747
      %v1749 = vsel %vm1137, %v1577, 0.0
      %v1750 = vadd.f32 %v1748, %v1749
      %v1751 = vsel %vm1137, %v1578, 0.0
      %v1752 = vadd.f32 %v1750, %v1751
      %v1753 = vsel %vm1137, %v1579, 0.0
      %v1754 = vadd.f32 %v1752, %v1753
      %v1755 = vsel %vm1137, %v1580, 0.0
      %v1756 = vadd.f32 %v1754, %v1755
      %v1757 = vsel %vm1137, %v1581, 0.0
      %v1758 = vadd.f32 %v1756, %v1757
      %v1759 = vsel %vm1137, %v1582, 0.0
      %v1760 = vadd.f32 %v1758, %v1759
      %v1761 = vsel %vm1137, %v1583, 0.0
      %v1762 = vadd.f32 %v1760, %v1761
      %v1763 = vsel %vm1137, %v1584, 0.0
      %v1764 = vadd.f32 %v1762, %v1763
      %v1765 = vsel %vm1137, %v1585, 0.0
      %v1766 = vadd.f32 %v1764, %v1765
      %v1767 = vsel %vm1137, %v1586, 0.0
      %v1768 = vadd.f32 %v1766, %v1767
      %v1769 = vsel %vm1137, %v1587, 0.0
      %v1770 = vadd.f32 %v1768, %v1769
      %v1771 = vsel %vm1137, %v1588, 0.0
      %v1772 = vadd.f32 %v1770, %v1771
      %v1773 = vsel %vm1137, %v1589, 0.0
      %v1774 = vadd.f32 %v1772, %v1773
      %v1775 = vsel %vm1137, %v1590, 0.0
      %v1776 = vadd.f32 %v1774, %v1775
      %v1777 = vsel %vm1137, %v1591, 0.0
      %v1778 = vadd.f32 %v1776, %v1777
      %v1779 = vsel %vm1137, %v1592, 0.0
      %v1780 = vadd.f32 %v1778, %v1779
      %v1781 = vsel %vm1137, %v1593, 0.0
      %v1782 = vadd.f32 %v1780, %v1781
      %v1783 = vsel %vm1137, %v1594, 0.0
      %v1784 = vadd.f32 %v1782, %v1783
      %v1785 = vsel %vm1137, %v1595, 0.0
      %v1786 = vadd.f32 %v1784, %v1785
      %v1787 = vsel %vm1137, %v1596, 0.0
      %v1788 = vadd.f32 %v1786, %v1787
      %v1789 = vsel %vm1137, %v1597, 0.0
      %v1790 = vadd.f32 %v1788, %v1789
      %v1791 = vsel %vm1137, %v1598, 0.0
      %v1792 = vadd.f32 %v1790, %v1791
      %v1793 = vsel %vm1137, %v1599, 0.0
      %v1794 = vadd.f32 %v1792, %v1793
      %v1795 = vsel %vm1137, %v1600, 0.0
      %v1796 = vadd.f32 %v1794, %v1795
      %v1797 = vsel %vm1137, %v1601, 0.0
      %v1798 = vadd.f32 %v1796, %v1797
      %v1799 = vsel %vm1137, %v1602, 0.0
      %v1800 = vadd.f32 %v1798, %v1799
      %v1801 = vsel %vm1137, %v1603, 0.0
      %v1802 = vadd.f32 %v1800, %v1801
      %v1803 = vsel %vm1137, %v1604, 0.0
      %v1804 = vadd.f32 %v1802, %v1803
      %v1805 = vsel %vm1137, %v1605, 0.0
      %v1806 = vadd.f32 %v1804, %v1805
      %v1807 = vsel %vm1137, %v1606, 0.0
      %v1808 = vadd.f32 %v1806, %v1807
      %v1809 = vsel %vm1137, %v1607, 0.0
      %v1810 = vadd.f32 %v1808, %v1809
      %v1811 = vsel %vm1137, %v1608, 0.0
      %v1812 = vadd.f32 %v1810, %v1811
      %v1813 = vsel %vm1137, %v1609, 0.0
      %v1814 = vadd.f32 %v1812, %v1813
      %v1815 = vsel %vm1137, %v1610, 0.0
      %v1816 = vadd.f32 %v1814, %v1815
      %v1817 = vsel %vm1137, %v1611, 0.0
      %v1818 = vadd.f32 %v1816, %v1817
      %v1819 = vsel %vm1137, %v1612, 0.0
      %v1820 = vadd.f32 %v1818, %v1819
      %v1821 = vsel %vm1137, %v1613, 0.0
      %v1822 = vadd.f32 %v1820, %v1821
      %v1823 = vsel %vm1137, %v1614, 0.0
      %v1824 = vadd.f32 %v1822, %v1823
      %v1825 = vsel %vm1137, %v1615, 0.0
      %v1826 = vadd.f32 %v1824, %v1825
      %v1827 = vsel %vm1137, %v1616, 0.0
      %v1828 = vadd.f32 %v1826, %v1827
      %v1829 = vsel %vm1137, %v1617, 0.0
      %v1830 = vadd.f32 %v1828, %v1829
      %v1831 = vsel %vm1137, %v1618, 0.0
      %v1832 = vadd.f32 %v1830, %v1831
      %v1833 = vsel %vm1137, %v1619, 0.0
      %v1834 = vadd.f32 %v1832, %v1833
      %v1835 = vsel %vm1137, %v1620, 0.0
      %v1836 = vadd.f32 %v1834, %v1835
      %v1837 = vsel %vm1137, %v1621, 0.0
      %v1838 = vadd.f32 %v1836, %v1837
      %v1839 = vsel %vm1137, %v1622, 0.0
      %v1840 = vadd.f32 %v1838, %v1839
      %v1841 = vsel %vm1137, %v1623, 0.0
      %v1842 = vadd.f32 %v1840, %v1841
      %v1843 = vsel %vm1137, %v1624, 0.0
      %v1844 = vadd.f32 %v1842, %v1843
      %v1845 = vsel %vm1137, %v1625, 0.0
      %v1846 = vadd.f32 %v1844, %v1845
      %v1847 = vsel %vm1137, %v1626, 0.0
      %v1848 = vadd.f32 %v1846, %v1847
      %v1849 = vsel %vm1137, %v1627, 0.0
      %v1850 = vadd.f32 %v1848, %v1849
      %v1851 = vsel %vm1137, %v1628, 0.0
      %v1852 = vadd.f32 %v1850, %v1851
      %v1853 = vsel %vm1137, %v1629, 0.0
      %v1854 = vadd.f32 %v1852, %v1853
      %v1855 = vsel %vm1137, %v1630, 0.0
      %v1856 = vadd.f32 %v1854, %v1855
      %v1857 = vsel %vm1137, %v1631, 0.0
      %v1858 = vadd.f32 %v1856, %v1857
      %v1859 = vsel %vm1137, %v1632, 0.0
      %v1860 = vadd.f32 %v1858, %v1859
      %v1861 = vsel %vm1137, %v1633, 0.0
      %v1862 = vadd.f32 %v1860, %v1861
      %v1863 = vsel %vm1137, %v1634, 0.0
      %v1864 = vadd.f32 %v1862, %v1863
      %v1865 = vsel %vm1137, %v1635, 0.0
      %v1866 = vadd.f32 %v1864, %v1865
      %v1867 = vsel %vm1137, %v1636, 0.0
      %v1868 = vadd.f32 %v1866, %v1867
      %v1869 = vsel %vm1137, %v1637, 0.0
      %v1870 = vadd.f32 %v1868, %v1869
      %v1871 = vsel %vm1137, %v1638, 0.0
      %v1872 = vadd.f32 %v1870, %v1871
      %v1873 = vsel %vm1137, %v1639, 0.0
      %v1874 = vadd.f32 %v1872, %v1873
      %v1875 = vsel %vm1137, %v1640, 0.0
      %v1876 = vadd.f32 %v1874, %v1875
      %v1877 = vsel %vm1137, %v1641, 0.0
      %v1878 = vadd.f32 %v1876, %v1877
      %v1879 = vsel %vm1137, %v1642, 0.0
      %v1880 = vadd.f32 %v1878, %v1879
      %v1881 = vsel %vm1137, %v1643, 0.0
      %v1882 = vadd.f32 %v1880, %v1881
      %v1883 = vsel %vm1137, %v1644, 0.0
      %v1884 = vadd.f32 %v1882, %v1883
      %v1885 = vsel %vm1137, %v1645, 0.0
      %v1886 = vadd.f32 %v1884, %v1885
      %v1887 = vsel %vm1137, %v1646, 0.0
      %v1888 = vadd.f32 %v1886, %v1887
      %v1889 = vsel %vm1137, %v1647, 0.0
      %v1890 = vadd.f32 %v1888, %v1889
      %v1891 = vsel %vm1137, %v1648, 0.0
      %v1892 = vadd.f32 %v1890, %v1891
      %v1893 = vsel %vm1137, %v1649, 0.0
      %v1894 = vadd.f32 %v1892, %v1893
      %v1895 = vsel %vm1137, %v1650, 0.0
      %v1896 = vadd.f32 %v1894, %v1895
      %v1897 = vsel %vm1137, %v1651, 0.0
      %v1898 = vadd.f32 %v1896, %v1897
      %v1899 = vsel %vm1137, %v1652, 0.0
      %v1900 = vadd.f32 %v1898, %v1899
      %v1901 = vsel %vm1137, %v1653, 0.0
      %v1902 = vadd.f32 %v1900, %v1901
      %v1903 = vsel %vm1137, %v1654, 0.0
      %v1904 = vadd.f32 %v1902, %v1903
      %v1905 = vsel %vm1137, %v1655, 0.0
      %v1906 = vadd.f32 %v1904, %v1905
      %v1907 = vsel %vm1137, %v1656, 0.0
      %v1908 = vadd.f32 %v1906, %v1907
      %v1909 = vsel %vm1137, %v1657, 0.0
      %v1910 = vadd.f32 %v1908, %v1909
      %v1911 = vsel %vm1137, %v1658, 0.0
      %v1912 = vadd.f32 %v1910, %v1911
      %v1913 = vsel %vm1137, %v1659, 0.0
      %v1914 = vadd.f32 %v1912, %v1913
      %v1915 = vrot.slane %v1914, 4
      %v1916 = vadd.f32 %v1914, %v1915
      %v1917 = vrot.slane %v1916, 2
      %v1918 = vadd.f32 %v1916, %v1917
      %v1919 = vrot.slane %v1918, 1
      %v1920 = vadd.f32 %v1918, %v1919
      %v1921 = vsel %vm1137, %v1920, 0.0
      %1922 = vadd.xlane.f32.xlu0 %v1921
      %v1923 = vpop.xlane.xlu0 %1922
      %v1924 = vmul.f32 %v1923, %v1402
      %v1925 = vadd.f32 %v1924, 1e-05
      %v1926 = vrsqrt.pop %v1925
      %v1927 = vmul.f32 %v1404, %v1926
      %v1928 = vmul.f32 %v1405, %v1926
      %v1929 = vmul.f32 %v1406, %v1926
      %v1930 = vmul.f32 %v1407, %v1926
      %v1931 = vmul.f32 %v1408, %v1926
      %v1932 = vmul.f32 %v1409, %v1926
      %v1933 = vmul.f32 %v1410, %v1926
      %v1934 = vmul.f32 %v1411, %v1926
      %v1935 = vmul.f32 %v1412, %v1926
      %v1936 = vmul.f32 %v1413, %v1926
      %v1937 = vmul.f32 %v1414, %v1926
      %v1938 = vmul.f32 %v1415, %v1926
      %v1939 = vmul.f32 %v1416, %v1926
      %v1940 = vmul.f32 %v1417, %v1926
      %v1941 = vmul.f32 %v1418, %v1926
      %v1942 = vmul.f32 %v1419, %v1926
      %v1943 = vmul.f32 %v1420, %v1926
      %v1944 = vmul.f32 %v1421, %v1926
      %v1945 = vmul.f32 %v1422, %v1926
      %v1946 = vmul.f32 %v1423, %v1926
      %v1947 = vmul.f32 %v1424, %v1926
      %v1948 = vmul.f32 %v1425, %v1926
      %v1949 = vmul.f32 %v1426, %v1926
      %v1950 = vmul.f32 %v1427, %v1926
      %v1951 = vmul.f32 %v1428, %v1926
      %v1952 = vmul.f32 %v1429, %v1926
      %v1953 = vmul.f32 %v1430, %v1926
      %v1954 = vmul.f32 %v1431, %v1926
      %v1955 = vmul.f32 %v1432, %v1926
      %v1956 = vmul.f32 %v1433, %v1926
      %v1957 = vmul.f32 %v1434, %v1926
      %v1958 = vmul.f32 %v1435, %v1926
      %v1959 = vmul.f32 %v1436, %v1926
      %v1960 = vmul.f32 %v1437, %v1926
      %v1961 = vmul.f32 %v1438, %v1926
      %v1962 = vmul.f32 %v1439, %v1926
      %v1963 = vmul.f32 %v1440, %v1926
      %v1964 = vmul.f32 %v1441, %v1926
      %v1965 = vmul.f32 %v1442, %v1926
      %v1966 = vmul.f32 %v1443, %v1926
      %v1967 = vmul.f32 %v1444, %v1926
      %v1968 = vmul.f32 %v1445, %v1926
      %v1969 = vmul.f32 %v1446, %v1926
      %v1970 = vmul.f32 %v1447, %v1926
      %v1971 = vmul.f32 %v1448, %v1926
      %v1972 = vmul.f32 %v1449, %v1926
      %v1973 = vmul.f32 %v1450, %v1926
      %v1974 = vmul.f32 %v1451, %v1926
      %v1975 = vmul.f32 %v1452, %v1926
      %v1976 = vmul.f32 %v1453, %v1926
      %v1977 = vmul.f32 %v1454, %v1926
      %v1978 = vmul.f32 %v1455, %v1926
      %v1979 = vmul.f32 %v1456, %v1926
      %v1980 = vmul.f32 %v1457, %v1926
      %v1981 = vmul.f32 %v1458, %v1926
      %v1982 = vmul.f32 %v1459, %v1926
      %v1983 = vmul.f32 %v1460, %v1926
      %v1984 = vmul.f32 %v1461, %v1926
      %v1985 = vmul.f32 %v1462, %v1926
      %v1986 = vmul.f32 %v1463, %v1926
      %v1987 = vmul.f32 %v1464, %v1926
      %v1988 = vmul.f32 %v1465, %v1926
      %v1989 = vmul.f32 %v1466, %v1926
      %v1990 = vmul.f32 %v1467, %v1926
      %v1991 = vmul.f32 %v1468, %v1926
      %v1992 = vmul.f32 %v1469, %v1926
      %v1993 = vmul.f32 %v1470, %v1926
      %v1994 = vmul.f32 %v1471, %v1926
      %v1995 = vmul.f32 %v1472, %v1926
      %v1996 = vmul.f32 %v1473, %v1926
      %v1997 = vmul.f32 %v1474, %v1926
      %v1998 = vmul.f32 %v1475, %v1926
      %v1999 = vmul.f32 %v1476, %v1926
      %v2000 = vmul.f32 %v1477, %v1926
      %v2001 = vmul.f32 %v1478, %v1926
      %v2002 = vmul.f32 %v1479, %v1926
      %v2003 = vmul.f32 %v1480, %v1926
      %v2004 = vmul.f32 %v1481, %v1926
      %v2005 = vmul.f32 %v1482, %v1926
      %v2006 = vmul.f32 %v1483, %v1926
      %v2007 = vmul.f32 %v1484, %v1926
      %v2008 = vmul.f32 %v1485, %v1926
      %v2009 = vmul.f32 %v1486, %v1926
      %v2010 = vmul.f32 %v1487, %v1926
      %v2011 = vmul.f32 %v1488, %v1926
      %v2012 = vmul.f32 %v1489, %v1926
      %v2013 = vmul.f32 %v1490, %v1926
      %v2014 = vmul.f32 %v1491, %v1926
      %v2015 = vmul.f32 %v1492, %v1926
      %v2016 = vmul.f32 %v1493, %v1926
      %v2017 = vmul.f32 %v1494, %v1926
      %v2018 = vmul.f32 %v1495, %v1926
      %v2019 = vmul.f32 %v1496, %v1926
      %v2020 = vmul.f32 %v1497, %v1926
      %v2021 = vmul.f32 %v1498, %v1926
      %v2022 = vmul.f32 %v1499, %v1926
      %v2023 = vmul.f32 %v1500, %v1926
      %v2024 = vmul.f32 %v1501, %v1926
      %v2025 = vmul.f32 %v1502, %v1926
      %v2026 = vmul.f32 %v1503, %v1926
      %v2027 = vmul.f32 %v1504, %v1926
      %v2028 = vmul.f32 %v1505, %v1926
      %v2029 = vmul.f32 %v1506, %v1926
      %v2030 = vmul.f32 %v1507, %v1926
      %v2031 = vmul.f32 %v1508, %v1926
      %v2032 = vmul.f32 %v1509, %v1926
      %v2033 = vmul.f32 %v1510, %v1926
      %v2034 = vmul.f32 %v1511, %v1926
      %v2035 = vmul.f32 %v1512, %v1926
      %v2036 = vmul.f32 %v1513, %v1926
      %v2037 = vmul.f32 %v1514, %v1926
      %v2038 = vmul.f32 %v1515, %v1926
      %v2039 = vmul.f32 %v1516, %v1926
      %v2040 = vmul.f32 %v1517, %v1926
      %v2041 = vmul.f32 %v1518, %v1926
      %v2042 = vmul.f32 %v1519, %v1926
      %v2043 = vmul.f32 %v1520, %v1926
      %v2044 = vmul.f32 %v1521, %v1926
      %v2045 = vmul.f32 %v1522, %v1926
      %v2046 = vmul.f32 %v1523, %v1926
      %v2047 = vmul.f32 %v1524, %v1926
      %v2048 = vmul.f32 %v1525, %v1926
      %v2049 = vmul.f32 %v1526, %v1926
      %v2050 = vmul.f32 %v1527, %v1926
      %v2051 = vmul.f32 %v1528, %v1926
      %v2052 = vmul.f32 %v1529, %v1926
      %v2053 = vmul.f32 %v1530, %v1926
      %v2054 = vmul.f32 %v1531, %v1926
      %v2055 = vld [vmem:[%s2] sm:$0xff]
      %v2056 = vld [vmem:[%s2 + $0x8] sm:$0xff]
      %v2057 = vld [vmem:[%s2 + $0x10] sm:$0xff]
      %v2058 = vld [vmem:[%s2 + $0x18] sm:$0xff]
      %v2059 = vld [vmem:[%s2 + $0x20] sm:$0xff]
      %v2060 = vld [vmem:[%s2 + $0x28] sm:$0xff]
      %v2061 = vld [vmem:[%s2 + $0x30] sm:$0xff]
      %v2062 = vld [vmem:[%s2 + $0x38] sm:$0xff]
      %v2063 = vld [vmem:[%s2 + $0x40] sm:$0xff]
      %v2064 = vld [vmem:[%s2 + $0x48] sm:$0xff]
      %v2065 = vld [vmem:[%s2 + $0x50] sm:$0xff]
      %v2066 = vld [vmem:[%s2 + $0x58] sm:$0xff]
      %v2067 = vld [vmem:[%s2 + $0x60] sm:$0xff]
      %v2068 = vld [vmem:[%s2 + $0x68] sm:$0xff]
      %v2069 = vld [vmem:[%s2 + $0x70] sm:$0xff]
      %v2070 = vld [vmem:[%s2 + $0x78] sm:$0xff]
      %v2071 = vld [vmem:[%s2 + $0x80] sm:$0xff]
      %v2072 = vld [vmem:[%s2 + $0x88] sm:$0xff]
      %v2073 = vld [vmem:[%s2 + $0x90] sm:$0xff]
      %v2074 = vld [vmem:[%s2 + $0x98] sm:$0xff]
      %v2075 = vld [vmem:[%s2 + $0xa0] sm:$0xff]
      %v2076 = vld [vmem:[%s2 + $0xa8] sm:$0xff]
      %v2077 = vld [vmem:[%s2 + $0xb0] sm:$0xff]
      %v2078 = vld [vmem:[%s2 + $0xb8] sm:$0xff]
      %v2079 = vld [vmem:[%s2 + $0xc0] sm:$0xff]
      %v2080 = vld [vmem:[%s2 + $0xc8] sm:$0xff]
      %v2081 = vld [vmem:[%s2 + $0xd0] sm:$0xff]
      %v2082 = vld [vmem:[%s2 + $0xd8] sm:$0xff]
      %v2083 = vld [vmem:[%s2 + $0xe0] sm:$0xff]
      %v2084 = vld [vmem:[%s2 + $0xe8] sm:$0xff]
      %v2085 = vld [vmem:[%s2 + $0xf0] sm:$0xff]
      %v2086 = vld [vmem:[%s2 + $0xf8] sm:$0xff]
      %v2087 = vld [vmem:[%s2 + $0x100] sm:$0xff]
      %v2088 = vld [vmem:[%s2 + $0x108] sm:$0xff]
      %v2089 = vld [vmem:[%s2 + $0x110] sm:$0xff]
      %v2090 = vld [vmem:[%s2 + $0x118] sm:$0xff]
      %v2091 = vld [vmem:[%s2 + $0x120] sm:$0xff]
      %v2092 = vld [vmem:[%s2 + $0x128] sm:$0xff]
      %v2093 = vld [vmem:[%s2 + $0x130] sm:$0xff]
      %v2094 = vld [vmem:[%s2 + $0x138] sm:$0xff]
      %v2095 = vld [vmem:[%s2 + $0x140] sm:$0xff]
      %v2096 = vld [vmem:[%s2 + $0x148] sm:$0xff]
      %v2097 = vld [vmem:[%s2 + $0x150] sm:$0xff]
      %v2098 = vld [vmem:[%s2 + $0x158] sm:$0xff]
      %v2099 = vld [vmem:[%s2 + $0x160] sm:$0xff]
      %v2100 = vld [vmem:[%s2 + $0x168] sm:$0xff]
      %v2101 = vld [vmem:[%s2 + $0x170] sm:$0xff]
      %v2102 = vld [vmem:[%s2 + $0x178] sm:$0xff]
      %v2103 = vld [vmem:[%s2 + $0x180] sm:$0xff]
      %v2104 = vld [vmem:[%s2 + $0x188] sm:$0xff]
      %v2105 = vld [vmem:[%s2 + $0x190] sm:$0xff]
      %v2106 = vld [vmem:[%s2 + $0x198] sm:$0xff]
      %v2107 = vld [vmem:[%s2 + $0x1a0] sm:$0xff]
      %v2108 = vld [vmem:[%s2 + $0x1a8] sm:$0xff]
      %v2109 = vld [vmem:[%s2 + $0x1b0] sm:$0xff]
      %v2110 = vld [vmem:[%s2 + $0x1b8] sm:$0xff]
      %v2111 = vld [vmem:[%s2 + $0x1c0] sm:$0xff]
      %v2112 = vld [vmem:[%s2 + $0x1c8] sm:$0xff]
      %v2113 = vld [vmem:[%s2 + $0x1d0] sm:$0xff]
      %v2114 = vld [vmem:[%s2 + $0x1d8] sm:$0xff]
      %v2115 = vld [vmem:[%s2 + $0x1e0] sm:$0xff]
      %v2116 = vld [vmem:[%s2 + $0x1e8] sm:$0xff]
      %v2117 = vld [vmem:[%s2 + $0x1f0] sm:$0xff]
      %v2118 = vld [vmem:[%s2 + $0x1f8] sm:$0xff]
      %v2119 = vld [vmem:[%s2 + $0x200] sm:$0xff]
      %v2120 = vld [vmem:[%s2 + $0x208] sm:$0xff]
      %v2121 = vld [vmem:[%s2 + $0x210] sm:$0xff]
      %v2122 = vld [vmem:[%s2 + $0x218] sm:$0xff]
      %v2123 = vld [vmem:[%s2 + $0x220] sm:$0xff]
      %v2124 = vld [vmem:[%s2 + $0x228] sm:$0xff]
      %v2125 = vld [vmem:[%s2 + $0x230] sm:$0xff]
      %v2126 = vld [vmem:[%s2 + $0x238] sm:$0xff]
      %v2127 = vld [vmem:[%s2 + $0x240] sm:$0xff]
      %v2128 = vld [vmem:[%s2 + $0x248] sm:$0xff]
      %v2129 = vld [vmem:[%s2 + $0x250] sm:$0xff]
      %v2130 = vld [vmem:[%s2 + $0x258] sm:$0xff]
      %v2131 = vld [vmem:[%s2 + $0x260] sm:$0xff]
      %v2132 = vld [vmem:[%s2 + $0x268] sm:$0xff]
      %v2133 = vld [vmem:[%s2 + $0x270] sm:$0xff]
      %v2134 = vld [vmem:[%s2 + $0x278] sm:$0xff]
      %v2135 = vld [vmem:[%s2 + $0x280] sm:$0xff]
      %v2136 = vld [vmem:[%s2 + $0x288] sm:$0xff]
      %v2137 = vld [vmem:[%s2 + $0x290] sm:$0xff]
      %v2138 = vld [vmem:[%s2 + $0x298] sm:$0xff]
      %v2139 = vld [vmem:[%s2 + $0x2a0] sm:$0xff]
      %v2140 = vld [vmem:[%s2 + $0x2a8] sm:$0xff]
      %v2141 = vld [vmem:[%s2 + $0x2b0] sm:$0xff]
      %v2142 = vld [vmem:[%s2 + $0x2b8] sm:$0xff]
      %v2143 = vld [vmem:[%s2 + $0x2c0] sm:$0xff]
      %v2144 = vld [vmem:[%s2 + $0x2c8] sm:$0xff]
      %v2145 = vld [vmem:[%s2 + $0x2d0] sm:$0xff]
      %v2146 = vld [vmem:[%s2 + $0x2d8] sm:$0xff]
      %v2147 = vld [vmem:[%s2 + $0x2e0] sm:$0xff]
      %v2148 = vld [vmem:[%s2 + $0x2e8] sm:$0xff]
      %v2149 = vld [vmem:[%s2 + $0x2f0] sm:$0xff]
      %v2150 = vld [vmem:[%s2 + $0x2f8] sm:$0xff]
      %v2151 = vld [vmem:[%s2 + $0x300] sm:$0xff]
      %v2152 = vld [vmem:[%s2 + $0x308] sm:$0xff]
      %v2153 = vld [vmem:[%s2 + $0x310] sm:$0xff]
      %v2154 = vld [vmem:[%s2 + $0x318] sm:$0xff]
      %v2155 = vld [vmem:[%s2 + $0x320] sm:$0xff]
      %v2156 = vld [vmem:[%s2 + $0x328] sm:$0xff]
      %v2157 = vld [vmem:[%s2 + $0x330] sm:$0xff]
      %v2158 = vld [vmem:[%s2 + $0x338] sm:$0xff]
      %v2159 = vld [vmem:[%s2 + $0x340] sm:$0xff]
      %v2160 = vld [vmem:[%s2 + $0x348] sm:$0xff]
      %v2161 = vld [vmem:[%s2 + $0x350] sm:$0xff]
      %v2162 = vld [vmem:[%s2 + $0x358] sm:$0xff]
      %v2163 = vld [vmem:[%s2 + $0x360] sm:$0xff]
      %v2164 = vld [vmem:[%s2 + $0x368] sm:$0xff]
      %v2165 = vld [vmem:[%s2 + $0x370] sm:$0xff]
      %v2166 = vld [vmem:[%s2 + $0x378] sm:$0xff]
      %v2167 = vld [vmem:[%s2 + $0x380] sm:$0xff]
      %v2168 = vld [vmem:[%s2 + $0x388] sm:$0xff]
      %v2169 = vld [vmem:[%s2 + $0x390] sm:$0xff]
      %v2170 = vld [vmem:[%s2 + $0x398] sm:$0xff]
      %v2171 = vld [vmem:[%s2 + $0x3a0] sm:$0xff]
      %v2172 = vld [vmem:[%s2 + $0x3a8] sm:$0xff]
      %v2173 = vld [vmem:[%s2 + $0x3b0] sm:$0xff]
      %v2174 = vld [vmem:[%s2 + $0x3b8] sm:$0xff]
      %v2175 = vld [vmem:[%s2 + $0x3c0] sm:$0xff]
      %v2176 = vld [vmem:[%s2 + $0x3c8] sm:$0xff]
      %v2177 = vld [vmem:[%s2 + $0x3d0] sm:$0xff]
      %v2178 = vld [vmem:[%s2 + $0x3d8] sm:$0xff]
      %v2179 = vld [vmem:[%s2 + $0x3e0] sm:$0xff]
      %v2180 = vld [vmem:[%s2 + $0x3e8] sm:$0xff]
      %v2181 = vld [vmem:[%s2 + $0x3f0] sm:$0xff]
      %v2182 = vld [vmem:[%s2 + $0x3f8] sm:$0xff]
      %v2183 = vmul.f32 %v1927, %v2055
      %v2184 = vmul.f32 %v1928, %v2056
      %v2185 = vmul.f32 %v1929, %v2057
      %v2186 = vmul.f32 %v1930, %v2058
      %v2187 = vmul.f32 %v1931, %v2059
      %v2188 = vmul.f32 %v1932, %v2060
      %v2189 = vmul.f32 %v1933, %v2061
      %v2190 = vmul.f32 %v1934, %v2062
      %v2191 = vmul.f32 %v1935, %v2063
      %v2192 = vmul.f32 %v1936, %v2064
      %v2193 = vmul.f32 %v1937, %v2065
      %v2194 = vmul.f32 %v1938, %v2066
      %v2195 = vmul.f32 %v1939, %v2067
      %v2196 = vmul.f32 %v1940, %v2068
      %v2197 = vmul.f32 %v1941, %v2069
      %v2198 = vmul.f32 %v1942, %v2070
      %v2199 = vmul.f32 %v1943, %v2071
      %v2200 = vmul.f32 %v1944, %v2072
      %v2201 = vmul.f32 %v1945, %v2073
      %v2202 = vmul.f32 %v1946, %v2074
      %v2203 = vmul.f32 %v1947, %v2075
      %v2204 = vmul.f32 %v1948, %v2076
      %v2205 = vmul.f32 %v1949, %v2077
      %v2206 = vmul.f32 %v1950, %v2078
      %v2207 = vmul.f32 %v1951, %v2079
      %v2208 = vmul.f32 %v1952, %v2080
      %v2209 = vmul.f32 %v1953, %v2081
      %v2210 = vmul.f32 %v1954, %v2082
      %v2211 = vmul.f32 %v1955, %v2083
      %v2212 = vmul.f32 %v1956, %v2084
      %v2213 = vmul.f32 %v1957, %v2085
      %v2214 = vmul.f32 %v1958, %v2086
      %v2215 = vmul.f32 %v1959, %v2087
      %v2216 = vmul.f32 %v1960, %v2088
      %v2217 = vmul.f32 %v1961, %v2089
      %v2218 = vmul.f32 %v1962, %v2090
      %v2219 = vmul.f32 %v1963, %v2091
      %v2220 = vmul.f32 %v1964, %v2092
      %v2221 = vmul.f32 %v1965, %v2093
      %v2222 = vmul.f32 %v1966, %v2094
      %v2223 = vmul.f32 %v1967, %v2095
      %v2224 = vmul.f32 %v1968, %v2096
      %v2225 = vmul.f32 %v1969, %v2097
      %v2226 = vmul.f32 %v1970, %v2098
      %v2227 = vmul.f32 %v1971, %v2099
      %v2228 = vmul.f32 %v1972, %v2100
      %v2229 = vmul.f32 %v1973, %v2101
      %v2230 = vmul.f32 %v1974, %v2102
      %v2231 = vmul.f32 %v1975, %v2103
      %v2232 = vmul.f32 %v1976, %v2104
      %v2233 = vmul.f32 %v1977, %v2105
      %v2234 = vmul.f32 %v1978, %v2106
      %v2235 = vmul.f32 %v1979, %v2107
      %v2236 = vmul.f32 %v1980, %v2108
      %v2237 = vmul.f32 %v1981, %v2109
      %v2238 = vmul.f32 %v1982, %v2110
      %v2239 = vmul.f32 %v1983, %v2111
      %v2240 = vmul.f32 %v1984, %v2112
      %v2241 = vmul.f32 %v1985, %v2113
      %v2242 = vmul.f32 %v1986, %v2114
      %v2243 = vmul.f32 %v1987, %v2115
      %v2244 = vmul.f32 %v1988, %v2116
      %v2245 = vmul.f32 %v1989, %v2117
      %v2246 = vmul.f32 %v1990, %v2118
      %v2247 = vmul.f32 %v1991, %v2119
      %v2248 = vmul.f32 %v1992, %v2120
      %v2249 = vmul.f32 %v1993, %v2121
      %v2250 = vmul.f32 %v1994, %v2122
      %v2251 = vmul.f32 %v1995, %v2123
      %v2252 = vmul.f32 %v1996, %v2124
      %v2253 = vmul.f32 %v1997, %v2125
      %v2254 = vmul.f32 %v1998, %v2126
      %v2255 = vmul.f32 %v1999, %v2127
      %v2256 = vmul.f32 %v2000, %v2128
      %v2257 = vmul.f32 %v2001, %v2129
      %v2258 = vmul.f32 %v2002, %v2130
      %v2259 = vmul.f32 %v2003, %v2131
      %v2260 = vmul.f32 %v2004, %v2132
      %v2261 = vmul.f32 %v2005, %v2133
      %v2262 = vmul.f32 %v2006, %v2134
      %v2263 = vmul.f32 %v2007, %v2135
      %v2264 = vmul.f32 %v2008, %v2136
      %v2265 = vmul.f32 %v2009, %v2137
      %v2266 = vmul.f32 %v2010, %v2138
      %v2267 = vmul.f32 %v2011, %v2139
      %v2268 = vmul.f32 %v2012, %v2140
      %v2269 = vmul.f32 %v2013, %v2141
      %v2270 = vmul.f32 %v2014, %v2142
      %v2271 = vmul.f32 %v2015, %v2143
      %v2272 = vmul.f32 %v2016, %v2144
      %v2273 = vmul.f32 %v2017, %v2145
      %v2274 = vmul.f32 %v2018, %v2146
      %v2275 = vmul.f32 %v2019, %v2147
      %v2276 = vmul.f32 %v2020, %v2148
      %v2277 = vmul.f32 %v2021, %v2149
      %v2278 = vmul.f32 %v2022, %v2150
      %v2279 = vmul.f32 %v2023, %v2151
      %v2280 = vmul.f32 %v2024, %v2152
      %v2281 = vmul.f32 %v2025, %v2153
      %v2282 = vmul.f32 %v2026, %v2154
      %v2283 = vmul.f32 %v2027, %v2155
      %v2284 = vmul.f32 %v2028, %v2156
      %v2285 = vmul.f32 %v2029, %v2157
      %v2286 = vmul.f32 %v2030, %v2158
      %v2287 = vmul.f32 %v2031, %v2159
      %v2288 = vmul.f32 %v2032, %v2160
      %v2289 = vmul.f32 %v2033, %v2161
      %v2290 = vmul.f32 %v2034, %v2162
      %v2291 = vmul.f32 %v2035, %v2163
      %v2292 = vmul.f32 %v2036, %v2164
      %v2293 = vmul.f32 %v2037, %v2165
      %v2294 = vmul.f32 %v2038, %v2166
      %v2295 = vmul.f32 %v2039, %v2167
      %v2296 = vmul.f32 %v2040, %v2168
      %v2297 = vmul.f32 %v2041, %v2169
      %v2298 = vmul.f32 %v2042, %v2170
      %v2299 = vmul.f32 %v2043, %v2171
      %v2300 = vmul.f32 %v2044, %v2172
      %v2301 = vmul.f32 %v2045, %v2173
      %v2302 = vmul.f32 %v2046, %v2174
      %v2303 = vmul.f32 %v2047, %v2175
      %v2304 = vmul.f32 %v2048, %v2176
      %v2305 = vmul.f32 %v2049, %v2177
      %v2306 = vmul.f32 %v2050, %v2178
      %v2307 = vmul.f32 %v2051, %v2179
      %v2308 = vmul.f32 %v2052, %v2180
      %v2309 = vmul.f32 %v2053, %v2181
      %v2310 = vmul.f32 %v2054, %v2182
      %v2311 = vld [vmem:[%s3] sm:$0xff]
      %v2312 = vld [vmem:[%s3 + $0x8] sm:$0xff]
      %v2313 = vld [vmem:[%s3 + $0x10] sm:$0xff]
      %v2314 = vld [vmem:[%s3 + $0x18] sm:$0xff]
      %v2315 = vld [vmem:[%s3 + $0x20] sm:$0xff]
      %v2316 = vld [vmem:[%s3 + $0x28] sm:$0xff]
      %v2317 = vld [vmem:[%s3 + $0x30] sm:$0xff]
      %v2318 = vld [vmem:[%s3 + $0x38] sm:$0xff]
      %v2319 = vld [vmem:[%s3 + $0x40] sm:$0xff]
      %v2320 = vld [vmem:[%s3 + $0x48] sm:$0xff]
      %v2321 = vld [vmem:[%s3 + $0x50] sm:$0xff]
      %v2322 = vld [vmem:[%s3 + $0x58] sm:$0xff]
      %v2323 = vld [vmem:[%s3 + $0x60] sm:$0xff]
      %v2324 = vld [vmem:[%s3 + $0x68] sm:$0xff]
      %v2325 = vld [vmem:[%s3 + $0x70] sm:$0xff]
      %v2326 = vld [vmem:[%s3 + $0x78] sm:$0xff]
      %v2327 = vld [vmem:[%s3 + $0x80] sm:$0xff]
      %v2328 = vld [vmem:[%s3 + $0x88] sm:$0xff]
      %v2329 = vld [vmem:[%s3 + $0x90] sm:$0xff]
      %v2330 = vld [vmem:[%s3 + $0x98] sm:$0xff]
      %v2331 = vld [vmem:[%s3 + $0xa0] sm:$0xff]
      %v2332 = vld [vmem:[%s3 + $0xa8] sm:$0xff]
      %v2333 = vld [vmem:[%s3 + $0xb0] sm:$0xff]
      %v2334 = vld [vmem:[%s3 + $0xb8] sm:$0xff]
      %v2335 = vld [vmem:[%s3 + $0xc0] sm:$0xff]
      %v2336 = vld [vmem:[%s3 + $0xc8] sm:$0xff]
      %v2337 = vld [vmem:[%s3 + $0xd0] sm:$0xff]
      %v2338 = vld [vmem:[%s3 + $0xd8] sm:$0xff]
      %v2339 = vld [vmem:[%s3 + $0xe0] sm:$0xff]
      %v2340 = vld [vmem:[%s3 + $0xe8] sm:$0xff]
      %v2341 = vld [vmem:[%s3 + $0xf0] sm:$0xff]
      %v2342 = vld [vmem:[%s3 + $0xf8] sm:$0xff]
      %v2343 = vld [vmem:[%s3 + $0x100] sm:$0xff]
      %v2344 = vld [vmem:[%s3 + $0x108] sm:$0xff]
      %v2345 = vld [vmem:[%s3 + $0x110] sm:$0xff]
      %v2346 = vld [vmem:[%s3 + $0x118] sm:$0xff]
      %v2347 = vld [vmem:[%s3 + $0x120] sm:$0xff]
      %v2348 = vld [vmem:[%s3 + $0x128] sm:$0xff]
      %v2349 = vld [vmem:[%s3 + $0x130] sm:$0xff]
      %v2350 = vld [vmem:[%s3 + $0x138] sm:$0xff]
      %v2351 = vld [vmem:[%s3 + $0x140] sm:$0xff]
      %v2352 = vld [vmem:[%s3 + $0x148] sm:$0xff]
      %v2353 = vld [vmem:[%s3 + $0x150] sm:$0xff]
      %v2354 = vld [vmem:[%s3 + $0x158] sm:$0xff]
      %v2355 = vld [vmem:[%s3 + $0x160] sm:$0xff]
      %v2356 = vld [vmem:[%s3 + $0x168] sm:$0xff]
      %v2357 = vld [vmem:[%s3 + $0x170] sm:$0xff]
      %v2358 = vld [vmem:[%s3 + $0x178] sm:$0xff]
      %v2359 = vld [vmem:[%s3 + $0x180] sm:$0xff]
      %v2360 = vld [vmem:[%s3 + $0x188] sm:$0xff]
      %v2361 = vld [vmem:[%s3 + $0x190] sm:$0xff]
      %v2362 = vld [vmem:[%s3 + $0x198] sm:$0xff]
      %v2363 = vld [vmem:[%s3 + $0x1a0] sm:$0xff]
      %v2364 = vld [vmem:[%s3 + $0x1a8] sm:$0xff]
      %v2365 = vld [vmem:[%s3 + $0x1b0] sm:$0xff]
      %v2366 = vld [vmem:[%s3 + $0x1b8] sm:$0xff]
      %v2367 = vld [vmem:[%s3 + $0x1c0] sm:$0xff]
      %v2368 = vld [vmem:[%s3 + $0x1c8] sm:$0xff]
      %v2369 = vld [vmem:[%s3 + $0x1d0] sm:$0xff]
      %v2370 = vld [vmem:[%s3 + $0x1d8] sm:$0xff]
      %v2371 = vld [vmem:[%s3 + $0x1e0] sm:$0xff]
      %v2372 = vld [vmem:[%s3 + $0x1e8] sm:$0xff]
      %v2373 = vld [vmem:[%s3 + $0x1f0] sm:$0xff]
      %v2374 = vld [vmem:[%s3 + $0x1f8] sm:$0xff]
      %v2375 = vld [vmem:[%s3 + $0x200] sm:$0xff]
      %v2376 = vld [vmem:[%s3 + $0x208] sm:$0xff]
      %v2377 = vld [vmem:[%s3 + $0x210] sm:$0xff]
      %v2378 = vld [vmem:[%s3 + $0x218] sm:$0xff]
      %v2379 = vld [vmem:[%s3 + $0x220] sm:$0xff]
      %v2380 = vld [vmem:[%s3 + $0x228] sm:$0xff]
      %v2381 = vld [vmem:[%s3 + $0x230] sm:$0xff]
      %v2382 = vld [vmem:[%s3 + $0x238] sm:$0xff]
      %v2383 = vld [vmem:[%s3 + $0x240] sm:$0xff]
      %v2384 = vld [vmem:[%s3 + $0x248] sm:$0xff]
      %v2385 = vld [vmem:[%s3 + $0x250] sm:$0xff]
      %v2386 = vld [vmem:[%s3 + $0x258] sm:$0xff]
      %v2387 = vld [vmem:[%s3 + $0x260] sm:$0xff]
      %v2388 = vld [vmem:[%s3 + $0x268] sm:$0xff]
      %v2389 = vld [vmem:[%s3 + $0x270] sm:$0xff]
      %v2390 = vld [vmem:[%s3 + $0x278] sm:$0xff]
      %v2391 = vld [vmem:[%s3 + $0x280] sm:$0xff]
      %v2392 = vld [vmem:[%s3 + $0x288] sm:$0xff]
      %v2393 = vld [vmem:[%s3 + $0x290] sm:$0xff]
      %v2394 = vld [vmem:[%s3 + $0x298] sm:$0xff]
      %v2395 = vld [vmem:[%s3 + $0x2a0] sm:$0xff]
      %v2396 = vld [vmem:[%s3 + $0x2a8] sm:$0xff]
      %v2397 = vld [vmem:[%s3 + $0x2b0] sm:$0xff]
      %v2398 = vld [vmem:[%s3 + $0x2b8] sm:$0xff]
      %v2399 = vld [vmem:[%s3 + $0x2c0] sm:$0xff]
      %v2400 = vld [vmem:[%s3 + $0x2c8] sm:$0xff]
      %v2401 = vld [vmem:[%s3 + $0x2d0] sm:$0xff]
      %v2402 = vld [vmem:[%s3 + $0x2d8] sm:$0xff]
      %v2403 = vld [vmem:[%s3 + $0x2e0] sm:$0xff]
      %v2404 = vld [vmem:[%s3 + $0x2e8] sm:$0xff]
      %v2405 = vld [vmem:[%s3 + $0x2f0] sm:$0xff]
      %v2406 = vld [vmem:[%s3 + $0x2f8] sm:$0xff]
      %v2407 = vld [vmem:[%s3 + $0x300] sm:$0xff]
      %v2408 = vld [vmem:[%s3 + $0x308] sm:$0xff]
      %v2409 = vld [vmem:[%s3 + $0x310] sm:$0xff]
      %v2410 = vld [vmem:[%s3 + $0x318] sm:$0xff]
      %v2411 = vld [vmem:[%s3 + $0x320] sm:$0xff]
      %v2412 = vld [vmem:[%s3 + $0x328] sm:$0xff]
      %v2413 = vld [vmem:[%s3 + $0x330] sm:$0xff]
      %v2414 = vld [vmem:[%s3 + $0x338] sm:$0xff]
      %v2415 = vld [vmem:[%s3 + $0x340] sm:$0xff]
      %v2416 = vld [vmem:[%s3 + $0x348] sm:$0xff]
      %v2417 = vld [vmem:[%s3 + $0x350] sm:$0xff]
      %v2418 = vld [vmem:[%s3 + $0x358] sm:$0xff]
      %v2419 = vld [vmem:[%s3 + $0x360] sm:$0xff]
      %v2420 = vld [vmem:[%s3 + $0x368] sm:$0xff]
      %v2421 = vld [vmem:[%s3 + $0x370] sm:$0xff]
      %v2422 = vld [vmem:[%s3 + $0x378] sm:$0xff]
      %v2423 = vld [vmem:[%s3 + $0x380] sm:$0xff]
      %v2424 = vld [vmem:[%s3 + $0x388] sm:$0xff]
      %v2425 = vld [vmem:[%s3 + $0x390] sm:$0xff]
      %v2426 = vld [vmem:[%s3 + $0x398] sm:$0xff]
      %v2427 = vld [vmem:[%s3 + $0x3a0] sm:$0xff]
      %v2428 = vld [vmem:[%s3 + $0x3a8] sm:$0xff]
      %v2429 = vld [vmem:[%s3 + $0x3b0] sm:$0xff]
      %v2430 = vld [vmem:[%s3 + $0x3b8] sm:$0xff]
      %v2431 = vld [vmem:[%s3 + $0x3c0] sm:$0xff]
      %v2432 = vld [vmem:[%s3 + $0x3c8] sm:$0xff]
      %v2433 = vld [vmem:[%s3 + $0x3d0] sm:$0xff]
      %v2434 = vld [vmem:[%s3 + $0x3d8] sm:$0xff]
      %v2435 = vld [vmem:[%s3 + $0x3e0] sm:$0xff]
      %v2436 = vld [vmem:[%s3 + $0x3e8] sm:$0xff]
      %v2437 = vld [vmem:[%s3 + $0x3f0] sm:$0xff]
      %v2438 = vld [vmem:[%s3 + $0x3f8] sm:$0xff]
      %v2439 = vadd.f32 %v2183, %v2311
      %v2440 = vadd.f32 %v2184, %v2312
      %v2441 = vadd.f32 %v2185, %v2313
      %v2442 = vadd.f32 %v2186, %v2314
      %v2443 = vadd.f32 %v2187, %v2315
      %v2444 = vadd.f32 %v2188, %v2316
      %v2445 = vadd.f32 %v2189, %v2317
      %v2446 = vadd.f32 %v2190, %v2318
      %v2447 = vadd.f32 %v2191, %v2319
      %v2448 = vadd.f32 %v2192, %v2320
      %v2449 = vadd.f32 %v2193, %v2321
      %v2450 = vadd.f32 %v2194, %v2322
      %v2451 = vadd.f32 %v2195, %v2323
      %v2452 = vadd.f32 %v2196, %v2324
      %v2453 = vadd.f32 %v2197, %v2325
      %v2454 = vadd.f32 %v2198, %v2326
      %v2455 = vadd.f32 %v2199, %v2327
      %v2456 = vadd.f32 %v2200, %v2328
      %v2457 = vadd.f32 %v2201, %v2329
      %v2458 = vadd.f32 %v2202, %v2330
      %v2459 = vadd.f32 %v2203, %v2331
      %v2460 = vadd.f32 %v2204, %v2332
      %v2461 = vadd.f32 %v2205, %v2333
      %v2462 = vadd.f32 %v2206, %v2334
      %v2463 = vadd.f32 %v2207, %v2335
      %v2464 = vadd.f32 %v2208, %v2336
      %v2465 = vadd.f32 %v2209, %v2337
      %v2466 = vadd.f32 %v2210, %v2338
      %v2467 = vadd.f32 %v2211, %v2339
      %v2468 = vadd.f32 %v2212, %v2340
      %v2469 = vadd.f32 %v2213, %v2341
      %v2470 = vadd.f32 %v2214, %v2342
      %v2471 = vadd.f32 %v2215, %v2343
      %v2472 = vadd.f32 %v2216, %v2344
      %v2473 = vadd.f32 %v2217, %v2345
      %v2474 = vadd.f32 %v2218, %v2346
      %v2475 = vadd.f32 %v2219, %v2347
      %v2476 = vadd.f32 %v2220, %v2348
      %v2477 = vadd.f32 %v2221, %v2349
      %v2478 = vadd.f32 %v2222, %v2350
      %v2479 = vadd.f32 %v2223, %v2351
      %v2480 = vadd.f32 %v2224, %v2352
      %v2481 = vadd.f32 %v2225, %v2353
      %v2482 = vadd.f32 %v2226, %v2354
      %v2483 = vadd.f32 %v2227, %v2355
      %v2484 = vadd.f32 %v2228, %v2356
      %v2485 = vadd.f32 %v2229, %v2357
      %v2486 = vadd.f32 %v2230, %v2358
      %v2487 = vadd.f32 %v2231, %v2359
      %v2488 = vadd.f32 %v2232, %v2360
      %v2489 = vadd.f32 %v2233, %v2361
      %v2490 = vadd.f32 %v2234, %v2362
      %v2491 = vadd.f32 %v2235, %v2363
      %v2492 = vadd.f32 %v2236, %v2364
      %v2493 = vadd.f32 %v2237, %v2365
      %v2494 = vadd.f32 %v2238, %v2366
      %v2495 = vadd.f32 %v2239, %v2367
      %v2496 = vadd.f32 %v2240, %v2368
      %v2497 = vadd.f32 %v2241, %v2369
      %v2498 = vadd.f32 %v2242, %v2370
      %v2499 = vadd.f32 %v2243, %v2371
      %v2500 = vadd.f32 %v2244, %v2372
      %v2501 = vadd.f32 %v2245, %v2373
      %v2502 = vadd.f32 %v2246, %v2374
      %v2503 = vadd.f32 %v2247, %v2375
      %v2504 = vadd.f32 %v2248, %v2376
      %v2505 = vadd.f32 %v2249, %v2377
      %v2506 = vadd.f32 %v2250, %v2378
      %v2507 = vadd.f32 %v2251, %v2379
      %v2508 = vadd.f32 %v2252, %v2380
      %v2509 = vadd.f32 %v2253, %v2381
      %v2510 = vadd.f32 %v2254, %v2382
      %v2511 = vadd.f32 %v2255, %v2383
      %v2512 = vadd.f32 %v2256, %v2384
      %v2513 = vadd.f32 %v2257, %v2385
      %v2514 = vadd.f32 %v2258, %v2386
      %v2515 = vadd.f32 %v2259, %v2387
      %v2516 = vadd.f32 %v2260, %v2388
      %v2517 = vadd.f32 %v2261, %v2389
      %v2518 = vadd.f32 %v2262, %v2390
      %v2519 = vadd.f32 %v2263, %v2391
      %v2520 = vadd.f32 %v2264, %v2392
      %v2521 = vadd.f32 %v2265, %v2393
      %v2522 = vadd.f32 %v2266, %v2394
      %v2523 = vadd.f32 %v2267, %v2395
      %v2524 = vadd.f32 %v2268, %v2396
      %v2525 = vadd.f32 %v2269, %v2397
      %v2526 = vadd.f32 %v2270, %v2398
      %v2527 = vadd.f32 %v2271, %v2399
      %v2528 = vadd.f32 %v2272, %v2400
      %v2529 = vadd.f32 %v2273, %v2401
      %v2530 = vadd.f32 %v2274, %v2402
      %v2531 = vadd.f32 %v2275, %v2403
      %v2532 = vadd.f32 %v2276, %v2404
      %v2533 = vadd.f32 %v2277, %v2405
      %v2534 = vadd.f32 %v2278, %v2406
      %v2535 = vadd.f32 %v2279, %v2407
      %v2536 = vadd.f32 %v2280, %v2408
      %v2537 = vadd.f32 %v2281, %v2409
      %v2538 = vadd.f32 %v2282, %v2410
      %v2539 = vadd.f32 %v2283, %v2411
      %v2540 = vadd.f32 %v2284, %v2412
      %v2541 = vadd.f32 %v2285, %v2413
      %v2542 = vadd.f32 %v2286, %v2414
      %v2543 = vadd.f32 %v2287, %v2415
      %v2544 = vadd.f32 %v2288, %v2416
      %v2545 = vadd.f32 %v2289, %v2417
      %v2546 = vadd.f32 %v2290, %v2418
      %v2547 = vadd.f32 %v2291, %v2419
      %v2548 = vadd.f32 %v2292, %v2420
      %v2549 = vadd.f32 %v2293, %v2421
      %v2550 = vadd.f32 %v2294, %v2422
      %v2551 = vadd.f32 %v2295, %v2423
      %v2552 = vadd.f32 %v2296, %v2424
      %v2553 = vadd.f32 %v2297, %v2425
      %v2554 = vadd.f32 %v2298, %v2426
      %v2555 = vadd.f32 %v2299, %v2427
      %v2556 = vadd.f32 %v2300, %v2428
      %v2557 = vadd.f32 %v2301, %v2429
      %v2558 = vadd.f32 %v2302, %v2430
      %v2559 = vadd.f32 %v2303, %v2431
      %v2560 = vadd.f32 %v2304, %v2432
      %v2561 = vadd.f32 %v2305, %v2433
      %v2562 = vadd.f32 %v2306, %v2434
      %v2563 = vadd.f32 %v2307, %v2435
      %v2564 = vadd.f32 %v2308, %v2436
      %v2565 = vadd.f32 %v2309, %v2437
      %v2566 = vadd.f32 %v2310, %v2438
      %vm2567 = vcmp.ge.f32.partialorder %v2439, 0.0
      %vm2568 = vcmp.ge.f32.partialorder %v2440, 0.0
      %vm2569 = vcmp.ge.f32.partialorder %v2441, 0.0
      %vm2570 = vcmp.ge.f32.partialorder %v2442, 0.0
      %vm2571 = vcmp.ge.f32.partialorder %v2443, 0.0
      %vm2572 = vcmp.ge.f32.partialorder %v2444, 0.0
      %vm2573 = vcmp.ge.f32.partialorder %v2445, 0.0
      %vm2574 = vcmp.ge.f32.partialorder %v2446, 0.0
      %vm2575 = vcmp.ge.f32.partialorder %v2447, 0.0
      %vm2576 = vcmp.ge.f32.partialorder %v2448, 0.0
      %vm2577 = vcmp.ge.f32.partialorder %v2449, 0.0
      %vm2578 = vcmp.ge.f32.partialorder %v2450, 0.0
      %vm2579 = vcmp.ge.f32.partialorder %v2451, 0.0
      %vm2580 = vcmp.ge.f32.partialorder %v2452, 0.0
      %vm2581 = vcmp.ge.f32.partialorder %v2453, 0.0
      %vm2582 = vcmp.ge.f32.partialorder %v2454, 0.0
      %vm2583 = vcmp.ge.f32.partialorder %v2455, 0.0
      %vm2584 = vcmp.ge.f32.partialorder %v2456, 0.0
      %vm2585 = vcmp.ge.f32.partialorder %v2457, 0.0
      %vm2586 = vcmp.ge.f32.partialorder %v2458, 0.0
      %vm2587 = vcmp.ge.f32.partialorder %v2459, 0.0
      %vm2588 = vcmp.ge.f32.partialorder %v2460, 0.0
      %vm2589 = vcmp.ge.f32.partialorder %v2461, 0.0
      %vm2590 = vcmp.ge.f32.partialorder %v2462, 0.0
      %vm2591 = vcmp.ge.f32.partialorder %v2463, 0.0
      %vm2592 = vcmp.ge.f32.partialorder %v2464, 0.0
      %vm2593 = vcmp.ge.f32.partialorder %v2465, 0.0
      %vm2594 = vcmp.ge.f32.partialorder %v2466, 0.0
      %vm2595 = vcmp.ge.f32.partialorder %v2467, 0.0
      %vm2596 = vcmp.ge.f32.partialorder %v2468, 0.0
      %vm2597 = vcmp.ge.f32.partialorder %v2469, 0.0
      %vm2598 = vcmp.ge.f32.partialorder %v2470, 0.0
      %vm2599 = vcmp.ge.f32.partialorder %v2471, 0.0
      %vm2600 = vcmp.ge.f32.partialorder %v2472, 0.0
      %vm2601 = vcmp.ge.f32.partialorder %v2473, 0.0
      %vm2602 = vcmp.ge.f32.partialorder %v2474, 0.0
      %vm2603 = vcmp.ge.f32.partialorder %v2475, 0.0
      %vm2604 = vcmp.ge.f32.partialorder %v2476, 0.0
      %vm2605 = vcmp.ge.f32.partialorder %v2477, 0.0
      %vm2606 = vcmp.ge.f32.partialorder %v2478, 0.0
      %vm2607 = vcmp.ge.f32.partialorder %v2479, 0.0
      %vm2608 = vcmp.ge.f32.partialorder %v2480, 0.0
      %vm2609 = vcmp.ge.f32.partialorder %v2481, 0.0
      %vm2610 = vcmp.ge.f32.partialorder %v2482, 0.0
      %vm2611 = vcmp.ge.f32.partialorder %v2483, 0.0
      %vm2612 = vcmp.ge.f32.partialorder %v2484, 0.0
      %vm2613 = vcmp.ge.f32.partialorder %v2485, 0.0
      %vm2614 = vcmp.ge.f32.partialorder %v2486, 0.0
      %vm2615 = vcmp.ge.f32.partialorder %v2487, 0.0
      %vm2616 = vcmp.ge.f32.partialorder %v2488, 0.0
      %vm2617 = vcmp.ge.f32.partialorder %v2489, 0.0
      %vm2618 = vcmp.ge.f32.partialorder %v2490, 0.0
      %vm2619 = vcmp.ge.f32.partialorder %v2491, 0.0
      %vm2620 = vcmp.ge.f32.partialorder %v2492, 0.0
      %vm2621 = vcmp.ge.f32.partialorder %v2493, 0.0
      %vm2622 = vcmp.ge.f32.partialorder %v2494, 0.0
      %vm2623 = vcmp.ge.f32.partialorder %v2495, 0.0
      %vm2624 = vcmp.ge.f32.partialorder %v2496, 0.0
      %vm2625 = vcmp.ge.f32.partialorder %v2497, 0.0
      %vm2626 = vcmp.ge.f32.partialorder %v2498, 0.0
      %vm2627 = vcmp.ge.f32.partialorder %v2499, 0.0
      %vm2628 = vcmp.ge.f32.partialorder %v2500, 0.0
      %vm2629 = vcmp.ge.f32.partialorder %v2501, 0.0
      %vm2630 = vcmp.ge.f32.partialorder %v2502, 0.0
      %vm2631 = vcmp.ge.f32.partialorder %v2503, 0.0
      %vm2632 = vcmp.ge.f32.partialorder %v2504, 0.0
      %vm2633 = vcmp.ge.f32.partialorder %v2505, 0.0
      %vm2634 = vcmp.ge.f32.partialorder %v2506, 0.0
      %vm2635 = vcmp.ge.f32.partialorder %v2507, 0.0
      %vm2636 = vcmp.ge.f32.partialorder %v2508, 0.0
      %vm2637 = vcmp.ge.f32.partialorder %v2509, 0.0
      %vm2638 = vcmp.ge.f32.partialorder %v2510, 0.0
      %vm2639 = vcmp.ge.f32.partialorder %v2511, 0.0
      %vm2640 = vcmp.ge.f32.partialorder %v2512, 0.0
      %vm2641 = vcmp.ge.f32.partialorder %v2513, 0.0
      %vm2642 = vcmp.ge.f32.partialorder %v2514, 0.0
      %vm2643 = vcmp.ge.f32.partialorder %v2515, 0.0
      %vm2644 = vcmp.ge.f32.partialorder %v2516, 0.0
      %vm2645 = vcmp.ge.f32.partialorder %v2517, 0.0
      %vm2646 = vcmp.ge.f32.partialorder %v2518, 0.0
      %vm2647 = vcmp.ge.f32.partialorder %v2519, 0.0
      %vm2648 = vcmp.ge.f32.partialorder %v2520, 0.0
      %vm2649 = vcmp.ge.f32.partialorder %v2521, 0.0
      %vm2650 = vcmp.ge.f32.partialorder %v2522, 0.0
      %vm2651 = vcmp.ge.f32.partialorder %v2523, 0.0
      %vm2652 = vcmp.ge.f32.partialorder %v2524, 0.0
      %vm2653 = vcmp.ge.f32.partialorder %v2525, 0.0
      %vm2654 = vcmp.ge.f32.partialorder %v2526, 0.0
      %vm2655 = vcmp.ge.f32.partialorder %v2527, 0.0
      %vm2656 = vcmp.ge.f32.partialorder %v2528, 0.0
      %vm2657 = vcmp.ge.f32.partialorder %v2529, 0.0
      %vm2658 = vcmp.ge.f32.partialorder %v2530, 0.0
      %vm2659 = vcmp.ge.f32.partialorder %v2531, 0.0
      %vm2660 = vcmp.ge.f32.partialorder %v2532, 0.0
      %vm2661 = vcmp.ge.f32.partialorder %v2533, 0.0
      %vm2662 = vcmp.ge.f32.partialorder %v2534, 0.0
      %vm2663 = vcmp.ge.f32.partialorder %v2535, 0.0
      %vm2664 = vcmp.ge.f32.partialorder %v2536, 0.0
      %vm2665 = vcmp.ge.f32.partialorder %v2537, 0.0
      %vm2666 = vcmp.ge.f32.partialorder %v2538, 0.0
      %vm2667 = vcmp.ge.f32.partialorder %v2539, 0.0
      %vm2668 = vcmp.ge.f32.partialorder %v2540, 0.0
      %vm2669 = vcmp.ge.f32.partialorder %v2541, 0.0
      %vm2670 = vcmp.ge.f32.partialorder %v2542, 0.0
      %vm2671 = vcmp.ge.f32.partialorder %v2543, 0.0
      %vm2672 = vcmp.ge.f32.partialorder %v2544, 0.0
      %vm2673 = vcmp.ge.f32.partialorder %v2545, 0.0
      %vm2674 = vcmp.ge.f32.partialorder %v2546, 0.0
      %vm2675 = vcmp.ge.f32.partialorder %v2547, 0.0
      %vm2676 = vcmp.ge.f32.partialorder %v2548, 0.0
      %vm2677 = vcmp.ge.f32.partialorder %v2549, 0.0
      %vm2678 = vcmp.ge.f32.partialorder %v2550, 0.0
      %vm2679 = vcmp.ge.f32.partialorder %v2551, 0.0
      %vm2680 = vcmp.ge.f32.partialorder %v2552, 0.0
      %vm2681 = vcmp.ge.f32.partialorder %v2553, 0.0
      %vm2682 = vcmp.ge.f32.partialorder %v2554, 0.0
      %vm2683 = vcmp.ge.f32.partialorder %v2555, 0.0
      %vm2684 = vcmp.ge.f32.partialorder %v2556, 0.0
      %vm2685 = vcmp.ge.f32.partialorder %v2557, 0.0
      %vm2686 = vcmp.ge.f32.partialorder %v2558, 0.0
      %vm2687 = vcmp.ge.f32.partialorder %v2559, 0.0
      %vm2688 = vcmp.ge.f32.partialorder %v2560, 0.0
      %vm2689 = vcmp.ge.f32.partialorder %v2561, 0.0
      %vm2690 = vcmp.ge.f32.partialorder %v2562, 0.0
      %vm2691 = vcmp.ge.f32.partialorder %v2563, 0.0
      %vm2692 = vcmp.ge.f32.partialorder %v2564, 0.0
      %vm2693 = vcmp.ge.f32.partialorder %v2565, 0.0
      %vm2694 = vcmp.ge.f32.partialorder %v2566, 0.0
      %v2695 = vmul.f32 %v2439, 0.2
      %v2696 = vmul.f32 %v2440, 0.2
      %v2697 = vmul.f32 %v2441, 0.2
      %v2698 = vmul.f32 %v2442, 0.2
      %v2699 = vmul.f32 %v2443, 0.2
      %v2700 = vmul.f32 %v2444, 0.2
      %v2701 = vmul.f32 %v2445, 0.2
      %v2702 = vmul.f32 %v2446, 0.2
      %v2703 = vmul.f32 %v2447, 0.2
      %v2704 = vmul.f32 %v2448, 0.2
      %v2705 = vmul.f32 %v2449, 0.2
      %v2706 = vmul.f32 %v2450, 0.2
      %v2707 = vmul.f32 %v2451, 0.2
      %v2708 = vmul.f32 %v2452, 0.2
      %v2709 = vmul.f32 %v2453, 0.2
      %v2710 = vmul.f32 %v2454, 0.2
      %v2711 = vmul.f32 %v2455, 0.2
      %v2712 = vmul.f32 %v2456, 0.2
      %v2713 = vmul.f32 %v2457, 0.2
      %v2714 = vmul.f32 %v2458, 0.2
      %v2715 = vmul.f32 %v2459, 0.2
      %v2716 = vmul.f32 %v2460, 0.2
      %v2717 = vmul.f32 %v2461, 0.2
      %v2718 = vmul.f32 %v2462, 0.2
      %v2719 = vmul.f32 %v2463, 0.2
      %v2720 = vmul.f32 %v2464, 0.2
      %v2721 = vmul.f32 %v2465, 0.2
      %v2722 = vmul.f32 %v2466, 0.2
      %v2723 = vmul.f32 %v2467, 0.2
      %v2724 = vmul.f32 %v2468, 0.2
      %v2725 = vmul.f32 %v2469, 0.2
      %v2726 = vmul.f32 %v2470, 0.2
      %v2727 = vmul.f32 %v2471, 0.2
      %v2728 = vmul.f32 %v2472, 0.2
      %v2729 = vmul.f32 %v2473, 0.2
      %v2730 = vmul.f32 %v2474, 0.2
      %v2731 = vmul.f32 %v2475, 0.2
      %v2732 = vmul.f32 %v2476, 0.2
      %v2733 = vmul.f32 %v2477, 0.2
      %v2734 = vmul.f32 %v2478, 0.2
      %v2735 = vmul.f32 %v2479, 0.2
      %v2736 = vmul.f32 %v2480, 0.2
      %v2737 = vmul.f32 %v2481, 0.2
      %v2738 = vmul.f32 %v2482, 0.2
      %v2739 = vmul.f32 %v2483, 0.2
      %v2740 = vmul.f32 %v2484, 0.2
      %v2741 = vmul.f32 %v2485, 0.2
      %v2742 = vmul.f32 %v2486, 0.2
      %v2743 = vmul.f32 %v2487, 0.2
      %v2744 = vmul.f32 %v2488, 0.2
      %v2745 = vmul.f32 %v2489, 0.2
      %v2746 = vmul.f32 %v2490, 0.2
      %v2747 = vmul.f32 %v2491, 0.2
      %v2748 = vmul.f32 %v2492, 0.2
      %v2749 = vmul.f32 %v2493, 0.2
      %v2750 = vmul.f32 %v2494, 0.2
      %v2751 = vmul.f32 %v2495, 0.2
      %v2752 = vmul.f32 %v2496, 0.2
      %v2753 = vmul.f32 %v2497, 0.2
      %v2754 = vmul.f32 %v2498, 0.2
      %v2755 = vmul.f32 %v2499, 0.2
      %v2756 = vmul.f32 %v2500, 0.2
      %v2757 = vmul.f32 %v2501, 0.2
      %v2758 = vmul.f32 %v2502, 0.2
      %v2759 = vmul.f32 %v2503, 0.2
      %v2760 = vmul.f32 %v2504, 0.2
      %v2761 = vmul.f32 %v2505, 0.2
      %v2762 = vmul.f32 %v2506, 0.2
      %v2763 = vmul.f32 %v2507, 0.2
      %v2764 = vmul.f32 %v2508, 0.2
      %v2765 = vmul.f32 %v2509, 0.2
      %v2766 = vmul.f32 %v2510, 0.2
      %v2767 = vmul.f32 %v2511, 0.2
      %v2768 = vmul.f32 %v2512, 0.2
      %v2769 = vmul.f32 %v2513, 0.2
      %v2770 = vmul.f32 %v2514, 0.2
      %v2771 = vmul.f32 %v2515, 0.2
      %v2772 = vmul.f32 %v2516, 0.2
      %v2773 = vmul.f32 %v2517, 0.2
      %v2774 = vmul.f32 %v2518, 0.2
      %v2775 = vmul.f32 %v2519, 0.2
      %v2776 = vmul.f32 %v2520, 0.2
      %v2777 = vmul.f32 %v2521, 0.2
      %v2778 = vmul.f32 %v2522, 0.2
      %v2779 = vmul.f32 %v2523, 0.2
      %v2780 = vmul.f32 %v2524, 0.2
      %v2781 = vmul.f32 %v2525, 0.2
      %v2782 = vmul.f32 %v2526, 0.2
      %v2783 = vmul.f32 %v2527, 0.2
      %v2784 = vmul.f32 %v2528, 0.2
      %v2785 = vmul.f32 %v2529, 0.2
      %v2786 = vmul.f32 %v2530, 0.2
      %v2787 = vmul.f32 %v2531, 0.2
      %v2788 = vmul.f32 %v2532, 0.2
      %v2789 = vmul.f32 %v2533, 0.2
      %v2790 = vmul.f32 %v2534, 0.2
      %v2791 = vmul.f32 %v2535, 0.2
      %v2792 = vmul.f32 %v2536, 0.2
      %v2793 = vmul.f32 %v2537, 0.2
      %v2794 = vmul.f32 %v2538, 0.2
      %v2795 = vmul.f32 %v2539, 0.2
      %v2796 = vmul.f32 %v2540, 0.2
      %v2797 = vmul.f32 %v2541, 0.2
      %v2798 = vmul.f32 %v2542, 0.2
      %v2799 = vmul.f32 %v2543, 0.2
      %v2800 = vmul.f32 %v2544, 0.2
      %v2801 = vmul.f32 %v2545, 0.2
      %v2802 = vmul.f32 %v2546, 0.2
      %v2803 = vmul.f32 %v2547, 0.2
      %v2804 = vmul.f32 %v2548, 0.2
      %v2805 = vmul.f32 %v2549, 0.2
      %v2806 = vmul.f32 %v2550, 0.2
      %v2807 = vmul.f32 %v2551, 0.2
      %v2808 = vmul.f32 %v2552, 0.2
      %v2809 = vmul.f32 %v2553, 0.2
      %v2810 = vmul.f32 %v2554, 0.2
      %v2811 = vmul.f32 %v2555, 0.2
      %v2812 = vmul.f32 %v2556, 0.2
      %v2813 = vmul.f32 %v2557, 0.2
      %v2814 = vmul.f32 %v2558, 0.2
      %v2815 = vmul.f32 %v2559, 0.2
      %v2816 = vmul.f32 %v2560, 0.2
      %v2817 = vmul.f32 %v2561, 0.2
      %v2818 = vmul.f32 %v2562, 0.2
      %v2819 = vmul.f32 %v2563, 0.2
      %v2820 = vmul.f32 %v2564, 0.2
      %v2821 = vmul.f32 %v2565, 0.2
      %v2822 = vmul.f32 %v2566, 0.2
      %v2823 = vsel %vm2567, %v2439, %v2695
      %v2824 = vsel %vm2568, %v2440, %v2696
      %v2825 = vsel %vm2569, %v2441, %v2697
      %v2826 = vsel %vm2570, %v2442, %v2698
      %v2827 = vsel %vm2571, %v2443, %v2699
      %v2828 = vsel %vm2572, %v2444, %v2700
      %v2829 = vsel %vm2573, %v2445, %v2701
      %v2830 = vsel %vm2574, %v2446, %v2702
      %v2831 = vsel %vm2575, %v2447, %v2703
      %v2832 = vsel %vm2576, %v2448, %v2704
      %v2833 = vsel %vm2577, %v2449, %v2705
      %v2834 = vsel %vm2578, %v2450, %v2706
      %v2835 = vsel %vm2579, %v2451, %v2707
      %v2836 = vsel %vm2580, %v2452, %v2708
      %v2837 = vsel %vm2581, %v2453, %v2709
      %v2838 = vsel %vm2582, %v2454, %v2710
      %v2839 = vsel %vm2583, %v2455, %v2711
      %v2840 = vsel %vm2584, %v2456, %v2712
      %v2841 = vsel %vm2585, %v2457, %v2713
      %v2842 = vsel %vm2586, %v2458, %v2714
      %v2843 = vsel %vm2587, %v2459, %v2715
      %v2844 = vsel %vm2588, %v2460, %v2716
      %v2845 = vsel %vm2589, %v2461, %v2717
      %v2846 = vsel %vm2590, %v2462, %v2718
      %v2847 = vsel %vm2591, %v2463, %v2719
      %v2848 = vsel %vm2592, %v2464, %v2720
      %v2849 = vsel %vm2593, %v2465, %v2721
      %v2850 = vsel %vm2594, %v2466, %v2722
      %v2851 = vsel %vm2595, %v2467, %v2723
      %v2852 = vsel %vm2596, %v2468, %v2724
      %v2853 = vsel %vm2597, %v2469, %v2725
      %v2854 = vsel %vm2598, %v2470, %v2726
      %v2855 = vsel %vm2599, %v2471, %v2727
      %v2856 = vsel %vm2600, %v2472, %v2728
      %v2857 = vsel %vm2601, %v2473, %v2729
      %v2858 = vsel %vm2602, %v2474, %v2730
      %v2859 = vsel %vm2603, %v2475, %v2731
      %v2860 = vsel %vm2604, %v2476, %v2732
      %v2861 = vsel %vm2605, %v2477, %v2733
      %v2862 = vsel %vm2606, %v2478, %v2734
      %v2863 = vsel %vm2607, %v2479, %v2735
      %v2864 = vsel %vm2608, %v2480, %v2736
      %v2865 = vsel %vm2609, %v2481, %v2737
      %v2866 = vsel %vm2610, %v2482, %v2738
      %v2867 = vsel %vm2611, %v2483, %v2739
      %v2868 = vsel %vm2612, %v2484, %v2740
      %v2869 = vsel %vm2613, %v2485, %v2741
      %v2870 = vsel %vm2614, %v2486, %v2742
      %v2871 = vsel %vm2615, %v2487, %v2743
      %v2872 = vsel %vm2616, %v2488, %v2744
      %v2873 = vsel %vm2617, %v2489, %v2745
      %v2874 = vsel %vm2618, %v2490, %v2746
      %v2875 = vsel %vm2619, %v2491, %v2747
      %v2876 = vsel %vm2620, %v2492, %v2748
      %v2877 = vsel %vm2621, %v2493, %v2749
      %v2878 = vsel %vm2622, %v2494, %v2750
      %v2879 = vsel %vm2623, %v2495, %v2751
      %v2880 = vsel %vm2624, %v2496, %v2752
      %v2881 = vsel %vm2625, %v2497, %v2753
      %v2882 = vsel %vm2626, %v2498, %v2754
      %v2883 = vsel %vm2627, %v2499, %v2755
      %v2884 = vsel %vm2628, %v2500, %v2756
      %v2885 = vsel %vm2629, %v2501, %v2757
      %v2886 = vsel %vm2630, %v2502, %v2758
      %v2887 = vsel %vm2631, %v2503, %v2759
      %v2888 = vsel %vm2632, %v2504, %v2760
      %v2889 = vsel %vm2633, %v2505, %v2761
      %v2890 = vsel %vm2634, %v2506, %v2762
      %v2891 = vsel %vm2635, %v2507, %v2763
      %v2892 = vsel %vm2636, %v2508, %v2764
      %v2893 = vsel %vm2637, %v2509, %v2765
      %v2894 = vsel %vm2638, %v2510, %v2766
      %v2895 = vsel %vm2639, %v2511, %v2767
      %v2896 = vsel %vm2640, %v2512, %v2768
      %v2897 = vsel %vm2641, %v2513, %v2769
      %v2898 = vsel %vm2642, %v2514, %v2770
      %v2899 = vsel %vm2643, %v2515, %v2771
      %v2900 = vsel %vm2644, %v2516, %v2772
      %v2901 = vsel %vm2645, %v2517, %v2773
      %v2902 = vsel %vm2646, %v2518, %v2774
      %v2903 = vsel %vm2647, %v2519, %v2775
      %v2904 = vsel %vm2648, %v2520, %v2776
      %v2905 = vsel %vm2649, %v2521, %v2777
      %v2906 = vsel %vm2650, %v2522, %v2778
      %v2907 = vsel %vm2651, %v2523, %v2779
      %v2908 = vsel %vm2652, %v2524, %v2780
      %v2909 = vsel %vm2653, %v2525, %v2781
      %v2910 = vsel %vm2654, %v2526, %v2782
      %v2911 = vsel %vm2655, %v2527, %v2783
      %v2912 = vsel %vm2656, %v2528, %v2784
      %v2913 = vsel %vm2657, %v2529, %v2785
      %v2914 = vsel %vm2658, %v2530, %v2786
      %v2915 = vsel %vm2659, %v2531, %v2787
      %v2916 = vsel %vm2660, %v2532, %v2788
      %v2917 = vsel %vm2661, %v2533, %v2789
      %v2918 = vsel %vm2662, %v2534, %v2790
      %v2919 = vsel %vm2663, %v2535, %v2791
      %v2920 = vsel %vm2664, %v2536, %v2792
      %v2921 = vsel %vm2665, %v2537, %v2793
      %v2922 = vsel %vm2666, %v2538, %v2794
      %v2923 = vsel %vm2667, %v2539, %v2795
      %v2924 = vsel %vm2668, %v2540, %v2796
      %v2925 = vsel %vm2669, %v2541, %v2797
      %v2926 = vsel %vm2670, %v2542, %v2798
      %v2927 = vsel %vm2671, %v2543, %v2799
      %v2928 = vsel %vm2672, %v2544, %v2800
      %v2929 = vsel %vm2673, %v2545, %v2801
      %v2930 = vsel %vm2674, %v2546, %v2802
      %v2931 = vsel %vm2675, %v2547, %v2803
      %v2932 = vsel %vm2676, %v2548, %v2804
      %v2933 = vsel %vm2677, %v2549, %v2805
      %v2934 = vsel %vm2678, %v2550, %v2806
      %v2935 = vsel %vm2679, %v2551, %v2807
      %v2936 = vsel %vm2680, %v2552, %v2808
      %v2937 = vsel %vm2681, %v2553, %v2809
      %v2938 = vsel %vm2682, %v2554, %v2810
      %v2939 = vsel %vm2683, %v2555, %v2811
      %v2940 = vsel %vm2684, %v2556, %v2812
      %v2941 = vsel %vm2685, %v2557, %v2813
      %v2942 = vsel %vm2686, %v2558, %v2814
      %v2943 = vsel %vm2687, %v2559, %v2815
      %v2944 = vsel %vm2688, %v2560, %v2816
      %v2945 = vsel %vm2689, %v2561, %v2817
      %v2946 = vsel %vm2690, %v2562, %v2818
      %v2947 = vsel %vm2691, %v2563, %v2819
      %v2948 = vsel %vm2692, %v2564, %v2820
      %v2949 = vsel %vm2693, %v2565, %v2821
      %v2950 = vsel %vm2694, %v2566, %v2822
      %2951 = vst.msk [vmem:[%s197] sm:$0xff] %vm1137, %v2823
      %2952 = vst.msk [vmem:[%s197 + $0x8] sm:$0xff] %vm1137, %v2824
      %2953 = vst.msk [vmem:[%s197 + $0x10] sm:$0xff] %vm1137, %v2825
      %2954 = vst.msk [vmem:[%s197 + $0x18] sm:$0xff] %vm1137, %v2826
      %2955 = vst.msk [vmem:[%s197 + $0x20] sm:$0xff] %vm1137, %v2827
      %2956 = vst.msk [vmem:[%s197 + $0x28] sm:$0xff] %vm1137, %v2828
      %2957 = vst.msk [vmem:[%s197 + $0x30] sm:$0xff] %vm1137, %v2829
      %2958 = vst.msk [vmem:[%s197 + $0x38] sm:$0xff] %vm1137, %v2830
      %2959 = vst.msk [vmem:[%s197 + $0x40] sm:$0xff] %vm1137, %v2831
      %2960 = vst.msk [vmem:[%s197 + $0x48] sm:$0xff] %vm1137, %v2832
      %2961 = vst.msk [vmem:[%s197 + $0x50] sm:$0xff] %vm1137, %v2833
      %2962 = vst.msk [vmem:[%s197 + $0x58] sm:$0xff] %vm1137, %v2834
      %2963 = vst.msk [vmem:[%s197 + $0x60] sm:$0xff] %vm1137, %v2835
      %2964 = vst.msk [vmem:[%s197 + $0x68] sm:$0xff] %vm1137, %v2836
      %2965 = vst.msk [vmem:[%s197 + $0x70] sm:$0xff] %vm1137, %v2837
      %2966 = vst.msk [vmem:[%s197 + $0x78] sm:$0xff] %vm1137, %v2838
      %2967 = vst.msk [vmem:[%s197 + $0x80] sm:$0xff] %vm1137, %v2839
      %2968 = vst.msk [vmem:[%s197 + $0x88] sm:$0xff] %vm1137, %v2840
      %2969 = vst.msk [vmem:[%s197 + $0x90] sm:$0xff] %vm1137, %v2841
      %2970 = vst.msk [vmem:[%s197 + $0x98] sm:$0xff] %vm1137, %v2842
      %2971 = vst.msk [vmem:[%s197 + $0xa0] sm:$0xff] %vm1137, %v2843
      %2972 = vst.msk [vmem:[%s197 + $0xa8] sm:$0xff] %vm1137, %v2844
      %2973 = vst.msk [vmem:[%s197 + $0xb0] sm:$0xff] %vm1137, %v2845
      %2974 = vst.msk [vmem:[%s197 + $0xb8] sm:$0xff] %vm1137, %v2846
      %2975 = vst.msk [vmem:[%s197 + $0xc0] sm:$0xff] %vm1137, %v2847
      %2976 = vst.msk [vmem:[%s197 + $0xc8] sm:$0xff] %vm1137, %v2848
      %2977 = vst.msk [vmem:[%s197 + $0xd0] sm:$0xff] %vm1137, %v2849
      %2978 = vst.msk [vmem:[%s197 + $0xd8] sm:$0xff] %vm1137, %v2850
      %2979 = vst.msk [vmem:[%s197 + $0xe0] sm:$0xff] %vm1137, %v2851
      %2980 = vst.msk [vmem:[%s197 + $0xe8] sm:$0xff] %vm1137, %v2852
      %2981 = vst.msk [vmem:[%s197 + $0xf0] sm:$0xff] %vm1137, %v2853
      %2982 = vst.msk [vmem:[%s197 + $0xf8] sm:$0xff] %vm1137, %v2854
      %2983 = vst.msk [vmem:[%s197 + $0x100] sm:$0xff] %vm1137, %v2855
      %2984 = vst.msk [vmem:[%s197 + $0x108] sm:$0xff] %vm1137, %v2856
      %2985 = vst.msk [vmem:[%s197 + $0x110] sm:$0xff] %vm1137, %v2857
      %2986 = vst.msk [vmem:[%s197 + $0x118] sm:$0xff] %vm1137, %v2858
      %2987 = vst.msk [vmem:[%s197 + $0x120] sm:$0xff] %vm1137, %v2859
      %2988 = vst.msk [vmem:[%s197 + $0x128] sm:$0xff] %vm1137, %v2860
      %2989 = vst.msk [vmem:[%s197 + $0x130] sm:$0xff] %vm1137, %v2861
      %2990 = vst.msk [vmem:[%s197 + $0x138] sm:$0xff] %vm1137, %v2862
      %2991 = vst.msk [vmem:[%s197 + $0x140] sm:$0xff] %vm1137, %v2863
      %2992 = vst.msk [vmem:[%s197 + $0x148] sm:$0xff] %vm1137, %v2864
      %2993 = vst.msk [vmem:[%s197 + $0x150] sm:$0xff] %vm1137, %v2865
      %2994 = vst.msk [vmem:[%s197 + $0x158] sm:$0xff] %vm1137, %v2866
      %2995 = vst.msk [vmem:[%s197 + $0x160] sm:$0xff] %vm1137, %v2867
      %2996 = vst.msk [vmem:[%s197 + $0x168] sm:$0xff] %vm1137, %v2868
      %2997 = vst.msk [vmem:[%s197 + $0x170] sm:$0xff] %vm1137, %v2869
      %2998 = vst.msk [vmem:[%s197 + $0x178] sm:$0xff] %vm1137, %v2870
      %2999 = vst.msk [vmem:[%s197 + $0x180] sm:$0xff] %vm1137, %v2871
      %3000 = vst.msk [vmem:[%s197 + $0x188] sm:$0xff] %vm1137, %v2872
      %3001 = vst.msk [vmem:[%s197 + $0x190] sm:$0xff] %vm1137, %v2873
      %3002 = vst.msk [vmem:[%s197 + $0x198] sm:$0xff] %vm1137, %v2874
      %3003 = vst.msk [vmem:[%s197 + $0x1a0] sm:$0xff] %vm1137, %v2875
      %3004 = vst.msk [vmem:[%s197 + $0x1a8] sm:$0xff] %vm1137, %v2876
      %3005 = vst.msk [vmem:[%s197 + $0x1b0] sm:$0xff] %vm1137, %v2877
      %3006 = vst.msk [vmem:[%s197 + $0x1b8] sm:$0xff] %vm1137, %v2878
      %3007 = vst.msk [vmem:[%s197 + $0x1c0] sm:$0xff] %vm1137, %v2879
      %3008 = vst.msk [vmem:[%s197 + $0x1c8] sm:$0xff] %vm1137, %v2880
      %3009 = vst.msk [vmem:[%s197 + $0x1d0] sm:$0xff] %vm1137, %v2881
      %3010 = vst.msk [vmem:[%s197 + $0x1d8] sm:$0xff] %vm1137, %v2882
      %3011 = vst.msk [vmem:[%s197 + $0x1e0] sm:$0xff] %vm1137, %v2883
      %3012 = vst.msk [vmem:[%s197 + $0x1e8] sm:$0xff] %vm1137, %v2884
      %3013 = vst.msk [vmem:[%s197 + $0x1f0] sm:$0xff] %vm1137, %v2885
      %3014 = vst.msk [vmem:[%s197 + $0x1f8] sm:$0xff] %vm1137, %v2886
      %3015 = vst.msk [vmem:[%s197 + $0x200] sm:$0xff] %vm1137, %v2887
      %3016 = vst.msk [vmem:[%s197 + $0x208] sm:$0xff] %vm1137, %v2888
      %3017 = vst.msk [vmem:[%s197 + $0x210] sm:$0xff] %vm1137, %v2889
      %3018 = vst.msk [vmem:[%s197 + $0x218] sm:$0xff] %vm1137, %v2890
      %3019 = vst.msk [vmem:[%s197 + $0x220] sm:$0xff] %vm1137, %v2891
      %3020 = vst.msk [vmem:[%s197 + $0x228] sm:$0xff] %vm1137, %v2892
      %3021 = vst.msk [vmem:[%s197 + $0x230] sm:$0xff] %vm1137, %v2893
      %3022 = vst.msk [vmem:[%s197 + $0x238] sm:$0xff] %vm1137, %v2894
      %3023 = vst.msk [vmem:[%s197 + $0x240] sm:$0xff] %vm1137, %v2895
      %3024 = vst.msk [vmem:[%s197 + $0x248] sm:$0xff] %vm1137, %v2896
      %3025 = vst.msk [vmem:[%s197 + $0x250] sm:$0xff] %vm1137, %v2897
      %3026 = vst.msk [vmem:[%s197 + $0x258] sm:$0xff] %vm1137, %v2898
      %3027 = vst.msk [vmem:[%s197 + $0x260] sm:$0xff] %vm1137, %v2899
      %3028 = vst.msk [vmem:[%s197 + $0x268] sm:$0xff] %vm1137, %v2900
      %3029 = vst.msk [vmem:[%s197 + $0x270] sm:$0xff] %vm1137, %v2901
      %3030 = vst.msk [vmem:[%s197 + $0x278] sm:$0xff] %vm1137, %v2902
      %3031 = vst.msk [vmem:[%s197 + $0x280] sm:$0xff] %vm1137, %v2903
      %3032 = vst.msk [vmem:[%s197 + $0x288] sm:$0xff] %vm1137, %v2904
      %3033 = vst.msk [vmem:[%s197 + $0x290] sm:$0xff] %vm1137, %v2905
      %3034 = vst.msk [vmem:[%s197 + $0x298] sm:$0xff] %vm1137, %v2906
      %3035 = vst.msk [vmem:[%s197 + $0x2a0] sm:$0xff] %vm1137, %v2907
      %3036 = vst.msk [vmem:[%s197 + $0x2a8] sm:$0xff] %vm1137, %v2908
      %3037 = vst.msk [vmem:[%s197 + $0x2b0] sm:$0xff] %vm1137, %v2909
      %3038 = vst.msk [vmem:[%s197 + $0x2b8] sm:$0xff] %vm1137, %v2910
      %3039 = vst.msk [vmem:[%s197 + $0x2c0] sm:$0xff] %vm1137, %v2911
      %3040 = vst.msk [vmem:[%s197 + $0x2c8] sm:$0xff] %vm1137, %v2912
      %3041 = vst.msk [vmem:[%s197 + $0x2d0] sm:$0xff] %vm1137, %v2913
      %3042 = vst.msk [vmem:[%s197 + $0x2d8] sm:$0xff] %vm1137, %v2914
      %3043 = vst.msk [vmem:[%s197 + $0x2e0] sm:$0xff] %vm1137, %v2915
      %3044 = vst.msk [vmem:[%s197 + $0x2e8] sm:$0xff] %vm1137, %v2916
      %3045 = vst.msk [vmem:[%s197 + $0x2f0] sm:$0xff] %vm1137, %v2917
      %3046 = vst.msk [vmem:[%s197 + $0x2f8] sm:$0xff] %vm1137, %v2918
      %3047 = vst.msk [vmem:[%s197 + $0x300] sm:$0xff] %vm1137, %v2919
      %3048 = vst.msk [vmem:[%s197 + $0x308] sm:$0xff] %vm1137, %v2920
      %3049 = vst.msk [vmem:[%s197 + $0x310] sm:$0xff] %vm1137, %v2921
      %3050 = vst.msk [vmem:[%s197 + $0x318] sm:$0xff] %vm1137, %v2922
      %3051 = vst.msk [vmem:[%s197 + $0x320] sm:$0xff] %vm1137, %v2923
      %3052 = vst.msk [vmem:[%s197 + $0x328] sm:$0xff] %vm1137, %v2924
      %3053 = vst.msk [vmem:[%s197 + $0x330] sm:$0xff] %vm1137, %v2925
      %3054 = vst.msk [vmem:[%s197 + $0x338] sm:$0xff] %vm1137, %v2926
      %3055 = vst.msk [vmem:[%s197 + $0x340] sm:$0xff] %vm1137, %v2927
      %3056 = vst.msk [vmem:[%s197 + $0x348] sm:$0xff] %vm1137, %v2928
      %3057 = vst.msk [vmem:[%s197 + $0x350] sm:$0xff] %vm1137, %v2929
      %3058 = vst.msk [vmem:[%s197 + $0x358] sm:$0xff] %vm1137, %v2930
      %3059 = vst.msk [vmem:[%s197 + $0x360] sm:$0xff] %vm1137, %v2931
      %3060 = vst.msk [vmem:[%s197 + $0x368] sm:$0xff] %vm1137, %v2932
      %3061 = vst.msk [vmem:[%s197 + $0x370] sm:$0xff] %vm1137, %v2933
      %3062 = vst.msk [vmem:[%s197 + $0x378] sm:$0xff] %vm1137, %v2934
      %3063 = vst.msk [vmem:[%s197 + $0x380] sm:$0xff] %vm1137, %v2935
      %3064 = vst.msk [vmem:[%s197 + $0x388] sm:$0xff] %vm1137, %v2936
      %3065 = vst.msk [vmem:[%s197 + $0x390] sm:$0xff] %vm1137, %v2937
      %3066 = vst.msk [vmem:[%s197 + $0x398] sm:$0xff] %vm1137, %v2938
      %3067 = vst.msk [vmem:[%s197 + $0x3a0] sm:$0xff] %vm1137, %v2939
      %3068 = vst.msk [vmem:[%s197 + $0x3a8] sm:$0xff] %vm1137, %v2940
      %3069 = vst.msk [vmem:[%s197 + $0x3b0] sm:$0xff] %vm1137, %v2941
      %3070 = vst.msk [vmem:[%s197 + $0x3b8] sm:$0xff] %vm1137, %v2942
      %3071 = vst.msk [vmem:[%s197 + $0x3c0] sm:$0xff] %vm1137, %v2943
      %3072 = vst.msk [vmem:[%s197 + $0x3c8] sm:$0xff] %vm1137, %v2944
      %3073 = vst.msk [vmem:[%s197 + $0x3d0] sm:$0xff] %vm1137, %v2945
      %3074 = vst.msk [vmem:[%s197 + $0x3d8] sm:$0xff] %vm1137, %v2946
      %3075 = vst.msk [vmem:[%s197 + $0x3e0] sm:$0xff] %vm1137, %v2947
      %3076 = vst.msk [vmem:[%s197 + $0x3e8] sm:$0xff] %vm1137, %v2948
      %3077 = vst.msk [vmem:[%s197 + $0x3f0] sm:$0xff] %vm1137, %v2949
      %3078 = vst.msk [vmem:[%s197 + $0x3f8] sm:$0xff] %vm1137, %v2950
      %p3079 = scmp.lt.s32.totalorder %s15, 1
      %s3080 = scalar_select %p3079, %s15, 1
      %s3081 = smul.addr %s3080, 128
      %s3082 = smul.addr %s3081, 8
      %s3083 = scalar_lea.vmem %s4, %s3082
      // Predicated region
      $region37: #{conv_encoder_forward.4} parent=35 // pred_check
        %p3084 = pneg %p122
      $region38: #{conv_encoder_forward.4} parent=35 // pred_check_branch
        %3086 = sbr.rel (%p3084) target = $region40
      $region39: #{conv_encoder_forward.4} parent=35 // pred_region
        _
      $region40: #{conv_encoder_forward.4} parent=35 // pred_fallthru
        _
    $region36: #{conv_encoder_forward.4} parent=5 // pred_fallthru
      _
    %p3087 = scmp.le.s32.totalorder 2, %s10
    // Predicated region
    $region41: #{conv_encoder_forward.4} parent=5 // pred_check
      %p3088 = pneg %p3087
    $region42: #{conv_encoder_forward.4} parent=5 // pred_check_branch
      %3090 = sbr.rel (%p3088) target = $region44
    $region43: #{conv_encoder_forward.4} parent=5 // pred_region
      %s3091 = ssub.s32 %s10, 2
      // Predicated region
      $region45: #{conv_encoder_forward.4} parent=43 // pred_check
        %p3092 = pneg %p128
      $region46: #{conv_encoder_forward.4} parent=43 // pred_check_branch
        %3094 = sbr.rel (%p3092) target = $region48
      $region47: #{conv_encoder_forward.4} parent=43 // pred_region
        %p3095 = scmp.lt.s32.totalorder %s16, 1
        %s3096 = scalar_select %p3095, %s16, 1
        %s3097 = smul.addr %s3096, 128
        %s3098 = smul.addr %s3097, 8
        %s3099 = scalar_lea.vmem %s4, %s3098
      $region48: #{conv_encoder_forward.4} parent=43 // pred_fallthru
        _
    $region44: #{conv_encoder_forward.4} parent=5 // pred_fallthru
      _
  $region6: #{conv_encoder_forward.4} parent=0 // loop_footer
    %s14 = sadd.s32 1, %s10
  $region7: #{conv_encoder_forward.4} parent=0 // loop_footer_branch
    %9 = sbr.rel target = $region3
  $region8: #{conv_encoder_forward.4} parent=0 // loop_exit
    _

// kernel: conv_encoder_forward.5
$region0: #{conv_encoder_forward.5}
  #allocation0 [shape = 'u32[]', space=smem, size = 0x4, offset = 0x4, fixed_abs, tag = 'smem constant byte address 0x4 - core index']
  #allocation1 [shape = 'u32[144,128]{1,0:T(1,128)}', space=vmem, size = 0x12000, scoped, tag = 'internal scratch']
  %s0 = inlined_call_operand.vmem [shape: f32[2,9,33,128], index: 0, kind: input, shape index: {}]
  %s1 = inlined_call_operand.vmem [shape: bf16[2,2,128,64], index: 1, kind: input, shape index: {}]
  %s2 = inlined_call_operand.vmem [shape: f32[256,64], index: 2, kind: input, shape index: {}]
  %s3 = inlined_call_operand.vmem [shape: f32[256,64], index: 3, kind: input, shape index: {}]
  %s4 = inlined_call_operand.vmem [shape: f32[2,8,32,64], index: 4, kind: output, shape index: {}]
  %s5 = sld [smem:[#allocation0]]
  $region49: #{conv_encoder_forward.5} parent=0
    _
  %s7 = ssub.s32 1, %s5
  %s8 = scalar_select 0, %s7, %s5
  loop: start=0, step=1, limit=4
  $region2: #{conv_encoder_forward.5} parent=0 // loop_pre_header
    _
  $region3: #{conv_encoder_forward.5} parent=0 // loop_header
    %s10 = sphi 0, %s14
    %p11 = scmp.ge.s32.totalorder %s10, 4
    %s20 = sphi 0, %s22
    %s23 = sphi 0, %s20
    %s24 = sphi 0, %s23
    %s40 = sphi 0, %s24
    %s44 = sphi 0, %s44
    %s46 = sphi 0, %s44
    %s47 = sphi 0, %s46
    %s61 = sphi 0, %s47
    %s65 = sphi 0, %s65
    %s67 = sphi 0, %s65
    %s68 = sphi 0, %s67
    %s82 = sphi 0, %s68
    %s86 = sphi 0, %s86
    %s88 = sphi 0, %s86
    %s89 = sphi 0, %s88
    %s103 = sphi 0, %s89
    %s109 = sphi 0, %s111
    %s112 = sphi 0, %s109
    %s113 = sphi 0, %s112
    %s129 = sphi 0, %s113
  $region4: #{conv_encoder_forward.5} parent=0 // loop_header_branch
    %13 = sbr.rel (%p11) target = $region8
  $region5: #{conv_encoder_forward.5} parent=0 // loop_body
    %s15 = ssub.s32 %s10, 1
    %s16 = ssub.s32 %s10, 2
    %s17 = sadd.s32 %s10, 1
    %s18 = ssub.s32 %s10, %s17
    %p19 = scmp.eq.s32.totalorder %s18, 0
    %s21 = sadd.s32 %s20, 1
    %s22 = scalar_select %p19, %s20, %s21
    %p25 = pneg %p19
    %p26 = scmp.eq.s32.totalorder %s10, 1
    %p27 = por %p25, %p26
    %p28 = scmp.ne.s32.totalorder %s20, %s23
    %p29 = scmp.eq.s32.totalorder %s10, 0
    %p30 = por %p28, %p29
    %p31 = scmp.ne.s32.totalorder %s20, %s23
    %p32 = scmp.eq.s32.totalorder %s15, 1
    %p33 = por %p31, %p32
    %p34 = scmp.ne.s32.totalorder %s23, %s24
    %p35 = scmp.eq.s32.totalorder %s15, 0
    %p36 = por %p34, %p35
    %p37 = scmp.ne.s32.totalorder %s23, %s24
    %p38 = scmp.eq.s32.totalorder %s16, 1
    %p39 = por %p37, %p38
    %p41 = scmp.ne.s32.totalorder %s24, %s40
    %p42 = scmp.eq.s32.totalorder %s16, 0
    %p43 = por %p41, %p42
    %s45 = sadd.s32 %s44, 1
    %p48 = scmp.eq.s32.totalorder %s10, 1
    %p49 = scmp.ne.s32.totalorder %s44, %s46
    %p50 = scmp.eq.s32.totalorder %s10, 0
    %p51 = por %p49, %p50
    %p52 = scmp.ne.s32.totalorder %s44, %s46
    %p53 = scmp.eq.s32.totalorder %s15, 1
    %p54 = por %p52, %p53
    %p55 = scmp.ne.s32.totalorder %s46, %s47
    %p56 = scmp.eq.s32.totalorder %s15, 0
    %p57 = por %p55, %p56
    %p58 = scmp.ne.s32.totalorder %s46, %s47
    %p59 = scmp.eq.s32.totalorder %s16, 1
    %p60 = por %p58, %p59
    %p62 = scmp.ne.s32.totalorder %s47, %s61
    %p63 = scmp.eq.s32.totalorder %s16, 0
    %p64 = por %p62, %p63
    %s66 = sadd.s32 %s65, 1
    %p69 = scmp.eq.s32.totalorder %s10, 1
    %p70 = scmp.ne.s32.totalorder %s65, %s67
    %p71 = scmp.eq.s32.totalorder %s10, 0
    %p72 = por %p70, %p71
    %p73 = scmp.ne.s32.totalorder %s65, %s67
    %p74 = scmp.eq.s32.totalorder %s15, 1
    %p75 = por %p73, %p74
    %p76 = scmp.ne.s32.totalorder %s67, %s68
    %p77 = scmp.eq.s32.totalorder %s15, 0
    %p78 = por %p76, %p77
    %p79 = scmp.ne.s32.totalorder %s67, %s68
    %p80 = scmp.eq.s32.totalorder %s16, 1
    %p81 = por %p79, %p80
    %p83 = scmp.ne.s32.totalorder %s68, %s82
    %p84 = scmp.eq.s32.totalorder %s16, 0
    %p85 = por %p83, %p84
    %s87 = sadd.s32 %s86, 1
    %p90 = scmp.eq.s32.totalorder %s10, 1
    %p91 = scmp.ne.s32.totalorder %s86, %s88
    %p92 = scmp.eq.s32.totalorder %s10, 0
    %p93 = por %p91, %p92
    %p94 = scmp.ne.s32.totalorder %s86, %s88
    %p95 = scmp.eq.s32.totalorder %s15, 1
    %p96 = por %p94, %p95
    %p97 = scmp.ne.s32.totalorder %s88, %s89
    %p98 = scmp.eq.s32.totalorder %s15, 0
    %p99 = por %p97, %p98
    %p100 = scmp.ne.s32.totalorder %s88, %s89
    %p101 = scmp.eq.s32.totalorder %s16, 1
    %p102 = por %p100, %p101
    %p104 = scmp.ne.s32.totalorder %s89, %s103
    %p105 = scmp.eq.s32.totalorder %s16, 0
    %p106 = por %p104, %p105
    %s107 = ssub.s32 %s10, %s17
    %p108 = scmp.eq.s32.totalorder %s107, 0
    %s110 = sadd.s32 %s109, 1
    %s111 = scalar_select %p108, %s109, %s110
    %p114 = pneg %p108
    %p115 = scmp.eq.s32.totalorder %s10, 1
    %p116 = por %p114, %p115
    %p117 = scmp.ne.s32.totalorder %s109, %s112
    %p118 = scmp.eq.s32.totalorder %s10, 0
    %p119 = por %p117, %p118
    %p120 = scmp.ne.s32.totalorder %s109, %s112
    %p121 = scmp.eq.s32.totalorder %s15, 1
    %p122 = por %p120, %p121
    %p123 = scmp.ne.s32.totalorder %s112, %s113
    %p124 = scmp.eq.s32.totalorder %s15, 0
    %p125 = por %p123, %p124
    %p126 = scmp.ne.s32.totalorder %s112, %s113
    %p127 = scmp.eq.s32.totalorder %s16, 1
    %p128 = por %p126, %p127
    %p130 = scmp.ne.s32.totalorder %s113, %s129
    %p131 = scmp.eq.s32.totalorder %s16, 0
    %p132 = por %p130, %p131
    %p133 = scmp.le.s32.totalorder 1, %s10
    %p134 = scmp.lt.s32.totalorder %s10, 3
    %p135 = pnand %p133, %p134
    %p136 = pneg %p135
    // Predicated region
    $region9: #{conv_encoder_forward.5} parent=5 // pred_check
      _
    $region10: #{conv_encoder_forward.5} parent=5 // pred_check_branch
      %138 = sbr.rel (%p135) target = $region12
    $region11: #{conv_encoder_forward.5} parent=5 // pred_region
      %s139 = ssub.s32 %s10, 1
      // Predicated region
      $region13: #{conv_encoder_forward.5} parent=11 // pred_check
        %p140 = pneg %p57
      $region14: #{conv_encoder_forward.5} parent=11 // pred_check_branch
        %142 = sbr.rel (%p140) target = $region16
      $region15: #{conv_encoder_forward.5} parent=11 // pred_region
        _
      $region16: #{conv_encoder_forward.5} parent=11 // pred_fallthru
        _
      // Predicated region
      $region17: #{conv_encoder_forward.5} parent=11 // pred_check
        %p143 = pneg %p78
      $region18: #{conv_encoder_forward.5} parent=11 // pred_check_branch
        %145 = sbr.rel (%p143) target = $region20
      $region19: #{conv_encoder_forward.5} parent=11 // pred_region
        _
      $region20: #{conv_encoder_forward.5} parent=11 // pred_fallthru
        _
      // Predicated region
      $region21: #{conv_encoder_forward.5} parent=11 // pred_check
        %p146 = pneg %p99
      $region22: #{conv_encoder_forward.5} parent=11 // pred_check_branch
        %148 = sbr.rel (%p146) target = $region24
      $region23: #{conv_encoder_forward.5} parent=11 // pred_region
        _
      $region24: #{conv_encoder_forward.5} parent=11 // pred_fallthru
        _
    $region12: #{conv_encoder_forward.5} parent=5 // pred_fallthru
      _
    %p149 = scmp.lt.s32.totalorder %s10, 2
    // Predicated region
    $region25: #{conv_encoder_forward.5} parent=5 // pred_check
      %p150 = pneg %p149
    $region26: #{conv_encoder_forward.5} parent=5 // pred_check_branch
      %152 = sbr.rel (%p150) target = $region28
    $region27: #{conv_encoder_forward.5} parent=5 // pred_region
      // Predicated region
      $region29: #{conv_encoder_forward.5} parent=27 // pred_check
        %p153 = pneg %p30
      $region30: #{conv_encoder_forward.5} parent=27 // pred_check_branch
        %155 = sbr.rel (%p153) target = $region32
      $region31: #{conv_encoder_forward.5} parent=27 // pred_region
        %p156 = scmp.lt.s32.totalorder %s10, 1
        %s157 = scalar_select %p156, %s10, 1
        %s158 = smul.addr %s157, 45
        %s159 = smul.addr %s158, 8
        %s160 = scalar_lea.vmem %s0, %s159
      $region32: #{conv_encoder_forward.5} parent=27 // pred_fallthru
        _
    $region28: #{conv_encoder_forward.5} parent=5 // pred_fallthru
      _
    %p161 = scmp.le.s32.totalorder 1, %s10
    %p162 = scmp.lt.s32.totalorder %s10, 3
    %p163 = pnand %p161, %p162
    %p164 = pneg %p163
    // Predicated region
    $region33: #{conv_encoder_forward.5} parent=5 // pred_check
      _
    $region34: #{conv_encoder_forward.5} parent=5 // pred_check_branch
      %166 = sbr.rel (%p163) target = $region36
    $region35: #{conv_encoder_forward.5} parent=5 // pred_region
      %s167 = ssub.s32 %s10, 1
      %p168 = scmp.lt.s32.totalorder %s15, 1
      %s169 = scalar_select %p168, %s15, 1
      %s170 = smul.addr %s169, 45
      %s171 = smul.addr %s170, 8
      %s172 = scalar_lea.vmem %s0, %s171
      %p173 = pneg %p36
      %p174 = pneg %p33
      %p175 = pneg %p57
      %p176 = pneg %p54
      %p177 = pneg %p78
      %p178 = pneg %p75
      %p179 = pneg %p99
      %p180 = pneg %p96
      %p181 = pneg %p125
      %p182 = pneg %p122
      %p183 = scmp.lt.s32.totalorder %s15, 1
      %s184 = scalar_select %p183, %s15, 1
      %s185 = smul.addr %s184, 32
      %s186 = smul.addr %s185, 8
      %s187 = scalar_lea.vmem %s4, %s186
      %p188 = scmp.lt.s32.totalorder %s15, 1
      %s189 = scalar_select %p188, %s15, 1
      %s190 = smul.addr %s189, 45
      %s191 = smul.addr %s190, 8
      %s192 = scalar_lea.vmem %s0, %s191
      %p193 = scmp.lt.s32.totalorder %s15, 1
      %s194 = scalar_select %p193, %s15, 1
      %s195 = smul.addr %s194, 32
      %s196 = smul.addr %s195, 8
      %s197 = scalar_lea.vmem %s4, %s196
      %v199 = vld [vmem:[%s192] sm:$0xff]
      %v200 = vld [vmem:[%s192 + $0x8] sm:$0xff]
      %v201 = vld [vmem:[%s192 + $0x10] sm:$0xff]
      %v202 = vld [vmem:[%s192 + $0x18] sm:$0xff]
      %v203 = vld [vmem:[%s192 + $0x28] sm:$0xff]
      %v204 = vld [vmem:[%s192 + $0x30] sm:$0xff]
      %v205 = vld [vmem:[%s192 + $0x38] sm:$0xff]
      %v206 = vld [vmem:[%s192 + $0x40] sm:$0xff]
      %v207 = vld [vmem:[%s192 + $0x50] sm:$0xff]
      %v208 = vld [vmem:[%s192 + $0x58] sm:$0xff]
      %v209 = vld [vmem:[%s192 + $0x60] sm:$0xff]
      %v210 = vld [vmem:[%s192 + $0x68] sm:$0xff]
      %v211 = vld [vmem:[%s192 + $0x78] sm:$0xff]
      %v212 = vld [vmem:[%s192 + $0x80] sm:$0xff]
      %v213 = vld [vmem:[%s192 + $0x88] sm:$0xff]
      %v214 = vld [vmem:[%s192 + $0x90] sm:$0xff]
      %v215 = vld [vmem:[%s192 + $0xa0] sm:$0xff]
      %v216 = vld [vmem:[%s192 + $0xa8] sm:$0xff]
      %v217 = vld [vmem:[%s192 + $0xb0] sm:$0xff]
      %v218 = vld [vmem:[%s192 + $0xb8] sm:$0xff]
      %v219 = vld [vmem:[%s192 + $0xc8] sm:$0xff]
      %v220 = vld [vmem:[%s192 + $0xd0] sm:$0xff]
      %v221 = vld [vmem:[%s192 + $0xd8] sm:$0xff]
      %v222 = vld [vmem:[%s192 + $0xe0] sm:$0xff]
      %v223 = vld [vmem:[%s192 + $0xf0] sm:$0xff]
      %v224 = vld [vmem:[%s192 + $0xf8] sm:$0xff]
      %v225 = vld [vmem:[%s192 + $0x100] sm:$0xff]
      %v226 = vld [vmem:[%s192 + $0x108] sm:$0xff]
      %v227 = vld [vmem:[%s192 + $0x118] sm:$0xff]
      %v228 = vld [vmem:[%s192 + $0x120] sm:$0xff]
      %v229 = vld [vmem:[%s192 + $0x128] sm:$0xff]
      %v230 = vld [vmem:[%s192 + $0x130] sm:$0xff]
      %v231 = vpack.c.bf16 %v200, %v199
      %v232 = vpack.c.bf16 %v202, %v201
      %v233 = vpack.c.bf16 %v204, %v203
      %v234 = vpack.c.bf16 %v206, %v205
      %v235 = vpack.c.bf16 %v208, %v207
      %v236 = vpack.c.bf16 %v210, %v209
      %v237 = vpack.c.bf16 %v212, %v211
      %v238 = vpack.c.bf16 %v214, %v213
      %v239 = vpack.c.bf16 %v216, %v215
      %v240 = vpack.c.bf16 %v218, %v217
      %v241 = vpack.c.bf16 %v220, %v219
      %v242 = vpack.c.bf16 %v222, %v221
      %v243 = vpack.c.bf16 %v224, %v223
      %v244 = vpack.c.bf16 %v226, %v225
      %v245 = vpack.c.bf16 %v228, %v227
      %v246 = vpack.c.bf16 %v230, %v229
      %v247 = vld [vmem:[%s1] sm:$0xf]
      %v248 = vld [vmem:[%s1 + $0x4] sm:$0xf]
      %v249 = vld [vmem:[%s1 + $0x8] sm:$0xf]
      %v250 = vld [vmem:[%s1 + $0xc] sm:$0xf]
      %v251 = vld [vmem:[%s1 + $0x10] sm:$0xf]
      %v252 = vld [vmem:[%s1 + $0x14] sm:$0xf]
      %v253 = vld [vmem:[%s1 + $0x18] sm:$0xf]
      %v254 = vld [vmem:[%s1 + $0x1c] sm:$0xf]
      %v255 = vld [vmem:[%s1 + $0x20] sm:$0xf]
      %v256 = vld [vmem:[%s1 + $0x24] sm:$0xf]
      %v257 = vld [vmem:[%s1 + $0x28] sm:$0xf]
      %v258 = vld [vmem:[%s1 + $0x2c] sm:$0xf]
      %v259 = vld [vmem:[%s1 + $0x30] sm:$0xf]
      %v260 = vld [vmem:[%s1 + $0x34] sm:$0xf]
      %v261 = vld [vmem:[%s1 + $0x38] sm:$0xf]
      %v262 = vld [vmem:[%s1 + $0x3c] sm:$0xf]
      %v263 = vld [vmem:[%s192 + $0x1] sm:$0xff]
      %v264 = vld [vmem:[%s192 + $0x9] sm:$0xff]
      %v265 = vld [vmem:[%s192 + $0x11] sm:$0xff]
      %v266 = vld [vmem:[%s192 + $0x19] sm:$0xff]
      %v267 = vld [vmem:[%s192 + $0x29] sm:$0xff]
      %v268 = vld [vmem:[%s192 + $0x31] sm:$0xff]
      %v269 = vld [vmem:[%s192 + $0x39] sm:$0xff]
      %v270 = vld [vmem:[%s192 + $0x41] sm:$0xff]
      %v271 = vld [vmem:[%s192 + $0x51] sm:$0xff]
      %v272 = vld [vmem:[%s192 + $0x59] sm:$0xff]
      %v273 = vld [vmem:[%s192 + $0x61] sm:$0xff]
      %v274 = vld [vmem:[%s192 + $0x69] sm:$0xff]
      %v275 = vld [vmem:[%s192 + $0x79] sm:$0xff]
      %v276 = vld [vmem:[%s192 + $0x81] sm:$0xff]
      %v277 = vld [vmem:[%s192 + $0x89] sm:$0xff]
      %v278 = vld [vmem:[%s192 + $0x91] sm:$0xff]
      %v279 = vld [vmem:[%s192 + $0xa1] sm:$0xff]
      %v280 = vld [vmem:[%s192 + $0xa9] sm:$0xff]
      %v281 = vld [vmem:[%s192 + $0xb1] sm:$0xff]
      %v282 = vld [vmem:[%s192 + $0xb9] sm:$0xff]
      %v283 = vld [vmem:[%s192 + $0xc9] sm:$0xff]
      %v284 = vld [vmem:[%s192 + $0xd1] sm:$0xff]
      %v285 = vld [vmem:[%s192 + $0xd9] sm:$0xff]
      %v286 = vld [vmem:[%s192 + $0xe1] sm:$0xff]
      %v287 = vld [vmem:[%s192 + $0xf1] sm:$0xff]
      %v288 = vld [vmem:[%s192 + $0xf9] sm:$0xff]
      %v289 = vld [vmem:[%s192 + $0x101] sm:$0xff]
      %v290 = vld [vmem:[%s192 + $0x109] sm:$0xff]
      %v291 = vld [vmem:[%s192 + $0x119] sm:$0xff]
      %v292 = vld [vmem:[%s192 + $0x121] sm:$0xff]
      %v293 = vld [vmem:[%s192 + $0x129] sm:$0xff]
      %v294 = vld [vmem:[%s192 + $0x131] sm:$0xff]
      %v295 = vpack.c.bf16 %v264, %v263
      %v296 = vpack.c.bf16 %v266, %v265
      %v297 = vpack.c.bf16 %v268, %v267
      %v298 = vpack.c.bf16 %v270, %v269
      %v299 = vpack.c.bf16 %v272, %v271
      %v300 = vpack.c.bf16 %v274, %v273
      %v301 = vpack.c.bf16 %v276, %v275
      %v302 = vpack.c.bf16 %v278, %v277
      %v303 = vpack.c.bf16 %v280, %v279
      %v304 = vpack.c.bf16 %v282, %v281
      %v305 = vpack.c.bf16 %v284, %v283
      %v306 = vpack.c.bf16 %v286, %v285
      %v307 = vpack.c.bf16 %v288, %v287
      %v308 = vpack.c.bf16 %v290, %v289
      %v309 = vpack.c.bf16 %v292, %v291
      %v310 = vpack.c.bf16 %v294, %v293
      %s311 = scalar_lea.vmem %s1, 64
      %v312 = vld [vmem:[%s311] sm:$0xf]
      %v313 = vld [vmem:[%s311 + $0x4] sm:$0xf]
      %v314 = vld [vmem:[%s311 + $0x8] sm:$0xf]
      %v315 = vld [vmem:[%s311 + $0xc] sm:$0xf]
      %v316 = vld [vmem:[%s311 + $0x10] sm:$0xf]
      %v317 = vld [vmem:[%s311 + $0x14] sm:$0xf]
      %v318 = vld [vmem:[%s311 + $0x18] sm:$0xf]
      %v319 = vld [vmem:[%s311 + $0x1c] sm:$0xf]
      %v320 = vld [vmem:[%s311 + $0x20] sm:$0xf]
      %v321 = vld [vmem:[%s311 + $0x24] sm:$0xf]
      %v322 = vld [vmem:[%s311 + $0x28] sm:$0xf]
      %v323 = vld [vmem:[%s311 + $0x2c] sm:$0xf]
      %v324 = vld [vmem:[%s311 + $0x30] sm:$0xf]
      %v325 = vld [vmem:[%s311 + $0x34] sm:$0xf]
      %v326 = vld [vmem:[%s311 + $0x38] sm:$0xf]
      %v327 = vld [vmem:[%s311 + $0x3c] sm:$0xf]
      %v344 = vunpack.c.l.b16 %v312
      %v345 = vunpack.c.l.b16 %v313
      %v346 = vunpack.c.l.b16 %v314
      %v347 = vunpack.c.l.b16 %v315
      %v348 = vunpack.c.l.b16 %v316
      %v349 = vunpack.c.l.b16 %v317
      %v350 = vunpack.c.l.b16 %v318
      %v351 = vunpack.c.l.b16 %v319
      %v352 = vunpack.c.l.b16 %v320
      %v353 = vunpack.c.l.b16 %v321
      %v354 = vunpack.c.l.b16 %v322
      %v355 = vunpack.c.l.b16 %v323
      %v356 = vunpack.c.l.b16 %v324
      %v357 = vunpack.c.l.b16 %v325
      %v358 = vunpack.c.l.b16 %v326
      %v359 = vunpack.c.l.b16 %v327
      %v360 = vpack.c.b16 %v345, %v344
      %v361 = vpack.c.b16 %v347, %v346
      %v362 = vpack.c.b16 %v349, %v348
      %v363 = vpack.c.b16 %v351, %v350
      %v364 = vpack.c.b16 %v353, %v352
      %v365 = vpack.c.b16 %v355, %v354
      %v366 = vpack.c.b16 %v357, %v356
      %v367 = vpack.c.b16 %v359, %v358
      %376 = vmatprep.subr.bf16.mxu0 0
      %377 = vmatpush1.bf16.msra.mxu0 %v360
      %378 = vmatprep.subr.bf16.mxu0 0
      %379 = vmatpush1.bf16.msra.mxu0 %v361
      %380 = vmatprep.subr.bf16.mxu0 0
      %381 = vmatpush1.bf16.msra.mxu0 %v362
      %382 = vmatprep.subr.bf16.mxu0 0
      %383 = vmatpush1.bf16.msra.mxu0 %v363
      %384 = vmatprep.subr.bf16.mxu0 0
      %385 = vmatpush1.bf16.msra.mxu0 %v364
      %386 = vmatprep.subr.bf16.mxu0 0
      %387 = vmatpush1.bf16.msra.mxu0 %v365
      %388 = vmatprep.subr.bf16.mxu0 0
      %389 = vmatpush1.bf16.msra.mxu0 %v366
      %390 = vmatprep.subr.bf16.mxu0 0
      %391 = vmatpush1.bf16.msra.mxu0 %v367
      %392 = vmatprep.subr.bf16.mxu0 0
      %393 = vmatpush1.bf16.msra.mxu0 0
      %394 = vmatprep.subr.bf16.mxu0 0
      %395 = vmatpush1.bf16.msra.mxu0 0
      %396 = vmatprep.subr.bf16.mxu0 0
      %397 = vmatpush1.bf16.msra.mxu0 0
      %398 = vmatprep.subr.bf16.mxu0 0
      %399 = vmatpush1.bf16.msra.mxu0 0
      %400 = vmatprep.subr.bf16.mxu0 0
      %401 = vmatpush1.bf16.msra.mxu0 0
      %402 = vmatprep.subr.bf16.mxu0 0
      %403 = vmatpush1.bf16.msra.mxu0 0
      %404 = vmatprep.subr.bf16.mxu0 0
      %405 = vmatpush1.bf16.msra.mxu0 0
      %406 = vmatprep.subr.bf16.mxu0 0
      %407 = vmatpush1.bf16.msra.mxu0 0
      %408 = vmatprep.mubr.bf16.mxu0 0
      %409 = vmatmul.mubr.bf16.gmra.mrb[0].mxu0 %v295
      %v410 = vpop.f32.mrb[0].mxu0
      %v411 = vadd.f32 0.0, %v410
      %v412 = vpop.f32.mrb[0].mxu0
      %v413 = vpop.f32.mrb[0].mxu0
      %v414 = vadd.f32 0.0, %v413
      %v415 = vpop.f32.mrb[0].mxu0
      %416 = vmatprep.mubr.bf16.mxu0 0
      %417 = vmatmul.mubr.bf16.gmra.mrb[0].mxu0 %v296
      %v418 = vpop.f32.mrb[0].mxu0
      %v419 = vadd.f32 0.0, %v418
      %v420 = vpop.f32.mrb[0].mxu0
      %v421 = vpop.f32.mrb[0].mxu0
      %v422 = vadd.f32 0.0, %v421
      %v423 = vpop.f32.mrb[0].mxu0
      %424 = vmatprep.mubr.bf16.mxu0 0
      %425 = vmatmul.mubr.bf16.gmra.mrb[0].mxu0 %v297
      %v426 = vpop.f32.mrb[0].mxu0
      %v427 = vadd.f32 0.0, %v426
      %v428 = vpop.f32.mrb[0].mxu0
      %v429 = vpop.f32.mrb[0].mxu0
      %v430 = vadd.f32 0.0, %v429
      %v431 = vpop.f32.mrb[0].mxu0
      %432 = vmatprep.mubr.bf16.mxu0 0
      %433 = vmatmul.mubr.bf16.gmra.mrb[0].mxu0 %v298
      %v434 = vpop.f32.mrb[0].mxu0
      %v435 = vadd.f32 0.0, %v434
      %v436 = vpop.f32.mrb[0].mxu0
      %v437 = vpop.f32.mrb[0].mxu0
      %v438 = vadd.f32 0.0, %v437
      %v439 = vpop.f32.mrb[0].mxu0
      %440 = vmatprep.mubr.bf16.mxu0 0
      %441 = vmatmul.mubr.bf16.gmra.mrb[0].mxu0 %v299
      %v442 = vpop.f32.mrb[0].mxu0
      %v443 = vadd.f32 0.0, %v442
      %v444 = vpop.f32.mrb[0].mxu0
      %v445 = vpop.f32.mrb[0].mxu0
      %v446 = vadd.f32 0.0, %v445
      %v447 = vpop.f32.mrb[0].mxu0
      %448 = vmatprep.mubr.bf16.mxu0 0
      %449 = vmatmul.mubr.bf16.gmra.mrb[0].mxu0 %v300
      %v450 = vpop.f32.mrb[0].mxu0
      %v451 = vadd.f32 0.0, %v450
      %v452 = vpop.f32.mrb[0].mxu0
      %v453 = vpop.f32.mrb[0].mxu0
      %v454 = vadd.f32 0.0, %v453
      %v455 = vpop.f32.mrb[0].mxu0
      %456 = vmatprep.mubr.bf16.mxu0 0
      %457 = vmatmul.mubr.bf16.gmra.mrb[0].mxu0 %v301
      %v458 = vpop.f32.mrb[0].mxu0
      %v459 = vadd.f32 0.0, %v458
      %v460 = vpop.f32.mrb[0].mxu0
      %v461 = vpop.f32.mrb[0].mxu0
      %v462 = vadd.f32 0.0, %v461
      %v463 = vpop.f32.mrb[0].mxu0
      %464 = vmatprep.mubr.bf16.mxu0 0
      %465 = vmatmul.mubr.bf16.gmra.mrb[0].mxu0 %v302
      %v466 = vpop.f32.mrb[0].mxu0
      %v467 = vadd.f32 0.0, %v466
      %v468 = vpop.f32.mrb[0].mxu0
      %v469 = vpop.f32.mrb[0].mxu0
      %v470 = vadd.f32 0.0, %v469
      %v471 = vpop.f32.mrb[0].mxu0
      %472 = vmatprep.mubr.bf16.mxu0 0
      %473 = vmatmul.mubr.bf16.gmra.mrb[0].mxu0 %v303
      %v474 = vpop.f32.mrb[0].mxu0
      %v475 = vadd.f32 0.0, %v474
      %v476 = vpop.f32.mrb[0].mxu0
      %v477 = vpop.f32.mrb[0].mxu0
      %v478 = vadd.f32 0.0, %v477
      %v479 = vpop.f32.mrb[0].mxu0
      %480 = vmatprep.mubr.bf16.mxu0 0
      %481 = vmatmul.mubr.bf16.gmra.mrb[0].mxu0 %v304
      %v482 = vpop.f32.mrb[0].mxu0
      %v483 = vadd.f32 0.0, %v482
      %v484 = vpop.f32.mrb[0].mxu0
      %v485 = vpop.f32.mrb[0].mxu0
      %v486 = vadd.f32 0.0, %v485
      %v487 = vpop.f32.mrb[0].mxu0
      %488 = vmatprep.mubr.bf16.mxu0 0
      %489 = vmatmul.mubr.bf16.gmra.mrb[0].mxu0 %v305
      %v490 = vpop.f32.mrb[0].mxu0
      %v491 = vadd.f32 0.0, %v490
      %v492 = vpop.f32.mrb[0].mxu0
      %v493 = vpop.f32.mrb[0].mxu0
      %v494 = vadd.f32 0.0, %v493
      %v495 = vpop.f32.mrb[0].mxu0
      %496 = vmatprep.mubr.bf16.mxu0 0
      %497 = vmatmul.mubr.bf16.gmra.mrb[0].mxu0 %v306
      %v498 = vpop.f32.mrb[0].mxu0
      %v499 = vadd.f32 0.0, %v498
      %v500 = vpop.f32.mrb[0].mxu0
      %v501 = vpop.f32.mrb[0].mxu0
      %v502 = vadd.f32 0.0, %v501
      %v503 = vpop.f32.mrb[0].mxu0
      %504 = vmatprep.mubr.bf16.mxu0 0
      %505 = vmatmul.mubr.bf16.gmra.mrb[0].mxu0 %v307
      %v506 = vpop.f32.mrb[0].mxu0
      %v507 = vadd.f32 0.0, %v506
      %v508 = vpop.f32.mrb[0].mxu0
      %v509 = vpop.f32.mrb[0].mxu0
      %v510 = vadd.f32 0.0, %v509
      %v511 = vpop.f32.mrb[0].mxu0
      %512 = vmatprep.mubr.bf16.mxu0 0
      %513 = vmatmul.mubr.bf16.gmra.mrb[0].mxu0 %v308
      %v514 = vpop.f32.mrb[0].mxu0
      %v515 = vadd.f32 0.0, %v514
      %v516 = vpop.f32.mrb[0].mxu0
      %v517 = vpop.f32.mrb[0].mxu0
      %v518 = vadd.f32 0.0, %v517
      %v519 = vpop.f32.mrb[0].mxu0
      %520 = vmatprep.mubr.bf16.mxu0 0
      %521 = vmatmul.mubr.bf16.gmra.mrb[0].mxu0 %v309
      %v522 = vpop.f32.mrb[0].mxu0
      %v523 = vadd.f32 0.0, %v522
      %v524 = vpop.f32.mrb[0].mxu0
      %v525 = vpop.f32.mrb[0].mxu0
      %v526 = vadd.f32 0.0, %v525
      %v527 = vpop.f32.mrb[0].mxu0
      %528 = vmatprep.mubr.bf16.mxu0 0
      %529 = vmatmul.mubr.bf16.gmra.mrb[0].mxu0 %v310
      %v530 = vpop.f32.mrb[0].mxu0
      %v531 = vadd.f32 0.0, %v530
      %v532 = vpop.f32.mrb[0].mxu0
      %v533 = vpop.f32.mrb[0].mxu0
      %v534 = vadd.f32 0.0, %v533
      %v535 = vpop.f32.mrb[0].mxu0
      %536 = vdwg.mxu0
      %v553 = vunpack.c.l.b16 %v247
      %v554 = vunpack.c.l.b16 %v248
      %v555 = vunpack.c.l.b16 %v249
      %v556 = vunpack.c.l.b16 %v250
      %v557 = vunpack.c.l.b16 %v251
      %v558 = vunpack.c.l.b16 %v252
      %v559 = vunpack.c.l.b16 %v253
      %v560 = vunpack.c.l.b16 %v254
      %v561 = vunpack.c.l.b16 %v255
      %v562 = vunpack.c.l.b16 %v256
      %v563 = vunpack.c.l.b16 %v257
      %v564 = vunpack.c.l.b16 %v258
      %v565 = vunpack.c.l.b16 %v259
      %v566 = vunpack.c.l.b16 %v260
      %v567 = vunpack.c.l.b16 %v261
      %v568 = vunpack.c.l.b16 %v262
      %v569 = vpack.c.b16 %v554, %v553
      %v570 = vpack.c.b16 %v556, %v555
      %v571 = vpack.c.b16 %v558, %v557
      %v572 = vpack.c.b16 %v560, %v559
      %v573 = vpack.c.b16 %v562, %v561
      %v574 = vpack.c.b16 %v564, %v563
      %v575 = vpack.c.b16 %v566, %v565
      %v576 = vpack.c.b16 %v568, %v567
      %585 = vmatprep.subr.bf16.mxu0 0
      %586 = vmatpush1.bf16.msra.mxu0 %v569
      %587 = vmatprep.subr.bf16.mxu0 0
      %588 = vmatpush1.bf16.msra.mxu0 %v570
      %589 = vmatprep.subr.bf16.mxu0 0
      %590 = vmatpush1.bf16.msra.mxu0 %v571
      %591 = vmatprep.subr.bf16.mxu0 0
      %592 = vmatpush1.bf16.msra.mxu0 %v572
      %593 = vmatprep.subr.bf16.mxu0 0
      %594 = vmatpush1.bf16.msra.mxu0 %v573
      %595 = vmatprep.subr.bf16.mxu0 0
      %596 = vmatpush1.bf16.msra.mxu0 %v574
      %597 = vmatprep.subr.bf16.mxu0 0
      %598 = vmatpush1.bf16.msra.mxu0 %v575
      %599 = vmatprep.subr.bf16.mxu0 0
      %600 = vmatpush1.bf16.msra.mxu0 %v576
      %601 = vmatprep.subr.bf16.mxu0 0
      %602 = vmatpush1.bf16.msra.mxu0 0
      %603 = vmatprep.subr.bf16.mxu0 0
      %604 = vmatpush1.bf16.msra.mxu0 0
      %605 = vmatprep.subr.bf16.mxu0 0
      %606 = vmatpush1.bf16.msra.mxu0 0
      %607 = vmatprep.subr.bf16.mxu0 0
      %608 = vmatpush1.bf16.msra.mxu0 0
      %609 = vmatprep.subr.bf16.mxu0 0
      %610 = vmatpush1.bf16.msra.mxu0 0
      %611 = vmatprep.subr.bf16.mxu0 0
      %612 = vmatpush1.bf16.msra.mxu0 0
      %613 = vmatprep.subr.bf16.mxu0 0
      %614 = vmatpush1.bf16.msra.mxu0 0
      %615 = vmatprep.subr.bf16.mxu0 0
      %616 = vmatpush1.bf16.msra.mxu0 0
      %617 = vmatprep.mubr.bf16.mxu0 0
      %618 = vmatmul.mubr.bf16.gmra.mrb[0].mxu0 %v231
      %v619 = vpop.f32.mrb[0].mxu0
      %v620 = vadd.f32 %v411, %v619
      %v621 = vpop.f32.mrb[0].mxu0
      %v622 = vpop.f32.mrb[0].mxu0
      %v623 = vadd.f32 %v414, %v622
      %v624 = vpop.f32.mrb[0].mxu0
      %625 = vmatprep.mubr.bf16.mxu0 0
      %626 = vmatmul.mubr.bf16.gmra.mrb[0].mxu0 %v232
      %v627 = vpop.f32.mrb[0].mxu0
      %v628 = vadd.f32 %v419, %v627
      %v629 = vpop.f32.mrb[0].mxu0
      %v630 = vpop.f32.mrb[0].mxu0
      %v631 = vadd.f32 %v422, %v630
      %v632 = vpop.f32.mrb[0].mxu0
      %633 = vmatprep.mubr.bf16.mxu0 0
      %634 = vmatmul.mubr.bf16.gmra.mrb[0].mxu0 %v233
      %v635 = vpop.f32.mrb[0].mxu0
      %v636 = vadd.f32 %v427, %v635
      %v637 = vpop.f32.mrb[0].mxu0
      %v638 = vpop.f32.mrb[0].mxu0
      %v639 = vadd.f32 %v430, %v638
      %v640 = vpop.f32.mrb[0].mxu0
      %641 = vmatprep.mubr.bf16.mxu0 0
      %642 = vmatmul.mubr.bf16.gmra.mrb[0].mxu0 %v234
      %v643 = vpop.f32.mrb[0].mxu0
      %v644 = vadd.f32 %v435, %v643
      %v645 = vpop.f32.mrb[0].mxu0
      %v646 = vpop.f32.mrb[0].mxu0
      %v647 = vadd.f32 %v438, %v646
      %v648 = vpop.f32.mrb[0].mxu0
      %649 = vmatprep.mubr.bf16.mxu0 0
      %650 = vmatmul.mubr.bf16.gmra.mrb[0].mxu0 %v235
      %v651 = vpop.f32.mrb[0].mxu0
      %v652 = vadd.f32 %v443, %v651
      %v653 = vpop.f32.mrb[0].mxu0
      %v654 = vpop.f32.mrb[0].mxu0
      %v655 = vadd.f32 %v446, %v654
      %v656 = vpop.f32.mrb[0].mxu0
      %657 = vmatprep.mubr.bf16.mxu0 0
      %658 = vmatmul.mubr.bf16.gmra.mrb[0].mxu0 %v236
      %v659 = vpop.f32.mrb[0].mxu0
      %v660 = vadd.f32 %v451, %v659
      %v661 = vpop.f32.mrb[0].mxu0
      %v662 = vpop.f32.mrb[0].mxu0
      %v663 = vadd.f32 %v454, %v662
      %v664 = vpop.f32.mrb[0].mxu0
      %665 = vmatprep.mubr.bf16.mxu0 0
      %666 = vmatmul.mubr.bf16.gmra.mrb[0].mxu0 %v237
      %v667 = vpop.f32.mrb[0].mxu0
      %v668 = vadd.f32 %v459, %v667
      %v669 = vpop.f32.mrb[0].mxu0
      %v670 = vpop.f32.mrb[0].mxu0
      %v671 = vadd.f32 %v462, %v670
      %v672 = vpop.f32.mrb[0].mxu0
      %673 = vmatprep.mubr.bf16.mxu0 0
      %674 = vmatmul.mubr.bf16.gmra.mrb[0].mxu0 %v238
      %v675 = vpop.f32.mrb[0].mxu0
      %v676 = vadd.f32 %v467, %v675
      %v677 = vpop.f32.mrb[0].mxu0
      %v678 = vpop.f32.mrb[0].mxu0
      %v679 = vadd.f32 %v470, %v678
      %v680 = vpop.f32.mrb[0].mxu0
      %681 = vmatprep.mubr.bf16.mxu0 0
      %682 = vmatmul.mubr.bf16.gmra.mrb[0].mxu0 %v239
      %v683 = vpop.f32.mrb[0].mxu0
      %v684 = vadd.f32 %v475, %v683
      %v685 = vpop.f32.mrb[0].mxu0
      %v686 = vpop.f32.mrb[0].mxu0
      %v687 = vadd.f32 %v478, %v686
      %v688 = vpop.f32.mrb[0].mxu0
      %689 = vmatprep.mubr.bf16.mxu0 0
      %690 = vmatmul.mubr.bf16.gmra.mrb[0].mxu0 %v240
      %v691 = vpop.f32.mrb[0].mxu0
      %v692 = vadd.f32 %v483, %v691
      %v693 = vpop.f32.mrb[0].mxu0
      %v694 = vpop.f32.mrb[0].mxu0
      %v695 = vadd.f32 %v486, %v694
      %v696 = vpop.f32.mrb[0].mxu0
      %697 = vmatprep.mubr.bf16.mxu0 0
      %698 = vmatmul.mubr.bf16.gmra.mrb[0].mxu0 %v241
      %v699 = vpop.f32.mrb[0].mxu0
      %v700 = vadd.f32 %v491, %v699
      %v701 = vpop.f32.mrb[0].mxu0
      %v702 = vpop.f32.mrb[0].mxu0
      %v703 = vadd.f32 %v494, %v702
      %v704 = vpop.f32.mrb[0].mxu0
      %705 = vmatprep.mubr.bf16.mxu0 0
      %706 = vmatmul.mubr.bf16.gmra.mrb[0].mxu0 %v242
      %v707 = vpop.f32.mrb[0].mxu0
      %v708 = vadd.f32 %v499, %v707
      %v709 = vpop.f32.mrb[0].mxu0
      %v710 = vpop.f32.mrb[0].mxu0
      %v711 = vadd.f32 %v502, %v710
      %v712 = vpop.f32.mrb[0].mxu0
      %713 = vmatprep.mubr.bf16.mxu0 0
      %714 = vmatmul.mubr.bf16.gmra.mrb[0].mxu0 %v243
      %v715 = vpop.f32.mrb[0].mxu0
      %v716 = vadd.f32 %v507, %v715
      %v717 = vpop.f32.mrb[0].mxu0
      %v718 = vpop.f32.mrb[0].mxu0
      %v719 = vadd.f32 %v510, %v718
      %v720 = vpop.f32.mrb[0].mxu0
      %721 = vmatprep.mubr.bf16.mxu0 0
      %722 = vmatmul.mubr.bf16.gmra.mrb[0].mxu0 %v244
      %v723 = vpop.f32.mrb[0].mxu0
      %v724 = vadd.f32 %v515, %v723
      %v725 = vpop.f32.mrb[0].mxu0
      %v726 = vpop.f32.mrb[0].mxu0
      %v727 = vadd.f32 %v518, %v726
      %v728 = vpop.f32.mrb[0].mxu0
      %729 = vmatprep.mubr.bf16.mxu0 0
      %730 = vmatmul.mubr.bf16.gmra.mrb[0].mxu0 %v245
      %v731 = vpop.f32.mrb[0].mxu0
      %v732 = vadd.f32 %v523, %v731
      %v733 = vpop.f32.mrb[0].mxu0
      %v734 = vpop.f32.mrb[0].mxu0
      %v735 = vadd.f32 %v526, %v734
      %v736 = vpop.f32.mrb[0].mxu0
      %737 = vmatprep.mubr.bf16.mxu0 0
      %738 = vmatmul.mubr.bf16.gmra.mrb[0].mxu0 %v246
      %v739 = vpop.f32.mrb[0].mxu0
      %v740 = vadd.f32 %v531, %v739
      %v741 = vpop.f32.mrb[0].mxu0
      %v742 = vpop.f32.mrb[0].mxu0
      %v743 = vadd.f32 %v534, %v742
      %v744 = vpop.f32.mrb[0].mxu0
      %745 = vdwg.mxu0
      %s746 = scalar_lea.vmem %s192, 40
      %v747 = vld [vmem:[%s746] sm:$0xff]
      %v748 = vld [vmem:[%s746 + $0x8] sm:$0xff]
      %v749 = vld [vmem:[%s746 + $0x10] sm:$0xff]
      %v750 = vld [vmem:[%s746 + $0x18] sm:$0xff]
      %v751 = vld [vmem:[%s746 + $0x28] sm:$0xff]
      %v752 = vld [vmem:[%s746 + $0x30] sm:$0xff]
      %v753 = vld [vmem:[%s746 + $0x38] sm:$0xff]
      %v754 = vld [vmem:[%s746 + $0x40] sm:$0xff]
      %v755 = vld [vmem:[%s746 + $0x50] sm:$0xff]
      %v756 = vld [vmem:[%s746 + $0x58] sm:$0xff]
      %v757 = vld [vmem:[%s746 + $0x60] sm:$0xff]
      %v758 = vld [vmem:[%s746 + $0x68] sm:$0xff]
      %v759 = vld [vmem:[%s746 + $0x78] sm:$0xff]
      %v760 = vld [vmem:[%s746 + $0x80] sm:$0xff]
      %v761 = vld [vmem:[%s746 + $0x88] sm:$0xff]
      %v762 = vld [vmem:[%s746 + $0x90] sm:$0xff]
      %v763 = vld [vmem:[%s746 + $0xa0] sm:$0xff]
      %v764 = vld [vmem:[%s746 + $0xa8] sm:$0xff]
      %v765 = vld [vmem:[%s746 + $0xb0] sm:$0xff]
      %v766 = vld [vmem:[%s746 + $0xb8] sm:$0xff]
      %v767 = vld [vmem:[%s746 + $0xc8] sm:$0xff]
      %v768 = vld [vmem:[%s746 + $0xd0] sm:$0xff]
      %v769 = vld [vmem:[%s746 + $0xd8] sm:$0xff]
      %v770 = vld [vmem:[%s746 + $0xe0] sm:$0xff]
      %v771 = vld [vmem:[%s746 + $0xf0] sm:$0xff]
      %v772 = vld [vmem:[%s746 + $0xf8] sm:$0xff]
      %v773 = vld [vmem:[%s746 + $0x100] sm:$0xff]
      %v774 = vld [vmem:[%s746 + $0x108] sm:$0xff]
      %v775 = vld [vmem:[%s746 + $0x118] sm:$0xff]
      %v776 = vld [vmem:[%s746 + $0x120] sm:$0xff]
      %v777 = vld [vmem:[%s746 + $0x128] sm:$0xff]
      %v778 = vld [vmem:[%s746 + $0x130] sm:$0xff]
      %v779 = vpack.c.bf16 %v748, %v747
      %v780 = vpack.c.bf16 %v750, %v749
      %v781 = vpack.c.bf16 %v752, %v751
      %v782 = vpack.c.bf16 %v754, %v753
      %v783 = vpack.c.bf16 %v756, %v755
      %v784 = vpack.c.bf16 %v758, %v757
      %v785 = vpack.c.bf16 %v760, %v759
      %v786 = vpack.c.bf16 %v762, %v761
      %v787 = vpack.c.bf16 %v764, %v763
      %v788 = vpack.c.bf16 %v766, %v765
      %v789 = vpack.c.bf16 %v768, %v767
      %v790 = vpack.c.bf16 %v770, %v769
      %v791 = vpack.c.bf16 %v772, %v771
      %v792 = vpack.c.bf16 %v774, %v773
      %v793 = vpack.c.bf16 %v776, %v775
      %v794 = vpack.c.bf16 %v778, %v777
      %s795 = scalar_lea.vmem %s1, 128
      %v796 = vld [vmem:[%s795] sm:$0xf]
      %v797 = vld [vmem:[%s795 + $0x4] sm:$0xf]
      %v798 = vld [vmem:[%s795 + $0x8] sm:$0xf]
      %v799 = vld [vmem:[%s795 + $0xc] sm:$0xf]
      %v800 = vld [vmem:[%s795 + $0x10] sm:$0xf]
      %v801 = vld [vmem:[%s795 + $0x14] sm:$0xf]
      %v802 = vld [vmem:[%s795 + $0x18] sm:$0xf]
      %v803 = vld [vmem:[%s795 + $0x1c] sm:$0xf]
      %v804 = vld [vmem:[%s795 + $0x20] sm:$0xf]
      %v805 = vld [vmem:[%s795 + $0x24] sm:$0xf]
      %v806 = vld [vmem:[%s795 + $0x28] sm:$0xf]
      %v807 = vld [vmem:[%s795 + $0x2c] sm:$0xf]
      %v808 = vld [vmem:[%s795 + $0x30] sm:$0xf]
      %v809 = vld [vmem:[%s795 + $0x34] sm:$0xf]
      %v810 = vld [vmem:[%s795 + $0x38] sm:$0xf]
      %v811 = vld [vmem:[%s795 + $0x3c] sm:$0xf]
      %v828 = vunpack.c.l.b16 %v796
      %v829 = vunpack.c.l.b16 %v797
      %v830 = vunpack.c.l.b16 %v798
      %v831 = vunpack.c.l.b16 %v799
      %v832 = vunpack.c.l.b16 %v800
      %v833 = vunpack.c.l.b16 %v801
      %v834 = vunpack.c.l.b16 %v802
      %v835 = vunpack.c.l.b16 %v803
      %v836 = vunpack.c.l.b16 %v804
      %v837 = vunpack.c.l.b16 %v805
      %v838 = vunpack.c.l.b16 %v806
      %v839 = vunpack.c.l.b16 %v807
      %v840 = vunpack.c.l.b16 %v808
      %v841 = vunpack.c.l.b16 %v809
      %v842 = vunpack.c.l.b16 %v810
      %v843 = vunpack.c.l.b16 %v811
      %v844 = vpack.c.b16 %v829, %v828
      %v845 = vpack.c.b16 %v831, %v830
      %v846 = vpack.c.b16 %v833, %v832
      %v847 = vpack.c.b16 %v835, %v834
      %v848 = vpack.c.b16 %v837, %v836
      %v849 = vpack.c.b16 %v839, %v838
      %v850 = vpack.c.b16 %v841, %v840
      %v851 = vpack.c.b16 %v843, %v842
      %860 = vmatprep.subr.bf16.mxu0 0
      %861 = vmatpush1.bf16.msra.mxu0 %v844
      %862 = vmatprep.subr.bf16.mxu0 0
      %863 = vmatpush1.bf16.msra.mxu0 %v845
      %864 = vmatprep.subr.bf16.mxu0 0
      %865 = vmatpush1.bf16.msra.mxu0 %v846
      %866 = vmatprep.subr.bf16.mxu0 0
      %867 = vmatpush1.bf16.msra.mxu0 %v847
      %868 = vmatprep.subr.bf16.mxu0 0
      %869 = vmatpush1.bf16.msra.mxu0 %v848
      %870 = vmatprep.subr.bf16.mxu0 0
      %871 = vmatpush1.bf16.msra.mxu0 %v849
      %872 = vmatprep.subr.bf16.mxu0 0
      %873 = vmatpush1.bf16.msra.mxu0 %v850
      %874 = vmatprep.subr.bf16.mxu0 0
      %875 = vmatpush1.bf16.msra.mxu0 %v851
      %876 = vmatprep.subr.bf16.mxu0 0
      %877 = vmatpush1.bf16.msra.mxu0 0
      %878 = vmatprep.subr.bf16.mxu0 0
      %879 = vmatpush1.bf16.msra.mxu0 0
      %880 = vmatprep.subr.bf16.mxu0 0
      %881 = vmatpush1.bf16.msra.mxu0 0
      %882 = vmatprep.subr.bf16.mxu0 0
      %883 = vmatpush1.bf16.msra.mxu0 0
      %884 = vmatprep.subr.bf16.mxu0 0
      %885 = vmatpush1.bf16.msra.mxu0 0
      %886 = vmatprep.subr.bf16.mxu0 0
      %887 = vmatpush1.bf16.msra.mxu0 0
      %888 = vmatprep.subr.bf16.mxu0 0
      %889 = vmatpush1.bf16.msra.mxu0 0
      %890 = vmatprep.subr.bf16.mxu0 0
      %891 = vmatpush1.bf16.msra.mxu0 0
      %892 = vmatprep.mubr.bf16.mxu0 0
      %893 = vmatmul.mubr.bf16.gmra.mrb[0].mxu0 %v779
      %v894 = vpop.f32.mrb[0].mxu0
      %v895 = vadd.f32 0.0, %v894
      %v896 = vpop.f32.mrb[0].mxu0
      %v897 = vpop.f32.mrb[0].mxu0
      %v898 = vadd.f32 0.0, %v897
      %v899 = vpop.f32.mrb[0].mxu0
      %900 = vmatprep.mubr.bf16.mxu0 0
      %901 = vmatmul.mubr.bf16.gmra.mrb[0].mxu0 %v780
      %v902 = vpop.f32.mrb[0].mxu0
      %v903 = vadd.f32 0.0, %v902
      %v904 = vpop.f32.mrb[0].mxu0
      %v905 = vpop.f32.mrb[0].mxu0
      %v906 = vadd.f32 0.0, %v905
      %v907 = vpop.f32.mrb[0].mxu0
      %908 = vmatprep.mubr.bf16.mxu0 0
      %909 = vmatmul.mubr.bf16.gmra.mrb[0].mxu0 %v781
      %v910 = vpop.f32.mrb[0].mxu0
      %v911 = vadd.f32 0.0, %v910
      %v912 = vpop.f32.mrb[0].mxu0
      %v913 = vpop.f32.mrb[0].mxu0
      %v914 = vadd.f32 0.0, %v913
      %v915 = vpop.f32.mrb[0].mxu0
      %916 = vmatprep.mubr.bf16.mxu0 0
      %917 = vmatmul.mubr.bf16.gmra.mrb[0].mxu0 %v782
      %v918 = vpop.f32.mrb[0].mxu0
      %v919 = vadd.f32 0.0, %v918
      %v920 = vpop.f32.mrb[0].mxu0
      %v921 = vpop.f32.mrb[0].mxu0
      %v922 = vadd.f32 0.0, %v921
      %v923 = vpop.f32.mrb[0].mxu0
      %924 = vmatprep.mubr.bf16.mxu0 0
      %925 = vmatmul.mubr.bf16.gmra.mrb[0].mxu0 %v783
      %v926 = vpop.f32.mrb[0].mxu0
      %v927 = vadd.f32 0.0, %v926
      %v928 = vpop.f32.mrb[0].mxu0
      %v929 = vpop.f32.mrb[0].mxu0
      %v930 = vadd.f32 0.0, %v929
      %v931 = vpop.f32.mrb[0].mxu0
      %932 = vmatprep.mubr.bf16.mxu0 0
      %933 = vmatmul.mubr.bf16.gmra.mrb[0].mxu0 %v784
      %v934 = vpop.f32.mrb[0].mxu0
      %v935 = vadd.f32 0.0, %v934
      %v936 = vpop.f32.mrb[0].mxu0
      %v937 = vpop.f32.mrb[0].mxu0
      %v938 = vadd.f32 0.0, %v937
      %v939 = vpop.f32.mrb[0].mxu0
      %940 = vmatprep.mubr.bf16.mxu0 0
      %941 = vmatmul.mubr.bf16.gmra.mrb[0].mxu0 %v785
      %v942 = vpop.f32.mrb[0].mxu0
      %v943 = vadd.f32 0.0, %v942
      %v944 = vpop.f32.mrb[0].mxu0
      %v945 = vpop.f32.mrb[0].mxu0
      %v946 = vadd.f32 0.0, %v945
      %v947 = vpop.f32.mrb[0].mxu0
      %948 = vmatprep.mubr.bf16.mxu0 0
      %949 = vmatmul.mubr.bf16.gmra.mrb[0].mxu0 %v786
      %v950 = vpop.f32.mrb[0].mxu0
      %v951 = vadd.f32 0.0, %v950
      %v952 = vpop.f32.mrb[0].mxu0
      %v953 = vpop.f32.mrb[0].mxu0
      %v954 = vadd.f32 0.0, %v953
      %v955 = vpop.f32.mrb[0].mxu0
      %956 = vmatprep.mubr.bf16.mxu0 0
      %957 = vmatmul.mubr.bf16.gmra.mrb[0].mxu0 %v787
      %v958 = vpop.f32.mrb[0].mxu0
      %v959 = vadd.f32 0.0, %v958
      %v960 = vpop.f32.mrb[0].mxu0
      %v961 = vpop.f32.mrb[0].mxu0
      %v962 = vadd.f32 0.0, %v961
      %v963 = vpop.f32.mrb[0].mxu0
      %964 = vmatprep.mubr.bf16.mxu0 0
      %965 = vmatmul.mubr.bf16.gmra.mrb[0].mxu0 %v788
      %v966 = vpop.f32.mrb[0].mxu0
      %v967 = vadd.f32 0.0, %v966
      %v968 = vpop.f32.mrb[0].mxu0
      %v969 = vpop.f32.mrb[0].mxu0
      %v970 = vadd.f32 0.0, %v969
      %v971 = vpop.f32.mrb[0].mxu0
      %972 = vmatprep.mubr.bf16.mxu0 0
      %973 = vmatmul.mubr.bf16.gmra.mrb[0].mxu0 %v789
      %v974 = vpop.f32.mrb[0].mxu0
      %v975 = vadd.f32 0.0, %v974
      %v976 = vpop.f32.mrb[0].mxu0
      %v977 = vpop.f32.mrb[0].mxu0
      %v978 = vadd.f32 0.0, %v977
      %v979 = vpop.f32.mrb[0].mxu0
      %980 = vmatprep.mubr.bf16.mxu0 0
      %981 = vmatmul.mubr.bf16.gmra.mrb[0].mxu0 %v790
      %v982 = vpop.f32.mrb[0].mxu0
      %v983 = vadd.f32 0.0, %v982
      %v984 = vpop.f32.mrb[0].mxu0
      %v985 = vpop.f32.mrb[0].mxu0
      %v986 = vadd.f32 0.0, %v985
      %v987 = vpop.f32.mrb[0].mxu0
      %988 = vmatprep.mubr.bf16.mxu0 0
      %989 = vmatmul.mubr.bf16.gmra.mrb[0].mxu0 %v791
      %v990 = vpop.f32.mrb[0].mxu0
      %v991 = vadd.f32 0.0, %v990
      %v992 = vpop.f32.mrb[0].mxu0
      %v993 = vpop.f32.mrb[0].mxu0
      %v994 = vadd.f32 0.0, %v993
      %v995 = vpop.f32.mrb[0].mxu0
      %996 = vmatprep.mubr.bf16.mxu0 0
      %997 = vmatmul.mubr.bf16.gmra.mrb[0].mxu0 %v792
      %v998 = vpop.f32.mrb[0].mxu0
      %v999 = vadd.f32 0.0, %v998
      %v1000 = vpop.f32.mrb[0].mxu0
      %v1001 = vpop.f32.mrb[0].mxu0
      %v1002 = vadd.f32 0.0, %v1001
      %v1003 = vpop.f32.mrb[0].mxu0
      %1004 = vmatprep.mubr.bf16.mxu0 0
      %1005 = vmatmul.mubr.bf16.gmra.mrb[0].mxu0 %v793
      %v1006 = vpop.f32.mrb[0].mxu0
      %v1007 = vadd.f32 0.0, %v1006
      %v1008 = vpop.f32.mrb[0].mxu0
      %v1009 = vpop.f32.mrb[0].mxu0
      %v1010 = vadd.f32 0.0, %v1009
      %v1011 = vpop.f32.mrb[0].mxu0
      %1012 = vmatprep.mubr.bf16.mxu0 0
      %1013 = vmatmul.mubr.bf16.gmra.mrb[0].mxu0 %v794
      %v1014 = vpop.f32.mrb[0].mxu0
      %v1015 = vadd.f32 0.0, %v1014
      %v1016 = vpop.f32.mrb[0].mxu0
      %v1017 = vpop.f32.mrb[0].mxu0
      %v1018 = vadd.f32 0.0, %v1017
      %v1019 = vpop.f32.mrb[0].mxu0
      %1020 = vdwg.mxu0
      %v1021 = vadd.f32 %v620, %v895
      %v1022 = vadd.f32 %v623, %v898
      %v1023 = vadd.f32 %v628, %v903
      %v1024 = vadd.f32 %v631, %v906
      %v1025 = vadd.f32 %v636, %v911
      %v1026 = vadd.f32 %v639, %v914
      %v1027 = vadd.f32 %v644, %v919
      %v1028 = vadd.f32 %v647, %v922
      %v1029 = vadd.f32 %v652, %v927
      %v1030 = vadd.f32 %v655, %v930
      %v1031 = vadd.f32 %v660, %v935
      %v1032 = vadd.f32 %v663, %v938
      %v1033 = vadd.f32 %v668, %v943
      %v1034 = vadd.f32 %v671, %v946
      %v1035 = vadd.f32 %v676, %v951
      %v1036 = vadd.f32 %v679, %v954
      %v1037 = vadd.f32 %v684, %v959
      %v1038 = vadd.f32 %v687, %v962
      %v1039 = vadd.f32 %v692, %v967
      %v1040 = vadd.f32 %v695, %v970
      %v1041 = vadd.f32 %v700, %v975
      %v1042 = vadd.f32 %v703, %v978
      %v1043 = vadd.f32 %v708, %v983
      %v1044 = vadd.f32 %v711, %v986
      %v1045 = vadd.f32 %v716, %v991
      %v1046 = vadd.f32 %v719, %v994
      %v1047 = vadd.f32 %v724, %v999
      %v1048 = vadd.f32 %v727, %v1002
      %v1049 = vadd.f32 %v732, %v1007
      %v1050 = vadd.f32 %v735, %v1010
      %v1051 = vadd.f32 %v740, %v1015
      %v1052 = vadd.f32 %v743, %v1018
      %v1053 = vld [vmem:[%s746 + $0x1] sm:$0xff]
      %v1054 = vld [vmem:[%s746 + $0x9] sm:$0xff]
      %v1055 = vld [vmem:[%s746 + $0x11] sm:$0xff]
      %v1056 = vld [vmem:[%s746 + $0x19] sm:$0xff]
      %v1057 = vld [vmem:[%s746 + $0x29] sm:$0xff]
      %v1058 = vld [vmem:[%s746 + $0x31] sm:$0xff]
      %v1059 = vld [vmem:[%s746 + $0x39] sm:$0xff]
      %v1060 = vld [vmem:[%s746 + $0x41] sm:$0xff]
      %v1061 = vld [vmem:[%s746 + $0x51] sm:$0xff]
      %v1062 = vld [vmem:[%s746 + $0x59] sm:$0xff]
      %v1063 = vld [vmem:[%s746 + $0x61] sm:$0xff]
      %v1064 = vld [vmem:[%s746 + $0x69] sm:$0xff]
      %v1065 = vld [vmem:[%s746 + $0x79] sm:$0xff]
      %v1066 = vld [vmem:[%s746 + $0x81] sm:$0xff]
      %v1067 = vld [vmem:[%s746 + $0x89] sm:$0xff]
      %v1068 = vld [vmem:[%s746 + $0x91] sm:$0xff]
      %v1069 = vld [vmem:[%s746 + $0xa1] sm:$0xff]
      %v1070 = vld [vmem:[%s746 + $0xa9] sm:$0xff]
      %v1071 = vld [vmem:[%s746 + $0xb1] sm:$0xff]
      %v1072 = vld [vmem:[%s746 + $0xb9] sm:$0xff]
      %v1073 = vld [vmem:[%s746 + $0xc9] sm:$0xff]
      %v1074 = vld [vmem:[%s746 + $0xd1] sm:$0xff]
      %v1075 = vld [vmem:[%s746 + $0xd9] sm:$0xff]
      %v1076 = vld [vmem:[%s746 + $0xe1] sm:$0xff]
      %v1077 = vld [vmem:[%s746 + $0xf1] sm:$0xff]
      %v1078 = vld [vmem:[%s746 + $0xf9] sm:$0xff]
      %v1079 = vld [vmem:[%s746 + $0x101] sm:$0xff]
      %v1080 = vld [vmem:[%s746 + $0x109] sm:$0xff]
      %v1081 = vld [vmem:[%s746 + $0x119] sm:$0xff]
      %v1082 = vld [vmem:[%s746 + $0x121] sm:$0xff]
      %v1083 = vld [vmem:[%s746 + $0x129] sm:$0xff]
      %v1084 = vld [vmem:[%s746 + $0x131] sm:$0xff]
      %v1085 = vpack.c.bf16 %v1054, %v1053
      %v1086 = vpack.c.bf16 %v1056, %v1055
      %v1087 = vpack.c.bf16 %v1058, %v1057
      %v1088 = vpack.c.bf16 %v1060, %v1059
      %v1089 = vpack.c.bf16 %v1062, %v1061
      %v1090 = vpack.c.bf16 %v1064, %v1063
      %v1091 = vpack.c.bf16 %v1066, %v1065
      %v1092 = vpack.c.bf16 %v1068, %v1067
      %v1093 = vpack.c.bf16 %v1070, %v1069
      %v1094 = vpack.c.bf16 %v1072, %v1071
      %v1095 = vpack.c.bf16 %v1074, %v1073
      %v1096 = vpack.c.bf16 %v1076, %v1075
      %v1097 = vpack.c.bf16 %v1078, %v1077
      %v1098 = vpack.c.bf16 %v1080, %v1079
      %v1099 = vpack.c.bf16 %v1082, %v1081
      %v1100 = vpack.c.bf16 %v1084, %v1083
      %s1101 = scalar_lea.vmem %s1, 192
      %v1102 = vld [vmem:[%s1101] sm:$0xf]
      %v1103 = vld [vmem:[%s1101 + $0x4] sm:$0xf]
      %v1104 = vld [vmem:[%s1101 + $0x8] sm:$0xf]
      %v1105 = vld [vmem:[%s1101 + $0xc] sm:$0xf]
      %v1106 = vld [vmem:[%s1101 + $0x10] sm:$0xf]
      %v1107 = vld [vmem:[%s1101 + $0x14] sm:$0xf]
      %v1108 = vld [vmem:[%s1101 + $0x18] sm:$0xf]
      %v1109 = vld [vmem:[%s1101 + $0x1c] sm:$0xf]
      %v1110 = vld [vmem:[%s1101 + $0x20] sm:$0xf]
      %v1111 = vld [vmem:[%s1101 + $0x24] sm:$0xf]
      %v1112 = vld [vmem:[%s1101 + $0x28] sm:$0xf]
      %v1113 = vld [vmem:[%s1101 + $0x2c] sm:$0xf]
      %v1114 = vld [vmem:[%s1101 + $0x30] sm:$0xf]
      %v1115 = vld [vmem:[%s1101 + $0x34] sm:$0xf]
      %v1116 = vld [vmem:[%s1101 + $0x38] sm:$0xf]
      %v1117 = vld [vmem:[%s1101 + $0x3c] sm:$0xf]
      %v1134 = vunpack.c.l.b16 %v1102
      %v1135 = vunpack.c.l.b16 %v1103
      %v1136 = vunpack.c.l.b16 %v1104
      %v1137 = vunpack.c.l.b16 %v1105
      %v1138 = vunpack.c.l.b16 %v1106
      %v1139 = vunpack.c.l.b16 %v1107
      %v1140 = vunpack.c.l.b16 %v1108
      %v1141 = vunpack.c.l.b16 %v1109
      %v1142 = vunpack.c.l.b16 %v1110
      %v1143 = vunpack.c.l.b16 %v1111
      %v1144 = vunpack.c.l.b16 %v1112
      %v1145 = vunpack.c.l.b16 %v1113
      %v1146 = vunpack.c.l.b16 %v1114
      %v1147 = vunpack.c.l.b16 %v1115
      %v1148 = vunpack.c.l.b16 %v1116
      %v1149 = vunpack.c.l.b16 %v1117
      %v1150 = vpack.c.b16 %v1135, %v1134
      %v1151 = vpack.c.b16 %v1137, %v1136
      %v1152 = vpack.c.b16 %v1139, %v1138
      %v1153 = vpack.c.b16 %v1141, %v1140
      %v1154 = vpack.c.b16 %v1143, %v1142
      %v1155 = vpack.c.b16 %v1145, %v1144
      %v1156 = vpack.c.b16 %v1147, %v1146
      %v1157 = vpack.c.b16 %v1149, %v1148
      %1166 = vmatprep.subr.bf16.mxu0 0
      %1167 = vmatpush1.bf16.msra.mxu0 %v1150
      %1168 = vmatprep.subr.bf16.mxu0 0
      %1169 = vmatpush1.bf16.msra.mxu0 %v1151
      %1170 = vmatprep.subr.bf16.mxu0 0
      %1171 = vmatpush1.bf16.msra.mxu0 %v1152
      %1172 = vmatprep.subr.bf16.mxu0 0
      %1173 = vmatpush1.bf16.msra.mxu0 %v1153
      %1174 = vmatprep.subr.bf16.mxu0 0
      %1175 = vmatpush1.bf16.msra.mxu0 %v1154
      %1176 = vmatprep.subr.bf16.mxu0 0
      %1177 = vmatpush1.bf16.msra.mxu0 %v1155
      %1178 = vmatprep.subr.bf16.mxu0 0
      %1179 = vmatpush1.bf16.msra.mxu0 %v1156
      %1180 = vmatprep.subr.bf16.mxu0 0
      %1181 = vmatpush1.bf16.msra.mxu0 %v1157
      %1182 = vmatprep.subr.bf16.mxu0 0
      %1183 = vmatpush1.bf16.msra.mxu0 0
      %1184 = vmatprep.subr.bf16.mxu0 0
      %1185 = vmatpush1.bf16.msra.mxu0 0
      %1186 = vmatprep.subr.bf16.mxu0 0
      %1187 = vmatpush1.bf16.msra.mxu0 0
      %1188 = vmatprep.subr.bf16.mxu0 0
      %1189 = vmatpush1.bf16.msra.mxu0 0
      %1190 = vmatprep.subr.bf16.mxu0 0
      %1191 = vmatpush1.bf16.msra.mxu0 0
      %1192 = vmatprep.subr.bf16.mxu0 0
      %1193 = vmatpush1.bf16.msra.mxu0 0
      %1194 = vmatprep.subr.bf16.mxu0 0
      %1195 = vmatpush1.bf16.msra.mxu0 0
      %1196 = vmatprep.subr.bf16.mxu0 0
      %1197 = vmatpush1.bf16.msra.mxu0 0
      %1198 = vmatprep.mubr.bf16.mxu0 0
      %1199 = vmatmul.mubr.bf16.gmra.mrb[0].mxu0 %v1085
      %v1200 = vpop.f32.mrb[0].mxu0
      %v1201 = vadd.f32 0.0, %v1200
      %v1202 = vpop.f32.mrb[0].mxu0
      %v1203 = vpop.f32.mrb[0].mxu0
      %v1204 = vadd.f32 0.0, %v1203
      %v1205 = vpop.f32.mrb[0].mxu0
      %1206 = vmatprep.mubr.bf16.mxu0 0
      %1207 = vmatmul.mubr.bf16.gmra.mrb[0].mxu0 %v1086
      %v1208 = vpop.f32.mrb[0].mxu0
      %v1209 = vadd.f32 0.0, %v1208
      %v1210 = vpop.f32.mrb[0].mxu0
      %v1211 = vpop.f32.mrb[0].mxu0
      %v1212 = vadd.f32 0.0, %v1211
      %v1213 = vpop.f32.mrb[0].mxu0
      %1214 = vmatprep.mubr.bf16.mxu0 0
      %1215 = vmatmul.mubr.bf16.gmra.mrb[0].mxu0 %v1087
      %v1216 = vpop.f32.mrb[0].mxu0
      %v1217 = vadd.f32 0.0, %v1216
      %v1218 = vpop.f32.mrb[0].mxu0
      %v1219 = vpop.f32.mrb[0].mxu0
      %v1220 = vadd.f32 0.0, %v1219
      %v1221 = vpop.f32.mrb[0].mxu0
      %1222 = vmatprep.mubr.bf16.mxu0 0
      %1223 = vmatmul.mubr.bf16.gmra.mrb[0].mxu0 %v1088
      %v1224 = vpop.f32.mrb[0].mxu0
      %v1225 = vadd.f32 0.0, %v1224
      %v1226 = vpop.f32.mrb[0].mxu0
      %v1227 = vpop.f32.mrb[0].mxu0
      %v1228 = vadd.f32 0.0, %v1227
      %v1229 = vpop.f32.mrb[0].mxu0
      %1230 = vmatprep.mubr.bf16.mxu0 0
      %1231 = vmatmul.mubr.bf16.gmra.mrb[0].mxu0 %v1089
      %v1232 = vpop.f32.mrb[0].mxu0
      %v1233 = vadd.f32 0.0, %v1232
      %v1234 = vpop.f32.mrb[0].mxu0
      %v1235 = vpop.f32.mrb[0].mxu0
      %v1236 = vadd.f32 0.0, %v1235
      %v1237 = vpop.f32.mrb[0].mxu0
      %1238 = vmatprep.mubr.bf16.mxu0 0
      %1239 = vmatmul.mubr.bf16.gmra.mrb[0].mxu0 %v1090
      %v1240 = vpop.f32.mrb[0].mxu0
      %v1241 = vadd.f32 0.0, %v1240
      %v1242 = vpop.f32.mrb[0].mxu0
      %v1243 = vpop.f32.mrb[0].mxu0
      %v1244 = vadd.f32 0.0, %v1243
      %v1245 = vpop.f32.mrb[0].mxu0
      %1246 = vmatprep.mubr.bf16.mxu0 0
      %1247 = vmatmul.mubr.bf16.gmra.mrb[0].mxu0 %v1091
      %v1248 = vpop.f32.mrb[0].mxu0
      %v1249 = vadd.f32 0.0, %v1248
      %v1250 = vpop.f32.mrb[0].mxu0
      %v1251 = vpop.f32.mrb[0].mxu0
      %v1252 = vadd.f32 0.0, %v1251
      %v1253 = vpop.f32.mrb[0].mxu0
      %1254 = vmatprep.mubr.bf16.mxu0 0
      %1255 = vmatmul.mubr.bf16.gmra.mrb[0].mxu0 %v1092
      %v1256 = vpop.f32.mrb[0].mxu0
      %v1257 = vadd.f32 0.0, %v1256
      %v1258 = vpop.f32.mrb[0].mxu0
      %v1259 = vpop.f32.mrb[0].mxu0
      %v1260 = vadd.f32 0.0, %v1259
      %v1261 = vpop.f32.mrb[0].mxu0
      %1262 = vmatprep.mubr.bf16.mxu0 0
      %1263 = vmatmul.mubr.bf16.gmra.mrb[0].mxu0 %v1093
      %v1264 = vpop.f32.mrb[0].mxu0
      %v1265 = vadd.f32 0.0, %v1264
      %v1266 = vpop.f32.mrb[0].mxu0
      %v1267 = vpop.f32.mrb[0].mxu0
      %v1268 = vadd.f32 0.0, %v1267
      %v1269 = vpop.f32.mrb[0].mxu0
      %1270 = vmatprep.mubr.bf16.mxu0 0
      %1271 = vmatmul.mubr.bf16.gmra.mrb[0].mxu0 %v1094
      %v1272 = vpop.f32.mrb[0].mxu0
      %v1273 = vadd.f32 0.0, %v1272
      %v1274 = vpop.f32.mrb[0].mxu0
      %v1275 = vpop.f32.mrb[0].mxu0
      %v1276 = vadd.f32 0.0, %v1275
      %v1277 = vpop.f32.mrb[0].mxu0
      %1278 = vmatprep.mubr.bf16.mxu0 0
      %1279 = vmatmul.mubr.bf16.gmra.mrb[0].mxu0 %v1095
      %v1280 = vpop.f32.mrb[0].mxu0
      %v1281 = vadd.f32 0.0, %v1280
      %v1282 = vpop.f32.mrb[0].mxu0
      %v1283 = vpop.f32.mrb[0].mxu0
      %v1284 = vadd.f32 0.0, %v1283
      %v1285 = vpop.f32.mrb[0].mxu0
      %1286 = vmatprep.mubr.bf16.mxu0 0
      %1287 = vmatmul.mubr.bf16.gmra.mrb[0].mxu0 %v1096
      %v1288 = vpop.f32.mrb[0].mxu0
      %v1289 = vadd.f32 0.0, %v1288
      %v1290 = vpop.f32.mrb[0].mxu0
      %v1291 = vpop.f32.mrb[0].mxu0
      %v1292 = vadd.f32 0.0, %v1291
      %v1293 = vpop.f32.mrb[0].mxu0
      %1294 = vmatprep.mubr.bf16.mxu0 0
      %1295 = vmatmul.mubr.bf16.gmra.mrb[0].mxu0 %v1097
      %v1296 = vpop.f32.mrb[0].mxu0
      %v1297 = vadd.f32 0.0, %v1296
      %v1298 = vpop.f32.mrb[0].mxu0
      %v1299 = vpop.f32.mrb[0].mxu0
      %v1300 = vadd.f32 0.0, %v1299
      %v1301 = vpop.f32.mrb[0].mxu0
      %1302 = vmatprep.mubr.bf16.mxu0 0
      %1303 = vmatmul.mubr.bf16.gmra.mrb[0].mxu0 %v1098
      %v1304 = vpop.f32.mrb[0].mxu0
      %v1305 = vadd.f32 0.0, %v1304
      %v1306 = vpop.f32.mrb[0].mxu0
      %v1307 = vpop.f32.mrb[0].mxu0
      %v1308 = vadd.f32 0.0, %v1307
      %v1309 = vpop.f32.mrb[0].mxu0
      %1310 = vmatprep.mubr.bf16.mxu0 0
      %1311 = vmatmul.mubr.bf16.gmra.mrb[0].mxu0 %v1099
      %v1312 = vpop.f32.mrb[0].mxu0
      %v1313 = vadd.f32 0.0, %v1312
      %v1314 = vpop.f32.mrb[0].mxu0
      %v1315 = vpop.f32.mrb[0].mxu0
      %v1316 = vadd.f32 0.0, %v1315
      %v1317 = vpop.f32.mrb[0].mxu0
      %1318 = vmatprep.mubr.bf16.mxu0 0
      %1319 = vmatmul.mubr.bf16.gmra.mrb[0].mxu0 %v1100
      %v1320 = vpop.f32.mrb[0].mxu0
      %v1321 = vadd.f32 0.0, %v1320
      %v1322 = vpop.f32.mrb[0].mxu0
      %v1323 = vpop.f32.mrb[0].mxu0
      %v1324 = vadd.f32 0.0, %v1323
      %v1325 = vpop.f32.mrb[0].mxu0
      %1326 = vdwg.mxu0
      %v1327 = vadd.f32 %v1021, %v1201
      %v1328 = vadd.f32 %v1022, %v1204
      %v1329 = vadd.f32 %v1023, %v1209
      %v1330 = vadd.f32 %v1024, %v1212
      %v1331 = vadd.f32 %v1025, %v1217
      %v1332 = vadd.f32 %v1026, %v1220
      %v1333 = vadd.f32 %v1027, %v1225
      %v1334 = vadd.f32 %v1028, %v1228
      %v1335 = vadd.f32 %v1029, %v1233
      %v1336 = vadd.f32 %v1030, %v1236
      %v1337 = vadd.f32 %v1031, %v1241
      %v1338 = vadd.f32 %v1032, %v1244
      %v1339 = vadd.f32 %v1033, %v1249
      %v1340 = vadd.f32 %v1034, %v1252
      %v1341 = vadd.f32 %v1035, %v1257
      %v1342 = vadd.f32 %v1036, %v1260
      %v1343 = vadd.f32 %v1037, %v1265
      %v1344 = vadd.f32 %v1038, %v1268
      %v1345 = vadd.f32 %v1039, %v1273
      %v1346 = vadd.f32 %v1040, %v1276
      %v1347 = vadd.f32 %v1041, %v1281
      %v1348 = vadd.f32 %v1042, %v1284
      %v1349 = vadd.f32 %v1043, %v1289
      %v1350 = vadd.f32 %v1044, %v1292
      %v1351 = vadd.f32 %v1045, %v1297
      %v1352 = vadd.f32 %v1046, %v1300
      %v1353 = vadd.f32 %v1047, %v1305
      %v1354 = vadd.f32 %v1048, %v1308
      %v1355 = vadd.f32 %v1049, %v1313
      %v1356 = vadd.f32 %v1050, %v1316
      %v1357 = vadd.f32 %v1051, %v1321
      %v1358 = vadd.f32 %v1052, %v1324
      %vm1359 = vcmask 523264
      %v1360 = vsel %vm1359, %v1327, 0.0
      %v1361 = vsel %vm1359, %v1328, 0.0
      %v1362 = vadd.f32 %v1360, %v1361
      %v1363 = vsel %vm1359, %v1329, 0.0
      %v1364 = vadd.f32 %v1362, %v1363
      %v1365 = vsel %vm1359, %v1330, 0.0
      %v1366 = vadd.f32 %v1364, %v1365
      %v1367 = vsel %vm1359, %v1331, 0.0
      %v1368 = vadd.f32 %v1366, %v1367
      %v1369 = vsel %vm1359, %v1332, 0.0
      %v1370 = vadd.f32 %v1368, %v1369
      %v1371 = vsel %vm1359, %v1333, 0.0
      %v1372 = vadd.f32 %v1370, %v1371
      %v1373 = vsel %vm1359, %v1334, 0.0
      %v1374 = vadd.f32 %v1372, %v1373
      %v1375 = vsel %vm1359, %v1335, 0.0
      %v1376 = vadd.f32 %v1374, %v1375
      %v1377 = vsel %vm1359, %v1336, 0.0
      %v1378 = vadd.f32 %v1376, %v1377
      %v1379 = vsel %vm1359, %v1337, 0.0
      %v1380 = vadd.f32 %v1378, %v1379
      %v1381 = vsel %vm1359, %v1338, 0.0
      %v1382 = vadd.f32 %v1380, %v1381
      %v1383 = vsel %vm1359, %v1339, 0.0
      %v1384 = vadd.f32 %v1382, %v1383
      %v1385 = vsel %vm1359, %v1340, 0.0
      %v1386 = vadd.f32 %v1384, %v1385
      %v1387 = vsel %vm1359, %v1341, 0.0
      %v1388 = vadd.f32 %v1386, %v1387
      %v1389 = vsel %vm1359, %v1342, 0.0
      %v1390 = vadd.f32 %v1388, %v1389
      %v1391 = vsel %vm1359, %v1343, 0.0
      %v1392 = vadd.f32 %v1390, %v1391
      %v1393 = vsel %vm1359, %v1344, 0.0
      %v1394 = vadd.f32 %v1392, %v1393
      %v1395 = vsel %vm1359, %v1345, 0.0
      %v1396 = vadd.f32 %v1394, %v1395
      %v1397 = vsel %vm1359, %v1346, 0.0
      %v1398 = vadd.f32 %v1396, %v1397
      %v1399 = vsel %vm1359, %v1347, 0.0
      %v1400 = vadd.f32 %v1398, %v1399
      %v1401 = vsel %vm1359, %v1348, 0.0
      %v1402 = vadd.f32 %v1400, %v1401
      %v1403 = vsel %vm1359, %v1349, 0.0
      %v1404 = vadd.f32 %v1402, %v1403
      %v1405 = vsel %vm1359, %v1350, 0.0
      %v1406 = vadd.f32 %v1404, %v1405
      %v1407 = vsel %vm1359, %v1351, 0.0
      %v1408 = vadd.f32 %v1406, %v1407
      %v1409 = vsel %vm1359, %v1352, 0.0
      %v1410 = vadd.f32 %v1408, %v1409
      %v1411 = vsel %vm1359, %v1353, 0.0
      %v1412 = vadd.f32 %v1410, %v1411
      %v1413 = vsel %vm1359, %v1354, 0.0
      %v1414 = vadd.f32 %v1412, %v1413
      %v1415 = vsel %vm1359, %v1355, 0.0
      %v1416 = vadd.f32 %v1414, %v1415
      %v1417 = vsel %vm1359, %v1356, 0.0
      %v1418 = vadd.f32 %v1416, %v1417
      %v1419 = vsel %vm1359, %v1357, 0.0
      %v1420 = vadd.f32 %v1418, %v1419
      %v1421 = vsel %vm1359, %v1358, 0.0
      %v1422 = vadd.f32 %v1420, %v1421
      %v1423 = vrot.slane %v1422, 4
      %v1424 = vadd.f32 %v1422, %v1423
      %v1425 = vrot.slane %v1424, 2
      %v1426 = vadd.f32 %v1424, %v1425
      %v1427 = vrot.slane %v1426, 1
      %v1428 = vadd.f32 %v1426, %v1427
      %v1429 = vsel %vm1359, %v1428, 0.0
      %1430 = vadd.xlane.f32.xlu0 %v1429
      %v1431 = vpop.xlane.xlu0 %1430
      %v1432 = vrcp.pop 16384.0
      %v1433 = vmul.f32 %v1431, %v1432
      %v1434 = vsub.f32 %v1327, %v1433
      %v1435 = vsub.f32 %v1328, %v1433
      %v1436 = vsub.f32 %v1329, %v1433
      %v1437 = vsub.f32 %v1330, %v1433
      %v1438 = vsub.f32 %v1331, %v1433
      %v1439 = vsub.f32 %v1332, %v1433
      %v1440 = vsub.f32 %v1333, %v1433
      %v1441 = vsub.f32 %v1334, %v1433
      %v1442 = vsub.f32 %v1335, %v1433
      %v1443 = vsub.f32 %v1336, %v1433
      %v1444 = vsub.f32 %v1337, %v1433
      %v1445 = vsub.f32 %v1338, %v1433
      %v1446 = vsub.f32 %v1339, %v1433
      %v1447 = vsub.f32 %v1340, %v1433
      %v1448 = vsub.f32 %v1341, %v1433
      %v1449 = vsub.f32 %v1342, %v1433
      %v1450 = vsub.f32 %v1343, %v1433
      %v1451 = vsub.f32 %v1344, %v1433
      %v1452 = vsub.f32 %v1345, %v1433
      %v1453 = vsub.f32 %v1346, %v1433
      %v1454 = vsub.f32 %v1347, %v1433
      %v1455 = vsub.f32 %v1348, %v1433
      %v1456 = vsub.f32 %v1349, %v1433
      %v1457 = vsub.f32 %v1350, %v1433
      %v1458 = vsub.f32 %v1351, %v1433
      %v1459 = vsub.f32 %v1352, %v1433
      %v1460 = vsub.f32 %v1353, %v1433
      %v1461 = vsub.f32 %v1354, %v1433
      %v1462 = vsub.f32 %v1355, %v1433
      %v1463 = vsub.f32 %v1356, %v1433
      %v1464 = vsub.f32 %v1357, %v1433
      %v1465 = vsub.f32 %v1358, %v1433
      %v1466 = vmul.f32 %v1434, %v1434
      %v1467 = vmul.f32 %v1435, %v1435
      %v1468 = vmul.f32 %v1436, %v1436
      %v1469 = vmul.f32 %v1437, %v1437
      %v1470 = vmul.f32 %v1438, %v1438
      %v1471 = vmul.f32 %v1439, %v1439
      %v1472 = vmul.f32 %v1440, %v1440
      %v1473 = vmul.f32 %v1441, %v1441
      %v1474 = vmul.f32 %v1442, %v1442
      %v1475 = vmul.f32 %v1443, %v1443
      %v1476 = vmul.f32 %v1444, %v1444
      %v1477 = vmul.f32 %v1445, %v1445
      %v1478 = vmul.f32 %v1446, %v1446
      %v1479 = vmul.f32 %v1447, %v1447
      %v1480 = vmul.f32 %v1448, %v1448
      %v1481 = vmul.f32 %v1449, %v1449
      %v1482 = vmul.f32 %v1450, %v1450
      %v1483 = vmul.f32 %v1451, %v1451
      %v1484 = vmul.f32 %v1452, %v1452
      %v1485 = vmul.f32 %v1453, %v1453
      %v1486 = vmul.f32 %v1454, %v1454
      %v1487 = vmul.f32 %v1455, %v1455
      %v1488 = vmul.f32 %v1456, %v1456
      %v1489 = vmul.f32 %v1457, %v1457
      %v1490 = vmul.f32 %v1458, %v1458
      %v1491 = vmul.f32 %v1459, %v1459
      %v1492 = vmul.f32 %v1460, %v1460
      %v1493 = vmul.f32 %v1461, %v1461
      %v1494 = vmul.f32 %v1462, %v1462
      %v1495 = vmul.f32 %v1463, %v1463
      %v1496 = vmul.f32 %v1464, %v1464
      %v1497 = vmul.f32 %v1465, %v1465
      %v1498 = vsel %vm1359, %v1466, 0.0
      %v1499 = vsel %vm1359, %v1467, 0.0
      %v1500 = vadd.f32 %v1498, %v1499
      %v1501 = vsel %vm1359, %v1468, 0.0
      %v1502 = vadd.f32 %v1500, %v1501
      %v1503 = vsel %vm1359, %v1469, 0.0
      %v1504 = vadd.f32 %v1502, %v1503
      %v1505 = vsel %vm1359, %v1470, 0.0
      %v1506 = vadd.f32 %v1504, %v1505
      %v1507 = vsel %vm1359, %v1471, 0.0
      %v1508 = vadd.f32 %v1506, %v1507
      %v1509 = vsel %vm1359, %v1472, 0.0
      %v1510 = vadd.f32 %v1508, %v1509
      %v1511 = vsel %vm1359, %v1473, 0.0
      %v1512 = vadd.f32 %v1510, %v1511
      %v1513 = vsel %vm1359, %v1474, 0.0
      %v1514 = vadd.f32 %v1512, %v1513
      %v1515 = vsel %vm1359, %v1475, 0.0
      %v1516 = vadd.f32 %v1514, %v1515
      %v1517 = vsel %vm1359, %v1476, 0.0
      %v1518 = vadd.f32 %v1516, %v1517
      %v1519 = vsel %vm1359, %v1477, 0.0
      %v1520 = vadd.f32 %v1518, %v1519
      %v1521 = vsel %vm1359, %v1478, 0.0
      %v1522 = vadd.f32 %v1520, %v1521
      %v1523 = vsel %vm1359, %v1479, 0.0
      %v1524 = vadd.f32 %v1522, %v1523
      %v1525 = vsel %vm1359, %v1480, 0.0
      %v1526 = vadd.f32 %v1524, %v1525
      %v1527 = vsel %vm1359, %v1481, 0.0
      %v1528 = vadd.f32 %v1526, %v1527
      %v1529 = vsel %vm1359, %v1482, 0.0
      %v1530 = vadd.f32 %v1528, %v1529
      %v1531 = vsel %vm1359, %v1483, 0.0
      %v1532 = vadd.f32 %v1530, %v1531
      %v1533 = vsel %vm1359, %v1484, 0.0
      %v1534 = vadd.f32 %v1532, %v1533
      %v1535 = vsel %vm1359, %v1485, 0.0
      %v1536 = vadd.f32 %v1534, %v1535
      %v1537 = vsel %vm1359, %v1486, 0.0
      %v1538 = vadd.f32 %v1536, %v1537
      %v1539 = vsel %vm1359, %v1487, 0.0
      %v1540 = vadd.f32 %v1538, %v1539
      %v1541 = vsel %vm1359, %v1488, 0.0
      %v1542 = vadd.f32 %v1540, %v1541
      %v1543 = vsel %vm1359, %v1489, 0.0
      %v1544 = vadd.f32 %v1542, %v1543
      %v1545 = vsel %vm1359, %v1490, 0.0
      %v1546 = vadd.f32 %v1544, %v1545
      %v1547 = vsel %vm1359, %v1491, 0.0
      %v1548 = vadd.f32 %v1546, %v1547
      %v1549 = vsel %vm1359, %v1492, 0.0
      %v1550 = vadd.f32 %v1548, %v1549
      %v1551 = vsel %vm1359, %v1493, 0.0
      %v1552 = vadd.f32 %v1550, %v1551
      %v1553 = vsel %vm1359, %v1494, 0.0
      %v1554 = vadd.f32 %v1552, %v1553
      %v1555 = vsel %vm1359, %v1495, 0.0
      %v1556 = vadd.f32 %v1554, %v1555
      %v1557 = vsel %vm1359, %v1496, 0.0
      %v1558 = vadd.f32 %v1556, %v1557
      %v1559 = vsel %vm1359, %v1497, 0.0
      %v1560 = vadd.f32 %v1558, %v1559
      %v1561 = vrot.slane %v1560, 4
      %v1562 = vadd.f32 %v1560, %v1561
      %v1563 = vrot.slane %v1562, 2
      %v1564 = vadd.f32 %v1562, %v1563
      %v1565 = vrot.slane %v1564, 1
      %v1566 = vadd.f32 %v1564, %v1565
      %v1567 = vsel %vm1359, %v1566, 0.0
      %1568 = vadd.xlane.f32.xlu0 %v1567
      %v1569 = vpop.xlane.xlu0 %1568
      %v1570 = vmul.f32 %v1569, %v1432
      %v1571 = vadd.f32 %v1570, 1e-05
      %v1572 = vrsqrt.pop %v1571
      %v1573 = vmul.f32 %v1434, %v1572
      %v1574 = vmul.f32 %v1435, %v1572
      %v1575 = vmul.f32 %v1436, %v1572
      %v1576 = vmul.f32 %v1437, %v1572
      %v1577 = vmul.f32 %v1438, %v1572
      %v1578 = vmul.f32 %v1439, %v1572
      %v1579 = vmul.f32 %v1440, %v1572
      %v1580 = vmul.f32 %v1441, %v1572
      %v1581 = vmul.f32 %v1442, %v1572
      %v1582 = vmul.f32 %v1443, %v1572
      %v1583 = vmul.f32 %v1444, %v1572
      %v1584 = vmul.f32 %v1445, %v1572
      %v1585 = vmul.f32 %v1446, %v1572
      %v1586 = vmul.f32 %v1447, %v1572
      %v1587 = vmul.f32 %v1448, %v1572
      %v1588 = vmul.f32 %v1449, %v1572
      %v1589 = vmul.f32 %v1450, %v1572
      %v1590 = vmul.f32 %v1451, %v1572
      %v1591 = vmul.f32 %v1452, %v1572
      %v1592 = vmul.f32 %v1453, %v1572
      %v1593 = vmul.f32 %v1454, %v1572
      %v1594 = vmul.f32 %v1455, %v1572
      %v1595 = vmul.f32 %v1456, %v1572
      %v1596 = vmul.f32 %v1457, %v1572
      %v1597 = vmul.f32 %v1458, %v1572
      %v1598 = vmul.f32 %v1459, %v1572
      %v1599 = vmul.f32 %v1460, %v1572
      %v1600 = vmul.f32 %v1461, %v1572
      %v1601 = vmul.f32 %v1462, %v1572
      %v1602 = vmul.f32 %v1463, %v1572
      %v1603 = vmul.f32 %v1464, %v1572
      %v1604 = vmul.f32 %v1465, %v1572
      %v1605 = vld [vmem:[%s2] sm:$0xff]
      %v1606 = vld [vmem:[%s2 + $0x8] sm:$0xff]
      %v1607 = vld [vmem:[%s2 + $0x10] sm:$0xff]
      %v1608 = vld [vmem:[%s2 + $0x18] sm:$0xff]
      %v1609 = vld [vmem:[%s2 + $0x20] sm:$0xff]
      %v1610 = vld [vmem:[%s2 + $0x28] sm:$0xff]
      %v1611 = vld [vmem:[%s2 + $0x30] sm:$0xff]
      %v1612 = vld [vmem:[%s2 + $0x38] sm:$0xff]
      %v1613 = vld [vmem:[%s2 + $0x40] sm:$0xff]
      %v1614 = vld [vmem:[%s2 + $0x48] sm:$0xff]
      %v1615 = vld [vmem:[%s2 + $0x50] sm:$0xff]
      %v1616 = vld [vmem:[%s2 + $0x58] sm:$0xff]
      %v1617 = vld [vmem:[%s2 + $0x60] sm:$0xff]
      %v1618 = vld [vmem:[%s2 + $0x68] sm:$0xff]
      %v1619 = vld [vmem:[%s2 + $0x70] sm:$0xff]
      %v1620 = vld [vmem:[%s2 + $0x78] sm:$0xff]
      %v1621 = vld [vmem:[%s2 + $0x80] sm:$0xff]
      %v1622 = vld [vmem:[%s2 + $0x88] sm:$0xff]
      %v1623 = vld [vmem:[%s2 + $0x90] sm:$0xff]
      %v1624 = vld [vmem:[%s2 + $0x98] sm:$0xff]
      %v1625 = vld [vmem:[%s2 + $0xa0] sm:$0xff]
      %v1626 = vld [vmem:[%s2 + $0xa8] sm:$0xff]
      %v1627 = vld [vmem:[%s2 + $0xb0] sm:$0xff]
      %v1628 = vld [vmem:[%s2 + $0xb8] sm:$0xff]
      %v1629 = vld [vmem:[%s2 + $0xc0] sm:$0xff]
      %v1630 = vld [vmem:[%s2 + $0xc8] sm:$0xff]
      %v1631 = vld [vmem:[%s2 + $0xd0] sm:$0xff]
      %v1632 = vld [vmem:[%s2 + $0xd8] sm:$0xff]
      %v1633 = vld [vmem:[%s2 + $0xe0] sm:$0xff]
      %v1634 = vld [vmem:[%s2 + $0xe8] sm:$0xff]
      %v1635 = vld [vmem:[%s2 + $0xf0] sm:$0xff]
      %v1636 = vld [vmem:[%s2 + $0xf8] sm:$0xff]
      %v1637 = vmul.f32 %v1573, %v1605
      %v1638 = vmul.f32 %v1574, %v1606
      %v1639 = vmul.f32 %v1575, %v1607
      %v1640 = vmul.f32 %v1576, %v1608
      %v1641 = vmul.f32 %v1577, %v1609
      %v1642 = vmul.f32 %v1578, %v1610
      %v1643 = vmul.f32 %v1579, %v1611
      %v1644 = vmul.f32 %v1580, %v1612
      %v1645 = vmul.f32 %v1581, %v1613
      %v1646 = vmul.f32 %v1582, %v1614
      %v1647 = vmul.f32 %v1583, %v1615
      %v1648 = vmul.f32 %v1584, %v1616
      %v1649 = vmul.f32 %v1585, %v1617
      %v1650 = vmul.f32 %v1586, %v1618
      %v1651 = vmul.f32 %v1587, %v1619
      %v1652 = vmul.f32 %v1588, %v1620
      %v1653 = vmul.f32 %v1589, %v1621
      %v1654 = vmul.f32 %v1590, %v1622
      %v1655 = vmul.f32 %v1591, %v1623
      %v1656 = vmul.f32 %v1592, %v1624
      %v1657 = vmul.f32 %v1593, %v1625
      %v1658 = vmul.f32 %v1594, %v1626
      %v1659 = vmul.f32 %v1595, %v1627
      %v1660 = vmul.f32 %v1596, %v1628
      %v1661 = vmul.f32 %v1597, %v1629
      %v1662 = vmul.f32 %v1598, %v1630
      %v1663 = vmul.f32 %v1599, %v1631
      %v1664 = vmul.f32 %v1600, %v1632
      %v1665 = vmul.f32 %v1601, %v1633
      %v1666 = vmul.f32 %v1602, %v1634
      %v1667 = vmul.f32 %v1603, %v1635
      %v1668 = vmul.f32 %v1604, %v1636
      %v1669 = vld [vmem:[%s3] sm:$0xff]
      %v1670 = vld [vmem:[%s3 + $0x8] sm:$0xff]
      %v1671 = vld [vmem:[%s3 + $0x10] sm:$0xff]
      %v1672 = vld [vmem:[%s3 + $0x18] sm:$0xff]
      %v1673 = vld [vmem:[%s3 + $0x20] sm:$0xff]
      %v1674 = vld [vmem:[%s3 + $0x28] sm:$0xff]
      %v1675 = vld [vmem:[%s3 + $0x30] sm:$0xff]
      %v1676 = vld [vmem:[%s3 + $0x38] sm:$0xff]
      %v1677 = vld [vmem:[%s3 + $0x40] sm:$0xff]
      %v1678 = vld [vmem:[%s3 + $0x48] sm:$0xff]
      %v1679 = vld [vmem:[%s3 + $0x50] sm:$0xff]
      %v1680 = vld [vmem:[%s3 + $0x58] sm:$0xff]
      %v1681 = vld [vmem:[%s3 + $0x60] sm:$0xff]
      %v1682 = vld [vmem:[%s3 + $0x68] sm:$0xff]
      %v1683 = vld [vmem:[%s3 + $0x70] sm:$0xff]
      %v1684 = vld [vmem:[%s3 + $0x78] sm:$0xff]
      %v1685 = vld [vmem:[%s3 + $0x80] sm:$0xff]
      %v1686 = vld [vmem:[%s3 + $0x88] sm:$0xff]
      %v1687 = vld [vmem:[%s3 + $0x90] sm:$0xff]
      %v1688 = vld [vmem:[%s3 + $0x98] sm:$0xff]
      %v1689 = vld [vmem:[%s3 + $0xa0] sm:$0xff]
      %v1690 = vld [vmem:[%s3 + $0xa8] sm:$0xff]
      %v1691 = vld [vmem:[%s3 + $0xb0] sm:$0xff]
      %v1692 = vld [vmem:[%s3 + $0xb8] sm:$0xff]
      %v1693 = vld [vmem:[%s3 + $0xc0] sm:$0xff]
      %v1694 = vld [vmem:[%s3 + $0xc8] sm:$0xff]
      %v1695 = vld [vmem:[%s3 + $0xd0] sm:$0xff]
      %v1696 = vld [vmem:[%s3 + $0xd8] sm:$0xff]
      %v1697 = vld [vmem:[%s3 + $0xe0] sm:$0xff]
      %v1698 = vld [vmem:[%s3 + $0xe8] sm:$0xff]
      %v1699 = vld [vmem:[%s3 + $0xf0] sm:$0xff]
      %v1700 = vld [vmem:[%s3 + $0xf8] sm:$0xff]
      %v1701 = vadd.f32 %v1637, %v1669
      %v1702 = vadd.f32 %v1638, %v1670
      %v1703 = vadd.f32 %v1639, %v1671
      %v1704 = vadd.f32 %v1640, %v1672
      %v1705 = vadd.f32 %v1641, %v1673
      %v1706 = vadd.f32 %v1642, %v1674
      %v1707 = vadd.f32 %v1643, %v1675
      %v1708 = vadd.f32 %v1644, %v1676
      %v1709 = vadd.f32 %v1645, %v1677
      %v1710 = vadd.f32 %v1646, %v1678
      %v1711 = vadd.f32 %v1647, %v1679
      %v1712 = vadd.f32 %v1648, %v1680
      %v1713 = vadd.f32 %v1649, %v1681
      %v1714 = vadd.f32 %v1650, %v1682
      %v1715 = vadd.f32 %v1651, %v1683
      %v1716 = vadd.f32 %v1652, %v1684
      %v1717 = vadd.f32 %v1653, %v1685
      %v1718 = vadd.f32 %v1654, %v1686
      %v1719 = vadd.f32 %v1655, %v1687
      %v1720 = vadd.f32 %v1656, %v1688
      %v1721 = vadd.f32 %v1657, %v1689
      %v1722 = vadd.f32 %v1658, %v1690
      %v1723 = vadd.f32 %v1659, %v1691
      %v1724 = vadd.f32 %v1660, %v1692
      %v1725 = vadd.f32 %v1661, %v1693
      %v1726 = vadd.f32 %v1662, %v1694
      %v1727 = vadd.f32 %v1663, %v1695
      %v1728 = vadd.f32 %v1664, %v1696
      %v1729 = vadd.f32 %v1665, %v1697
      %v1730 = vadd.f32 %v1666, %v1698
      %v1731 = vadd.f32 %v1667, %v1699
      %v1732 = vadd.f32 %v1668, %v1700
      %vm1733 = vcmp.ge.f32.partialorder %v1701, 0.0
      %vm1734 = vcmp.ge.f32.partialorder %v1702, 0.0
      %vm1735 = vcmp.ge.f32.partialorder %v1703, 0.0
      %vm1736 = vcmp.ge.f32.partialorder %v1704, 0.0
      %vm1737 = vcmp.ge.f32.partialorder %v1705, 0.0
      %vm1738 = vcmp.ge.f32.partialorder %v1706, 0.0
      %vm1739 = vcmp.ge.f32.partialorder %v1707, 0.0
      %vm1740 = vcmp.ge.f32.partialorder %v1708, 0.0
      %vm1741 = vcmp.ge.f32.partialorder %v1709, 0.0
      %vm1742 = vcmp.ge.f32.partialorder %v1710, 0.0
      %vm1743 = vcmp.ge.f32.partialorder %v1711, 0.0
      %vm1744 = vcmp.ge.f32.partialorder %v1712, 0.0
      %vm1745 = vcmp.ge.f32.partialorder %v1713, 0.0
      %vm1746 = vcmp.ge.f32.partialorder %v1714, 0.0
      %vm1747 = vcmp.ge.f32.partialorder %v1715, 0.0
      %vm1748 = vcmp.ge.f32.partialorder %v1716, 0.0
      %vm1749 = vcmp.ge.f32.partialorder %v1717, 0.0
      %vm1750 = vcmp.ge.f32.partialorder %v1718, 0.0
      %vm1751 = vcmp.ge.f32.partialorder %v1719, 0.0
      %vm1752 = vcmp.ge.f32.partialorder %v1720, 0.0
      %vm1753 = vcmp.ge.f32.partialorder %v1721, 0.0
      %vm1754 = vcmp.ge.f32.partialorder %v1722, 0.0
      %vm1755 = vcmp.ge.f32.partialorder %v1723, 0.0
      %vm1756 = vcmp.ge.f32.partialorder %v1724, 0.0
      %vm1757 = vcmp.ge.f32.partialorder %v1725, 0.0
      %vm1758 = vcmp.ge.f32.partialorder %v1726, 0.0
      %vm1759 = vcmp.ge.f32.partialorder %v1727, 0.0
      %vm1760 = vcmp.ge.f32.partialorder %v1728, 0.0
      %vm1761 = vcmp.ge.f32.partialorder %v1729, 0.0
      %vm1762 = vcmp.ge.f32.partialorder %v1730, 0.0
      %vm1763 = vcmp.ge.f32.partialorder %v1731, 0.0
      %vm1764 = vcmp.ge.f32.partialorder %v1732, 0.0
      %v1765 = vmul.f32 %v1701, 0.2
      %v1766 = vmul.f32 %v1702, 0.2
      %v1767 = vmul.f32 %v1703, 0.2
      %v1768 = vmul.f32 %v1704, 0.2
      %v1769 = vmul.f32 %v1705, 0.2
      %v1770 = vmul.f32 %v1706, 0.2
      %v1771 = vmul.f32 %v1707, 0.2
      %v1772 = vmul.f32 %v1708, 0.2
      %v1773 = vmul.f32 %v1709, 0.2
      %v1774 = vmul.f32 %v1710, 0.2
      %v1775 = vmul.f32 %v1711, 0.2
      %v1776 = vmul.f32 %v1712, 0.2
      %v1777 = vmul.f32 %v1713, 0.2
      %v1778 = vmul.f32 %v1714, 0.2
      %v1779 = vmul.f32 %v1715, 0.2
      %v1780 = vmul.f32 %v1716, 0.2
      %v1781 = vmul.f32 %v1717, 0.2
      %v1782 = vmul.f32 %v1718, 0.2
      %v1783 = vmul.f32 %v1719, 0.2
      %v1784 = vmul.f32 %v1720, 0.2
      %v1785 = vmul.f32 %v1721, 0.2
      %v1786 = vmul.f32 %v1722, 0.2
      %v1787 = vmul.f32 %v1723, 0.2
      %v1788 = vmul.f32 %v1724, 0.2
      %v1789 = vmul.f32 %v1725, 0.2
      %v1790 = vmul.f32 %v1726, 0.2
      %v1791 = vmul.f32 %v1727, 0.2
      %v1792 = vmul.f32 %v1728, 0.2
      %v1793 = vmul.f32 %v1729, 0.2
      %v1794 = vmul.f32 %v1730, 0.2
      %v1795 = vmul.f32 %v1731, 0.2
      %v1796 = vmul.f32 %v1732, 0.2
      %v1797 = vsel %vm1733, %v1701, %v1765
      %v1798 = vsel %vm1734, %v1702, %v1766
      %v1799 = vsel %vm1735, %v1703, %v1767
      %v1800 = vsel %vm1736, %v1704, %v1768
      %v1801 = vsel %vm1737, %v1705, %v1769
      %v1802 = vsel %vm1738, %v1706, %v1770
      %v1803 = vsel %vm1739, %v1707, %v1771
      %v1804 = vsel %vm1740, %v1708, %v1772
      %v1805 = vsel %vm1741, %v1709, %v1773
      %v1806 = vsel %vm1742, %v1710, %v1774
      %v1807 = vsel %vm1743, %v1711, %v1775
      %v1808 = vsel %vm1744, %v1712, %v1776
      %v1809 = vsel %vm1745, %v1713, %v1777
      %v1810 = vsel %vm1746, %v1714, %v1778
      %v1811 = vsel %vm1747, %v1715, %v1779
      %v1812 = vsel %vm1748, %v1716, %v1780
      %v1813 = vsel %vm1749, %v1717, %v1781
      %v1814 = vsel %vm1750, %v1718, %v1782
      %v1815 = vsel %vm1751, %v1719, %v1783
      %v1816 = vsel %vm1752, %v1720, %v1784
      %v1817 = vsel %vm1753, %v1721, %v1785
      %v1818 = vsel %vm1754, %v1722, %v1786
      %v1819 = vsel %vm1755, %v1723, %v1787
      %v1820 = vsel %vm1756, %v1724, %v1788
      %v1821 = vsel %vm1757, %v1725, %v1789
      %v1822 = vsel %vm1758, %v1726, %v1790
      %v1823 = vsel %vm1759, %v1727, %v1791
      %v1824 = vsel %vm1760, %v1728, %v1792
      %v1825 = vsel %vm1761, %v1729, %v1793
      %v1826 = vsel %vm1762, %v1730, %v1794
      %v1827 = vsel %vm1763, %v1731, %v1795
      %v1828 = vsel %vm1764, %v1732, %v1796
      %1829 = vst.msk [vmem:[%s197] sm:$0xff] %vm1359, %v1797
      %1830 = vst.msk [vmem:[%s197 + $0x8] sm:$0xff] %vm1359, %v1798
      %1831 = vst.msk [vmem:[%s197 + $0x10] sm:$0xff] %vm1359, %v1799
      %1832 = vst.msk [vmem:[%s197 + $0x18] sm:$0xff] %vm1359, %v1800
      %1833 = vst.msk [vmem:[%s197 + $0x20] sm:$0xff] %vm1359, %v1801
      %1834 = vst.msk [vmem:[%s197 + $0x28] sm:$0xff] %vm1359, %v1802
      %1835 = vst.msk [vmem:[%s197 + $0x30] sm:$0xff] %vm1359, %v1803
      %1836 = vst.msk [vmem:[%s197 + $0x38] sm:$0xff] %vm1359, %v1804
      %1837 = vst.msk [vmem:[%s197 + $0x40] sm:$0xff] %vm1359, %v1805
      %1838 = vst.msk [vmem:[%s197 + $0x48] sm:$0xff] %vm1359, %v1806
      %1839 = vst.msk [vmem:[%s197 + $0x50] sm:$0xff] %vm1359, %v1807
      %1840 = vst.msk [vmem:[%s197 + $0x58] sm:$0xff] %vm1359, %v1808
      %1841 = vst.msk [vmem:[%s197 + $0x60] sm:$0xff] %vm1359, %v1809
      %1842 = vst.msk [vmem:[%s197 + $0x68] sm:$0xff] %vm1359, %v1810
      %1843 = vst.msk [vmem:[%s197 + $0x70] sm:$0xff] %vm1359, %v1811
      %1844 = vst.msk [vmem:[%s197 + $0x78] sm:$0xff] %vm1359, %v1812
      %1845 = vst.msk [vmem:[%s197 + $0x80] sm:$0xff] %vm1359, %v1813
      %1846 = vst.msk [vmem:[%s197 + $0x88] sm:$0xff] %vm1359, %v1814
      %1847 = vst.msk [vmem:[%s197 + $0x90] sm:$0xff] %vm1359, %v1815
      %1848 = vst.msk [vmem:[%s197 + $0x98] sm:$0xff] %vm1359, %v1816
      %1849 = vst.msk [vmem:[%s197 + $0xa0] sm:$0xff] %vm1359, %v1817
      %1850 = vst.msk [vmem:[%s197 + $0xa8] sm:$0xff] %vm1359, %v1818
      %1851 = vst.msk [vmem:[%s197 + $0xb0] sm:$0xff] %vm1359, %v1819
      %1852 = vst.msk [vmem:[%s197 + $0xb8] sm:$0xff] %vm1359, %v1820
      %1853 = vst.msk [vmem:[%s197 + $0xc0] sm:$0xff] %vm1359, %v1821
      %1854 = vst.msk [vmem:[%s197 + $0xc8] sm:$0xff] %vm1359, %v1822
      %1855 = vst.msk [vmem:[%s197 + $0xd0] sm:$0xff] %vm1359, %v1823
      %1856 = vst.msk [vmem:[%s197 + $0xd8] sm:$0xff] %vm1359, %v1824
      %1857 = vst.msk [vmem:[%s197 + $0xe0] sm:$0xff] %vm1359, %v1825
      %1858 = vst.msk [vmem:[%s197 + $0xe8] sm:$0xff] %vm1359, %v1826
      %1859 = vst.msk [vmem:[%s197 + $0xf0] sm:$0xff] %vm1359, %v1827
      %1860 = vst.msk [vmem:[%s197 + $0xf8] sm:$0xff] %vm1359, %v1828
      %p1861 = scmp.lt.s32.totalorder %s15, 1
      %s1862 = scalar_select %p1861, %s15, 1
      %s1863 = smul.addr %s1862, 32
      %s1864 = smul.addr %s1863, 8
      %s1865 = scalar_lea.vmem %s4, %s1864
      // Predicated region
      $region37: #{conv_encoder_forward.5} parent=35 // pred_check
        %p1866 = pneg %p122
      $region38: #{conv_encoder_forward.5} parent=35 // pred_check_branch
        %1868 = sbr.rel (%p1866) target = $region40
      $region39: #{conv_encoder_forward.5} parent=35 // pred_region
        _
      $region40: #{conv_encoder_forward.5} parent=35 // pred_fallthru
        _
    $region36: #{conv_encoder_forward.5} parent=5 // pred_fallthru
      _
    %p1869 = scmp.le.s32.totalorder 2, %s10
    // Predicated region
    $region41: #{conv_encoder_forward.5} parent=5 // pred_check
      %p1870 = pneg %p1869
    $region42: #{conv_encoder_forward.5} parent=5 // pred_check_branch
      %1872 = sbr.rel (%p1870) target = $region44
    $region43: #{conv_encoder_forward.5} parent=5 // pred_region
      %s1873 = ssub.s32 %s10, 2
      // Predicated region
      $region45: #{conv_encoder_forward.5} parent=43 // pred_check
        %p1874 = pneg %p128
      $region46: #{conv_encoder_forward.5} parent=43 // pred_check_branch
        %1876 = sbr.rel (%p1874) target = $region48
      $region47: #{conv_encoder_forward.5} parent=43 // pred_region
        %p1877 = scmp.lt.s32.totalorder %s16, 1
        %s1878 = scalar_select %p1877, %s16, 1
        %s1879 = smul.addr %s1878, 32
        %s1880 = smul.addr %s1879, 8
        %s1881 = scalar_lea.vmem %s4, %s1880
      $region48: #{conv_encoder_forward.5} parent=43 // pred_fallthru
        _
    $region44: #{conv_encoder_forward.5} parent=5 // pred_fallthru
      _
  $region6: #{conv_encoder_forward.5} parent=0 // loop_footer
    %s14 = sadd.s32 1, %s10
  $region7: #{conv_encoder_forward.5} parent=0 // loop_footer_branch
    %9 = sbr.rel target = $region3
  $region8: #{conv_encoder_forward.5} parent=0 // loop_exit
    _

// kernel: conv_encoder_forward.6
$region0: #{conv_encoder_forward.6}
  #allocation0 [shape = 'u32[]', space=smem, size = 0x4, offset = 0x4, fixed_abs, tag = 'smem constant byte address 0x4 - core index']
  #allocation1 [shape = 'u32[144,128]{1,0:T(1,128)}', space=vmem, size = 0x12000, scoped, tag = 'internal scratch']
  %s0 = inlined_call_operand.vmem [shape: f32[2,5,17,256], index: 0, kind: input, shape index: {}]
  %s1 = inlined_call_operand.vmem [shape: bf16[2,2,256,128], index: 1, kind: input, shape index: {}]
  %s2 = inlined_call_operand.vmem [shape: f32[64,128], index: 2, kind: input, shape index: {}]
  %s3 = inlined_call_operand.vmem [shape: f32[64,128], index: 3, kind: input, shape index: {}]
  %s4 = inlined_call_operand.vmem [shape: f32[2,4,16,128], index: 4, kind: output, shape index: {}]
  %s5 = sld [smem:[#allocation0]]
  $region49: #{conv_encoder_forward.6} parent=0
    _
  %s7 = ssub.s32 1, %s5
  %s8 = scalar_select 0, %s7, %s5
  loop: start=0, step=1, limit=4
  $region2: #{conv_encoder_forward.6} parent=0 // loop_pre_header
    _
  $region3: #{conv_encoder_forward.6} parent=0 // loop_header
    %s10 = sphi 0, %s14
    %p11 = scmp.ge.s32.totalorder %s10, 4
    %s20 = sphi 0, %s22
    %s23 = sphi 0, %s20
    %s24 = sphi 0, %s23
    %s40 = sphi 0, %s24
    %s44 = sphi 0, %s44
    %s46 = sphi 0, %s44
    %s47 = sphi 0, %s46
    %s61 = sphi 0, %s47
    %s65 = sphi 0, %s65
    %s67 = sphi 0, %s65
    %s68 = sphi 0, %s67
    %s82 = sphi 0, %s68
    %s86 = sphi 0, %s86
    %s88 = sphi 0, %s86
    %s89 = sphi 0, %s88
    %s103 = sphi 0, %s89
    %s109 = sphi 0, %s111
    %s112 = sphi 0, %s109
    %s113 = sphi 0, %s112
    %s129 = sphi 0, %s113
  $region4: #{conv_encoder_forward.6} parent=0 // loop_header_branch
    %13 = sbr.rel (%p11) target = $region8
  $region5: #{conv_encoder_forward.6} parent=0 // loop_body
    %s15 = ssub.s32 %s10, 1
    %s16 = ssub.s32 %s10, 2
    %s17 = sadd.s32 %s10, 1
    %s18 = ssub.s32 %s10, %s17
    %p19 = scmp.eq.s32.totalorder %s18, 0
    %s21 = sadd.s32 %s20, 1
    %s22 = scalar_select %p19, %s20, %s21
    %p25 = pneg %p19
    %p26 = scmp.eq.s32.totalorder %s10, 1
    %p27 = por %p25, %p26
    %p28 = scmp.ne.s32.totalorder %s20, %s23
    %p29 = scmp.eq.s32.totalorder %s10, 0
    %p30 = por %p28, %p29
    %p31 = scmp.ne.s32.totalorder %s20, %s23
    %p32 = scmp.eq.s32.totalorder %s15, 1
    %p33 = por %p31, %p32
    %p34 = scmp.ne.s32.totalorder %s23, %s24
    %p35 = scmp.eq.s32.totalorder %s15, 0
    %p36 = por %p34, %p35
    %p37 = scmp.ne.s32.totalorder %s23, %s24
    %p38 = scmp.eq.s32.totalorder %s16, 1
    %p39 = por %p37, %p38
    %p41 = scmp.ne.s32.totalorder %s24, %s40
    %p42 = scmp.eq.s32.totalorder %s16, 0
    %p43 = por %p41, %p42
    %s45 = sadd.s32 %s44, 1
    %p48 = scmp.eq.s32.totalorder %s10, 1
    %p49 = scmp.ne.s32.totalorder %s44, %s46
    %p50 = scmp.eq.s32.totalorder %s10, 0
    %p51 = por %p49, %p50
    %p52 = scmp.ne.s32.totalorder %s44, %s46
    %p53 = scmp.eq.s32.totalorder %s15, 1
    %p54 = por %p52, %p53
    %p55 = scmp.ne.s32.totalorder %s46, %s47
    %p56 = scmp.eq.s32.totalorder %s15, 0
    %p57 = por %p55, %p56
    %p58 = scmp.ne.s32.totalorder %s46, %s47
    %p59 = scmp.eq.s32.totalorder %s16, 1
    %p60 = por %p58, %p59
    %p62 = scmp.ne.s32.totalorder %s47, %s61
    %p63 = scmp.eq.s32.totalorder %s16, 0
    %p64 = por %p62, %p63
    %s66 = sadd.s32 %s65, 1
    %p69 = scmp.eq.s32.totalorder %s10, 1
    %p70 = scmp.ne.s32.totalorder %s65, %s67
    %p71 = scmp.eq.s32.totalorder %s10, 0
    %p72 = por %p70, %p71
    %p73 = scmp.ne.s32.totalorder %s65, %s67
    %p74 = scmp.eq.s32.totalorder %s15, 1
    %p75 = por %p73, %p74
    %p76 = scmp.ne.s32.totalorder %s67, %s68
    %p77 = scmp.eq.s32.totalorder %s15, 0
    %p78 = por %p76, %p77
    %p79 = scmp.ne.s32.totalorder %s67, %s68
    %p80 = scmp.eq.s32.totalorder %s16, 1
    %p81 = por %p79, %p80
    %p83 = scmp.ne.s32.totalorder %s68, %s82
    %p84 = scmp.eq.s32.totalorder %s16, 0
    %p85 = por %p83, %p84
    %s87 = sadd.s32 %s86, 1
    %p90 = scmp.eq.s32.totalorder %s10, 1
    %p91 = scmp.ne.s32.totalorder %s86, %s88
    %p92 = scmp.eq.s32.totalorder %s10, 0
    %p93 = por %p91, %p92
    %p94 = scmp.ne.s32.totalorder %s86, %s88
    %p95 = scmp.eq.s32.totalorder %s15, 1
    %p96 = por %p94, %p95
    %p97 = scmp.ne.s32.totalorder %s88, %s89
    %p98 = scmp.eq.s32.totalorder %s15, 0
    %p99 = por %p97, %p98
    %p100 = scmp.ne.s32.totalorder %s88, %s89
    %p101 = scmp.eq.s32.totalorder %s16, 1
    %p102 = por %p100, %p101
    %p104 = scmp.ne.s32.totalorder %s89, %s103
    %p105 = scmp.eq.s32.totalorder %s16, 0
    %p106 = por %p104, %p105
    %s107 = ssub.s32 %s10, %s17
    %p108 = scmp.eq.s32.totalorder %s107, 0
    %s110 = sadd.s32 %s109, 1
    %s111 = scalar_select %p108, %s109, %s110
    %p114 = pneg %p108
    %p115 = scmp.eq.s32.totalorder %s10, 1
    %p116 = por %p114, %p115
    %p117 = scmp.ne.s32.totalorder %s109, %s112
    %p118 = scmp.eq.s32.totalorder %s10, 0
    %p119 = por %p117, %p118
    %p120 = scmp.ne.s32.totalorder %s109, %s112
    %p121 = scmp.eq.s32.totalorder %s15, 1
    %p122 = por %p120, %p121
    %p123 = scmp.ne.s32.totalorder %s112, %s113
    %p124 = scmp.eq.s32.totalorder %s15, 0
    %p125 = por %p123, %p124
    %p126 = scmp.ne.s32.totalorder %s112, %s113
    %p127 = scmp.eq.s32.totalorder %s16, 1
    %p128 = por %p126, %p127
    %p130 = scmp.ne.s32.totalorder %s113, %s129
    %p131 = scmp.eq.s32.totalorder %s16, 0
    %p132 = por %p130, %p131
    %p133 = scmp.le.s32.totalorder 1, %s10
    %p134 = scmp.lt.s32.totalorder %s10, 3
    %p135 = pnand %p133, %p134
    %p136 = pneg %p135
    // Predicated region
    $region9: #{conv_encoder_forward.6} parent=5 // pred_check
      _
    $region10: #{conv_encoder_forward.6} parent=5 // pred_check_branch
      %138 = sbr.rel (%p135) target = $region12
    $region11: #{conv_encoder_forward.6} parent=5 // pred_region
      %s139 = ssub.s32 %s10, 1
      // Predicated region
      $region13: #{conv_encoder_forward.6} parent=11 // pred_check
        %p140 = pneg %p57
      $region14: #{conv_encoder_forward.6} parent=11 // pred_check_branch
        %142 = sbr.rel (%p140) target = $region16
      $region15: #{conv_encoder_forward.6} parent=11 // pred_region
        _
      $region16: #{conv_encoder_forward.6} parent=11 // pred_fallthru
        _
      // Predicated region
      $region17: #{conv_encoder_forward.6} parent=11 // pred_check
        %p143 = pneg %p78
      $region18: #{conv_encoder_forward.6} parent=11 // pred_check_branch
        %145 = sbr.rel (%p143) target = $region20
      $region19: #{conv_encoder_forward.6} parent=11 // pred_region
        _
      $region20: #{conv_encoder_forward.6} parent=11 // pred_fallthru
        _
      // Predicated region
      $region21: #{conv_encoder_forward.6} parent=11 // pred_check
        %p146 = pneg %p99
      $region22: #{conv_encoder_forward.6} parent=11 // pred_check_branch
        %148 = sbr.rel (%p146) target = $region24
      $region23: #{conv_encoder_forward.6} parent=11 // pred_region
        _
      $region24: #{conv_encoder_forward.6} parent=11 // pred_fallthru
        _
    $region12: #{conv_encoder_forward.6} parent=5 // pred_fallthru
      _
    %p149 = scmp.lt.s32.totalorder %s10, 2
    // Predicated region
    $region25: #{conv_encoder_forward.6} parent=5 // pred_check
      %p150 = pneg %p149
    $region26: #{conv_encoder_forward.6} parent=5 // pred_check_branch
      %152 = sbr.rel (%p150) target = $region28
    $region27: #{conv_encoder_forward.6} parent=5 // pred_region
      // Predicated region
      $region29: #{conv_encoder_forward.6} parent=27 // pred_check
        %p153 = pneg %p30
      $region30: #{conv_encoder_forward.6} parent=27 // pred_check_branch
        %155 = sbr.rel (%p153) target = $region32
      $region31: #{conv_encoder_forward.6} parent=27 // pred_region
        %p156 = scmp.lt.s32.totalorder %s10, 1
        %s157 = scalar_select %p156, %s10, 1
        %s158 = smul.addr %s157, 30
        %s159 = smul.addr %s158, 8
        %s160 = scalar_lea.vmem %s0, %s159
      $region32: #{conv_encoder_forward.6} parent=27 // pred_fallthru
        _
    $region28: #{conv_encoder_forward.6} parent=5 // pred_fallthru
      _
    %p161 = scmp.le.s32.totalorder 1, %s10
    %p162 = scmp.lt.s32.totalorder %s10, 3
    %p163 = pnand %p161, %p162
    %p164 = pneg %p163
    // Predicated region
    $region33: #{conv_encoder_forward.6} parent=5 // pred_check
      _
    $region34: #{conv_encoder_forward.6} parent=5 // pred_check_branch
      %166 = sbr.rel (%p163) target = $region36
    $region35: #{conv_encoder_forward.6} parent=5 // pred_region
      %s167 = ssub.s32 %s10, 1
      %p168 = scmp.lt.s32.totalorder %s15, 1
      %s169 = scalar_select %p168, %s15, 1
      %s170 = smul.addr %s169, 30
      %s171 = smul.addr %s170, 8
      %s172 = scalar_lea.vmem %s0, %s171
      %p173 = pneg %p36
      %p174 = pneg %p33
      %p175 = pneg %p57
      %p176 = pneg %p54
      %p177 = pneg %p78
      %p178 = pneg %p75
      %p179 = pneg %p99
      %p180 = pneg %p96
      %p181 = pneg %p125
      %p182 = pneg %p122
      %p183 = scmp.lt.s32.totalorder %s15, 1
      %s184 = scalar_select %p183, %s15, 1
      %s185 = smul.addr %s184, 8
      %s186 = smul.addr %s185, 8
      %s187 = scalar_lea.vmem %s4, %s186
      %p188 = scmp.lt.s32.totalorder %s15, 1
      %s189 = scalar_select %p188, %s15, 1
      %s190 = smul.addr %s189, 30
      %s191 = smul.addr %s190, 8
      %s192 = scalar_lea.vmem %s0, %s191
      %p193 = scmp.lt.s32.totalorder %s15, 1
      %s194 = scalar_select %p193, %s15, 1
      %s195 = smul.addr %s194, 8
      %s196 = smul.addr %s195, 8
      %s197 = scalar_lea.vmem %s4, %s196
      %v199 = vld [vmem:[%s192] sm:$0xff]
      %v200 = vld [vmem:[%s192 + $0x8] sm:$0xff]
      %v201 = vld [vmem:[%s192 + $0x10] sm:$0xff]
      %v202 = vld [vmem:[%s192 + $0x18] sm:$0xff]
      %v203 = vld [vmem:[%s192 + $0x30] sm:$0xff]
      %v204 = vld [vmem:[%s192 + $0x38] sm:$0xff]
      %v205 = vld [vmem:[%s192 + $0x40] sm:$0xff]
      %v206 = vld [vmem:[%s192 + $0x48] sm:$0xff]
      %v207 = vld [vmem:[%s192 + $0x60] sm:$0xff]
      %v208 = vld [vmem:[%s192 + $0x68] sm:$0xff]
      %v209 = vld [vmem:[%s192 + $0x70] sm:$0xff]
      %v210 = vld [vmem:[%s192 + $0x78] sm:$0xff]
      %v211 = vld [vmem:[%s192 + $0x90] sm:$0xff]
      %v212 = vld [vmem:[%s192 + $0x98] sm:$0xff]
      %v213 = vld [vmem:[%s192 + $0xa0] sm:$0xff]
      %v214 = vld [vmem:[%s192 + $0xa8] sm:$0xff]
      %v215 = vpack.c.bf16 %v201, %v199
      %v216 = vpack.c.bf16 %v202, %v200
      %v217 = vpack.c.bf16 %v205, %v203
      %v218 = vpack.c.bf16 %v206, %v204
      %v219 = vpack.c.bf16 %v209, %v207
      %v220 = vpack.c.bf16 %v210, %v208
      %v221 = vpack.c.bf16 %v213, %v211
      %v222 = vpack.c.bf16 %v214, %v212
      %v223 = vld [vmem:[%s1] sm:$0xf]
      %v224 = vld [vmem:[%s1 + $0x4] sm:$0xf]
      %v225 = vld [vmem:[%s1 + $0x8] sm:$0xf]
      %v226 = vld [vmem:[%s1 + $0xc] sm:$0xf]
      %v227 = vld [vmem:[%s1 + $0x10] sm:$0xf]
      %v228 = vld [vmem:[%s1 + $0x14] sm:$0xf]
      %v229 = vld [vmem:[%s1 + $0x18] sm:$0xf]
      %v230 = vld [vmem:[%s1 + $0x1c] sm:$0xf]
      %v231 = vld [vmem:[%s1 + $0x20] sm:$0xf]
      %v232 = vld [vmem:[%s1 + $0x24] sm:$0xf]
      %v233 = vld [vmem:[%s1 + $0x28] sm:$0xf]
      %v234 = vld [vmem:[%s1 + $0x2c] sm:$0xf]
      %v235 = vld [vmem:[%s1 + $0x30] sm:$0xf]
      %v236 = vld [vmem:[%s1 + $0x34] sm:$0xf]
      %v237 = vld [vmem:[%s1 + $0x38] sm:$0xf]
      %v238 = vld [vmem:[%s1 + $0x3c] sm:$0xf]
      %v239 = vld [vmem:[%s1 + $0x40] sm:$0xf]
      %v240 = vld [vmem:[%s1 + $0x44] sm:$0xf]
      %v241 = vld [vmem:[%s1 + $0x48] sm:$0xf]
      %v242 = vld [vmem:[%s1 + $0x4c] sm:$0xf]
      %v243 = vld [vmem:[%s1 + $0x50] sm:$0xf]
      %v244 = vld [vmem:[%s1 + $0x54] sm:$0xf]
      %v245 = vld [vmem:[%s1 + $0x58] sm:$0xf]
      %v246 = vld [vmem:[%s1 + $0x5c] sm:$0xf]
      %v247 = vld [vmem:[%s1 + $0x60] sm:$0xf]
      %v248 = vld [vmem:[%s1 + $0x64] sm:$0xf]
      %v249 = vld [vmem:[%s1 + $0x68] sm:$0xf]
      %v250 = vld [vmem:[%s1 + $0x6c] sm:$0xf]
      %v251 = vld [vmem:[%s1 + $0x70] sm:$0xf]
      %v252 = vld [vmem:[%s1 + $0x74] sm:$0xf]
      %v253 = vld [vmem:[%s1 + $0x78] sm:$0xf]
      %v254 = vld [vmem:[%s1 + $0x7c] sm:$0xf]
      %v255 = vld [vmem:[%s192] sm:$0xfe]
      %v256 = vld [vmem:[%s192 + $0x8] sm:$0xfe]
      %v257 = vld [vmem:[%s192 + $0x20] sm:$0x1]
      %v258 = vld [vmem:[%s192 + $0x28] sm:$0x1]
      %v259 = vld [vmem:[%s192 + $0x30] sm:$0xfe]
      %v260 = vld [vmem:[%s192 + $0x38] sm:$0xfe]
      %v261 = vld [vmem:[%s192 + $0x50] sm:$0x1]
      %v262 = vld [vmem:[%s192 + $0x58] sm:$0x1]
      %v263 = vld [vmem:[%s192 + $0x60] sm:$0xfe]
      %v264 = vld [vmem:[%s192 + $0x68] sm:$0xfe]
      %v265 = vld [vmem:[%s192 + $0x80] sm:$0x1]
      %v266 = vld [vmem:[%s192 + $0x88] sm:$0x1]
      %v267 = vld [vmem:[%s192 + $0x90] sm:$0xfe]
      %v268 = vld [vmem:[%s192 + $0x98] sm:$0xfe]
      %v269 = vld [vmem:[%s192 + $0xb0] sm:$0x1]
      %v270 = vld [vmem:[%s192 + $0xb8] sm:$0x1]
      %vm295 = vcmask 1046528
      %v296 = vrot.slane %v255, 1
      %v297 = vrot.slane %v201, 1
      %v298 = vsel %vm295, %v296, %v297
      %v299 = vrot.slane %v256, 1
      %v300 = vrot.slane %v202, 1
      %v301 = vsel %vm295, %v299, %v300
      %v302 = vrot.slane %v257, 1
      %v303 = vsel %vm295, %v297, %v302
      %v304 = vrot.slane %v258, 1
      %v305 = vsel %vm295, %v300, %v304
      %v306 = vrot.slane %v259, 1
      %v307 = vrot.slane %v205, 1
      %v308 = vsel %vm295, %v306, %v307
      %v309 = vrot.slane %v260, 1
      %v310 = vrot.slane %v206, 1
      %v311 = vsel %vm295, %v309, %v310
      %v312 = vrot.slane %v261, 1
      %v313 = vsel %vm295, %v307, %v312
      %v314 = vrot.slane %v262, 1
      %v315 = vsel %vm295, %v310, %v314
      %v316 = vrot.slane %v263, 1
      %v317 = vrot.slane %v209, 1
      %v318 = vsel %vm295, %v316, %v317
      %v319 = vrot.slane %v264, 1
      %v320 = vrot.slane %v210, 1
      %v321 = vsel %vm295, %v319, %v320
      %v322 = vrot.slane %v265, 1
      %v323 = vsel %vm295, %v317, %v322
      %v324 = vrot.slane %v266, 1
      %v325 = vsel %vm295, %v320, %v324
      %v326 = vrot.slane %v267, 1
      %v327 = vrot.slane %v213, 1
      %v328 = vsel %vm295, %v326, %v327
      %v329 = vrot.slane %v268, 1
      %v330 = vrot.slane %v214, 1
      %v331 = vsel %vm295, %v329, %v330
      %v332 = vrot.slane %v269, 1
      %v333 = vsel %vm295, %v327, %v332
      %v334 = vrot.slane %v270, 1
      %v335 = vsel %vm295, %v330, %v334
      %v352 = vpack.c.bf16 %v303, %v298
      %v353 = vpack.c.bf16 %v305, %v301
      %v354 = vpack.c.bf16 %v313, %v308
      %v355 = vpack.c.bf16 %v315, %v311
      %v356 = vpack.c.bf16 %v323, %v318
      %v357 = vpack.c.bf16 %v325, %v321
      %v358 = vpack.c.bf16 %v333, %v328
      %v359 = vpack.c.bf16 %v335, %v331
      %s360 = scalar_lea.vmem %s1, 128
      %v361 = vld [vmem:[%s360] sm:$0xf]
      %v362 = vld [vmem:[%s360 + $0x4] sm:$0xf]
      %v363 = vld [vmem:[%s360 + $0x8] sm:$0xf]
      %v364 = vld [vmem:[%s360 + $0xc] sm:$0xf]
      %v365 = vld [vmem:[%s360 + $0x10] sm:$0xf]
      %v366 = vld [vmem:[%s360 + $0x14] sm:$0xf]
      %v367 = vld [vmem:[%s360 + $0x18] sm:$0xf]
      %v368 = vld [vmem:[%s360 + $0x1c] sm:$0xf]
      %v369 = vld [vmem:[%s360 + $0x20] sm:$0xf]
      %v370 = vld [vmem:[%s360 + $0x24] sm:$0xf]
      %v371 = vld [vmem:[%s360 + $0x28] sm:$0xf]
      %v372 = vld [vmem:[%s360 + $0x2c] sm:$0xf]
      %v373 = vld [vmem:[%s360 + $0x30] sm:$0xf]
      %v374 = vld [vmem:[%s360 + $0x34] sm:$0xf]
      %v375 = vld [vmem:[%s360 + $0x38] sm:$0xf]
      %v376 = vld [vmem:[%s360 + $0x3c] sm:$0xf]
      %v377 = vld [vmem:[%s360 + $0x40] sm:$0xf]
      %v378 = vld [vmem:[%s360 + $0x44] sm:$0xf]
      %v379 = vld [vmem:[%s360 + $0x48] sm:$0xf]
      %v380 = vld [vmem:[%s360 + $0x4c] sm:$0xf]
      %v381 = vld [vmem:[%s360 + $0x50] sm:$0xf]
      %v382 = vld [vmem:[%s360 + $0x54] sm:$0xf]
      %v383 = vld [vmem:[%s360 + $0x58] sm:$0xf]
      %v384 = vld [vmem:[%s360 + $0x5c] sm:$0xf]
      %v385 = vld [vmem:[%s360 + $0x60] sm:$0xf]
      %v386 = vld [vmem:[%s360 + $0x64] sm:$0xf]
      %v387 = vld [vmem:[%s360 + $0x68] sm:$0xf]
      %v388 = vld [vmem:[%s360 + $0x6c] sm:$0xf]
      %v389 = vld [vmem:[%s360 + $0x70] sm:$0xf]
      %v390 = vld [vmem:[%s360 + $0x74] sm:$0xf]
      %v391 = vld [vmem:[%s360 + $0x78] sm:$0xf]
      %v392 = vld [vmem:[%s360 + $0x7c] sm:$0xf]
      %v425 = vunpack.c.l.b16 %v361
      %v426 = vunpack.c.l.b16 %v362
      %v427 = vunpack.c.l.b16 %v363
      %v428 = vunpack.c.l.b16 %v364
      %v429 = vunpack.c.l.b16 %v365
      %v430 = vunpack.c.l.b16 %v366
      %v431 = vunpack.c.l.b16 %v367
      %v432 = vunpack.c.l.b16 %v368
      %v433 = vunpack.c.l.b16 %v369
      %v434 = vunpack.c.l.b16 %v370
      %v435 = vunpack.c.l.b16 %v371
      %v436 = vunpack.c.l.b16 %v372
      %v437 = vunpack.c.l.b16 %v373
      %v438 = vunpack.c.l.b16 %v374
      %v439 = vunpack.c.l.b16 %v375
      %v440 = vunpack.c.l.b16 %v376
      %v441 = vunpack.c.l.b16 %v377
      %v442 = vunpack.c.l.b16 %v378
      %v443 = vunpack.c.l.b16 %v379
      %v444 = vunpack.c.l.b16 %v380
      %v445 = vunpack.c.l.b16 %v381
      %v446 = vunpack.c.l.b16 %v382
      %v447 = vunpack.c.l.b16 %v383
      %v448 = vunpack.c.l.b16 %v384
      %v449 = vunpack.c.l.b16 %v385
      %v450 = vunpack.c.l.b16 %v386
      %v451 = vunpack.c.l.b16 %v387
      %v452 = vunpack.c.l.b16 %v388
      %v453 = vunpack.c.l.b16 %v389
      %v454 = vunpack.c.l.b16 %v390
      %v455 = vunpack.c.l.b16 %v391
      %v456 = vunpack.c.l.b16 %v392
      %v457 = vpack.c.b16 %v426, %v425
      %v458 = vpack.c.b16 %v428, %v427
      %v459 = vpack.c.b16 %v430, %v429
      %v460 = vpack.c.b16 %v432, %v431
      %v461 = vpack.c.b16 %v434, %v433
      %v462 = vpack.c.b16 %v436, %v435
      %v463 = vpack.c.b16 %v438, %v437
      %v464 = vpack.c.b16 %v440, %v439
      %v465 = vpack.c.b16 %v442, %v441
      %v466 = vpack.c.b16 %v444, %v443
      %v467 = vpack.c.b16 %v446, %v445
      %v468 = vpack.c.b16 %v448, %v447
      %v469 = vpack.c.b16 %v450, %v449
      %v470 = vpack.c.b16 %v452, %v451
      %v471 = vpack.c.b16 %v454, %v453
      %v472 = vpack.c.b16 %v456, %v455
      %489 = vmatprep.subr.bf16.mxu0 0
      %490 = vmatpush1.bf16.msra.mxu0 %v457
      %491 = vmatprep.subr.bf16.mxu0 0
      %492 = vmatpush1.bf16.msra.mxu0 %v458
      %493 = vmatprep.subr.bf16.mxu0 0
      %494 = vmatpush1.bf16.msra.mxu0 %v459
      %495 = vmatprep.subr.bf16.mxu0 0
      %496 = vmatpush1.bf16.msra.mxu0 %v460
      %497 = vmatprep.subr.bf16.mxu0 0
      %498 = vmatpush1.bf16.msra.mxu0 %v461
      %499 = vmatprep.subr.bf16.mxu0 0
      %500 = vmatpush1.bf16.msra.mxu0 %v462
      %501 = vmatprep.subr.bf16.mxu0 0
      %502 = vmatpush1.bf16.msra.mxu0 %v463
      %503 = vmatprep.subr.bf16.mxu0 0
      %504 = vmatpush1.bf16.msra.mxu0 %v464
      %505 = vmatprep.subr.bf16.mxu0 0
      %506 = vmatpush1.bf16.msra.mxu0 %v465
      %507 = vmatprep.subr.bf16.mxu0 0
      %508 = vmatpush1.bf16.msra.mxu0 %v466
      %509 = vmatprep.subr.bf16.mxu0 0
      %510 = vmatpush1.bf16.msra.mxu0 %v467
      %511 = vmatprep.subr.bf16.mxu0 0
      %512 = vmatpush1.bf16.msra.mxu0 %v468
      %513 = vmatprep.subr.bf16.mxu0 0
      %514 = vmatpush1.bf16.msra.mxu0 %v469
      %515 = vmatprep.subr.bf16.mxu0 0
      %516 = vmatpush1.bf16.msra.mxu0 %v470
      %517 = vmatprep.subr.bf16.mxu0 0
      %518 = vmatpush1.bf16.msra.mxu0 %v471
      %519 = vmatprep.subr.bf16.mxu0 0
      %520 = vmatpush1.bf16.msra.mxu0 %v472
      %521 = vmatprep.mubr.bf16.mxu0 %v353
      %522 = vmatmul.mubr.bf16.gmra.mrb[0].mxu0 %v352
      %v523 = vpop.f32.mrb[0].mxu0
      %v524 = vadd.f32 0.0, %v523
      %v525 = vpop.f32.mrb[0].mxu0
      %v526 = vpop.f32.mrb[0].mxu0
      %v527 = vadd.f32 0.0, %v526
      %v528 = vpop.f32.mrb[0].mxu0
      %529 = vmatprep.mubr.bf16.mxu0 %v355
      %530 = vmatmul.mubr.bf16.gmra.mrb[0].mxu0 %v354
      %v531 = vpop.f32.mrb[0].mxu0
      %v532 = vadd.f32 0.0, %v531
      %v533 = vpop.f32.mrb[0].mxu0
      %v534 = vpop.f32.mrb[0].mxu0
      %v535 = vadd.f32 0.0, %v534
      %v536 = vpop.f32.mrb[0].mxu0
      %537 = vmatprep.mubr.bf16.mxu0 %v357
      %538 = vmatmul.mubr.bf16.gmra.mrb[0].mxu0 %v356
      %v539 = vpop.f32.mrb[0].mxu0
      %v540 = vadd.f32 0.0, %v539
      %v541 = vpop.f32.mrb[0].mxu0
      %v542 = vpop.f32.mrb[0].mxu0
      %v543 = vadd.f32 0.0, %v542
      %v544 = vpop.f32.mrb[0].mxu0
      %545 = vmatprep.mubr.bf16.mxu0 %v359
      %546 = vmatmul.mubr.bf16.gmra.mrb[0].mxu0 %v358
      %v547 = vpop.f32.mrb[0].mxu0
      %v548 = vadd.f32 0.0, %v547
      %v549 = vpop.f32.mrb[0].mxu0
      %v550 = vpop.f32.mrb[0].mxu0
      %v551 = vadd.f32 0.0, %v550
      %v552 = vpop.f32.mrb[0].mxu0
      %553 = vdwg.mxu0
      %v586 = vunpack.c.l.b16 %v223
      %v587 = vunpack.c.l.b16 %v224
      %v588 = vunpack.c.l.b16 %v225
      %v589 = vunpack.c.l.b16 %v226
      %v590 = vunpack.c.l.b16 %v227
      %v591 = vunpack.c.l.b16 %v228
      %v592 = vunpack.c.l.b16 %v229
      %v593 = vunpack.c.l.b16 %v230
      %v594 = vunpack.c.l.b16 %v231
      %v595 = vunpack.c.l.b16 %v232
      %v596 = vunpack.c.l.b16 %v233
      %v597 = vunpack.c.l.b16 %v234
      %v598 = vunpack.c.l.b16 %v235
      %v599 = vunpack.c.l.b16 %v236
      %v600 = vunpack.c.l.b16 %v237
      %v601 = vunpack.c.l.b16 %v238
      %v602 = vunpack.c.l.b16 %v239
      %v603 = vunpack.c.l.b16 %v240
      %v604 = vunpack.c.l.b16 %v241
      %v605 = vunpack.c.l.b16 %v242
      %v606 = vunpack.c.l.b16 %v243
      %v607 = vunpack.c.l.b16 %v244
      %v608 = vunpack.c.l.b16 %v245
      %v609 = vunpack.c.l.b16 %v246
      %v610 = vunpack.c.l.b16 %v247
      %v611 = vunpack.c.l.b16 %v248
      %v612 = vunpack.c.l.b16 %v249
      %v613 = vunpack.c.l.b16 %v250
      %v614 = vunpack.c.l.b16 %v251
      %v615 = vunpack.c.l.b16 %v252
      %v616 = vunpack.c.l.b16 %v253
      %v617 = vunpack.c.l.b16 %v254
      %v618 = vpack.c.b16 %v587, %v586
      %v619 = vpack.c.b16 %v589, %v588
      %v620 = vpack.c.b16 %v591, %v590
      %v621 = vpack.c.b16 %v593, %v592
      %v622 = vpack.c.b16 %v595, %v594
      %v623 = vpack.c.b16 %v597, %v596
      %v624 = vpack.c.b16 %v599, %v598
      %v625 = vpack.c.b16 %v601, %v600
      %v626 = vpack.c.b16 %v603, %v602
      %v627 = vpack.c.b16 %v605, %v604
      %v628 = vpack.c.b16 %v607, %v606
      %v629 = vpack.c.b16 %v609, %v608
      %v630 = vpack.c.b16 %v611, %v610
      %v631 = vpack.c.b16 %v613, %v612
      %v632 = vpack.c.b16 %v615, %v614
      %v633 = vpack.c.b16 %v617, %v616
      %650 = vmatprep.subr.bf16.mxu0 0
      %651 = vmatpush1.bf16.msra.mxu0 %v618
      %652 = vmatprep.subr.bf16.mxu0 0
      %653 = vmatpush1.bf16.msra.mxu0 %v619
      %654 = vmatprep.subr.bf16.mxu0 0
      %655 = vmatpush1.bf16.msra.mxu0 %v620
      %656 = vmatprep.subr.bf16.mxu0 0
      %657 = vmatpush1.bf16.msra.mxu0 %v621
      %658 = vmatprep.subr.bf16.mxu0 0
      %659 = vmatpush1.bf16.msra.mxu0 %v622
      %660 = vmatprep.subr.bf16.mxu0 0
      %661 = vmatpush1.bf16.msra.mxu0 %v623
      %662 = vmatprep.subr.bf16.mxu0 0
      %663 = vmatpush1.bf16.msra.mxu0 %v624
      %664 = vmatprep.subr.bf16.mxu0 0
      %665 = vmatpush1.bf16.msra.mxu0 %v625
      %666 = vmatprep.subr.bf16.mxu0 0
      %667 = vmatpush1.bf16.msra.mxu0 %v626
      %668 = vmatprep.subr.bf16.mxu0 0
      %669 = vmatpush1.bf16.msra.mxu0 %v627
      %670 = vmatprep.subr.bf16.mxu0 0
      %671 = vmatpush1.bf16.msra.mxu0 %v628
      %672 = vmatprep.subr.bf16.mxu0 0
      %673 = vmatpush1.bf16.msra.mxu0 %v629
      %674 = vmatprep.subr.bf16.mxu0 0
      %675 = vmatpush1.bf16.msra.mxu0 %v630
      %676 = vmatprep.subr.bf16.mxu0 0
      %677 = vmatpush1.bf16.msra.mxu0 %v631
      %678 = vmatprep.subr.bf16.mxu0 0
      %679 = vmatpush1.bf16.msra.mxu0 %v632
      %680 = vmatprep.subr.bf16.mxu0 0
      %681 = vmatpush1.bf16.msra.mxu0 %v633
      %682 = vmatprep.mubr.bf16.mxu0 %v216
      %683 = vmatmul.mubr.bf16.gmra.mrb[0].mxu0 %v215
      %v684 = vpop.f32.mrb[0].mxu0
      %v685 = vadd.f32 %v524, %v684
      %v686 = vpop.f32.mrb[0].mxu0
      %v687 = vpop.f32.mrb[0].mxu0
      %v688 = vadd.f32 %v527, %v687
      %v689 = vpop.f32.mrb[0].mxu0
      %690 = vmatprep.mubr.bf16.mxu0 %v218
      %691 = vmatmul.mubr.bf16.gmra.mrb[0].mxu0 %v217
      %v692 = vpop.f32.mrb[0].mxu0
      %v693 = vadd.f32 %v532, %v692
      %v694 = vpop.f32.mrb[0].mxu0
      %v695 = vpop.f32.mrb[0].mxu0
      %v696 = vadd.f32 %v535, %v695
      %v697 = vpop.f32.mrb[0].mxu0
      %698 = vmatprep.mubr.bf16.mxu0 %v220
      %699 = vmatmul.mubr.bf16.gmra.mrb[0].mxu0 %v219
      %v700 = vpop.f32.mrb[0].mxu0
      %v701 = vadd.f32 %v540, %v700
      %v702 = vpop.f32.mrb[0].mxu0
      %v703 = vpop.f32.mrb[0].mxu0
      %v704 = vadd.f32 %v543, %v703
      %v705 = vpop.f32.mrb[0].mxu0
      %706 = vmatprep.mubr.bf16.mxu0 %v222
      %707 = vmatmul.mubr.bf16.gmra.mrb[0].mxu0 %v221
      %v708 = vpop.f32.mrb[0].mxu0
      %v709 = vadd.f32 %v548, %v708
      %v710 = vpop.f32.mrb[0].mxu0
      %v711 = vpop.f32.mrb[0].mxu0
      %v712 = vadd.f32 %v551, %v711
      %v713 = vpop.f32.mrb[0].mxu0
      %714 = vdwg.mxu0
      %s715 = scalar_lea.vmem %s192, 48
      %v716 = vld [vmem:[%s715] sm:$0xff]
      %v717 = vld [vmem:[%s715 + $0x8] sm:$0xff]
      %v718 = vld [vmem:[%s715 + $0x10] sm:$0xff]
      %v719 = vld [vmem:[%s715 + $0x18] sm:$0xff]
      %v720 = vld [vmem:[%s715 + $0x30] sm:$0xff]
      %v721 = vld [vmem:[%s715 + $0x38] sm:$0xff]
      %v722 = vld [vmem:[%s715 + $0x40] sm:$0xff]
      %v723 = vld [vmem:[%s715 + $0x48] sm:$0xff]
      %v724 = vld [vmem:[%s715 + $0x60] sm:$0xff]
      %v725 = vld [vmem:[%s715 + $0x68] sm:$0xff]
      %v726 = vld [vmem:[%s715 + $0x70] sm:$0xff]
      %v727 = vld [vmem:[%s715 + $0x78] sm:$0xff]
      %v728 = vld [vmem:[%s715 + $0x90] sm:$0xff]
      %v729 = vld [vmem:[%s715 + $0x98] sm:$0xff]
      %v730 = vld [vmem:[%s715 + $0xa0] sm:$0xff]
      %v731 = vld [vmem:[%s715 + $0xa8] sm:$0xff]
      %v732 = vpack.c.bf16 %v718, %v716
      %v733 = vpack.c.bf16 %v719, %v717
      %v734 = vpack.c.bf16 %v722, %v720
      %v735 = vpack.c.bf16 %v723, %v721
      %v736 = vpack.c.bf16 %v726, %v724
      %v737 = vpack.c.bf16 %v727, %v725
      %v738 = vpack.c.bf16 %v730, %v728
      %v739 = vpack.c.bf16 %v731, %v729
      %s740 = scalar_lea.vmem %s1, 256
      %v741 = vld [vmem:[%s740] sm:$0xf]
      %v742 = vld [vmem:[%s740 + $0x4] sm:$0xf]
      %v743 = vld [vmem:[%s740 + $0x8] sm:$0xf]
      %v744 = vld [vmem:[%s740 + $0xc] sm:$0xf]
      %v745 = vld [vmem:[%s740 + $0x10] sm:$0xf]
      %v746 = vld [vmem:[%s740 + $0x14] sm:$0xf]
      %v747 = vld [vmem:[%s740 + $0x18] sm:$0xf]
      %v748 = vld [vmem:[%s740 + $0x1c] sm:$0xf]
      %v749 = vld [vmem:[%s740 + $0x20] sm:$0xf]
      %v750 = vld [vmem:[%s740 + $0x24] sm:$0xf]
      %v751 = vld [vmem:[%s740 + $0x28] sm:$0xf]
      %v752 = vld [vmem:[%s740 + $0x2c] sm:$0xf]
      %v753 = vld [vmem:[%s740 + $0x30] sm:$0xf]
      %v754 = vld [vmem:[%s740 + $0x34] sm:$0xf]
      %v755 = vld [vmem:[%s740 + $0x38] sm:$0xf]
      %v756 = vld [vmem:[%s740 + $0x3c] sm:$0xf]
      %v757 = vld [vmem:[%s740 + $0x40] sm:$0xf]
      %v758 = vld [vmem:[%s740 + $0x44] sm:$0xf]
      %v759 = vld [vmem:[%s740 + $0x48] sm:$0xf]
      %v760 = vld [vmem:[%s740 + $0x4c] sm:$0xf]
      %v761 = vld [vmem:[%s740 + $0x50] sm:$0xf]
      %v762 = vld [vmem:[%s740 + $0x54] sm:$0xf]
      %v763 = vld [vmem:[%s740 + $0x58] sm:$0xf]
      %v764 = vld [vmem:[%s740 + $0x5c] sm:$0xf]
      %v765 = vld [vmem:[%s740 + $0x60] sm:$0xf]
      %v766 = vld [vmem:[%s740 + $0x64] sm:$0xf]
      %v767 = vld [vmem:[%s740 + $0x68] sm:$0xf]
      %v768 = vld [vmem:[%s740 + $0x6c] sm:$0xf]
      %v769 = vld [vmem:[%s740 + $0x70] sm:$0xf]
      %v770 = vld [vmem:[%s740 + $0x74] sm:$0xf]
      %v771 = vld [vmem:[%s740 + $0x78] sm:$0xf]
      %v772 = vld [vmem:[%s740 + $0x7c] sm:$0xf]
      %v805 = vunpack.c.l.b16 %v741
      %v806 = vunpack.c.l.b16 %v742
      %v807 = vunpack.c.l.b16 %v743
      %v808 = vunpack.c.l.b16 %v744
      %v809 = vunpack.c.l.b16 %v745
      %v810 = vunpack.c.l.b16 %v746
      %v811 = vunpack.c.l.b16 %v747
      %v812 = vunpack.c.l.b16 %v748
      %v813 = vunpack.c.l.b16 %v749
      %v814 = vunpack.c.l.b16 %v750
      %v815 = vunpack.c.l.b16 %v751
      %v816 = vunpack.c.l.b16 %v752
      %v817 = vunpack.c.l.b16 %v753
      %v818 = vunpack.c.l.b16 %v754
      %v819 = vunpack.c.l.b16 %v755
      %v820 = vunpack.c.l.b16 %v756
      %v821 = vunpack.c.l.b16 %v757
      %v822 = vunpack.c.l.b16 %v758
      %v823 = vunpack.c.l.b16 %v759
      %v824 = vunpack.c.l.b16 %v760
      %v825 = vunpack.c.l.b16 %v761
      %v826 = vunpack.c.l.b16 %v762
      %v827 = vunpack.c.l.b16 %v763
      %v828 = vunpack.c.l.b16 %v764
      %v829 = vunpack.c.l.b16 %v765
      %v830 = vunpack.c.l.b16 %v766
      %v831 = vunpack.c.l.b16 %v767
      %v832 = vunpack.c.l.b16 %v768
      %v833 = vunpack.c.l.b16 %v769
      %v834 = vunpack.c.l.b16 %v770
      %v835 = vunpack.c.l.b16 %v771
      %v836 = vunpack.c.l.b16 %v772
      %v837 = vpack.c.b16 %v806, %v805
      %v838 = vpack.c.b16 %v808, %v807
      %v839 = vpack.c.b16 %v810, %v809
      %v840 = vpack.c.b16 %v812, %v811
      %v841 = vpack.c.b16 %v814, %v813
      %v842 = vpack.c.b16 %v816, %v815
      %v843 = vpack.c.b16 %v818, %v817
      %v844 = vpack.c.b16 %v820, %v819
      %v845 = vpack.c.b16 %v822, %v821
      %v846 = vpack.c.b16 %v824, %v823
      %v847 = vpack.c.b16 %v826, %v825
      %v848 = vpack.c.b16 %v828, %v827
      %v849 = vpack.c.b16 %v830, %v829
      %v850 = vpack.c.b16 %v832, %v831
      %v851 = vpack.c.b16 %v834, %v833
      %v852 = vpack.c.b16 %v836, %v835
      %869 = vmatprep.subr.bf16.mxu0 0
      %870 = vmatpush1.bf16.msra.mxu0 %v837
      %871 = vmatprep.subr.bf16.mxu0 0
      %872 = vmatpush1.bf16.msra.mxu0 %v838
      %873 = vmatprep.subr.bf16.mxu0 0
      %874 = vmatpush1.bf16.msra.mxu0 %v839
      %875 = vmatprep.subr.bf16.mxu0 0
      %876 = vmatpush1.bf16.msra.mxu0 %v840
      %877 = vmatprep.subr.bf16.mxu0 0
      %878 = vmatpush1.bf16.msra.mxu0 %v841
      %879 = vmatprep.subr.bf16.mxu0 0
      %880 = vmatpush1.bf16.msra.mxu0 %v842
      %881 = vmatprep.subr.bf16.mxu0 0
      %882 = vmatpush1.bf16.msra.mxu0 %v843
      %883 = vmatprep.subr.bf16.mxu0 0
      %884 = vmatpush1.bf16.msra.mxu0 %v844
      %885 = vmatprep.subr.bf16.mxu0 0
      %886 = vmatpush1.bf16.msra.mxu0 %v845
      %887 = vmatprep.subr.bf16.mxu0 0
      %888 = vmatpush1.bf16.msra.mxu0 %v846
      %889 = vmatprep.subr.bf16.mxu0 0
      %890 = vmatpush1.bf16.msra.mxu0 %v847
      %891 = vmatprep.subr.bf16.mxu0 0
      %892 = vmatpush1.bf16.msra.mxu0 %v848
      %893 = vmatprep.subr.bf16.mxu0 0
      %894 = vmatpush1.bf16.msra.mxu0 %v849
      %895 = vmatprep.subr.bf16.mxu0 0
      %896 = vmatpush1.bf16.msra.mxu0 %v850
      %897 = vmatprep.subr.bf16.mxu0 0
      %898 = vmatpush1.bf16.msra.mxu0 %v851
      %899 = vmatprep.subr.bf16.mxu0 0
      %900 = vmatpush1.bf16.msra.mxu0 %v852
      %901 = vmatprep.mubr.bf16.mxu0 %v733
      %902 = vmatmul.mubr.bf16.gmra.mrb[0].mxu0 %v732
      %v903 = vpop.f32.mrb[0].mxu0
      %v904 = vadd.f32 0.0, %v903
      %v905 = vpop.f32.mrb[0].mxu0
      %v906 = vpop.f32.mrb[0].mxu0
      %v907 = vadd.f32 0.0, %v906
      %v908 = vpop.f32.mrb[0].mxu0
      %909 = vmatprep.mubr.bf16.mxu0 %v735
      %910 = vmatmul.mubr.bf16.gmra.mrb[0].mxu0 %v734
      %v911 = vpop.f32.mrb[0].mxu0
      %v912 = vadd.f32 0.0, %v911
      %v913 = vpop.f32.mrb[0].mxu0
      %v914 = vpop.f32.mrb[0].mxu0
      %v915 = vadd.f32 0.0, %v914
      %v916 = vpop.f32.mrb[0].mxu0
      %917 = vmatprep.mubr.bf16.mxu0 %v737
      %918 = vmatmul.mubr.bf16.gmra.mrb[0].mxu0 %v736
      %v919 = vpop.f32.mrb[0].mxu0
      %v920 = vadd.f32 0.0, %v919
      %v921 = vpop.f32.mrb[0].mxu0
      %v922 = vpop.f32.mrb[0].mxu0
      %v923 = vadd.f32 0.0, %v922
      %v924 = vpop.f32.mrb[0].mxu0
      %925 = vmatprep.mubr.bf16.mxu0 %v739
      %926 = vmatmul.mubr.bf16.gmra.mrb[0].mxu0 %v738
      %v927 = vpop.f32.mrb[0].mxu0
      %v928 = vadd.f32 0.0, %v927
      %v929 = vpop.f32.mrb[0].mxu0
      %v930 = vpop.f32.mrb[0].mxu0
      %v931 = vadd.f32 0.0, %v930
      %v932 = vpop.f32.mrb[0].mxu0
      %933 = vdwg.mxu0
      %v934 = vadd.f32 %v685, %v904
      %v935 = vadd.f32 %v688, %v907
      %v936 = vadd.f32 %v693, %v912
      %v937 = vadd.f32 %v696, %v915
      %v938 = vadd.f32 %v701, %v920
      %v939 = vadd.f32 %v704, %v923
      %v940 = vadd.f32 %v709, %v928
      %v941 = vadd.f32 %v712, %v931
      %v942 = vld [vmem:[%s715] sm:$0xfe]
      %v943 = vld [vmem:[%s715 + $0x8] sm:$0xfe]
      %v944 = vld [vmem:[%s715 + $0x10] sm:$0xff]
      %v945 = vld [vmem:[%s715 + $0x18] sm:$0xff]
      %v946 = vld [vmem:[%s715 + $0x20] sm:$0x1]
      %v947 = vld [vmem:[%s715 + $0x28] sm:$0x1]
      %v948 = vld [vmem:[%s715 + $0x30] sm:$0xfe]
      %v949 = vld [vmem:[%s715 + $0x38] sm:$0xfe]
      %v950 = vld [vmem:[%s715 + $0x40] sm:$0xff]
      %v951 = vld [vmem:[%s715 + $0x48] sm:$0xff]
      %v952 = vld [vmem:[%s715 + $0x50] sm:$0x1]
      %v953 = vld [vmem:[%s715 + $0x58] sm:$0x1]
      %v954 = vld [vmem:[%s715 + $0x60] sm:$0xfe]
      %v955 = vld [vmem:[%s715 + $0x68] sm:$0xfe]
      %v956 = vld [vmem:[%s715 + $0x70] sm:$0xff]
      %v957 = vld [vmem:[%s715 + $0x78] sm:$0xff]
      %v958 = vld [vmem:[%s715 + $0x80] sm:$0x1]
      %v959 = vld [vmem:[%s715 + $0x88] sm:$0x1]
      %v960 = vld [vmem:[%s715 + $0x90] sm:$0xfe]
      %v961 = vld [vmem:[%s715 + $0x98] sm:$0xfe]
      %v962 = vld [vmem:[%s715 + $0xa0] sm:$0xff]
      %v963 = vld [vmem:[%s715 + $0xa8] sm:$0xff]
      %v964 = vld [vmem:[%s715 + $0xb0] sm:$0x1]
      %v965 = vld [vmem:[%s715 + $0xb8] sm:$0x1]
      %v990 = vrot.slane %v942, 1
      %v991 = vrot.slane %v944, 1
      %v992 = vsel %vm295, %v990, %v991
      %v993 = vrot.slane %v943, 1
      %v994 = vrot.slane %v945, 1
      %v995 = vsel %vm295, %v993, %v994
      %v996 = vrot.slane %v946, 1
      %v997 = vsel %vm295, %v991, %v996
      %v998 = vrot.slane %v947, 1
      %v999 = vsel %vm295, %v994, %v998
      %v1000 = vrot.slane %v948, 1
      %v1001 = vrot.slane %v950, 1
      %v1002 = vsel %vm295, %v1000, %v1001
      %v1003 = vrot.slane %v949, 1
      %v1004 = vrot.slane %v951, 1
      %v1005 = vsel %vm295, %v1003, %v1004
      %v1006 = vrot.slane %v952, 1
      %v1007 = vsel %vm295, %v1001, %v1006
      %v1008 = vrot.slane %v953, 1
      %v1009 = vsel %vm295, %v1004, %v1008
      %v1010 = vrot.slane %v954, 1
      %v1011 = vrot.slane %v956, 1
      %v1012 = vsel %vm295, %v1010, %v1011
      %v1013 = vrot.slane %v955, 1
      %v1014 = vrot.slane %v957, 1
      %v1015 = vsel %vm295, %v1013, %v1014
      %v1016 = vrot.slane %v958, 1
      %v1017 = vsel %vm295, %v1011, %v1016
      %v1018 = vrot.slane %v959, 1
      %v1019 = vsel %vm295, %v1014, %v1018
      %v1020 = vrot.slane %v960, 1
      %v1021 = vrot.slane %v962, 1
      %v1022 = vsel %vm295, %v1020, %v1021
      %v1023 = vrot.slane %v961, 1
      %v1024 = vrot.slane %v963, 1
      %v1025 = vsel %vm295, %v1023, %v1024
      %v1026 = vrot.slane %v964, 1
      %v1027 = vsel %vm295, %v1021, %v1026
      %v1028 = vrot.slane %v965, 1
      %v1029 = vsel %vm295, %v1024, %v1028
      %v1046 = vpack.c.bf16 %v997, %v992
      %v1047 = vpack.c.bf16 %v999, %v995
      %v1048 = vpack.c.bf16 %v1007, %v1002
      %v1049 = vpack.c.bf16 %v1009, %v1005
      %v1050 = vpack.c.bf16 %v1017, %v1012
      %v1051 = vpack.c.bf16 %v1019, %v1015
      %v1052 = vpack.c.bf16 %v1027, %v1022
      %v1053 = vpack.c.bf16 %v1029, %v1025
      %s1054 = scalar_lea.vmem %s1, 384
      %v1055 = vld [vmem:[%s1054] sm:$0xf]
      %v1056 = vld [vmem:[%s1054 + $0x4] sm:$0xf]
      %v1057 = vld [vmem:[%s1054 + $0x8] sm:$0xf]
      %v1058 = vld [vmem:[%s1054 + $0xc] sm:$0xf]
      %v1059 = vld [vmem:[%s1054 + $0x10] sm:$0xf]
      %v1060 = vld [vmem:[%s1054 + $0x14] sm:$0xf]
      %v1061 = vld [vmem:[%s1054 + $0x18] sm:$0xf]
      %v1062 = vld [vmem:[%s1054 + $0x1c] sm:$0xf]
      %v1063 = vld [vmem:[%s1054 + $0x20] sm:$0xf]
      %v1064 = vld [vmem:[%s1054 + $0x24] sm:$0xf]
      %v1065 = vld [vmem:[%s1054 + $0x28] sm:$0xf]
      %v1066 = vld [vmem:[%s1054 + $0x2c] sm:$0xf]
      %v1067 = vld [vmem:[%s1054 + $0x30] sm:$0xf]
      %v1068 = vld [vmem:[%s1054 + $0x34] sm:$0xf]
      %v1069 = vld [vmem:[%s1054 + $0x38] sm:$0xf]
      %v1070 = vld [vmem:[%s1054 + $0x3c] sm:$0xf]
      %v1071 = vld [vmem:[%s1054 + $0x40] sm:$0xf]
      %v1072 = vld [vmem:[%s1054 + $0x44] sm:$0xf]
      %v1073 = vld [vmem:[%s1054 + $0x48] sm:$0xf]
      %v1074 = vld [vmem:[%s1054 + $0x4c] sm:$0xf]
      %v1075 = vld [vmem:[%s1054 + $0x50] sm:$0xf]
      %v1076 = vld [vmem:[%s1054 + $0x54] sm:$0xf]
      %v1077 = vld [vmem:[%s1054 + $0x58] sm:$0xf]
      %v1078 = vld [vmem:[%s1054 + $0x5c] sm:$0xf]
      %v1079 = vld [vmem:[%s1054 + $0x60] sm:$0xf]
      %v1080 = vld [vmem:[%s1054 + $0x64] sm:$0xf]
      %v1081 = vld [vmem:[%s1054 + $0x68] sm:$0xf]
      %v1082 = vld [vmem:[%s1054 + $0x6c] sm:$0xf]
      %v1083 = vld [vmem:[%s1054 + $0x70] sm:$0xf]
      %v1084 = vld [vmem:[%s1054 + $0x74] sm:$0xf]
      %v1085 = vld [vmem:[%s1054 + $0x78] sm:$0xf]
      %v1086 = vld [vmem:[%s1054 + $0x7c] sm:$0xf]
      %v1119 = vunpack.c.l.b16 %v1055
      %v1120 = vunpack.c.l.b16 %v1056
      %v1121 = vunpack.c.l.b16 %v1057
      %v1122 = vunpack.c.l.b16 %v1058
      %v1123 = vunpack.c.l.b16 %v1059
      %v1124 = vunpack.c.l.b16 %v1060
      %v1125 = vunpack.c.l.b16 %v1061
      %v1126 = vunpack.c.l.b16 %v1062
      %v1127 = vunpack.c.l.b16 %v1063
      %v1128 = vunpack.c.l.b16 %v1064
      %v1129 = vunpack.c.l.b16 %v1065
      %v1130 = vunpack.c.l.b16 %v1066
      %v1131 = vunpack.c.l.b16 %v1067
      %v1132 = vunpack.c.l.b16 %v1068
      %v1133 = vunpack.c.l.b16 %v1069
      %v1134 = vunpack.c.l.b16 %v1070
      %v1135 = vunpack.c.l.b16 %v1071
      %v1136 = vunpack.c.l.b16 %v1072
      %v1137 = vunpack.c.l.b16 %v1073
      %v1138 = vunpack.c.l.b16 %v1074
      %v1139 = vunpack.c.l.b16 %v1075
      %v1140 = vunpack.c.l.b16 %v1076
      %v1141 = vunpack.c.l.b16 %v1077
      %v1142 = vunpack.c.l.b16 %v1078
      %v1143 = vunpack.c.l.b16 %v1079
      %v1144 = vunpack.c.l.b16 %v1080
      %v1145 = vunpack.c.l.b16 %v1081
      %v1146 = vunpack.c.l.b16 %v1082
      %v1147 = vunpack.c.l.b16 %v1083
      %v1148 = vunpack.c.l.b16 %v1084
      %v1149 = vunpack.c.l.b16 %v1085
      %v1150 = vunpack.c.l.b16 %v1086
      %v1151 = vpack.c.b16 %v1120, %v1119
      %v1152 = vpack.c.b16 %v1122, %v1121
      %v1153 = vpack.c.b16 %v1124, %v1123
      %v1154 = vpack.c.b16 %v1126, %v1125
      %v1155 = vpack.c.b16 %v1128, %v1127
      %v1156 = vpack.c.b16 %v1130, %v1129
      %v1157 = vpack.c.b16 %v1132, %v1131
      %v1158 = vpack.c.b16 %v1134, %v1133
      %v1159 = vpack.c.b16 %v1136, %v1135
      %v1160 = vpack.c.b16 %v1138, %v1137
      %v1161 = vpack.c.b16 %v1140, %v1139
      %v1162 = vpack.c.b16 %v1142, %v1141
      %v1163 = vpack.c.b16 %v1144, %v1143
      %v1164 = vpack.c.b16 %v1146, %v1145
      %v1165 = vpack.c.b16 %v1148, %v1147
      %v1166 = vpack.c.b16 %v1150, %v1149
      %1183 = vmatprep.subr.bf16.mxu0 0
      %1184 = vmatpush1.bf16.msra.mxu0 %v1151
      %1185 = vmatprep.subr.bf16.mxu0 0
      %1186 = vmatpush1.bf16.msra.mxu0 %v1152
      %1187 = vmatprep.subr.bf16.mxu0 0
      %1188 = vmatpush1.bf16.msra.mxu0 %v1153
      %1189 = vmatprep.subr.bf16.mxu0 0
      %1190 = vmatpush1.bf16.msra.mxu0 %v1154
      %1191 = vmatprep.subr.bf16.mxu0 0
      %1192 = vmatpush1.bf16.msra.mxu0 %v1155
      %1193 = vmatprep.subr.bf16.mxu0 0
      %1194 = vmatpush1.bf16.msra.mxu0 %v1156
      %1195 = vmatprep.subr.bf16.mxu0 0
      %1196 = vmatpush1.bf16.msra.mxu0 %v1157
      %1197 = vmatprep.subr.bf16.mxu0 0
      %1198 = vmatpush1.bf16.msra.mxu0 %v1158
      %1199 = vmatprep.subr.bf16.mxu0 0
      %1200 = vmatpush1.bf16.msra.mxu0 %v1159
      %1201 = vmatprep.subr.bf16.mxu0 0
      %1202 = vmatpush1.bf16.msra.mxu0 %v1160
      %1203 = vmatprep.subr.bf16.mxu0 0
      %1204 = vmatpush1.bf16.msra.mxu0 %v1161
      %1205 = vmatprep.subr.bf16.mxu0 0
      %1206 = vmatpush1.bf16.msra.mxu0 %v1162
      %1207 = vmatprep.subr.bf16.mxu0 0
      %1208 = vmatpush1.bf16.msra.mxu0 %v1163
      %1209 = vmatprep.subr.bf16.mxu0 0
      %1210 = vmatpush1.bf16.msra.mxu0 %v1164
      %1211 = vmatprep.subr.bf16.mxu0 0
      %1212 = vmatpush1.bf16.msra.mxu0 %v1165
      %1213 = vmatprep.subr.bf16.mxu0 0
      %1214 = vmatpush1.bf16.msra.mxu0 %v1166
      %1215 = vmatprep.mubr.bf16.mxu0 %v1047
      %1216 = vmatmul.mubr.bf16.gmra.mrb[0].mxu0 %v1046
      %v1217 = vpop.f32.mrb[0].mxu0
      %v1218 = vadd.f32 0.0, %v1217
      %v1219 = vpop.f32.mrb[0].mxu0
      %v1220 = vpop.f32.mrb[0].mxu0
      %v1221 = vadd.f32 0.0, %v1220
      %v1222 = vpop.f32.mrb[0].mxu0
      %1223 = vmatprep.mubr.bf16.mxu0 %v1049
      %1224 = vmatmul.mubr.bf16.gmra.mrb[0].mxu0 %v1048
      %v1225 = vpop.f32.mrb[0].mxu0
      %v1226 = vadd.f32 0.0, %v1225
      %v1227 = vpop.f32.mrb[0].mxu0
      %v1228 = vpop.f32.mrb[0].mxu0
      %v1229 = vadd.f32 0.0, %v1228
      %v1230 = vpop.f32.mrb[0].mxu0
      %1231 = vmatprep.mubr.bf16.mxu0 %v1051
      %1232 = vmatmul.mubr.bf16.gmra.mrb[0].mxu0 %v1050
      %v1233 = vpop.f32.mrb[0].mxu0
      %v1234 = vadd.f32 0.0, %v1233
      %v1235 = vpop.f32.mrb[0].mxu0
      %v1236 = vpop.f32.mrb[0].mxu0
      %v1237 = vadd.f32 0.0, %v1236
      %v1238 = vpop.f32.mrb[0].mxu0
      %1239 = vmatprep.mubr.bf16.mxu0 %v1053
      %1240 = vmatmul.mubr.bf16.gmra.mrb[0].mxu0 %v1052
      %v1241 = vpop.f32.mrb[0].mxu0
      %v1242 = vadd.f32 0.0, %v1241
      %v1243 = vpop.f32.mrb[0].mxu0
      %v1244 = vpop.f32.mrb[0].mxu0
      %v1245 = vadd.f32 0.0, %v1244
      %v1246 = vpop.f32.mrb[0].mxu0
      %1247 = vdwg.mxu0
      %v1248 = vadd.f32 %v934, %v1218
      %v1249 = vadd.f32 %v935, %v1221
      %v1250 = vadd.f32 %v936, %v1226
      %v1251 = vadd.f32 %v937, %v1229
      %v1252 = vadd.f32 %v938, %v1234
      %v1253 = vadd.f32 %v939, %v1237
      %v1254 = vadd.f32 %v940, %v1242
      %v1255 = vadd.f32 %v941, %v1245
      %v1256 = vadd.f32 %v1248, %v1249
      %v1257 = vadd.f32 %v1256, %v1250
      %v1258 = vadd.f32 %v1257, %v1251
      %v1259 = vadd.f32 %v1258, %v1252
      %v1260 = vadd.f32 %v1259, %v1253
      %v1261 = vadd.f32 %v1260, %v1254
      %v1262 = vadd.f32 %v1261, %v1255
      %v1263 = vrot.slane %v1262, 4
      %v1264 = vadd.f32 %v1262, %v1263
      %v1265 = vrot.slane %v1264, 2
      %v1266 = vadd.f32 %v1264, %v1265
      %v1267 = vrot.slane %v1266, 1
      %v1268 = vadd.f32 %v1266, %v1267
      %1269 = vadd.xlane.f32.xlu0 %v1268
      %v1270 = vpop.xlane.xlu0 %1269
      %v1271 = vrcp.pop 8192.0
      %v1272 = vmul.f32 %v1270, %v1271
      %v1273 = vsub.f32 %v1248, %v1272
      %v1274 = vsub.f32 %v1249, %v1272
      %v1275 = vsub.f32 %v1250, %v1272
      %v1276 = vsub.f32 %v1251, %v1272
      %v1277 = vsub.f32 %v1252, %v1272
      %v1278 = vsub.f32 %v1253, %v1272
      %v1279 = vsub.f32 %v1254, %v1272
      %v1280 = vsub.f32 %v1255, %v1272
      %v1281 = vmul.f32 %v1273, %v1273
      %v1282 = vmul.f32 %v1274, %v1274
      %v1283 = vmul.f32 %v1275, %v1275
      %v1284 = vmul.f32 %v1276, %v1276
      %v1285 = vmul.f32 %v1277, %v1277
      %v1286 = vmul.f32 %v1278, %v1278
      %v1287 = vmul.f32 %v1279, %v1279
      %v1288 = vmul.f32 %v1280, %v1280
      %v1289 = vadd.f32 %v1281, %v1282
      %v1290 = vadd.f32 %v1289, %v1283
      %v1291 = vadd.f32 %v1290, %v1284
      %v1292 = vadd.f32 %v1291, %v1285
      %v1293 = vadd.f32 %v1292, %v1286
      %v1294 = vadd.f32 %v1293, %v1287
      %v1295 = vadd.f32 %v1294, %v1288
      %v1296 = vrot.slane %v1295, 4
      %v1297 = vadd.f32 %v1295, %v1296
      %v1298 = vrot.slane %v1297, 2
      %v1299 = vadd.f32 %v1297, %v1298
      %v1300 = vrot.slane %v1299, 1
      %v1301 = vadd.f32 %v1299, %v1300
      %1302 = vadd.xlane.f32.xlu0 %v1301
      %v1303 = vpop.xlane.xlu0 %1302
      %v1304 = vmul.f32 %v1303, %v1271
      %v1305 = vadd.f32 %v1304, 1e-05
      %v1306 = vrsqrt.pop %v1305
      %v1307 = vmul.f32 %v1273, %v1306
      %v1308 = vmul.f32 %v1274, %v1306
      %v1309 = vmul.f32 %v1275, %v1306
      %v1310 = vmul.f32 %v1276, %v1306
      %v1311 = vmul.f32 %v1277, %v1306
      %v1312 = vmul.f32 %v1278, %v1306
      %v1313 = vmul.f32 %v1279, %v1306
      %v1314 = vmul.f32 %v1280, %v1306
      %v1315 = vld [vmem:[%s2] sm:$0xff]
      %v1316 = vld [vmem:[%s2 + $0x8] sm:$0xff]
      %v1317 = vld [vmem:[%s2 + $0x10] sm:$0xff]
      %v1318 = vld [vmem:[%s2 + $0x18] sm:$0xff]
      %v1319 = vld [vmem:[%s2 + $0x20] sm:$0xff]
      %v1320 = vld [vmem:[%s2 + $0x28] sm:$0xff]
      %v1321 = vld [vmem:[%s2 + $0x30] sm:$0xff]
      %v1322 = vld [vmem:[%s2 + $0x38] sm:$0xff]
      %v1323 = vmul.f32 %v1307, %v1315
      %v1324 = vmul.f32 %v1308, %v1316
      %v1325 = vmul.f32 %v1309, %v1317
      %v1326 = vmul.f32 %v1310, %v1318
      %v1327 = vmul.f32 %v1311, %v1319
      %v1328 = vmul.f32 %v1312, %v1320
      %v1329 = vmul.f32 %v1313, %v1321
      %v1330 = vmul.f32 %v1314, %v1322
      %v1331 = vld [vmem:[%s3] sm:$0xff]
      %v1332 = vld [vmem:[%s3 + $0x8] sm:$0xff]
      %v1333 = vld [vmem:[%s3 + $0x10] sm:$0xff]
      %v1334 = vld [vmem:[%s3 + $0x18] sm:$0xff]
      %v1335 = vld [vmem:[%s3 + $0x20] sm:$0xff]
      %v1336 = vld [vmem:[%s3 + $0x28] sm:$0xff]
      %v1337 = vld [vmem:[%s3 + $0x30] sm:$0xff]
      %v1338 = vld [vmem:[%s3 + $0x38] sm:$0xff]
      %v1339 = vadd.f32 %v1323, %v1331
      %v1340 = vadd.f32 %v1324, %v1332
      %v1341 = vadd.f32 %v1325, %v1333
      %v1342 = vadd.f32 %v1326, %v1334
      %v1343 = vadd.f32 %v1327, %v1335
      %v1344 = vadd.f32 %v1328, %v1336
      %v1345 = vadd.f32 %v1329, %v1337
      %v1346 = vadd.f32 %v1330, %v1338
      %vm1347 = vcmp.ge.f32.partialorder %v1339, 0.0
      %vm1348 = vcmp.ge.f32.partialorder %v1340, 0.0
      %vm1349 = vcmp.ge.f32.partialorder %v1341, 0.0
      %vm1350 = vcmp.ge.f32.partialorder %v1342, 0.0
      %vm1351 = vcmp.ge.f32.partialorder %v1343, 0.0
      %vm1352 = vcmp.ge.f32.partialorder %v1344, 0.0
      %vm1353 = vcmp.ge.f32.partialorder %v1345, 0.0
      %vm1354 = vcmp.ge.f32.partialorder %v1346, 0.0
      %v1355 = vmul.f32 %v1339, 0.2
      %v1356 = vmul.f32 %v1340, 0.2
      %v1357 = vmul.f32 %v1341, 0.2
      %v1358 = vmul.f32 %v1342, 0.2
      %v1359 = vmul.f32 %v1343, 0.2
      %v1360 = vmul.f32 %v1344, 0.2
      %v1361 = vmul.f32 %v1345, 0.2
      %v1362 = vmul.f32 %v1346, 0.2
      %v1363 = vsel %vm1347, %v1339, %v1355
      %v1364 = vsel %vm1348, %v1340, %v1356
      %v1365 = vsel %vm1349, %v1341, %v1357
      %v1366 = vsel %vm1350, %v1342, %v1358
      %v1367 = vsel %vm1351, %v1343, %v1359
      %v1368 = vsel %vm1352, %v1344, %v1360
      %v1369 = vsel %vm1353, %v1345, %v1361
      %v1370 = vsel %vm1354, %v1346, %v1362
      %1371 = vst [vmem:[%s197] sm:$0xff] %v1363
      %1372 = vst [vmem:[%s197 + $0x8] sm:$0xff] %v1364
      %1373 = vst [vmem:[%s197 + $0x10] sm:$0xff] %v1365
      %1374 = vst [vmem:[%s197 + $0x18] sm:$0xff] %v1366
      %1375 = vst [vmem:[%s197 + $0x20] sm:$0xff] %v1367
      %1376 = vst [vmem:[%s197 + $0x28] sm:$0xff] %v1368
      %1377 = vst [vmem:[%s197 + $0x30] sm:$0xff] %v1369
      %1378 = vst [vmem:[%s197 + $0x38] sm:$0xff] %v1370
      %p1379 = scmp.lt.s32.totalorder %s15, 1
      %s1380 = scalar_select %p1379, %s15, 1
      %s1381 = smul.addr %s1380, 8
      %s1382 = smul.addr %s1381, 8
      %s1383 = scalar_lea.vmem %s4, %s1382
      // Predicated region
      $region37: #{conv_encoder_forward.6} parent=35 // pred_check
        %p1384 = pneg %p122
      $region38: #{conv_encoder_forward.6} parent=35 // pred_check_branch
        %1386 = sbr.rel (%p1384) target = $region40
      $region39: #{conv_encoder_forward.6} parent=35 // pred_region
        _
      $region40: #{conv_encoder_forward.6} parent=35 // pred_fallthru
        _
    $region36: #{conv_encoder_forward.6} parent=5 // pred_fallthru
      _
    %p1387 = scmp.le.s32.totalorder 2, %s10
    // Predicated region
    $region41: #{conv_encoder_forward.6} parent=5 // pred_check
      %p1388 = pneg %p1387
    $region42: #{conv_encoder_forward.6} parent=5 // pred_check_branch
      %1390 = sbr.rel (%p1388) target = $region44
    $region43: #{conv_encoder_forward.6} parent=5 // pred_region
      %s1391 = ssub.s32 %s10, 2
      // Predicated region
      $region45: #{conv_encoder_forward.6} parent=43 // pred_check
        %p1392 = pneg %p128
      $region46: #{conv_encoder_forward.6} parent=43 // pred_check_branch
        %1394 = sbr.rel (%p1392) target = $region48
      $region47: #{conv_encoder_forward.6} parent=43 // pred_region
        %p1395 = scmp.lt.s32.totalorder %s16, 1
        %s1396 = scalar_select %p1395, %s16, 1
        %s1397 = smul.addr %s1396, 8
        %s1398 = smul.addr %s1397, 8
        %s1399 = scalar_lea.vmem %s4, %s1398
      $region48: #{conv_encoder_forward.6} parent=43 // pred_fallthru
        _
    $region44: #{conv_encoder_forward.6} parent=5 // pred_fallthru
      _
  $region6: #{conv_encoder_forward.6} parent=0 // loop_footer
    %s14 = sadd.s32 1, %s10
  $region7: #{conv_encoder_forward.6} parent=0 // loop_footer_branch
    %9 = sbr.rel target = $region3
  $region8: #{conv_encoder_forward.6} parent=0 // loop_exit
    _

// kernel: conv_encoder_forward.7
$region0: #{conv_encoder_forward.7}
  #allocation0 [shape = 'u32[]', space=smem, size = 0x4, offset = 0x4, fixed_abs, tag = 'smem constant byte address 0x4 - core index']
  #allocation1 [shape = 'u32[144,128]{1,0:T(1,128)}', space=vmem, size = 0x12000, scoped, tag = 'internal scratch']
  %s0 = inlined_call_operand.vmem [shape: f32[2,4,16,128], index: 0, kind: input, shape index: {}]
  %s1 = inlined_call_operand.vmem [shape: bf16[4,4,128,256], index: 1, kind: input, shape index: {}]
  %s2 = inlined_call_operand.vmem [shape: f32[256,6], index: 2, kind: input, shape index: {}]
  %s3 = inlined_call_operand.vmem [shape: f32[1,6], index: 3, kind: input, shape index: {}]
  %s4 = inlined_call_operand.vmem [shape: f32[2,1,13,256], index: 4, kind: output, shape index: {0}]
  %s5 = inlined_call_operand.hbm [shape: f32[2,1,6], index: 5, kind: output, shape index: {1}]
  %6 = xla_tuple %s4, %s5
  %s7 = sld [smem:[#allocation0]]
  $region57: #{conv_encoder_forward.7} parent=0
    _
  %s9 = ssub.s32 1, %s7
  %s10 = scalar_select 0, %s9, %s7
  $region1: #{conv_encoder_forward.7} parent=0
    #allocation2 [shape = 'u8[1024]{0}', space=vmem, size = 0x400, scoped, tag = 'output window, operand 1']
    #allocation3 [shape = 's32[2]{0}', space=sflag, size = 0x8, scoped, tag = 'scoped memory for conv_encoder_forward.7']
    %11 = vsyncpa [#allocation3], 0
    %s12 = scalar_lea.sflag [#allocation3], 1
    %13 = vsyncpa %s12, 0
    loop: start=0, step=1, limit=4
    $region2: #{conv_encoder_forward.7} parent=1 // loop_pre_header
      _
    $region3: #{conv_encoder_forward.7} parent=1 // loop_header
      %s15 = sphi 0, %s19
      %p16 = scmp.ge.s32.totalorder %s15, 4
      %s25 = sphi 0, %s27
      %s28 = sphi 0, %s25
      %s29 = sphi 0, %s28
      %s45 = sphi 0, %s29
      %s49 = sphi 0, %s49
      %s51 = sphi 0, %s49
      %s52 = sphi 0, %s51
      %s66 = sphi 0, %s52
      %s70 = sphi 0, %s70
      %s72 = sphi 0, %s70
      %s73 = sphi 0, %s72
      %s87 = sphi 0, %s73
      %s91 = sphi 0, %s91
      %s93 = sphi 0, %s91
      %s94 = sphi 0, %s93
      %s108 = sphi 0, %s94
      %s114 = sphi 0, %s116
      %s117 = sphi 0, %s114
      %s118 = sphi 0, %s117
      %s134 = sphi 0, %s118
      %s140 = sphi 0, %s142
      %s143 = sphi 0, %s140
      %s144 = sphi 0, %s143
      %s160 = sphi 0, %s144
    $region4: #{conv_encoder_forward.7} parent=1 // loop_header_branch
      %18 = sbr.rel (%p16) target = $region8
    $region5: #{conv_encoder_forward.7} parent=1 // loop_body
      %s20 = ssub.s32 %s15, 1
      %s21 = ssub.s32 %s15, 2
      %s22 = sadd.s32 %s15, 1
      %s23 = ssub.s32 %s15, %s22
      %p24 = scmp.eq.s32.totalorder %s23, 0
      %s26 = sadd.s32 %s25, 1
      %s27 = scalar_select %p24, %s25, %s26
      %p30 = pneg %p24
      %p31 = scmp.eq.s32.totalorder %s15, 1
      %p32 = por %p30, %p31
      %p33 = scmp.ne.s32.totalorder %s25, %s28
      %p34 = scmp.eq.s32.totalorder %s15, 0
      %p35 = por %p33, %p34
      %p36 = scmp.ne.s32.totalorder %s25, %s28
      %p37 = scmp.eq.s32.totalorder %s20, 1
      %p38 = por %p36, %p37
      %p39 = scmp.ne.s32.totalorder %s28, %s29
      %p40 = scmp.eq.s32.totalorder %s20, 0
      %p41 = por %p39, %p40
      %p42 = scmp.ne.s32.totalorder %s28, %s29
      %p43 = scmp.eq.s32.totalorder %s21, 1
      %p44 = por %p42, %p43
      %p46 = scmp.ne.s32.totalorder %s29, %s45
      %p47 = scmp.eq.s32.totalorder %s21, 0
      %p48 = por %p46, %p47
      %s50 = sadd.s32 %s49, 1
      %p53 = scmp.eq.s32.totalorder %s15, 1
      %p54 = scmp.ne.s32.totalorder %s49, %s51
      %p55 = scmp.eq.s32.totalorder %s15, 0
      %p56 = por %p54, %p55
      %p57 = scmp.ne.s32.totalorder %s49, %s51
      %p58 = scmp.eq.s32.totalorder %s20, 1
      %p59 = por %p57, %p58
      %p60 = scmp.ne.s32.totalorder %s51, %s52
      %p61 = scmp.eq.s32.totalorder %s20, 0
      %p62 = por %p60, %p61
      %p63 = scmp.ne.s32.totalorder %s51, %s52
      %p64 = scmp.eq.s32.totalorder %s21, 1
      %p65 = por %p63, %p64
      %p67 = scmp.ne.s32.totalorder %s52, %s66
      %p68 = scmp.eq.s32.totalorder %s21, 0
      %p69 = por %p67, %p68
      %s71 = sadd.s32 %s70, 1
      %p74 = scmp.eq.s32.totalorder %s15, 1
      %p75 = scmp.ne.s32.totalorder %s70, %s72
      %p76 = scmp.eq.s32.totalorder %s15, 0
      %p77 = por %p75, %p76
      %p78 = scmp.ne.s32.totalorder %s70, %s72
      %p79 = scmp.eq.s32.totalorder %s20, 1
      %p80 = por %p78, %p79
      %p81 = scmp.ne.s32.totalorder %s72, %s73
      %p82 = scmp.eq.s32.totalorder %s20, 0
      %p83 = por %p81, %p82
      %p84 = scmp.ne.s32.totalorder %s72, %s73
      %p85 = scmp.eq.s32.totalorder %s21, 1
      %p86 = por %p84, %p85
      %p88 = scmp.ne.s32.totalorder %s73, %s87
      %p89 = scmp.eq.s32.totalorder %s21, 0
      %p90 = por %p88, %p89
      %s92 = sadd.s32 %s91, 1
      %p95 = scmp.eq.s32.totalorder %s15, 1
      %p96 = scmp.ne.s32.totalorder %s91, %s93
      %p97 = scmp.eq.s32.totalorder %s15, 0
      %p98 = por %p96, %p97
      %p99 = scmp.ne.s32.totalorder %s91, %s93
      %p100 = scmp.eq.s32.totalorder %s20, 1
      %p101 = por %p99, %p100
      %p102 = scmp.ne.s32.totalorder %s93, %s94
      %p103 = scmp.eq.s32.totalorder %s20, 0
      %p104 = por %p102, %p103
      %p105 = scmp.ne.s32.totalorder %s93, %s94
      %p106 = scmp.eq.s32.totalorder %s21, 1
      %p107 = por %p105, %p106
      %p109 = scmp.ne.s32.totalorder %s94, %s108
      %p110 = scmp.eq.s32.totalorder %s21, 0
      %p111 = por %p109, %p110
      %s112 = ssub.s32 %s15, %s22
      %p113 = scmp.eq.s32.totalorder %s112, 0
      %s115 = sadd.s32 %s114, 1
      %s116 = scalar_select %p113, %s114, %s115
      %p119 = pneg %p113
      %p120 = scmp.eq.s32.totalorder %s15, 1
      %p121 = por %p119, %p120
      %p122 = scmp.ne.s32.totalorder %s114, %s117
      %p123 = scmp.eq.s32.totalorder %s15, 0
      %p124 = por %p122, %p123
      %p125 = scmp.ne.s32.totalorder %s114, %s117
      %p126 = scmp.eq.s32.totalorder %s20, 1
      %p127 = por %p125, %p126
      %p128 = scmp.ne.s32.totalorder %s117, %s118
      %p129 = scmp.eq.s32.totalorder %s20, 0
      %p130 = por %p128, %p129
      %p131 = scmp.ne.s32.totalorder %s117, %s118
      %p132 = scmp.eq.s32.totalorder %s21, 1
      %p133 = por %p131, %p132
      %p135 = scmp.ne.s32.totalorder %s118, %s134
      %p136 = scmp.eq.s32.totalorder %s21, 0
      %p137 = por %p135, %p136
      %s138 = ssub.s32 %s15, %s22
      %p139 = scmp.eq.s32.totalorder %s138, 0
      %s141 = sadd.s32 %s140, 1
      %s142 = scalar_select %p139, %s140, %s141
      %p145 = pneg %p139
      %p146 = scmp.eq.s32.totalorder %s15, 1
      %p147 = por %p145, %p146
      %p148 = scmp.ne.s32.totalorder %s140, %s143
      %p149 = scmp.eq.s32.totalorder %s15, 0
      %p150 = por %p148, %p149
      %p151 = scmp.ne.s32.totalorder %s140, %s143
      %p152 = scmp.eq.s32.totalorder %s20, 1
      %p153 = por %p151, %p152
      %p154 = scmp.ne.s32.totalorder %s143, %s144
      %p155 = scmp.eq.s32.totalorder %s20, 0
      %p156 = por %p154, %p155
      %p157 = scmp.ne.s32.totalorder %s143, %s144
      %p158 = scmp.eq.s32.totalorder %s21, 1
      %p159 = por %p157, %p158
      %p161 = scmp.ne.s32.totalorder %s144, %s160
      %p162 = scmp.eq.s32.totalorder %s21, 0
      %p163 = por %p161, %p162
      %p164 = scmp.le.s32.totalorder 1, %s15
      %p165 = scmp.lt.s32.totalorder %s15, 3
      %p166 = pnand %p164, %p165
      %p167 = pneg %p166
      // Predicated region
      $region9: #{conv_encoder_forward.7} parent=5 // pred_check
        _
      $region10: #{conv_encoder_forward.7} parent=5 // pred_check_branch
        %169 = sbr.rel (%p166) target = $region12
      $region11: #{conv_encoder_forward.7} parent=5 // pred_region
        %s170 = ssub.s32 %s15, 1
        // Predicated region
        $region13: #{conv_encoder_forward.7} parent=11 // pred_check
          %p171 = pneg %p62
        $region14: #{conv_encoder_forward.7} parent=11 // pred_check_branch
          %173 = sbr.rel (%p171) target = $region16
        $region15: #{conv_encoder_forward.7} parent=11 // pred_region
          _
        $region16: #{conv_encoder_forward.7} parent=11 // pred_fallthru
          _
        // Predicated region
        $region17: #{conv_encoder_forward.7} parent=11 // pred_check
          %p174 = pneg %p83
        $region18: #{conv_encoder_forward.7} parent=11 // pred_check_branch
          %176 = sbr.rel (%p174) target = $region20
        $region19: #{conv_encoder_forward.7} parent=11 // pred_region
          _
        $region20: #{conv_encoder_forward.7} parent=11 // pred_fallthru
          _
        // Predicated region
        $region21: #{conv_encoder_forward.7} parent=11 // pred_check
          %p177 = pneg %p104
        $region22: #{conv_encoder_forward.7} parent=11 // pred_check_branch
          %179 = sbr.rel (%p177) target = $region24
        $region23: #{conv_encoder_forward.7} parent=11 // pred_region
          _
        $region24: #{conv_encoder_forward.7} parent=11 // pred_fallthru
          _
      $region12: #{conv_encoder_forward.7} parent=5 // pred_fallthru
        _
      %p180 = scmp.lt.s32.totalorder %s15, 2
      // Predicated region
      $region25: #{conv_encoder_forward.7} parent=5 // pred_check
        %p181 = pneg %p180
      $region26: #{conv_encoder_forward.7} parent=5 // pred_check_branch
        %183 = sbr.rel (%p181) target = $region28
      $region27: #{conv_encoder_forward.7} parent=5 // pred_region
        // Predicated region
        $region29: #{conv_encoder_forward.7} parent=27 // pred_check
          %p184 = pneg %p35
        $region30: #{conv_encoder_forward.7} parent=27 // pred_check_branch
          %186 = sbr.rel (%p184) target = $region32
        $region31: #{conv_encoder_forward.7} parent=27 // pred_region
          %p187 = scmp.lt.s32.totalorder %s15, 1
          %s188 = scalar_select %p187, %s15, 1
          %s189 = smul.addr %s188, 8
          %s190 = smul.addr %s189, 8
          %s191 = scalar_lea.vmem %s0, %s190
        $region32: #{conv_encoder_forward.7} parent=27 // pred_fallthru
          _
      $region28: #{conv_encoder_forward.7} parent=5 // pred_fallthru
        _
      %p192 = scmp.le.s32.totalorder 1, %s15
      %p193 = scmp.lt.s32.totalorder %s15, 3
      %p194 = pnand %p192, %p193
      %p195 = pneg %p194
      // Predicated region
      $region33: #{conv_encoder_forward.7} parent=5 // pred_check
        _
      $region34: #{conv_encoder_forward.7} parent=5 // pred_check_branch
        %197 = sbr.rel (%p194) target = $region36
      $region35: #{conv_encoder_forward.7} parent=5 // pred_region
        %s198 = ssub.s32 %s15, 1
        %p199 = scmp.lt.s32.totalorder %s20, 1
        %s200 = scalar_select %p199, %s20, 1
        %s201 = smul.addr %s200, 8
        %s202 = smul.addr %s201, 8
        %s203 = scalar_lea.vmem %s0, %s202
        %p204 = pneg %p41
        %p205 = pneg %p38
        %p206 = pneg %p62
        %p207 = pneg %p59
        %p208 = pneg %p83
        %p209 = pneg %p80
        %p210 = pneg %p104
        %p211 = pneg %p101
        %p212 = pneg %p130
        %p213 = pneg %p127
        %p214 = scmp.lt.s32.totalorder %s20, 1
        %s215 = scalar_select %p214, %s20, 1
        %s216 = smul.addr %s215, 4
        %s217 = smul.addr %s216, 8
        %s218 = scalar_lea.vmem %s4, %s217
        %p219 = pneg %p156
        %p220 = pneg %p153
        %s221 = sand.u32 %s143, 1
        %s222 = scalar_lea.sflag [#allocation3], %s221
        %s223 = sand.u32 %s143, 1
        %s224 = scalar_lea.vmem [#allocation2], %s223
        %p225 = scmp.lt.s32.totalorder %s20, 1
        %s226 = scalar_select %p225, %s20, 1
        %s227 = smul.addr %s226, 8
        %s228 = smul.addr %s227, 8
        %s229 = scalar_lea.vmem %s0, %s228
        %p230 = scmp.lt.s32.totalorder %s20, 1
        %s231 = scalar_select %p230, %s20, 1
        %s232 = smul.addr %s231, 4
        %s233 = smul.addr %s232, 8
        %s234 = scalar_lea.vmem %s4, %s233
        %v236 = vld [vmem:[%s229] sm:$0xff]
        %v237 = vld [vmem:[%s229 + $0x8] sm:$0x1f]
        %v238 = vpack.c.bf16 %v237, %v236
        %v239 = vld [vmem:[%s1] sm:$0xff]
        %v240 = vld [vmem:[%s1 + $0x8] sm:$0xff]
        %v241 = vld [vmem:[%s1 + $0x10] sm:$0xff]
        %v242 = vld [vmem:[%s1 + $0x18] sm:$0xff]
        %v243 = vld [vmem:[%s1 + $0x20] sm:$0xff]
        %v244 = vld [vmem:[%s1 + $0x28] sm:$0xff]
        %v245 = vld [vmem:[%s1 + $0x30] sm:$0xff]
        %v246 = vld [vmem:[%s1 + $0x38] sm:$0xff]
        %v247 = vld [vmem:[%s1 + $0x40] sm:$0xff]
        %v248 = vld [vmem:[%s1 + $0x48] sm:$0xff]
        %v249 = vld [vmem:[%s1 + $0x50] sm:$0xff]
        %v250 = vld [vmem:[%s1 + $0x58] sm:$0xff]
        %v251 = vld [vmem:[%s1 + $0x60] sm:$0xff]
        %v252 = vld [vmem:[%s1 + $0x68] sm:$0xff]
        %v253 = vld [vmem:[%s1 + $0x70] sm:$0xff]
        %v254 = vld [vmem:[%s1 + $0x78] sm:$0xff]
        %v255 = vld [vmem:[%s229 + $0x1] sm:$0xff]
        %v256 = vld [vmem:[%s229 + $0x9] sm:$0x1f]
        %v257 = vpack.c.bf16 %v256, %v255
        %s258 = scalar_lea.vmem %s1, 128
        %v259 = vld [vmem:[%s258] sm:$0xff]
        %v260 = vld [vmem:[%s258 + $0x8] sm:$0xff]
        %v261 = vld [vmem:[%s258 + $0x10] sm:$0xff]
        %v262 = vld [vmem:[%s258 + $0x18] sm:$0xff]
        %v263 = vld [vmem:[%s258 + $0x20] sm:$0xff]
        %v264 = vld [vmem:[%s258 + $0x28] sm:$0xff]
        %v265 = vld [vmem:[%s258 + $0x30] sm:$0xff]
        %v266 = vld [vmem:[%s258 + $0x38] sm:$0xff]
        %v267 = vld [vmem:[%s258 + $0x40] sm:$0xff]
        %v268 = vld [vmem:[%s258 + $0x48] sm:$0xff]
        %v269 = vld [vmem:[%s258 + $0x50] sm:$0xff]
        %v270 = vld [vmem:[%s258 + $0x58] sm:$0xff]
        %v271 = vld [vmem:[%s258 + $0x60] sm:$0xff]
        %v272 = vld [vmem:[%s258 + $0x68] sm:$0xff]
        %v273 = vld [vmem:[%s258 + $0x70] sm:$0xff]
        %v274 = vld [vmem:[%s258 + $0x78] sm:$0xff]
        %v291 = vunpack.c.l.b16 %v259
        %v292 = vunpack.c.h.b16 %v259
        %v293 = vunpack.c.l.b16 %v260
        %v294 = vunpack.c.h.b16 %v260
        %v295 = vunpack.c.l.b16 %v261
        %v296 = vunpack.c.h.b16 %v261
        %v297 = vunpack.c.l.b16 %v262
        %v298 = vunpack.c.h.b16 %v262
        %v299 = vunpack.c.l.b16 %v263
        %v300 = vunpack.c.h.b16 %v263
        %v301 = vunpack.c.l.b16 %v264
        %v302 = vunpack.c.h.b16 %v264
        %v303 = vunpack.c.l.b16 %v265
        %v304 = vunpack.c.h.b16 %v265
        %v305 = vunpack.c.l.b16 %v266
        %v306 = vunpack.c.h.b16 %v266
        %v307 = vunpack.c.l.b16 %v267
        %v308 = vunpack.c.h.b16 %v267
        %v309 = vunpack.c.l.b16 %v268
        %v310 = vunpack.c.h.b16 %v268
        %v311 = vunpack.c.l.b16 %v269
        %v312 = vunpack.c.h.b16 %v269
        %v313 = vunpack.c.l.b16 %v270
        %v314 = vunpack.c.h.b16 %v270
        %v315 = vunpack.c.l.b16 %v271
        %v316 = vunpack.c.h.b16 %v271
        %v317 = vunpack.c.l.b16 %v272
        %v318 = vunpack.c.h.b16 %v272
        %v319 = vunpack.c.l.b16 %v273
        %v320 = vunpack.c.h.b16 %v273
        %v321 = vunpack.c.l.b16 %v274
        %v322 = vunpack.c.h.b16 %v274
        %v323 = vpack.c.b16 %v293, %v291
        %v324 = vpack.c.b16 %v294, %v292
        %v325 = vpack.c.b16 %v297, %v295
        %v326 = vpack.c.b16 %v298, %v296
        %v327 = vpack.c.b16 %v301, %v299
        %v328 = vpack.c.b16 %v302, %v300
        %v329 = vpack.c.b16 %v305, %v303
        %v330 = vpack.c.b16 %v306, %v304
        %v331 = vpack.c.b16 %v309, %v307
        %v332 = vpack.c.b16 %v310, %v308
        %v333 = vpack.c.b16 %v313, %v311
        %v334 = vpack.c.b16 %v314, %v312
        %v335 = vpack.c.b16 %v317, %v315
        %v336 = vpack.c.b16 %v318, %v316
        %v337 = vpack.c.b16 %v321, %v319
        %v338 = vpack.c.b16 %v322, %v320
        %355 = vmatprep.subr.bf16.mxu0 %v324
        %356 = vmatpush1.bf16.msra.mxu0 %v323
        %357 = vmatprep.subr.bf16.mxu0 %v326
        %358 = vmatpush1.bf16.msra.mxu0 %v325
        %359 = vmatprep.subr.bf16.mxu0 %v328
        %360 = vmatpush1.bf16.msra.mxu0 %v327
        %361 = vmatprep.subr.bf16.mxu0 %v330
        %362 = vmatpush1.bf16.msra.mxu0 %v329
        %363 = vmatprep.subr.bf16.mxu0 %v332
        %364 = vmatpush1.bf16.msra.mxu0 %v331
        %365 = vmatprep.subr.bf16.mxu0 %v334
        %366 = vmatpush1.bf16.msra.mxu0 %v333
        %367 = vmatprep.subr.bf16.mxu0 %v336
        %368 = vmatpush1.bf16.msra.mxu0 %v335
        %369 = vmatprep.subr.bf16.mxu0 %v338
        %370 = vmatpush1.bf16.msra.mxu0 %v337
        %371 = vmatprep.subr.bf16.mxu0 0
        %372 = vmatpush1.bf16.msra.mxu0 0
        %373 = vmatprep.subr.bf16.mxu0 0
        %374 = vmatpush1.bf16.msra.mxu0 0
        %375 = vmatprep.subr.bf16.mxu0 0
        %376 = vmatpush1.bf16.msra.mxu0 0
        %377 = vmatprep.subr.bf16.mxu0 0
        %378 = vmatpush1.bf16.msra.mxu0 0
        %379 = vmatprep.subr.bf16.mxu0 0
        %380 = vmatpush1.bf16.msra.mxu0 0
        %381 = vmatprep.subr.bf16.mxu0 0
        %382 = vmatpush1.bf16.msra.mxu0 0
        %383 = vmatprep.subr.bf16.mxu0 0
        %384 = vmatpush1.bf16.msra.mxu0 0
        %385 = vmatprep.subr.bf16.mxu0 0
        %386 = vmatpush1.bf16.msra.mxu0 0
        %387 = vmatprep.mubr.bf16.mxu0 0
        %388 = vmatmul.mubr.bf16.gmra.mrb[0].mxu0 %v257
        %v389 = vpop.f32.mrb[0].mxu0
        %v390 = vadd.f32 0.0, %v389
        %v391 = vpop.f32.mrb[0].mxu0
        %v392 = vadd.f32 0.0, %v391
        %v393 = vpop.f32.mrb[0].mxu0
        %v394 = vadd.f32 0.0, %v393
        %v395 = vpop.f32.mrb[0].mxu0
        %v396 = vadd.f32 0.0, %v395
        %397 = vdwg.mxu0
        %v414 = vunpack.c.l.b16 %v239
        %v415 = vunpack.c.h.b16 %v239
        %v416 = vunpack.c.l.b16 %v240
        %v417 = vunpack.c.h.b16 %v240
        %v418 = vunpack.c.l.b16 %v241
        %v419 = vunpack.c.h.b16 %v241
        %v420 = vunpack.c.l.b16 %v242
        %v421 = vunpack.c.h.b16 %v242
        %v422 = vunpack.c.l.b16 %v243
        %v423 = vunpack.c.h.b16 %v243
        %v424 = vunpack.c.l.b16 %v244
        %v425 = vunpack.c.h.b16 %v244
        %v426 = vunpack.c.l.b16 %v245
        %v427 = vunpack.c.h.b16 %v245
        %v428 = vunpack.c.l.b16 %v246
        %v429 = vunpack.c.h.b16 %v246
        %v430 = vunpack.c.l.b16 %v247
        %v431 = vunpack.c.h.b16 %v247
        %v432 = vunpack.c.l.b16 %v248
        %v433 = vunpack.c.h.b16 %v248
        %v434 = vunpack.c.l.b16 %v249
        %v435 = vunpack.c.h.b16 %v249
        %v436 = vunpack.c.l.b16 %v250
        %v437 = vunpack.c.h.b16 %v250
        %v438 = vunpack.c.l.b16 %v251
        %v439 = vunpack.c.h.b16 %v251
        %v440 = vunpack.c.l.b16 %v252
        %v441 = vunpack.c.h.b16 %v252
        %v442 = vunpack.c.l.b16 %v253
        %v443 = vunpack.c.h.b16 %v253
        %v444 = vunpack.c.l.b16 %v254
        %v445 = vunpack.c.h.b16 %v254
        %v446 = vpack.c.b16 %v416, %v414
        %v447 = vpack.c.b16 %v417, %v415
        %v448 = vpack.c.b16 %v420, %v418
        %v449 = vpack.c.b16 %v421, %v419
        %v450 = vpack.c.b16 %v424, %v422
        %v451 = vpack.c.b16 %v425, %v423
        %v452 = vpack.c.b16 %v428, %v426
        %v453 = vpack.c.b16 %v429, %v427
        %v454 = vpack.c.b16 %v432, %v430
        %v455 = vpack.c.b16 %v433, %v431
        %v456 = vpack.c.b16 %v436, %v434
        %v457 = vpack.c.b16 %v437, %v435
        %v458 = vpack.c.b16 %v440, %v438
        %v459 = vpack.c.b16 %v441, %v439
        %v460 = vpack.c.b16 %v444, %v442
        %v461 = vpack.c.b16 %v445, %v443
        %478 = vmatprep.subr.bf16.mxu0 %v447
        %479 = vmatpush1.bf16.msra.mxu0 %v446
        %480 = vmatprep.subr.bf16.mxu0 %v449
        %481 = vmatpush1.bf16.msra.mxu0 %v448
        %482 = vmatprep.subr.bf16.mxu0 %v451
        %483 = vmatpush1.bf16.msra.mxu0 %v450
        %484 = vmatprep.subr.bf16.mxu0 %v453
        %485 = vmatpush1.bf16.msra.mxu0 %v452
        %486 = vmatprep.subr.bf16.mxu0 %v455
        %487 = vmatpush1.bf16.msra.mxu0 %v454
        %488 = vmatprep.subr.bf16.mxu0 %v457
        %489 = vmatpush1.bf16.msra.mxu0 %v456
        %490 = vmatprep.subr.bf16.mxu0 %v459
        %491 = vmatpush1.bf16.msra.mxu0 %v458
        %492 = vmatprep.subr.bf16.mxu0 %v461
        %493 = vmatpush1.bf16.msra.mxu0 %v460
        %494 = vmatprep.subr.bf16.mxu0 0
        %495 = vmatpush1.bf16.msra.mxu0 0
        %496 = vmatprep.subr.bf16.mxu0 0
        %497 = vmatpush1.bf16.msra.mxu0 0
        %498 = vmatprep.subr.bf16.mxu0 0
        %499 = vmatpush1.bf16.msra.mxu0 0
        %500 = vmatprep.subr.bf16.mxu0 0
        %501 = vmatpush1.bf16.msra.mxu0 0
        %502 = vmatprep.subr.bf16.mxu0 0
        %503 = vmatpush1.bf16.msra.mxu0 0
        %504 = vmatprep.subr.bf16.mxu0 0
        %505 = vmatpush1.bf16.msra.mxu0 0
        %506 = vmatprep.subr.bf16.mxu0 0
        %507 = vmatpush1.bf16.msra.mxu0 0
        %508 = vmatprep.subr.bf16.mxu0 0
        %509 = vmatpush1.bf16.msra.mxu0 0
        %510 = vmatprep.mubr.bf16.mxu0 0
        %511 = vmatmul.mubr.bf16.gmra.mrb[0].mxu0 %v238
        %v512 = vpop.f32.mrb[0].mxu0
        %v513 = vadd.f32 %v390, %v512
        %v514 = vpop.f32.mrb[0].mxu0
        %v515 = vadd.f32 %v392, %v514
        %v516 = vpop.f32.mrb[0].mxu0
        %v517 = vadd.f32 %v394, %v516
        %v518 = vpop.f32.mrb[0].mxu0
        %v519 = vadd.f32 %v396, %v518
        %520 = vdwg.mxu0
        %v521 = vld [vmem:[%s229 + $0x2] sm:$0xff]
        %v522 = vld [vmem:[%s229 + $0xa] sm:$0x1f]
        %v523 = vpack.c.bf16 %v522, %v521
        %s524 = scalar_lea.vmem %s1, 256
        %v525 = vld [vmem:[%s524] sm:$0xff]
        %v526 = vld [vmem:[%s524 + $0x8] sm:$0xff]
        %v527 = vld [vmem:[%s524 + $0x10] sm:$0xff]
        %v528 = vld [vmem:[%s524 + $0x18] sm:$0xff]
        %v529 = vld [vmem:[%s524 + $0x20] sm:$0xff]
        %v530 = vld [vmem:[%s524 + $0x28] sm:$0xff]
        %v531 = vld [vmem:[%s524 + $0x30] sm:$0xff]
        %v532 = vld [vmem:[%s524 + $0x38] sm:$0xff]
        %v533 = vld [vmem:[%s524 + $0x40] sm:$0xff]
        %v534 = vld [vmem:[%s524 + $0x48] sm:$0xff]
        %v535 = vld [vmem:[%s524 + $0x50] sm:$0xff]
        %v536 = vld [vmem:[%s524 + $0x58] sm:$0xff]
        %v537 = vld [vmem:[%s524 + $0x60] sm:$0xff]
        %v538 = vld [vmem:[%s524 + $0x68] sm:$0xff]
        %v539 = vld [vmem:[%s524 + $0x70] sm:$0xff]
        %v540 = vld [vmem:[%s524 + $0x78] sm:$0xff]
        %v557 = vunpack.c.l.b16 %v525
        %v558 = vunpack.c.h.b16 %v525
        %v559 = vunpack.c.l.b16 %v526
        %v560 = vunpack.c.h.b16 %v526
        %v561 = vunpack.c.l.b16 %v527
        %v562 = vunpack.c.h.b16 %v527
        %v563 = vunpack.c.l.b16 %v528
        %v564 = vunpack.c.h.b16 %v528
        %v565 = vunpack.c.l.b16 %v529
        %v566 = vunpack.c.h.b16 %v529
        %v567 = vunpack.c.l.b16 %v530
        %v568 = vunpack.c.h.b16 %v530
        %v569 = vunpack.c.l.b16 %v531
        %v570 = vunpack.c.h.b16 %v531
        %v571 = vunpack.c.l.b16 %v532
        %v572 = vunpack.c.h.b16 %v532
        %v573 = vunpack.c.l.b16 %v533
        %v574 = vunpack.c.h.b16 %v533
        %v575 = vunpack.c.l.b16 %v534
        %v576 = vunpack.c.h.b16 %v534
        %v577 = vunpack.c.l.b16 %v535
        %v578 = vunpack.c.h.b16 %v535
        %v579 = vunpack.c.l.b16 %v536
        %v580 = vunpack.c.h.b16 %v536
        %v581 = vunpack.c.l.b16 %v537
        %v582 = vunpack.c.h.b16 %v537
        %v583 = vunpack.c.l.b16 %v538
        %v584 = vunpack.c.h.b16 %v538
        %v585 = vunpack.c.l.b16 %v539
        %v586 = vunpack.c.h.b16 %v539
        %v587 = vunpack.c.l.b16 %v540
        %v588 = vunpack.c.h.b16 %v540
        %v589 = vpack.c.b16 %v559, %v557
        %v590 = vpack.c.b16 %v560, %v558
        %v591 = vpack.c.b16 %v563, %v561
        %v592 = vpack.c.b16 %v564, %v562
        %v593 = vpack.c.b16 %v567, %v565
        %v594 = vpack.c.b16 %v568, %v566
        %v595 = vpack.c.b16 %v571, %v569
        %v596 = vpack.c.b16 %v572, %v570
        %v597 = vpack.c.b16 %v575, %v573
        %v598 = vpack.c.b16 %v576, %v574
        %v599 = vpack.c.b16 %v579, %v577
        %v600 = vpack.c.b16 %v580, %v578
        %v601 = vpack.c.b16 %v583, %v581
        %v602 = vpack.c.b16 %v584, %v582
        %v603 = vpack.c.b16 %v587, %v585
        %v604 = vpack.c.b16 %v588, %v586
        %621 = vmatprep.subr.bf16.mxu0 %v590
        %622 = vmatpush1.bf16.msra.mxu0 %v589
        %623 = vmatprep.subr.bf16.mxu0 %v592
        %624 = vmatpush1.bf16.msra.mxu0 %v591
        %625 = vmatprep.subr.bf16.mxu0 %v594
        %626 = vmatpush1.bf16.msra.mxu0 %v593
        %627 = vmatprep.subr.bf16.mxu0 %v596
        %628 = vmatpush1.bf16.msra.mxu0 %v595
        %629 = vmatprep.subr.bf16.mxu0 %v598
        %630 = vmatpush1.bf16.msra.mxu0 %v597
        %631 = vmatprep.subr.bf16.mxu0 %v600
        %632 = vmatpush1.bf16.msra.mxu0 %v599
        %633 = vmatprep.subr.bf16.mxu0 %v602
        %634 = vmatpush1.bf16.msra.mxu0 %v601
        %635 = vmatprep.subr.bf16.mxu0 %v604
        %636 = vmatpush1.bf16.msra.mxu0 %v603
        %637 = vmatprep.subr.bf16.mxu0 0
        %638 = vmatpush1.bf16.msra.mxu0 0
        %639 = vmatprep.subr.bf16.mxu0 0
        %640 = vmatpush1.bf16.msra.mxu0 0
        %641 = vmatprep.subr.bf16.mxu0 0
        %642 = vmatpush1.bf16.msra.mxu0 0
        %643 = vmatprep.subr.bf16.mxu0 0
        %644 = vmatpush1.bf16.msra.mxu0 0
        %645 = vmatprep.subr.bf16.mxu0 0
        %646 = vmatpush1.bf16.msra.mxu0 0
        %647 = vmatprep.subr.bf16.mxu0 0
        %648 = vmatpush1.bf16.msra.mxu0 0
        %649 = vmatprep.subr.bf16.mxu0 0
        %650 = vmatpush1.bf16.msra.mxu0 0
        %651 = vmatprep.subr.bf16.mxu0 0
        %652 = vmatpush1.bf16.msra.mxu0 0
        %653 = vmatprep.mubr.bf16.mxu0 0
        %654 = vmatmul.mubr.bf16.gmra.mrb[0].mxu0 %v523
        %v655 = vpop.f32.mrb[0].mxu0
        %v656 = vadd.f32 0.0, %v655
        %v657 = vpop.f32.mrb[0].mxu0
        %v658 = vadd.f32 0.0, %v657
        %v659 = vpop.f32.mrb[0].mxu0
        %v660 = vadd.f32 0.0, %v659
        %v661 = vpop.f32.mrb[0].mxu0
        %v662 = vadd.f32 0.0, %v661
        %663 = vdwg.mxu0
        %v664 = vadd.f32 %v513, %v656
        %v665 = vadd.f32 %v515, %v658
        %v666 = vadd.f32 %v517, %v660
        %v667 = vadd.f32 %v519, %v662
        %v668 = vld [vmem:[%s229 + $0x3] sm:$0xff]
        %v669 = vld [vmem:[%s229 + $0xb] sm:$0x1f]
        %v670 = vpack.c.bf16 %v669, %v668
        %s671 = scalar_lea.vmem %s1, 384
        %v672 = vld [vmem:[%s671] sm:$0xff]
        %v673 = vld [vmem:[%s671 + $0x8] sm:$0xff]
        %v674 = vld [vmem:[%s671 + $0x10] sm:$0xff]
        %v675 = vld [vmem:[%s671 + $0x18] sm:$0xff]
        %v676 = vld [vmem:[%s671 + $0x20] sm:$0xff]
        %v677 = vld [vmem:[%s671 + $0x28] sm:$0xff]
        %v678 = vld [vmem:[%s671 + $0x30] sm:$0xff]
        %v679 = vld [vmem:[%s671 + $0x38] sm:$0xff]
        %v680 = vld [vmem:[%s671 + $0x40] sm:$0xff]
        %v681 = vld [vmem:[%s671 + $0x48] sm:$0xff]
        %v682 = vld [vmem:[%s671 + $0x50] sm:$0xff]
        %v683 = vld [vmem:[%s671 + $0x58] sm:$0xff]
        %v684 = vld [vmem:[%s671 + $0x60] sm:$0xff]
        %v685 = vld [vmem:[%s671 + $0x68] sm:$0xff]
        %v686 = vld [vmem:[%s671 + $0x70] sm:$0xff]
        %v687 = vld [vmem:[%s671 + $0x78] sm:$0xff]
        %v704 = vunpack.c.l.b16 %v672
        %v705 = vunpack.c.h.b16 %v672
        %v706 = vunpack.c.l.b16 %v673
        %v707 = vunpack.c.h.b16 %v673
        %v708 = vunpack.c.l.b16 %v674
        %v709 = vunpack.c.h.b16 %v674
        %v710 = vunpack.c.l.b16 %v675
        %v711 = vunpack.c.h.b16 %v675
        %v712 = vunpack.c.l.b16 %v676
        %v713 = vunpack.c.h.b16 %v676
        %v714 = vunpack.c.l.b16 %v677
        %v715 = vunpack.c.h.b16 %v677
        %v716 = vunpack.c.l.b16 %v678
        %v717 = vunpack.c.h.b16 %v678
        %v718 = vunpack.c.l.b16 %v679
        %v719 = vunpack.c.h.b16 %v679
        %v720 = vunpack.c.l.b16 %v680
        %v721 = vunpack.c.h.b16 %v680
        %v722 = vunpack.c.l.b16 %v681
        %v723 = vunpack.c.h.b16 %v681
        %v724 = vunpack.c.l.b16 %v682
        %v725 = vunpack.c.h.b16 %v682
        %v726 = vunpack.c.l.b16 %v683
        %v727 = vunpack.c.h.b16 %v683
        %v728 = vunpack.c.l.b16 %v684
        %v729 = vunpack.c.h.b16 %v684
        %v730 = vunpack.c.l.b16 %v685
        %v731 = vunpack.c.h.b16 %v685
        %v732 = vunpack.c.l.b16 %v686
        %v733 = vunpack.c.h.b16 %v686
        %v734 = vunpack.c.l.b16 %v687
        %v735 = vunpack.c.h.b16 %v687
        %v736 = vpack.c.b16 %v706, %v704
        %v737 = vpack.c.b16 %v707, %v705
        %v738 = vpack.c.b16 %v710, %v708
        %v739 = vpack.c.b16 %v711, %v709
        %v740 = vpack.c.b16 %v714, %v712
        %v741 = vpack.c.b16 %v715, %v713
        %v742 = vpack.c.b16 %v718, %v716
        %v743 = vpack.c.b16 %v719, %v717
        %v744 = vpack.c.b16 %v722, %v720
        %v745 = vpack.c.b16 %v723, %v721
        %v746 = vpack.c.b16 %v726, %v724
        %v747 = vpack.c.b16 %v727, %v725
        %v748 = vpack.c.b16 %v730, %v728
        %v749 = vpack.c.b16 %v731, %v729
        %v750 = vpack.c.b16 %v734, %v732
        %v751 = vpack.c.b16 %v735, %v733
        %768 = vmatprep.subr.bf16.mxu0 %v737
        %769 = vmatpush1.bf16.msra.mxu0 %v736
        %770 = vmatprep.subr.bf16.mxu0 %v739
        %771 = vmatpush1.bf16.msra.mxu0 %v738
        %772 = vmatprep.subr.bf16.mxu0 %v741
        %773 = vmatpush1.bf16.msra.mxu0 %v740
        %774 = vmatprep.subr.bf16.mxu0 %v743
        %775 = vmatpush1.bf16.msra.mxu0 %v742
        %776 = vmatprep.subr.bf16.mxu0 %v745
        %777 = vmatpush1.bf16.msra.mxu0 %v744
        %778 = vmatprep.subr.bf16.mxu0 %v747
        %779 = vmatpush1.bf16.msra.mxu0 %v746
        %780 = vmatprep.subr.bf16.mxu0 %v749
        %781 = vmatpush1.bf16.msra.mxu0 %v748
        %782 = vmatprep.subr.bf16.mxu0 %v751
        %783 = vmatpush1.bf16.msra.mxu0 %v750
        %784 = vmatprep.subr.bf16.mxu0 0
        %785 = vmatpush1.bf16.msra.mxu0 0
        %786 = vmatprep.subr.bf16.mxu0 0
        %787 = vmatpush1.bf16.msra.mxu0 0
        %788 = vmatprep.subr.bf16.mxu0 0
        %789 = vmatpush1.bf16.msra.mxu0 0
        %790 = vmatprep.subr.bf16.mxu0 0
        %791 = vmatpush1.bf16.msra.mxu0 0
        %792 = vmatprep.subr.bf16.mxu0 0
        %793 = vmatpush1.bf16.msra.mxu0 0
        %794 = vmatprep.subr.bf16.mxu0 0
        %795 = vmatpush1.bf16.msra.mxu0 0
        %796 = vmatprep.subr.bf16.mxu0 0
        %797 = vmatpush1.bf16.msra.mxu0 0
        %798 = vmatprep.subr.bf16.mxu0 0
        %799 = vmatpush1.bf16.msra.mxu0 0
        %800 = vmatprep.mubr.bf16.mxu0 0
        %801 = vmatmul.mubr.bf16.gmra.mrb[0].mxu0 %v670
        %v802 = vpop.f32.mrb[0].mxu0
        %v803 = vadd.f32 0.0, %v802
        %v804 = vpop.f32.mrb[0].mxu0
        %v805 = vadd.f32 0.0, %v804
        %v806 = vpop.f32.mrb[0].mxu0
        %v807 = vadd.f32 0.0, %v806
        %v808 = vpop.f32.mrb[0].mxu0
        %v809 = vadd.f32 0.0, %v808
        %810 = vdwg.mxu0
        %v811 = vadd.f32 %v664, %v803
        %v812 = vadd.f32 %v665, %v805
        %v813 = vadd.f32 %v666, %v807
        %v814 = vadd.f32 %v667, %v809
        %s815 = scalar_lea.vmem %s229, 16
        %v816 = vld [vmem:[%s815] sm:$0xff]
        %v817 = vld [vmem:[%s815 + $0x8] sm:$0x1f]
        %v818 = vpack.c.bf16 %v817, %v816
        %s819 = scalar_lea.vmem %s1, 512
        %v820 = vld [vmem:[%s819] sm:$0xff]
        %v821 = vld [vmem:[%s819 + $0x8] sm:$0xff]
        %v822 = vld [vmem:[%s819 + $0x10] sm:$0xff]
        %v823 = vld [vmem:[%s819 + $0x18] sm:$0xff]
        %v824 = vld [vmem:[%s819 + $0x20] sm:$0xff]
        %v825 = vld [vmem:[%s819 + $0x28] sm:$0xff]
        %v826 = vld [vmem:[%s819 + $0x30] sm:$0xff]
        %v827 = vld [vmem:[%s819 + $0x38] sm:$0xff]
        %v828 = vld [vmem:[%s819 + $0x40] sm:$0xff]
        %v829 = vld [vmem:[%s819 + $0x48] sm:$0xff]
        %v830 = vld [vmem:[%s819 + $0x50] sm:$0xff]
        %v831 = vld [vmem:[%s819 + $0x58] sm:$0xff]
        %v832 = vld [vmem:[%s819 + $0x60] sm:$0xff]
        %v833 = vld [vmem:[%s819 + $0x68] sm:$0xff]
        %v834 = vld [vmem:[%s819 + $0x70] sm:$0xff]
        %v835 = vld [vmem:[%s819 + $0x78] sm:$0xff]
        %v852 = vunpack.c.l.b16 %v820
        %v853 = vunpack.c.h.b16 %v820
        %v854 = vunpack.c.l.b16 %v821
        %v855 = vunpack.c.h.b16 %v821
        %v856 = vunpack.c.l.b16 %v822
        %v857 = vunpack.c.h.b16 %v822
        %v858 = vunpack.c.l.b16 %v823
        %v859 = vunpack.c.h.b16 %v823
        %v860 = vunpack.c.l.b16 %v824
        %v861 = vunpack.c.h.b16 %v824
        %v862 = vunpack.c.l.b16 %v825
        %v863 = vunpack.c.h.b16 %v825
        %v864 = vunpack.c.l.b16 %v826
        %v865 = vunpack.c.h.b16 %v826
        %v866 = vunpack.c.l.b16 %v827
        %v867 = vunpack.c.h.b16 %v827
        %v868 = vunpack.c.l.b16 %v828
        %v869 = vunpack.c.h.b16 %v828
        %v870 = vunpack.c.l.b16 %v829
        %v871 = vunpack.c.h.b16 %v829
        %v872 = vunpack.c.l.b16 %v830
        %v873 = vunpack.c.h.b16 %v830
        %v874 = vunpack.c.l.b16 %v831
        %v875 = vunpack.c.h.b16 %v831
        %v876 = vunpack.c.l.b16 %v832
        %v877 = vunpack.c.h.b16 %v832
        %v878 = vunpack.c.l.b16 %v833
        %v879 = vunpack.c.h.b16 %v833
        %v880 = vunpack.c.l.b16 %v834
        %v881 = vunpack.c.h.b16 %v834
        %v882 = vunpack.c.l.b16 %v835
        %v883 = vunpack.c.h.b16 %v835
        %v884 = vpack.c.b16 %v854, %v852
        %v885 = vpack.c.b16 %v855, %v853
        %v886 = vpack.c.b16 %v858, %v856
        %v887 = vpack.c.b16 %v859, %v857
        %v888 = vpack.c.b16 %v862, %v860
        %v889 = vpack.c.b16 %v863, %v861
        %v890 = vpack.c.b16 %v866, %v864
        %v891 = vpack.c.b16 %v867, %v865
        %v892 = vpack.c.b16 %v870, %v868
        %v893 = vpack.c.b16 %v871, %v869
        %v894 = vpack.c.b16 %v874, %v872
        %v895 = vpack.c.b16 %v875, %v873
        %v896 = vpack.c.b16 %v878, %v876
        %v897 = vpack.c.b16 %v879, %v877
        %v898 = vpack.c.b16 %v882, %v880
        %v899 = vpack.c.b16 %v883, %v881
        %916 = vmatprep.subr.bf16.mxu0 %v885
        %917 = vmatpush1.bf16.msra.mxu0 %v884
        %918 = vmatprep.subr.bf16.mxu0 %v887
        %919 = vmatpush1.bf16.msra.mxu0 %v886
        %920 = vmatprep.subr.bf16.mxu0 %v889
        %921 = vmatpush1.bf16.msra.mxu0 %v888
        %922 = vmatprep.subr.bf16.mxu0 %v891
        %923 = vmatpush1.bf16.msra.mxu0 %v890
        %924 = vmatprep.subr.bf16.mxu0 %v893
        %925 = vmatpush1.bf16.msra.mxu0 %v892
        %926 = vmatprep.subr.bf16.mxu0 %v895
        %927 = vmatpush1.bf16.msra.mxu0 %v894
        %928 = vmatprep.subr.bf16.mxu0 %v897
        %929 = vmatpush1.bf16.msra.mxu0 %v896
        %930 = vmatprep.subr.bf16.mxu0 %v899
        %931 = vmatpush1.bf16.msra.mxu0 %v898
        %932 = vmatprep.subr.bf16.mxu0 0
        %933 = vmatpush1.bf16.msra.mxu0 0
        %934 = vmatprep.subr.bf16.mxu0 0
        %935 = vmatpush1.bf16.msra.mxu0 0
        %936 = vmatprep.subr.bf16.mxu0 0
        %937 = vmatpush1.bf16.msra.mxu0 0
        %938 = vmatprep.subr.bf16.mxu0 0
        %939 = vmatpush1.bf16.msra.mxu0 0
        %940 = vmatprep.subr.bf16.mxu0 0
        %941 = vmatpush1.bf16.msra.mxu0 0
        %942 = vmatprep.subr.bf16.mxu0 0
        %943 = vmatpush1.bf16.msra.mxu0 0
        %944 = vmatprep.subr.bf16.mxu0 0
        %945 = vmatpush1.bf16.msra.mxu0 0
        %946 = vmatprep.subr.bf16.mxu0 0
        %947 = vmatpush1.bf16.msra.mxu0 0
        %948 = vmatprep.mubr.bf16.mxu0 0
        %949 = vmatmul.mubr.bf16.gmra.mrb[0].mxu0 %v818
        %v950 = vpop.f32.mrb[0].mxu0
        %v951 = vadd.f32 0.0, %v950
        %v952 = vpop.f32.mrb[0].mxu0
        %v953 = vadd.f32 0.0, %v952
        %v954 = vpop.f32.mrb[0].mxu0
        %v955 = vadd.f32 0.0, %v954
        %v956 = vpop.f32.mrb[0].mxu0
        %v957 = vadd.f32 0.0, %v956
        %958 = vdwg.mxu0
        %v959 = vadd.f32 %v811, %v951
        %v960 = vadd.f32 %v812, %v953
        %v961 = vadd.f32 %v813, %v955
        %v962 = vadd.f32 %v814, %v957
        %v963 = vld [vmem:[%s815 + $0x1] sm:$0xff]
        %v964 = vld [vmem:[%s815 + $0x9] sm:$0x1f]
        %v965 = vpack.c.bf16 %v964, %v963
        %s966 = scalar_lea.vmem %s1, 640
        %v967 = vld [vmem:[%s966] sm:$0xff]
        %v968 = vld [vmem:[%s966 + $0x8] sm:$0xff]
        %v969 = vld [vmem:[%s966 + $0x10] sm:$0xff]
        %v970 = vld [vmem:[%s966 + $0x18] sm:$0xff]
        %v971 = vld [vmem:[%s966 + $0x20] sm:$0xff]
        %v972 = vld [vmem:[%s966 + $0x28] sm:$0xff]
        %v973 = vld [vmem:[%s966 + $0x30] sm:$0xff]
        %v974 = vld [vmem:[%s966 + $0x38] sm:$0xff]
        %v975 = vld [vmem:[%s966 + $0x40] sm:$0xff]
        %v976 = vld [vmem:[%s966 + $0x48] sm:$0xff]
        %v977 = vld [vmem:[%s966 + $0x50] sm:$0xff]
        %v978 = vld [vmem:[%s966 + $0x58] sm:$0xff]
        %v979 = vld [vmem:[%s966 + $0x60] sm:$0xff]
        %v980 = vld [vmem:[%s966 + $0x68] sm:$0xff]
        %v981 = vld [vmem:[%s966 + $0x70] sm:$0xff]
        %v982 = vld [vmem:[%s966 + $0x78] sm:$0xff]
        %v999 = vunpack.c.l.b16 %v967
        %v1000 = vunpack.c.h.b16 %v967
        %v1001 = vunpack.c.l.b16 %v968
        %v1002 = vunpack.c.h.b16 %v968
        %v1003 = vunpack.c.l.b16 %v969
        %v1004 = vunpack.c.h.b16 %v969
        %v1005 = vunpack.c.l.b16 %v970
        %v1006 = vunpack.c.h.b16 %v970
        %v1007 = vunpack.c.l.b16 %v971
        %v1008 = vunpack.c.h.b16 %v971
        %v1009 = vunpack.c.l.b16 %v972
        %v1010 = vunpack.c.h.b16 %v972
        %v1011 = vunpack.c.l.b16 %v973
        %v1012 = vunpack.c.h.b16 %v973
        %v1013 = vunpack.c.l.b16 %v974
        %v1014 = vunpack.c.h.b16 %v974
        %v1015 = vunpack.c.l.b16 %v975
        %v1016 = vunpack.c.h.b16 %v975
        %v1017 = vunpack.c.l.b16 %v976
        %v1018 = vunpack.c.h.b16 %v976
        %v1019 = vunpack.c.l.b16 %v977
        %v1020 = vunpack.c.h.b16 %v977
        %v1021 = vunpack.c.l.b16 %v978
        %v1022 = vunpack.c.h.b16 %v978
        %v1023 = vunpack.c.l.b16 %v979
        %v1024 = vunpack.c.h.b16 %v979
        %v1025 = vunpack.c.l.b16 %v980
        %v1026 = vunpack.c.h.b16 %v980
        %v1027 = vunpack.c.l.b16 %v981
        %v1028 = vunpack.c.h.b16 %v981
        %v1029 = vunpack.c.l.b16 %v982
        %v1030 = vunpack.c.h.b16 %v982
        %v1031 = vpack.c.b16 %v1001, %v999
        %v1032 = vpack.c.b16 %v1002, %v1000
        %v1033 = vpack.c.b16 %v1005, %v1003
        %v1034 = vpack.c.b16 %v1006, %v1004
        %v1035 = vpack.c.b16 %v1009, %v1007
        %v1036 = vpack.c.b16 %v1010, %v1008
        %v1037 = vpack.c.b16 %v1013, %v1011
        %v1038 = vpack.c.b16 %v1014, %v1012
        %v1039 = vpack.c.b16 %v1017, %v1015
        %v1040 = vpack.c.b16 %v1018, %v1016
        %v1041 = vpack.c.b16 %v1021, %v1019
        %v1042 = vpack.c.b16 %v1022, %v1020
        %v1043 = vpack.c.b16 %v1025, %v1023
        %v1044 = vpack.c.b16 %v1026, %v1024
        %v1045 = vpack.c.b16 %v1029, %v1027
        %v1046 = vpack.c.b16 %v1030, %v1028
        %1063 = vmatprep.subr.bf16.mxu0 %v1032
        %1064 = vmatpush1.bf16.msra.mxu0 %v1031
        %1065 = vmatprep.subr.bf16.mxu0 %v1034
        %1066 = vmatpush1.bf16.msra.mxu0 %v1033
        %1067 = vmatprep.subr.bf16.mxu0 %v1036
        %1068 = vmatpush1.bf16.msra.mxu0 %v1035
        %1069 = vmatprep.subr.bf16.mxu0 %v1038
        %1070 = vmatpush1.bf16.msra.mxu0 %v1037
        %1071 = vmatprep.subr.bf16.mxu0 %v1040
        %1072 = vmatpush1.bf16.msra.mxu0 %v1039
        %1073 = vmatprep.subr.bf16.mxu0 %v1042
        %1074 = vmatpush1.bf16.msra.mxu0 %v1041
        %1075 = vmatprep.subr.bf16.mxu0 %v1044
        %1076 = vmatpush1.bf16.msra.mxu0 %v1043
        %1077 = vmatprep.subr.bf16.mxu0 %v1046
        %1078 = vmatpush1.bf16.msra.mxu0 %v1045
        %1079 = vmatprep.subr.bf16.mxu0 0
        %1080 = vmatpush1.bf16.msra.mxu0 0
        %1081 = vmatprep.subr.bf16.mxu0 0
        %1082 = vmatpush1.bf16.msra.mxu0 0
        %1083 = vmatprep.subr.bf16.mxu0 0
        %1084 = vmatpush1.bf16.msra.mxu0 0
        %1085 = vmatprep.subr.bf16.mxu0 0
        %1086 = vmatpush1.bf16.msra.mxu0 0
        %1087 = vmatprep.subr.bf16.mxu0 0
        %1088 = vmatpush1.bf16.msra.mxu0 0
        %1089 = vmatprep.subr.bf16.mxu0 0
        %1090 = vmatpush1.bf16.msra.mxu0 0
        %1091 = vmatprep.subr.bf16.mxu0 0
        %1092 = vmatpush1.bf16.msra.mxu0 0
        %1093 = vmatprep.subr.bf16.mxu0 0
        %1094 = vmatpush1.bf16.msra.mxu0 0
        %1095 = vmatprep.mubr.bf16.mxu0 0
        %1096 = vmatmul.mubr.bf16.gmra.mrb[0].mxu0 %v965
        %v1097 = vpop.f32.mrb[0].mxu0
        %v1098 = vadd.f32 0.0, %v1097
        %v1099 = vpop.f32.mrb[0].mxu0
        %v1100 = vadd.f32 0.0, %v1099
        %v1101 = vpop.f32.mrb[0].mxu0
        %v1102 = vadd.f32 0.0, %v1101
        %v1103 = vpop.f32.mrb[0].mxu0
        %v1104 = vadd.f32 0.0, %v1103
        %1105 = vdwg.mxu0
        %v1106 = vadd.f32 %v959, %v1098
        %v1107 = vadd.f32 %v960, %v1100
        %v1108 = vadd.f32 %v961, %v1102
        %v1109 = vadd.f32 %v962, %v1104
        %v1110 = vld [vmem:[%s815 + $0x2] sm:$0xff]
        %v1111 = vld [vmem:[%s815 + $0xa] sm:$0x1f]
        %v1112 = vpack.c.bf16 %v1111, %v1110
        %s1113 = scalar_lea.vmem %s1, 768
        %v1114 = vld [vmem:[%s1113] sm:$0xff]
        %v1115 = vld [vmem:[%s1113 + $0x8] sm:$0xff]
        %v1116 = vld [vmem:[%s1113 + $0x10] sm:$0xff]
        %v1117 = vld [vmem:[%s1113 + $0x18] sm:$0xff]
        %v1118 = vld [vmem:[%s1113 + $0x20] sm:$0xff]
        %v1119 = vld [vmem:[%s1113 + $0x28] sm:$0xff]
        %v1120 = vld [vmem:[%s1113 + $0x30] sm:$0xff]
        %v1121 = vld [vmem:[%s1113 + $0x38] sm:$0xff]
        %v1122 = vld [vmem:[%s1113 + $0x40] sm:$0xff]
        %v1123 = vld [vmem:[%s1113 + $0x48] sm:$0xff]
        %v1124 = vld [vmem:[%s1113 + $0x50] sm:$0xff]
        %v1125 = vld [vmem:[%s1113 + $0x58] sm:$0xff]
        %v1126 = vld [vmem:[%s1113 + $0x60] sm:$0xff]
        %v1127 = vld [vmem:[%s1113 + $0x68] sm:$0xff]
        %v1128 = vld [vmem:[%s1113 + $0x70] sm:$0xff]
        %v1129 = vld [vmem:[%s1113 + $0x78] sm:$0xff]
        %v1146 = vunpack.c.l.b16 %v1114
        %v1147 = vunpack.c.h.b16 %v1114
        %v1148 = vunpack.c.l.b16 %v1115
        %v1149 = vunpack.c.h.b16 %v1115
        %v1150 = vunpack.c.l.b16 %v1116
        %v1151 = vunpack.c.h.b16 %v1116
        %v1152 = vunpack.c.l.b16 %v1117
        %v1153 = vunpack.c.h.b16 %v1117
        %v1154 = vunpack.c.l.b16 %v1118
        %v1155 = vunpack.c.h.b16 %v1118
        %v1156 = vunpack.c.l.b16 %v1119
        %v1157 = vunpack.c.h.b16 %v1119
        %v1158 = vunpack.c.l.b16 %v1120
        %v1159 = vunpack.c.h.b16 %v1120
        %v1160 = vunpack.c.l.b16 %v1121
        %v1161 = vunpack.c.h.b16 %v1121
        %v1162 = vunpack.c.l.b16 %v1122
        %v1163 = vunpack.c.h.b16 %v1122
        %v1164 = vunpack.c.l.b16 %v1123
        %v1165 = vunpack.c.h.b16 %v1123
        %v1166 = vunpack.c.l.b16 %v1124
        %v1167 = vunpack.c.h.b16 %v1124
        %v1168 = vunpack.c.l.b16 %v1125
        %v1169 = vunpack.c.h.b16 %v1125
        %v1170 = vunpack.c.l.b16 %v1126
        %v1171 = vunpack.c.h.b16 %v1126
        %v1172 = vunpack.c.l.b16 %v1127
        %v1173 = vunpack.c.h.b16 %v1127
        %v1174 = vunpack.c.l.b16 %v1128
        %v1175 = vunpack.c.h.b16 %v1128
        %v1176 = vunpack.c.l.b16 %v1129
        %v1177 = vunpack.c.h.b16 %v1129
        %v1178 = vpack.c.b16 %v1148, %v1146
        %v1179 = vpack.c.b16 %v1149, %v1147
        %v1180 = vpack.c.b16 %v1152, %v1150
        %v1181 = vpack.c.b16 %v1153, %v1151
        %v1182 = vpack.c.b16 %v1156, %v1154
        %v1183 = vpack.c.b16 %v1157, %v1155
        %v1184 = vpack.c.b16 %v1160, %v1158
        %v1185 = vpack.c.b16 %v1161, %v1159
        %v1186 = vpack.c.b16 %v1164, %v1162
        %v1187 = vpack.c.b16 %v1165, %v1163
        %v1188 = vpack.c.b16 %v1168, %v1166
        %v1189 = vpack.c.b16 %v1169, %v1167
        %v1190 = vpack.c.b16 %v1172, %v1170
        %v1191 = vpack.c.b16 %v1173, %v1171
        %v1192 = vpack.c.b16 %v1176, %v1174
        %v1193 = vpack.c.b16 %v1177, %v1175
        %1210 = vmatprep.subr.bf16.mxu0 %v1179
        %1211 = vmatpush1.bf16.msra.mxu0 %v1178
        %1212 = vmatprep.subr.bf16.mxu0 %v1181
        %1213 = vmatpush1.bf16.msra.mxu0 %v1180
        %1214 = vmatprep.subr.bf16.mxu0 %v1183
        %1215 = vmatpush1.bf16.msra.mxu0 %v1182
        %1216 = vmatprep.subr.bf16.mxu0 %v1185
        %1217 = vmatpush1.bf16.msra.mxu0 %v1184
        %1218 = vmatprep.subr.bf16.mxu0 %v1187
        %1219 = vmatpush1.bf16.msra.mxu0 %v1186
        %1220 = vmatprep.subr.bf16.mxu0 %v1189
        %1221 = vmatpush1.bf16.msra.mxu0 %v1188
        %1222 = vmatprep.subr.bf16.mxu0 %v1191
        %1223 = vmatpush1.bf16.msra.mxu0 %v1190
        %1224 = vmatprep.subr.bf16.mxu0 %v1193
        %1225 = vmatpush1.bf16.msra.mxu0 %v1192
        %1226 = vmatprep.subr.bf16.mxu0 0
        %1227 = vmatpush1.bf16.msra.mxu0 0
        %1228 = vmatprep.subr.bf16.mxu0 0
        %1229 = vmatpush1.bf16.msra.mxu0 0
        %1230 = vmatprep.subr.bf16.mxu0 0
        %1231 = vmatpush1.bf16.msra.mxu0 0
        %1232 = vmatprep.subr.bf16.mxu0 0
        %1233 = vmatpush1.bf16.msra.mxu0 0
        %1234 = vmatprep.subr.bf16.mxu0 0
        %1235 = vmatpush1.bf16.msra.mxu0 0
        %1236 = vmatprep.subr.bf16.mxu0 0
        %1237 = vmatpush1.bf16.msra.mxu0 0
        %1238 = vmatprep.subr.bf16.mxu0 0
        %1239 = vmatpush1.bf16.msra.mxu0 0
        %1240 = vmatprep.subr.bf16.mxu0 0
        %1241 = vmatpush1.bf16.msra.mxu0 0
        %1242 = vmatprep.mubr.bf16.mxu0 0
        %1243 = vmatmul.mubr.bf16.gmra.mrb[0].mxu0 %v1112
        %v1244 = vpop.f32.mrb[0].mxu0
        %v1245 = vadd.f32 0.0, %v1244
        %v1246 = vpop.f32.mrb[0].mxu0
        %v1247 = vadd.f32 0.0, %v1246
        %v1248 = vpop.f32.mrb[0].mxu0
        %v1249 = vadd.f32 0.0, %v1248
        %v1250 = vpop.f32.mrb[0].mxu0
        %v1251 = vadd.f32 0.0, %v1250
        %1252 = vdwg.mxu0
        %v1253 = vadd.f32 %v1106, %v1245
        %v1254 = vadd.f32 %v1107, %v1247
        %v1255 = vadd.f32 %v1108, %v1249
        %v1256 = vadd.f32 %v1109, %v1251
        %v1257 = vld [vmem:[%s815 + $0x3] sm:$0xff]
        %v1258 = vld [vmem:[%s815 + $0xb] sm:$0x1f]
        %v1259 = vpack.c.bf16 %v1258, %v1257
        %s1260 = scalar_lea.vmem %s1, 896
        %v1261 = vld [vmem:[%s1260] sm:$0xff]
        %v1262 = vld [vmem:[%s1260 + $0x8] sm:$0xff]
        %v1263 = vld [vmem:[%s1260 + $0x10] sm:$0xff]
        %v1264 = vld [vmem:[%s1260 + $0x18] sm:$0xff]
        %v1265 = vld [vmem:[%s1260 + $0x20] sm:$0xff]
        %v1266 = vld [vmem:[%s1260 + $0x28] sm:$0xff]
        %v1267 = vld [vmem:[%s1260 + $0x30] sm:$0xff]
        %v1268 = vld [vmem:[%s1260 + $0x38] sm:$0xff]
        %v1269 = vld [vmem:[%s1260 + $0x40] sm:$0xff]
        %v1270 = vld [vmem:[%s1260 + $0x48] sm:$0xff]
        %v1271 = vld [vmem:[%s1260 + $0x50] sm:$0xff]
        %v1272 = vld [vmem:[%s1260 + $0x58] sm:$0xff]
        %v1273 = vld [vmem:[%s1260 + $0x60] sm:$0xff]
        %v1274 = vld [vmem:[%s1260 + $0x68] sm:$0xff]
        %v1275 = vld [vmem:[%s1260 + $0x70] sm:$0xff]
        %v1276 = vld [vmem:[%s1260 + $0x78] sm:$0xff]
        %v1293 = vunpack.c.l.b16 %v1261
        %v1294 = vunpack.c.h.b16 %v1261
        %v1295 = vunpack.c.l.b16 %v1262
        %v1296 = vunpack.c.h.b16 %v1262
        %v1297 = vunpack.c.l.b16 %v1263
        %v1298 = vunpack.c.h.b16 %v1263
        %v1299 = vunpack.c.l.b16 %v1264
        %v1300 = vunpack.c.h.b16 %v1264
        %v1301 = vunpack.c.l.b16 %v1265
        %v1302 = vunpack.c.h.b16 %v1265
        %v1303 = vunpack.c.l.b16 %v1266
        %v1304 = vunpack.c.h.b16 %v1266
        %v1305 = vunpack.c.l.b16 %v1267
        %v1306 = vunpack.c.h.b16 %v1267
        %v1307 = vunpack.c.l.b16 %v1268
        %v1308 = vunpack.c.h.b16 %v1268
        %v1309 = vunpack.c.l.b16 %v1269
        %v1310 = vunpack.c.h.b16 %v1269
        %v1311 = vunpack.c.l.b16 %v1270
        %v1312 = vunpack.c.h.b16 %v1270
        %v1313 = vunpack.c.l.b16 %v1271
        %v1314 = vunpack.c.h.b16 %v1271
        %v1315 = vunpack.c.l.b16 %v1272
        %v1316 = vunpack.c.h.b16 %v1272
        %v1317 = vunpack.c.l.b16 %v1273
        %v1318 = vunpack.c.h.b16 %v1273
        %v1319 = vunpack.c.l.b16 %v1274
        %v1320 = vunpack.c.h.b16 %v1274
        %v1321 = vunpack.c.l.b16 %v1275
        %v1322 = vunpack.c.h.b16 %v1275
        %v1323 = vunpack.c.l.b16 %v1276
        %v1324 = vunpack.c.h.b16 %v1276
        %v1325 = vpack.c.b16 %v1295, %v1293
        %v1326 = vpack.c.b16 %v1296, %v1294
        %v1327 = vpack.c.b16 %v1299, %v1297
        %v1328 = vpack.c.b16 %v1300, %v1298
        %v1329 = vpack.c.b16 %v1303, %v1301
        %v1330 = vpack.c.b16 %v1304, %v1302
        %v1331 = vpack.c.b16 %v1307, %v1305
        %v1332 = vpack.c.b16 %v1308, %v1306
        %v1333 = vpack.c.b16 %v1311, %v1309
        %v1334 = vpack.c.b16 %v1312, %v1310
        %v1335 = vpack.c.b16 %v1315, %v1313
        %v1336 = vpack.c.b16 %v1316, %v1314
        %v1337 = vpack.c.b16 %v1319, %v1317
        %v1338 = vpack.c.b16 %v1320, %v1318
        %v1339 = vpack.c.b16 %v1323, %v1321
        %v1340 = vpack.c.b16 %v1324, %v1322
        %1357 = vmatprep.subr.bf16.mxu0 %v1326
        %1358 = vmatpush1.bf16.msra.mxu0 %v1325
        %1359 = vmatprep.subr.bf16.mxu0 %v1328
        %1360 = vmatpush1.bf16.msra.mxu0 %v1327
        %1361 = vmatprep.subr.bf16.mxu0 %v1330
        %1362 = vmatpush1.bf16.msra.mxu0 %v1329
        %1363 = vmatprep.subr.bf16.mxu0 %v1332
        %1364 = vmatpush1.bf16.msra.mxu0 %v1331
        %1365 = vmatprep.subr.bf16.mxu0 %v1334
        %1366 = vmatpush1.bf16.msra.mxu0 %v1333
        %1367 = vmatprep.subr.bf16.mxu0 %v1336
        %1368 = vmatpush1.bf16.msra.mxu0 %v1335
        %1369 = vmatprep.subr.bf16.mxu0 %v1338
        %1370 = vmatpush1.bf16.msra.mxu0 %v1337
        %1371 = vmatprep.subr.bf16.mxu0 %v1340
        %1372 = vmatpush1.bf16.msra.mxu0 %v1339
        %1373 = vmatprep.subr.bf16.mxu0 0
        %1374 = vmatpush1.bf16.msra.mxu0 0
        %1375 = vmatprep.subr.bf16.mxu0 0
        %1376 = vmatpush1.bf16.msra.mxu0 0
        %1377 = vmatprep.subr.bf16.mxu0 0
        %1378 = vmatpush1.bf16.msra.mxu0 0
        %1379 = vmatprep.subr.bf16.mxu0 0
        %1380 = vmatpush1.bf16.msra.mxu0 0
        %1381 = vmatprep.subr.bf16.mxu0 0
        %1382 = vmatpush1.bf16.msra.mxu0 0
        %1383 = vmatprep.subr.bf16.mxu0 0
        %1384 = vmatpush1.bf16.msra.mxu0 0
        %1385 = vmatprep.subr.bf16.mxu0 0
        %1386 = vmatpush1.bf16.msra.mxu0 0
        %1387 = vmatprep.subr.bf16.mxu0 0
        %1388 = vmatpush1.bf16.msra.mxu0 0
        %1389 = vmatprep.mubr.bf16.mxu0 0
        %1390 = vmatmul.mubr.bf16.gmra.mrb[0].mxu0 %v1259
        %v1391 = vpop.f32.mrb[0].mxu0
        %v1392 = vadd.f32 0.0, %v1391
        %v1393 = vpop.f32.mrb[0].mxu0
        %v1394 = vadd.f32 0.0, %v1393
        %v1395 = vpop.f32.mrb[0].mxu0
        %v1396 = vadd.f32 0.0, %v1395
        %v1397 = vpop.f32.mrb[0].mxu0
        %v1398 = vadd.f32 0.0, %v1397
        %1399 = vdwg.mxu0
        %v1400 = vadd.f32 %v1253, %v1392
        %v1401 = vadd.f32 %v1254, %v1394
        %v1402 = vadd.f32 %v1255, %v1396
        %v1403 = vadd.f32 %v1256, %v1398
        %s1404 = scalar_lea.vmem %s229, 32
        %v1405 = vld [vmem:[%s1404] sm:$0xff]
        %v1406 = vld [vmem:[%s1404 + $0x8] sm:$0x1f]
        %v1407 = vpack.c.bf16 %v1406, %v1405
        %s1408 = scalar_lea.vmem %s1, 1024
        %v1409 = vld [vmem:[%s1408] sm:$0xff]
        %v1410 = vld [vmem:[%s1408 + $0x8] sm:$0xff]
        %v1411 = vld [vmem:[%s1408 + $0x10] sm:$0xff]
        %v1412 = vld [vmem:[%s1408 + $0x18] sm:$0xff]
        %v1413 = vld [vmem:[%s1408 + $0x20] sm:$0xff]
        %v1414 = vld [vmem:[%s1408 + $0x28] sm:$0xff]
        %v1415 = vld [vmem:[%s1408 + $0x30] sm:$0xff]
        %v1416 = vld [vmem:[%s1408 + $0x38] sm:$0xff]
        %v1417 = vld [vmem:[%s1408 + $0x40] sm:$0xff]
        %v1418 = vld [vmem:[%s1408 + $0x48] sm:$0xff]
        %v1419 = vld [vmem:[%s1408 + $0x50] sm:$0xff]
        %v1420 = vld [vmem:[%s1408 + $0x58] sm:$0xff]
        %v1421 = vld [vmem:[%s1408 + $0x60] sm:$0xff]
        %v1422 = vld [vmem:[%s1408 + $0x68] sm:$0xff]
        %v1423 = vld [vmem:[%s1408 + $0x70] sm:$0xff]
        %v1424 = vld [vmem:[%s1408 + $0x78] sm:$0xff]
        %v1441 = vunpack.c.l.b16 %v1409
        %v1442 = vunpack.c.h.b16 %v1409
        %v1443 = vunpack.c.l.b16 %v1410
        %v1444 = vunpack.c.h.b16 %v1410
        %v1445 = vunpack.c.l.b16 %v1411
        %v1446 = vunpack.c.h.b16 %v1411
        %v1447 = vunpack.c.l.b16 %v1412
        %v1448 = vunpack.c.h.b16 %v1412
        %v1449 = vunpack.c.l.b16 %v1413
        %v1450 = vunpack.c.h.b16 %v1413
        %v1451 = vunpack.c.l.b16 %v1414
        %v1452 = vunpack.c.h.b16 %v1414
        %v1453 = vunpack.c.l.b16 %v1415
        %v1454 = vunpack.c.h.b16 %v1415
        %v1455 = vunpack.c.l.b16 %v1416
        %v1456 = vunpack.c.h.b16 %v1416
        %v1457 = vunpack.c.l.b16 %v1417
        %v1458 = vunpack.c.h.b16 %v1417
        %v1459 = vunpack.c.l.b16 %v1418
        %v1460 = vunpack.c.h.b16 %v1418
        %v1461 = vunpack.c.l.b16 %v1419
        %v1462 = vunpack.c.h.b16 %v1419
        %v1463 = vunpack.c.l.b16 %v1420
        %v1464 = vunpack.c.h.b16 %v1420
        %v1465 = vunpack.c.l.b16 %v1421
        %v1466 = vunpack.c.h.b16 %v1421
        %v1467 = vunpack.c.l.b16 %v1422
        %v1468 = vunpack.c.h.b16 %v1422
        %v1469 = vunpack.c.l.b16 %v1423
        %v1470 = vunpack.c.h.b16 %v1423
        %v1471 = vunpack.c.l.b16 %v1424
        %v1472 = vunpack.c.h.b16 %v1424
        %v1473 = vpack.c.b16 %v1443, %v1441
        %v1474 = vpack.c.b16 %v1444, %v1442
        %v1475 = vpack.c.b16 %v1447, %v1445
        %v1476 = vpack.c.b16 %v1448, %v1446
        %v1477 = vpack.c.b16 %v1451, %v1449
        %v1478 = vpack.c.b16 %v1452, %v1450
        %v1479 = vpack.c.b16 %v1455, %v1453
        %v1480 = vpack.c.b16 %v1456, %v1454
        %v1481 = vpack.c.b16 %v1459, %v1457
        %v1482 = vpack.c.b16 %v1460, %v1458
        %v1483 = vpack.c.b16 %v1463, %v1461
        %v1484 = vpack.c.b16 %v1464, %v1462
        %v1485 = vpack.c.b16 %v1467, %v1465
        %v1486 = vpack.c.b16 %v1468, %v1466
        %v1487 = vpack.c.b16 %v1471, %v1469
        %v1488 = vpack.c.b16 %v1472, %v1470
        %1505 = vmatprep.subr.bf16.mxu0 %v1474
        %1506 = vmatpush1.bf16.msra.mxu0 %v1473
        %1507 = vmatprep.subr.bf16.mxu0 %v1476
        %1508 = vmatpush1.bf16.msra.mxu0 %v1475
        %1509 = vmatprep.subr.bf16.mxu0 %v1478
        %1510 = vmatpush1.bf16.msra.mxu0 %v1477
        %1511 = vmatprep.subr.bf16.mxu0 %v1480
        %1512 = vmatpush1.bf16.msra.mxu0 %v1479
        %1513 = vmatprep.subr.bf16.mxu0 %v1482
        %1514 = vmatpush1.bf16.msra.mxu0 %v1481
        %1515 = vmatprep.subr.bf16.mxu0 %v1484
        %1516 = vmatpush1.bf16.msra.mxu0 %v1483
        %1517 = vmatprep.subr.bf16.mxu0 %v1486
        %1518 = vmatpush1.bf16.msra.mxu0 %v1485
        %1519 = vmatprep.subr.bf16.mxu0 %v1488
        %1520 = vmatpush1.bf16.msra.mxu0 %v1487
        %1521 = vmatprep.subr.bf16.mxu0 0
        %1522 = vmatpush1.bf16.msra.mxu0 0
        %1523 = vmatprep.subr.bf16.mxu0 0
        %1524 = vmatpush1.bf16.msra.mxu0 0
        %1525 = vmatprep.subr.bf16.mxu0 0
        %1526 = vmatpush1.bf16.msra.mxu0 0
        %1527 = vmatprep.subr.bf16.mxu0 0
        %1528 = vmatpush1.bf16.msra.mxu0 0
        %1529 = vmatprep.subr.bf16.mxu0 0
        %1530 = vmatpush1.bf16.msra.mxu0 0
        %1531 = vmatprep.subr.bf16.mxu0 0
        %1532 = vmatpush1.bf16.msra.mxu0 0
        %1533 = vmatprep.subr.bf16.mxu0 0
        %1534 = vmatpush1.bf16.msra.mxu0 0
        %1535 = vmatprep.subr.bf16.mxu0 0
        %1536 = vmatpush1.bf16.msra.mxu0 0
        %1537 = vmatprep.mubr.bf16.mxu0 0
        %1538 = vmatmul.mubr.bf16.gmra.mrb[0].mxu0 %v1407
        %v1539 = vpop.f32.mrb[0].mxu0
        %v1540 = vadd.f32 0.0, %v1539
        %v1541 = vpop.f32.mrb[0].mxu0
        %v1542 = vadd.f32 0.0, %v1541
        %v1543 = vpop.f32.mrb[0].mxu0
        %v1544 = vadd.f32 0.0, %v1543
        %v1545 = vpop.f32.mrb[0].mxu0
        %v1546 = vadd.f32 0.0, %v1545
        %1547 = vdwg.mxu0
        %v1548 = vadd.f32 %v1400, %v1540
        %v1549 = vadd.f32 %v1401, %v1542
        %v1550 = vadd.f32 %v1402, %v1544
        %v1551 = vadd.f32 %v1403, %v1546
        %v1552 = vld [vmem:[%s1404 + $0x1] sm:$0xff]
        %v1553 = vld [vmem:[%s1404 + $0x9] sm:$0x1f]
        %v1554 = vpack.c.bf16 %v1553, %v1552
        %s1555 = scalar_lea.vmem %s1, 1152
        %v1556 = vld [vmem:[%s1555] sm:$0xff]
        %v1557 = vld [vmem:[%s1555 + $0x8] sm:$0xff]
        %v1558 = vld [vmem:[%s1555 + $0x10] sm:$0xff]
        %v1559 = vld [vmem:[%s1555 + $0x18] sm:$0xff]
        %v1560 = vld [vmem:[%s1555 + $0x20] sm:$0xff]
        %v1561 = vld [vmem:[%s1555 + $0x28] sm:$0xff]
        %v1562 = vld [vmem:[%s1555 + $0x30] sm:$0xff]
        %v1563 = vld [vmem:[%s1555 + $0x38] sm:$0xff]
        %v1564 = vld [vmem:[%s1555 + $0x40] sm:$0xff]
        %v1565 = vld [vmem:[%s1555 + $0x48] sm:$0xff]
        %v1566 = vld [vmem:[%s1555 + $0x50] sm:$0xff]
        %v1567 = vld [vmem:[%s1555 + $0x58] sm:$0xff]
        %v1568 = vld [vmem:[%s1555 + $0x60] sm:$0xff]
        %v1569 = vld [vmem:[%s1555 + $0x68] sm:$0xff]
        %v1570 = vld [vmem:[%s1555 + $0x70] sm:$0xff]
        %v1571 = vld [vmem:[%s1555 + $0x78] sm:$0xff]
        %v1588 = vunpack.c.l.b16 %v1556
        %v1589 = vunpack.c.h.b16 %v1556
        %v1590 = vunpack.c.l.b16 %v1557
        %v1591 = vunpack.c.h.b16 %v1557
        %v1592 = vunpack.c.l.b16 %v1558
        %v1593 = vunpack.c.h.b16 %v1558
        %v1594 = vunpack.c.l.b16 %v1559
        %v1595 = vunpack.c.h.b16 %v1559
        %v1596 = vunpack.c.l.b16 %v1560
        %v1597 = vunpack.c.h.b16 %v1560
        %v1598 = vunpack.c.l.b16 %v1561
        %v1599 = vunpack.c.h.b16 %v1561
        %v1600 = vunpack.c.l.b16 %v1562
        %v1601 = vunpack.c.h.b16 %v1562
        %v1602 = vunpack.c.l.b16 %v1563
        %v1603 = vunpack.c.h.b16 %v1563
        %v1604 = vunpack.c.l.b16 %v1564
        %v1605 = vunpack.c.h.b16 %v1564
        %v1606 = vunpack.c.l.b16 %v1565
        %v1607 = vunpack.c.h.b16 %v1565
        %v1608 = vunpack.c.l.b16 %v1566
        %v1609 = vunpack.c.h.b16 %v1566
        %v1610 = vunpack.c.l.b16 %v1567
        %v1611 = vunpack.c.h.b16 %v1567
        %v1612 = vunpack.c.l.b16 %v1568
        %v1613 = vunpack.c.h.b16 %v1568
        %v1614 = vunpack.c.l.b16 %v1569
        %v1615 = vunpack.c.h.b16 %v1569
        %v1616 = vunpack.c.l.b16 %v1570
        %v1617 = vunpack.c.h.b16 %v1570
        %v1618 = vunpack.c.l.b16 %v1571
        %v1619 = vunpack.c.h.b16 %v1571
        %v1620 = vpack.c.b16 %v1590, %v1588
        %v1621 = vpack.c.b16 %v1591, %v1589
        %v1622 = vpack.c.b16 %v1594, %v1592
        %v1623 = vpack.c.b16 %v1595, %v1593
        %v1624 = vpack.c.b16 %v1598, %v1596
        %v1625 = vpack.c.b16 %v1599, %v1597
        %v1626 = vpack.c.b16 %v1602, %v1600
        %v1627 = vpack.c.b16 %v1603, %v1601
        %v1628 = vpack.c.b16 %v1606, %v1604
        %v1629 = vpack.c.b16 %v1607, %v1605
        %v1630 = vpack.c.b16 %v1610, %v1608
        %v1631 = vpack.c.b16 %v1611, %v1609
        %v1632 = vpack.c.b16 %v1614, %v1612
        %v1633 = vpack.c.b16 %v1615, %v1613
        %v1634 = vpack.c.b16 %v1618, %v1616
        %v1635 = vpack.c.b16 %v1619, %v1617
        %1652 = vmatprep.subr.bf16.mxu0 %v1621
        %1653 = vmatpush1.bf16.msra.mxu0 %v1620
        %1654 = vmatprep.subr.bf16.mxu0 %v1623
        %1655 = vmatpush1.bf16.msra.mxu0 %v1622
        %1656 = vmatprep.subr.bf16.mxu0 %v1625
        %1657 = vmatpush1.bf16.msra.mxu0 %v1624
        %1658 = vmatprep.subr.bf16.mxu0 %v1627
        %1659 = vmatpush1.bf16.msra.mxu0 %v1626
        %1660 = vmatprep.subr.bf16.mxu0 %v1629
        %1661 = vmatpush1.bf16.msra.mxu0 %v1628
        %1662 = vmatprep.subr.bf16.mxu0 %v1631
        %1663 = vmatpush1.bf16.msra.mxu0 %v1630
        %1664 = vmatprep.subr.bf16.mxu0 %v1633
        %1665 = vmatpush1.bf16.msra.mxu0 %v1632
        %1666 = vmatprep.subr.bf16.mxu0 %v1635
        %1667 = vmatpush1.bf16.msra.mxu0 %v1634
        %1668 = vmatprep.subr.bf16.mxu0 0
        %1669 = vmatpush1.bf16.msra.mxu0 0
        %1670 = vmatprep.subr.bf16.mxu0 0
        %1671 = vmatpush1.bf16.msra.mxu0 0
        %1672 = vmatprep.subr.bf16.mxu0 0
        %1673 = vmatpush1.bf16.msra.mxu0 0
        %1674 = vmatprep.subr.bf16.mxu0 0
        %1675 = vmatpush1.bf16.msra.mxu0 0
        %1676 = vmatprep.subr.bf16.mxu0 0
        %1677 = vmatpush1.bf16.msra.mxu0 0
        %1678 = vmatprep.subr.bf16.mxu0 0
        %1679 = vmatpush1.bf16.msra.mxu0 0
        %1680 = vmatprep.subr.bf16.mxu0 0
        %1681 = vmatpush1.bf16.msra.mxu0 0
        %1682 = vmatprep.subr.bf16.mxu0 0
        %1683 = vmatpush1.bf16.msra.mxu0 0
        %1684 = vmatprep.mubr.bf16.mxu0 0
        %1685 = vmatmul.mubr.bf16.gmra.mrb[0].mxu0 %v1554
        %v1686 = vpop.f32.mrb[0].mxu0
        %v1687 = vadd.f32 0.0, %v1686
        %v1688 = vpop.f32.mrb[0].mxu0
        %v1689 = vadd.f32 0.0, %v1688
        %v1690 = vpop.f32.mrb[0].mxu0
        %v1691 = vadd.f32 0.0, %v1690
        %v1692 = vpop.f32.mrb[0].mxu0
        %v1693 = vadd.f32 0.0, %v1692
        %1694 = vdwg.mxu0
        %v1695 = vadd.f32 %v1548, %v1687
        %v1696 = vadd.f32 %v1549, %v1689
        %v1697 = vadd.f32 %v1550, %v1691
        %v1698 = vadd.f32 %v1551, %v1693
        %v1699 = vld [vmem:[%s1404 + $0x2] sm:$0xff]
        %v1700 = vld [vmem:[%s1404 + $0xa] sm:$0x1f]
        %v1701 = vpack.c.bf16 %v1700, %v1699
        %s1702 = scalar_lea.vmem %s1, 1280
        %v1703 = vld [vmem:[%s1702] sm:$0xff]
        %v1704 = vld [vmem:[%s1702 + $0x8] sm:$0xff]
        %v1705 = vld [vmem:[%s1702 + $0x10] sm:$0xff]
        %v1706 = vld [vmem:[%s1702 + $0x18] sm:$0xff]
        %v1707 = vld [vmem:[%s1702 + $0x20] sm:$0xff]
        %v1708 = vld [vmem:[%s1702 + $0x28] sm:$0xff]
        %v1709 = vld [vmem:[%s1702 + $0x30] sm:$0xff]
        %v1710 = vld [vmem:[%s1702 + $0x38] sm:$0xff]
        %v1711 = vld [vmem:[%s1702 + $0x40] sm:$0xff]
        %v1712 = vld [vmem:[%s1702 + $0x48] sm:$0xff]
        %v1713 = vld [vmem:[%s1702 + $0x50] sm:$0xff]
        %v1714 = vld [vmem:[%s1702 + $0x58] sm:$0xff]
        %v1715 = vld [vmem:[%s1702 + $0x60] sm:$0xff]
        %v1716 = vld [vmem:[%s1702 + $0x68] sm:$0xff]
        %v1717 = vld [vmem:[%s1702 + $0x70] sm:$0xff]
        %v1718 = vld [vmem:[%s1702 + $0x78] sm:$0xff]
        %v1735 = vunpack.c.l.b16 %v1703
        %v1736 = vunpack.c.h.b16 %v1703
        %v1737 = vunpack.c.l.b16 %v1704
        %v1738 = vunpack.c.h.b16 %v1704
        %v1739 = vunpack.c.l.b16 %v1705
        %v1740 = vunpack.c.h.b16 %v1705
        %v1741 = vunpack.c.l.b16 %v1706
        %v1742 = vunpack.c.h.b16 %v1706
        %v1743 = vunpack.c.l.b16 %v1707
        %v1744 = vunpack.c.h.b16 %v1707
        %v1745 = vunpack.c.l.b16 %v1708
        %v1746 = vunpack.c.h.b16 %v1708
        %v1747 = vunpack.c.l.b16 %v1709
        %v1748 = vunpack.c.h.b16 %v1709
        %v1749 = vunpack.c.l.b16 %v1710
        %v1750 = vunpack.c.h.b16 %v1710
        %v1751 = vunpack.c.l.b16 %v1711
        %v1752 = vunpack.c.h.b16 %v1711
        %v1753 = vunpack.c.l.b16 %v1712
        %v1754 = vunpack.c.h.b16 %v1712
        %v1755 = vunpack.c.l.b16 %v1713
        %v1756 = vunpack.c.h.b16 %v1713
        %v1757 = vunpack.c.l.b16 %v1714
        %v1758 = vunpack.c.h.b16 %v1714
        %v1759 = vunpack.c.l.b16 %v1715
        %v1760 = vunpack.c.h.b16 %v1715
        %v1761 = vunpack.c.l.b16 %v1716
        %v1762 = vunpack.c.h.b16 %v1716
        %v1763 = vunpack.c.l.b16 %v1717
        %v1764 = vunpack.c.h.b16 %v1717
        %v1765 = vunpack.c.l.b16 %v1718
        %v1766 = vunpack.c.h.b16 %v1718
        %v1767 = vpack.c.b16 %v1737, %v1735
        %v1768 = vpack.c.b16 %v1738, %v1736
        %v1769 = vpack.c.b16 %v1741, %v1739
        %v1770 = vpack.c.b16 %v1742, %v1740
        %v1771 = vpack.c.b16 %v1745, %v1743
        %v1772 = vpack.c.b16 %v1746, %v1744
        %v1773 = vpack.c.b16 %v1749, %v1747
        %v1774 = vpack.c.b16 %v1750, %v1748
        %v1775 = vpack.c.b16 %v1753, %v1751
        %v1776 = vpack.c.b16 %v1754, %v1752
        %v1777 = vpack.c.b16 %v1757, %v1755
        %v1778 = vpack.c.b16 %v1758, %v1756
        %v1779 = vpack.c.b16 %v1761, %v1759
        %v1780 = vpack.c.b16 %v1762, %v1760
        %v1781 = vpack.c.b16 %v1765, %v1763
        %v1782 = vpack.c.b16 %v1766, %v1764
        %1799 = vmatprep.subr.bf16.mxu0 %v1768
        %1800 = vmatpush1.bf16.msra.mxu0 %v1767
        %1801 = vmatprep.subr.bf16.mxu0 %v1770
        %1802 = vmatpush1.bf16.msra.mxu0 %v1769
        %1803 = vmatprep.subr.bf16.mxu0 %v1772
        %1804 = vmatpush1.bf16.msra.mxu0 %v1771
        %1805 = vmatprep.subr.bf16.mxu0 %v1774
        %1806 = vmatpush1.bf16.msra.mxu0 %v1773
        %1807 = vmatprep.subr.bf16.mxu0 %v1776
        %1808 = vmatpush1.bf16.msra.mxu0 %v1775
        %1809 = vmatprep.subr.bf16.mxu0 %v1778
        %1810 = vmatpush1.bf16.msra.mxu0 %v1777
        %1811 = vmatprep.subr.bf16.mxu0 %v1780
        %1812 = vmatpush1.bf16.msra.mxu0 %v1779
        %1813 = vmatprep.subr.bf16.mxu0 %v1782
        %1814 = vmatpush1.bf16.msra.mxu0 %v1781
        %1815 = vmatprep.subr.bf16.mxu0 0
        %1816 = vmatpush1.bf16.msra.mxu0 0
        %1817 = vmatprep.subr.bf16.mxu0 0
        %1818 = vmatpush1.bf16.msra.mxu0 0
        %1819 = vmatprep.subr.bf16.mxu0 0
        %1820 = vmatpush1.bf16.msra.mxu0 0
        %1821 = vmatprep.subr.bf16.mxu0 0
        %1822 = vmatpush1.bf16.msra.mxu0 0
        %1823 = vmatprep.subr.bf16.mxu0 0
        %1824 = vmatpush1.bf16.msra.mxu0 0
        %1825 = vmatprep.subr.bf16.mxu0 0
        %1826 = vmatpush1.bf16.msra.mxu0 0
        %1827 = vmatprep.subr.bf16.mxu0 0
        %1828 = vmatpush1.bf16.msra.mxu0 0
        %1829 = vmatprep.subr.bf16.mxu0 0
        %1830 = vmatpush1.bf16.msra.mxu0 0
        %1831 = vmatprep.mubr.bf16.mxu0 0
        %1832 = vmatmul.mubr.bf16.gmra.mrb[0].mxu0 %v1701
        %v1833 = vpop.f32.mrb[0].mxu0
        %v1834 = vadd.f32 0.0, %v1833
        %v1835 = vpop.f32.mrb[0].mxu0
        %v1836 = vadd.f32 0.0, %v1835
        %v1837 = vpop.f32.mrb[0].mxu0
        %v1838 = vadd.f32 0.0, %v1837
        %v1839 = vpop.f32.mrb[0].mxu0
        %v1840 = vadd.f32 0.0, %v1839
        %1841 = vdwg.mxu0
        %v1842 = vadd.f32 %v1695, %v1834
        %v1843 = vadd.f32 %v1696, %v1836
        %v1844 = vadd.f32 %v1697, %v1838
        %v1845 = vadd.f32 %v1698, %v1840
        %v1846 = vld [vmem:[%s1404 + $0x3] sm:$0xff]
        %v1847 = vld [vmem:[%s1404 + $0xb] sm:$0x1f]
        %v1848 = vpack.c.bf16 %v1847, %v1846
        %s1849 = scalar_lea.vmem %s1, 1408
        %v1850 = vld [vmem:[%s1849] sm:$0xff]
        %v1851 = vld [vmem:[%s1849 + $0x8] sm:$0xff]
        %v1852 = vld [vmem:[%s1849 + $0x10] sm:$0xff]
        %v1853 = vld [vmem:[%s1849 + $0x18] sm:$0xff]
        %v1854 = vld [vmem:[%s1849 + $0x20] sm:$0xff]
        %v1855 = vld [vmem:[%s1849 + $0x28] sm:$0xff]
        %v1856 = vld [vmem:[%s1849 + $0x30] sm:$0xff]
        %v1857 = vld [vmem:[%s1849 + $0x38] sm:$0xff]
        %v1858 = vld [vmem:[%s1849 + $0x40] sm:$0xff]
        %v1859 = vld [vmem:[%s1849 + $0x48] sm:$0xff]
        %v1860 = vld [vmem:[%s1849 + $0x50] sm:$0xff]
        %v1861 = vld [vmem:[%s1849 + $0x58] sm:$0xff]
        %v1862 = vld [vmem:[%s1849 + $0x60] sm:$0xff]
        %v1863 = vld [vmem:[%s1849 + $0x68] sm:$0xff]
        %v1864 = vld [vmem:[%s1849 + $0x70] sm:$0xff]
        %v1865 = vld [vmem:[%s1849 + $0x78] sm:$0xff]
        %v1882 = vunpack.c.l.b16 %v1850
        %v1883 = vunpack.c.h.b16 %v1850
        %v1884 = vunpack.c.l.b16 %v1851
        %v1885 = vunpack.c.h.b16 %v1851
        %v1886 = vunpack.c.l.b16 %v1852
        %v1887 = vunpack.c.h.b16 %v1852
        %v1888 = vunpack.c.l.b16 %v1853
        %v1889 = vunpack.c.h.b16 %v1853
        %v1890 = vunpack.c.l.b16 %v1854
        %v1891 = vunpack.c.h.b16 %v1854
        %v1892 = vunpack.c.l.b16 %v1855
        %v1893 = vunpack.c.h.b16 %v1855
        %v1894 = vunpack.c.l.b16 %v1856
        %v1895 = vunpack.c.h.b16 %v1856
        %v1896 = vunpack.c.l.b16 %v1857
        %v1897 = vunpack.c.h.b16 %v1857
        %v1898 = vunpack.c.l.b16 %v1858
        %v1899 = vunpack.c.h.b16 %v1858
        %v1900 = vunpack.c.l.b16 %v1859
        %v1901 = vunpack.c.h.b16 %v1859
        %v1902 = vunpack.c.l.b16 %v1860
        %v1903 = vunpack.c.h.b16 %v1860
        %v1904 = vunpack.c.l.b16 %v1861
        %v1905 = vunpack.c.h.b16 %v1861
        %v1906 = vunpack.c.l.b16 %v1862
        %v1907 = vunpack.c.h.b16 %v1862
        %v1908 = vunpack.c.l.b16 %v1863
        %v1909 = vunpack.c.h.b16 %v1863
        %v1910 = vunpack.c.l.b16 %v1864
        %v1911 = vunpack.c.h.b16 %v1864
        %v1912 = vunpack.c.l.b16 %v1865
        %v1913 = vunpack.c.h.b16 %v1865
        %v1914 = vpack.c.b16 %v1884, %v1882
        %v1915 = vpack.c.b16 %v1885, %v1883
        %v1916 = vpack.c.b16 %v1888, %v1886
        %v1917 = vpack.c.b16 %v1889, %v1887
        %v1918 = vpack.c.b16 %v1892, %v1890
        %v1919 = vpack.c.b16 %v1893, %v1891
        %v1920 = vpack.c.b16 %v1896, %v1894
        %v1921 = vpack.c.b16 %v1897, %v1895
        %v1922 = vpack.c.b16 %v1900, %v1898
        %v1923 = vpack.c.b16 %v1901, %v1899
        %v1924 = vpack.c.b16 %v1904, %v1902
        %v1925 = vpack.c.b16 %v1905, %v1903
        %v1926 = vpack.c.b16 %v1908, %v1906
        %v1927 = vpack.c.b16 %v1909, %v1907
        %v1928 = vpack.c.b16 %v1912, %v1910
        %v1929 = vpack.c.b16 %v1913, %v1911
        %1946 = vmatprep.subr.bf16.mxu0 %v1915
        %1947 = vmatpush1.bf16.msra.mxu0 %v1914
        %1948 = vmatprep.subr.bf16.mxu0 %v1917
        %1949 = vmatpush1.bf16.msra.mxu0 %v1916
        %1950 = vmatprep.subr.bf16.mxu0 %v1919
        %1951 = vmatpush1.bf16.msra.mxu0 %v1918
        %1952 = vmatprep.subr.bf16.mxu0 %v1921
        %1953 = vmatpush1.bf16.msra.mxu0 %v1920
        %1954 = vmatprep.subr.bf16.mxu0 %v1923
        %1955 = vmatpush1.bf16.msra.mxu0 %v1922
        %1956 = vmatprep.subr.bf16.mxu0 %v1925
        %1957 = vmatpush1.bf16.msra.mxu0 %v1924
        %1958 = vmatprep.subr.bf16.mxu0 %v1927
        %1959 = vmatpush1.bf16.msra.mxu0 %v1926
        %1960 = vmatprep.subr.bf16.mxu0 %v1929
        %1961 = vmatpush1.bf16.msra.mxu0 %v1928
        %1962 = vmatprep.subr.bf16.mxu0 0
        %1963 = vmatpush1.bf16.msra.mxu0 0
        %1964 = vmatprep.subr.bf16.mxu0 0
        %1965 = vmatpush1.bf16.msra.mxu0 0
        %1966 = vmatprep.subr.bf16.mxu0 0
        %1967 = vmatpush1.bf16.msra.mxu0 0
        %1968 = vmatprep.subr.bf16.mxu0 0
        %1969 = vmatpush1.bf16.msra.mxu0 0
        %1970 = vmatprep.subr.bf16.mxu0 0
        %1971 = vmatpush1.bf16.msra.mxu0 0
        %1972 = vmatprep.subr.bf16.mxu0 0
        %1973 = vmatpush1.bf16.msra.mxu0 0
        %1974 = vmatprep.subr.bf16.mxu0 0
        %1975 = vmatpush1.bf16.msra.mxu0 0
        %1976 = vmatprep.subr.bf16.mxu0 0
        %1977 = vmatpush1.bf16.msra.mxu0 0
        %1978 = vmatprep.mubr.bf16.mxu0 0
        %1979 = vmatmul.mubr.bf16.gmra.mrb[0].mxu0 %v1848
        %v1980 = vpop.f32.mrb[0].mxu0
        %v1981 = vadd.f32 0.0, %v1980
        %v1982 = vpop.f32.mrb[0].mxu0
        %v1983 = vadd.f32 0.0, %v1982
        %v1984 = vpop.f32.mrb[0].mxu0
        %v1985 = vadd.f32 0.0, %v1984
        %v1986 = vpop.f32.mrb[0].mxu0
        %v1987 = vadd.f32 0.0, %v1986
        %1988 = vdwg.mxu0
        %v1989 = vadd.f32 %v1842, %v1981
        %v1990 = vadd.f32 %v1843, %v1983
        %v1991 = vadd.f32 %v1844, %v1985
        %v1992 = vadd.f32 %v1845, %v1987
        %s1993 = scalar_lea.vmem %s229, 48
        %v1994 = vld [vmem:[%s1993] sm:$0xff]
        %v1995 = vld [vmem:[%s1993 + $0x8] sm:$0x1f]
        %v1996 = vpack.c.bf16 %v1995, %v1994
        %s1997 = scalar_lea.vmem %s1, 1536
        %v1998 = vld [vmem:[%s1997] sm:$0xff]
        %v1999 = vld [vmem:[%s1997 + $0x8] sm:$0xff]
        %v2000 = vld [vmem:[%s1997 + $0x10] sm:$0xff]
        %v2001 = vld [vmem:[%s1997 + $0x18] sm:$0xff]
        %v2002 = vld [vmem:[%s1997 + $0x20] sm:$0xff]
        %v2003 = vld [vmem:[%s1997 + $0x28] sm:$0xff]
        %v2004 = vld [vmem:[%s1997 + $0x30] sm:$0xff]
        %v2005 = vld [vmem:[%s1997 + $0x38] sm:$0xff]
        %v2006 = vld [vmem:[%s1997 + $0x40] sm:$0xff]
        %v2007 = vld [vmem:[%s1997 + $0x48] sm:$0xff]
        %v2008 = vld [vmem:[%s1997 + $0x50] sm:$0xff]
        %v2009 = vld [vmem:[%s1997 + $0x58] sm:$0xff]
        %v2010 = vld [vmem:[%s1997 + $0x60] sm:$0xff]
        %v2011 = vld [vmem:[%s1997 + $0x68] sm:$0xff]
        %v2012 = vld [vmem:[%s1997 + $0x70] sm:$0xff]
        %v2013 = vld [vmem:[%s1997 + $0x78] sm:$0xff]
        %v2030 = vunpack.c.l.b16 %v1998
        %v2031 = vunpack.c.h.b16 %v1998
        %v2032 = vunpack.c.l.b16 %v1999
        %v2033 = vunpack.c.h.b16 %v1999
        %v2034 = vunpack.c.l.b16 %v2000
        %v2035 = vunpack.c.h.b16 %v2000
        %v2036 = vunpack.c.l.b16 %v2001
        %v2037 = vunpack.c.h.b16 %v2001
        %v2038 = vunpack.c.l.b16 %v2002
        %v2039 = vunpack.c.h.b16 %v2002
        %v2040 = vunpack.c.l.b16 %v2003
        %v2041 = vunpack.c.h.b16 %v2003
        %v2042 = vunpack.c.l.b16 %v2004
        %v2043 = vunpack.c.h.b16 %v2004
        %v2044 = vunpack.c.l.b16 %v2005
        %v2045 = vunpack.c.h.b16 %v2005
        %v2046 = vunpack.c.l.b16 %v2006
        %v2047 = vunpack.c.h.b16 %v2006
        %v2048 = vunpack.c.l.b16 %v2007
        %v2049 = vunpack.c.h.b16 %v2007
        %v2050 = vunpack.c.l.b16 %v2008
        %v2051 = vunpack.c.h.b16 %v2008
        %v2052 = vunpack.c.l.b16 %v2009
        %v2053 = vunpack.c.h.b16 %v2009
        %v2054 = vunpack.c.l.b16 %v2010
        %v2055 = vunpack.c.h.b16 %v2010
        %v2056 = vunpack.c.l.b16 %v2011
        %v2057 = vunpack.c.h.b16 %v2011
        %v2058 = vunpack.c.l.b16 %v2012
        %v2059 = vunpack.c.h.b16 %v2012
        %v2060 = vunpack.c.l.b16 %v2013
        %v2061 = vunpack.c.h.b16 %v2013
        %v2062 = vpack.c.b16 %v2032, %v2030
        %v2063 = vpack.c.b16 %v2033, %v2031
        %v2064 = vpack.c.b16 %v2036, %v2034
        %v2065 = vpack.c.b16 %v2037, %v2035
        %v2066 = vpack.c.b16 %v2040, %v2038
        %v2067 = vpack.c.b16 %v2041, %v2039
        %v2068 = vpack.c.b16 %v2044, %v2042
        %v2069 = vpack.c.b16 %v2045, %v2043
        %v2070 = vpack.c.b16 %v2048, %v2046
        %v2071 = vpack.c.b16 %v2049, %v2047
        %v2072 = vpack.c.b16 %v2052, %v2050
        %v2073 = vpack.c.b16 %v2053, %v2051
        %v2074 = vpack.c.b16 %v2056, %v2054
        %v2075 = vpack.c.b16 %v2057, %v2055
        %v2076 = vpack.c.b16 %v2060, %v2058
        %v2077 = vpack.c.b16 %v2061, %v2059
        %2094 = vmatprep.subr.bf16.mxu0 %v2063
        %2095 = vmatpush1.bf16.msra.mxu0 %v2062
        %2096 = vmatprep.subr.bf16.mxu0 %v2065
        %2097 = vmatpush1.bf16.msra.mxu0 %v2064
        %2098 = vmatprep.subr.bf16.mxu0 %v2067
        %2099 = vmatpush1.bf16.msra.mxu0 %v2066
        %2100 = vmatprep.subr.bf16.mxu0 %v2069
        %2101 = vmatpush1.bf16.msra.mxu0 %v2068
        %2102 = vmatprep.subr.bf16.mxu0 %v2071
        %2103 = vmatpush1.bf16.msra.mxu0 %v2070
        %2104 = vmatprep.subr.bf16.mxu0 %v2073
        %2105 = vmatpush1.bf16.msra.mxu0 %v2072
        %2106 = vmatprep.subr.bf16.mxu0 %v2075
        %2107 = vmatpush1.bf16.msra.mxu0 %v2074
        %2108 = vmatprep.subr.bf16.mxu0 %v2077
        %2109 = vmatpush1.bf16.msra.mxu0 %v2076
        %2110 = vmatprep.subr.bf16.mxu0 0
        %2111 = vmatpush1.bf16.msra.mxu0 0
        %2112 = vmatprep.subr.bf16.mxu0 0
        %2113 = vmatpush1.bf16.msra.mxu0 0
        %2114 = vmatprep.subr.bf16.mxu0 0
        %2115 = vmatpush1.bf16.msra.mxu0 0
        %2116 = vmatprep.subr.bf16.mxu0 0
        %2117 = vmatpush1.bf16.msra.mxu0 0
        %2118 = vmatprep.subr.bf16.mxu0 0
        %2119 = vmatpush1.bf16.msra.mxu0 0
        %2120 = vmatprep.subr.bf16.mxu0 0
        %2121 = vmatpush1.bf16.msra.mxu0 0
        %2122 = vmatprep.subr.bf16.mxu0 0
        %2123 = vmatpush1.bf16.msra.mxu0 0
        %2124 = vmatprep.subr.bf16.mxu0 0
        %2125 = vmatpush1.bf16.msra.mxu0 0
        %2126 = vmatprep.mubr.bf16.mxu0 0
        %2127 = vmatmul.mubr.bf16.gmra.mrb[0].mxu0 %v1996
        %v2128 = vpop.f32.mrb[0].mxu0
        %v2129 = vadd.f32 0.0, %v2128
        %v2130 = vpop.f32.mrb[0].mxu0
        %v2131 = vadd.f32 0.0, %v2130
        %v2132 = vpop.f32.mrb[0].mxu0
        %v2133 = vadd.f32 0.0, %v2132
        %v2134 = vpop.f32.mrb[0].mxu0
        %v2135 = vadd.f32 0.0, %v2134
        %2136 = vdwg.mxu0
        %v2137 = vadd.f32 %v1989, %v2129
        %v2138 = vadd.f32 %v1990, %v2131
        %v2139 = vadd.f32 %v1991, %v2133
        %v2140 = vadd.f32 %v1992, %v2135
        %v2141 = vld [vmem:[%s1993 + $0x1] sm:$0xff]
        %v2142 = vld [vmem:[%s1993 + $0x9] sm:$0x1f]
        %v2143 = vpack.c.bf16 %v2142, %v2141
        %s2144 = scalar_lea.vmem %s1, 1664
        %v2145 = vld [vmem:[%s2144] sm:$0xff]
        %v2146 = vld [vmem:[%s2144 + $0x8] sm:$0xff]
        %v2147 = vld [vmem:[%s2144 + $0x10] sm:$0xff]
        %v2148 = vld [vmem:[%s2144 + $0x18] sm:$0xff]
        %v2149 = vld [vmem:[%s2144 + $0x20] sm:$0xff]
        %v2150 = vld [vmem:[%s2144 + $0x28] sm:$0xff]
        %v2151 = vld [vmem:[%s2144 + $0x30] sm:$0xff]
        %v2152 = vld [vmem:[%s2144 + $0x38] sm:$0xff]
        %v2153 = vld [vmem:[%s2144 + $0x40] sm:$0xff]
        %v2154 = vld [vmem:[%s2144 + $0x48] sm:$0xff]
        %v2155 = vld [vmem:[%s2144 + $0x50] sm:$0xff]
        %v2156 = vld [vmem:[%s2144 + $0x58] sm:$0xff]
        %v2157 = vld [vmem:[%s2144 + $0x60] sm:$0xff]
        %v2158 = vld [vmem:[%s2144 + $0x68] sm:$0xff]
        %v2159 = vld [vmem:[%s2144 + $0x70] sm:$0xff]
        %v2160 = vld [vmem:[%s2144 + $0x78] sm:$0xff]
        %v2177 = vunpack.c.l.b16 %v2145
        %v2178 = vunpack.c.h.b16 %v2145
        %v2179 = vunpack.c.l.b16 %v2146
        %v2180 = vunpack.c.h.b16 %v2146
        %v2181 = vunpack.c.l.b16 %v2147
        %v2182 = vunpack.c.h.b16 %v2147
        %v2183 = vunpack.c.l.b16 %v2148
        %v2184 = vunpack.c.h.b16 %v2148
        %v2185 = vunpack.c.l.b16 %v2149
        %v2186 = vunpack.c.h.b16 %v2149
        %v2187 = vunpack.c.l.b16 %v2150
        %v2188 = vunpack.c.h.b16 %v2150
        %v2189 = vunpack.c.l.b16 %v2151
        %v2190 = vunpack.c.h.b16 %v2151
        %v2191 = vunpack.c.l.b16 %v2152
        %v2192 = vunpack.c.h.b16 %v2152
        %v2193 = vunpack.c.l.b16 %v2153
        %v2194 = vunpack.c.h.b16 %v2153
        %v2195 = vunpack.c.l.b16 %v2154
        %v2196 = vunpack.c.h.b16 %v2154
        %v2197 = vunpack.c.l.b16 %v2155
        %v2198 = vunpack.c.h.b16 %v2155
        %v2199 = vunpack.c.l.b16 %v2156
        %v2200 = vunpack.c.h.b16 %v2156
        %v2201 = vunpack.c.l.b16 %v2157
        %v2202 = vunpack.c.h.b16 %v2157
        %v2203 = vunpack.c.l.b16 %v2158
        %v2204 = vunpack.c.h.b16 %v2158
        %v2205 = vunpack.c.l.b16 %v2159
        %v2206 = vunpack.c.h.b16 %v2159
        %v2207 = vunpack.c.l.b16 %v2160
        %v2208 = vunpack.c.h.b16 %v2160
        %v2209 = vpack.c.b16 %v2179, %v2177
        %v2210 = vpack.c.b16 %v2180, %v2178
        %v2211 = vpack.c.b16 %v2183, %v2181
        %v2212 = vpack.c.b16 %v2184, %v2182
        %v2213 = vpack.c.b16 %v2187, %v2185
        %v2214 = vpack.c.b16 %v2188, %v2186
        %v2215 = vpack.c.b16 %v2191, %v2189
        %v2216 = vpack.c.b16 %v2192, %v2190
        %v2217 = vpack.c.b16 %v2195, %v2193
        %v2218 = vpack.c.b16 %v2196, %v2194
        %v2219 = vpack.c.b16 %v2199, %v2197
        %v2220 = vpack.c.b16 %v2200, %v2198
        %v2221 = vpack.c.b16 %v2203, %v2201
        %v2222 = vpack.c.b16 %v2204, %v2202
        %v2223 = vpack.c.b16 %v2207, %v2205
        %v2224 = vpack.c.b16 %v2208, %v2206
        %2241 = vmatprep.subr.bf16.mxu0 %v2210
        %2242 = vmatpush1.bf16.msra.mxu0 %v2209
        %2243 = vmatprep.subr.bf16.mxu0 %v2212
        %2244 = vmatpush1.bf16.msra.mxu0 %v2211
        %2245 = vmatprep.subr.bf16.mxu0 %v2214
        %2246 = vmatpush1.bf16.msra.mxu0 %v2213
        %2247 = vmatprep.subr.bf16.mxu0 %v2216
        %2248 = vmatpush1.bf16.msra.mxu0 %v2215
        %2249 = vmatprep.subr.bf16.mxu0 %v2218
        %2250 = vmatpush1.bf16.msra.mxu0 %v2217
        %2251 = vmatprep.subr.bf16.mxu0 %v2220
        %2252 = vmatpush1.bf16.msra.mxu0 %v2219
        %2253 = vmatprep.subr.bf16.mxu0 %v2222
        %2254 = vmatpush1.bf16.msra.mxu0 %v2221
        %2255 = vmatprep.subr.bf16.mxu0 %v2224
        %2256 = vmatpush1.bf16.msra.mxu0 %v2223
        %2257 = vmatprep.subr.bf16.mxu0 0
        %2258 = vmatpush1.bf16.msra.mxu0 0
        %2259 = vmatprep.subr.bf16.mxu0 0
        %2260 = vmatpush1.bf16.msra.mxu0 0
        %2261 = vmatprep.subr.bf16.mxu0 0
        %2262 = vmatpush1.bf16.msra.mxu0 0
        %2263 = vmatprep.subr.bf16.mxu0 0
        %2264 = vmatpush1.bf16.msra.mxu0 0
        %2265 = vmatprep.subr.bf16.mxu0 0
        %2266 = vmatpush1.bf16.msra.mxu0 0
        %2267 = vmatprep.subr.bf16.mxu0 0
        %2268 = vmatpush1.bf16.msra.mxu0 0
        %2269 = vmatprep.subr.bf16.mxu0 0
        %2270 = vmatpush1.bf16.msra.mxu0 0
        %2271 = vmatprep.subr.bf16.mxu0 0
        %2272 = vmatpush1.bf16.msra.mxu0 0
        %2273 = vmatprep.mubr.bf16.mxu0 0
        %2274 = vmatmul.mubr.bf16.gmra.mrb[0].mxu0 %v2143
        %v2275 = vpop.f32.mrb[0].mxu0
        %v2276 = vadd.f32 0.0, %v2275
        %v2277 = vpop.f32.mrb[0].mxu0
        %v2278 = vadd.f32 0.0, %v2277
        %v2279 = vpop.f32.mrb[0].mxu0
        %v2280 = vadd.f32 0.0, %v2279
        %v2281 = vpop.f32.mrb[0].mxu0
        %v2282 = vadd.f32 0.0, %v2281
        %2283 = vdwg.mxu0
        %v2284 = vadd.f32 %v2137, %v2276
        %v2285 = vadd.f32 %v2138, %v2278
        %v2286 = vadd.f32 %v2139, %v2280
        %v2287 = vadd.f32 %v2140, %v2282
        %v2288 = vld [vmem:[%s1993 + $0x2] sm:$0xff]
        %v2289 = vld [vmem:[%s1993 + $0xa] sm:$0x1f]
        %v2290 = vpack.c.bf16 %v2289, %v2288
        %s2291 = scalar_lea.vmem %s1, 1792
        %v2292 = vld [vmem:[%s2291] sm:$0xff]
        %v2293 = vld [vmem:[%s2291 + $0x8] sm:$0xff]
        %v2294 = vld [vmem:[%s2291 + $0x10] sm:$0xff]
        %v2295 = vld [vmem:[%s2291 + $0x18] sm:$0xff]
        %v2296 = vld [vmem:[%s2291 + $0x20] sm:$0xff]
        %v2297 = vld [vmem:[%s2291 + $0x28] sm:$0xff]
        %v2298 = vld [vmem:[%s2291 + $0x30] sm:$0xff]
        %v2299 = vld [vmem:[%s2291 + $0x38] sm:$0xff]
        %v2300 = vld [vmem:[%s2291 + $0x40] sm:$0xff]
        %v2301 = vld [vmem:[%s2291 + $0x48] sm:$0xff]
        %v2302 = vld [vmem:[%s2291 + $0x50] sm:$0xff]
        %v2303 = vld [vmem:[%s2291 + $0x58] sm:$0xff]
        %v2304 = vld [vmem:[%s2291 + $0x60] sm:$0xff]
        %v2305 = vld [vmem:[%s2291 + $0x68] sm:$0xff]
        %v2306 = vld [vmem:[%s2291 + $0x70] sm:$0xff]
        %v2307 = vld [vmem:[%s2291 + $0x78] sm:$0xff]
        %v2324 = vunpack.c.l.b16 %v2292
        %v2325 = vunpack.c.h.b16 %v2292
        %v2326 = vunpack.c.l.b16 %v2293
        %v2327 = vunpack.c.h.b16 %v2293
        %v2328 = vunpack.c.l.b16 %v2294
        %v2329 = vunpack.c.h.b16 %v2294
        %v2330 = vunpack.c.l.b16 %v2295
        %v2331 = vunpack.c.h.b16 %v2295
        %v2332 = vunpack.c.l.b16 %v2296
        %v2333 = vunpack.c.h.b16 %v2296
        %v2334 = vunpack.c.l.b16 %v2297
        %v2335 = vunpack.c.h.b16 %v2297
        %v2336 = vunpack.c.l.b16 %v2298
        %v2337 = vunpack.c.h.b16 %v2298
        %v2338 = vunpack.c.l.b16 %v2299
        %v2339 = vunpack.c.h.b16 %v2299
        %v2340 = vunpack.c.l.b16 %v2300
        %v2341 = vunpack.c.h.b16 %v2300
        %v2342 = vunpack.c.l.b16 %v2301
        %v2343 = vunpack.c.h.b16 %v2301
        %v2344 = vunpack.c.l.b16 %v2302
        %v2345 = vunpack.c.h.b16 %v2302
        %v2346 = vunpack.c.l.b16 %v2303
        %v2347 = vunpack.c.h.b16 %v2303
        %v2348 = vunpack.c.l.b16 %v2304
        %v2349 = vunpack.c.h.b16 %v2304
        %v2350 = vunpack.c.l.b16 %v2305
        %v2351 = vunpack.c.h.b16 %v2305
        %v2352 = vunpack.c.l.b16 %v2306
        %v2353 = vunpack.c.h.b16 %v2306
        %v2354 = vunpack.c.l.b16 %v2307
        %v2355 = vunpack.c.h.b16 %v2307
        %v2356 = vpack.c.b16 %v2326, %v2324
        %v2357 = vpack.c.b16 %v2327, %v2325
        %v2358 = vpack.c.b16 %v2330, %v2328
        %v2359 = vpack.c.b16 %v2331, %v2329
        %v2360 = vpack.c.b16 %v2334, %v2332
        %v2361 = vpack.c.b16 %v2335, %v2333
        %v2362 = vpack.c.b16 %v2338, %v2336
        %v2363 = vpack.c.b16 %v2339, %v2337
        %v2364 = vpack.c.b16 %v2342, %v2340
        %v2365 = vpack.c.b16 %v2343, %v2341
        %v2366 = vpack.c.b16 %v2346, %v2344
        %v2367 = vpack.c.b16 %v2347, %v2345
        %v2368 = vpack.c.b16 %v2350, %v2348
        %v2369 = vpack.c.b16 %v2351, %v2349
        %v2370 = vpack.c.b16 %v2354, %v2352
        %v2371 = vpack.c.b16 %v2355, %v2353
        %2388 = vmatprep.subr.bf16.mxu0 %v2357
        %2389 = vmatpush1.bf16.msra.mxu0 %v2356
        %2390 = vmatprep.subr.bf16.mxu0 %v2359
        %2391 = vmatpush1.bf16.msra.mxu0 %v2358
        %2392 = vmatprep.subr.bf16.mxu0 %v2361
        %2393 = vmatpush1.bf16.msra.mxu0 %v2360
        %2394 = vmatprep.subr.bf16.mxu0 %v2363
        %2395 = vmatpush1.bf16.msra.mxu0 %v2362
        %2396 = vmatprep.subr.bf16.mxu0 %v2365
        %2397 = vmatpush1.bf16.msra.mxu0 %v2364
        %2398 = vmatprep.subr.bf16.mxu0 %v2367
        %2399 = vmatpush1.bf16.msra.mxu0 %v2366
        %2400 = vmatprep.subr.bf16.mxu0 %v2369
        %2401 = vmatpush1.bf16.msra.mxu0 %v2368
        %2402 = vmatprep.subr.bf16.mxu0 %v2371
        %2403 = vmatpush1.bf16.msra.mxu0 %v2370
        %2404 = vmatprep.subr.bf16.mxu0 0
        %2405 = vmatpush1.bf16.msra.mxu0 0
        %2406 = vmatprep.subr.bf16.mxu0 0
        %2407 = vmatpush1.bf16.msra.mxu0 0
        %2408 = vmatprep.subr.bf16.mxu0 0
        %2409 = vmatpush1.bf16.msra.mxu0 0
        %2410 = vmatprep.subr.bf16.mxu0 0
        %2411 = vmatpush1.bf16.msra.mxu0 0
        %2412 = vmatprep.subr.bf16.mxu0 0
        %2413 = vmatpush1.bf16.msra.mxu0 0
        %2414 = vmatprep.subr.bf16.mxu0 0
        %2415 = vmatpush1.bf16.msra.mxu0 0
        %2416 = vmatprep.subr.bf16.mxu0 0
        %2417 = vmatpush1.bf16.msra.mxu0 0
        %2418 = vmatprep.subr.bf16.mxu0 0
        %2419 = vmatpush1.bf16.msra.mxu0 0
        %2420 = vmatprep.mubr.bf16.mxu0 0
        %2421 = vmatmul.mubr.bf16.gmra.mrb[0].mxu0 %v2290
        %v2422 = vpop.f32.mrb[0].mxu0
        %v2423 = vadd.f32 0.0, %v2422
        %v2424 = vpop.f32.mrb[0].mxu0
        %v2425 = vadd.f32 0.0, %v2424
        %v2426 = vpop.f32.mrb[0].mxu0
        %v2427 = vadd.f32 0.0, %v2426
        %v2428 = vpop.f32.mrb[0].mxu0
        %v2429 = vadd.f32 0.0, %v2428
        %2430 = vdwg.mxu0
        %v2431 = vadd.f32 %v2284, %v2423
        %v2432 = vadd.f32 %v2285, %v2425
        %v2433 = vadd.f32 %v2286, %v2427
        %v2434 = vadd.f32 %v2287, %v2429
        %v2435 = vld [vmem:[%s1993 + $0x3] sm:$0xff]
        %v2436 = vld [vmem:[%s1993 + $0xb] sm:$0x1f]
        %v2437 = vpack.c.bf16 %v2436, %v2435
        %s2438 = scalar_lea.vmem %s1, 1920
        %v2439 = vld [vmem:[%s2438] sm:$0xff]
        %v2440 = vld [vmem:[%s2438 + $0x8] sm:$0xff]
        %v2441 = vld [vmem:[%s2438 + $0x10] sm:$0xff]
        %v2442 = vld [vmem:[%s2438 + $0x18] sm:$0xff]
        %v2443 = vld [vmem:[%s2438 + $0x20] sm:$0xff]
        %v2444 = vld [vmem:[%s2438 + $0x28] sm:$0xff]
        %v2445 = vld [vmem:[%s2438 + $0x30] sm:$0xff]
        %v2446 = vld [vmem:[%s2438 + $0x38] sm:$0xff]
        %v2447 = vld [vmem:[%s2438 + $0x40] sm:$0xff]
        %v2448 = vld [vmem:[%s2438 + $0x48] sm:$0xff]
        %v2449 = vld [vmem:[%s2438 + $0x50] sm:$0xff]
        %v2450 = vld [vmem:[%s2438 + $0x58] sm:$0xff]
        %v2451 = vld [vmem:[%s2438 + $0x60] sm:$0xff]
        %v2452 = vld [vmem:[%s2438 + $0x68] sm:$0xff]
        %v2453 = vld [vmem:[%s2438 + $0x70] sm:$0xff]
        %v2454 = vld [vmem:[%s2438 + $0x78] sm:$0xff]
        %v2471 = vunpack.c.l.b16 %v2439
        %v2472 = vunpack.c.h.b16 %v2439
        %v2473 = vunpack.c.l.b16 %v2440
        %v2474 = vunpack.c.h.b16 %v2440
        %v2475 = vunpack.c.l.b16 %v2441
        %v2476 = vunpack.c.h.b16 %v2441
        %v2477 = vunpack.c.l.b16 %v2442
        %v2478 = vunpack.c.h.b16 %v2442
        %v2479 = vunpack.c.l.b16 %v2443
        %v2480 = vunpack.c.h.b16 %v2443
        %v2481 = vunpack.c.l.b16 %v2444
        %v2482 = vunpack.c.h.b16 %v2444
        %v2483 = vunpack.c.l.b16 %v2445
        %v2484 = vunpack.c.h.b16 %v2445
        %v2485 = vunpack.c.l.b16 %v2446
        %v2486 = vunpack.c.h.b16 %v2446
        %v2487 = vunpack.c.l.b16 %v2447
        %v2488 = vunpack.c.h.b16 %v2447
        %v2489 = vunpack.c.l.b16 %v2448
        %v2490 = vunpack.c.h.b16 %v2448
        %v2491 = vunpack.c.l.b16 %v2449
        %v2492 = vunpack.c.h.b16 %v2449
        %v2493 = vunpack.c.l.b16 %v2450
        %v2494 = vunpack.c.h.b16 %v2450
        %v2495 = vunpack.c.l.b16 %v2451
        %v2496 = vunpack.c.h.b16 %v2451
        %v2497 = vunpack.c.l.b16 %v2452
        %v2498 = vunpack.c.h.b16 %v2452
        %v2499 = vunpack.c.l.b16 %v2453
        %v2500 = vunpack.c.h.b16 %v2453
        %v2501 = vunpack.c.l.b16 %v2454
        %v2502 = vunpack.c.h.b16 %v2454
        %v2503 = vpack.c.b16 %v2473, %v2471
        %v2504 = vpack.c.b16 %v2474, %v2472
        %v2505 = vpack.c.b16 %v2477, %v2475
        %v2506 = vpack.c.b16 %v2478, %v2476
        %v2507 = vpack.c.b16 %v2481, %v2479
        %v2508 = vpack.c.b16 %v2482, %v2480
        %v2509 = vpack.c.b16 %v2485, %v2483
        %v2510 = vpack.c.b16 %v2486, %v2484
        %v2511 = vpack.c.b16 %v2489, %v2487
        %v2512 = vpack.c.b16 %v2490, %v2488
        %v2513 = vpack.c.b16 %v2493, %v2491
        %v2514 = vpack.c.b16 %v2494, %v2492
        %v2515 = vpack.c.b16 %v2497, %v2495
        %v2516 = vpack.c.b16 %v2498, %v2496
        %v2517 = vpack.c.b16 %v2501, %v2499
        %v2518 = vpack.c.b16 %v2502, %v2500
        %2535 = vmatprep.subr.bf16.mxu0 %v2504
        %2536 = vmatpush1.bf16.msra.mxu0 %v2503
        %2537 = vmatprep.subr.bf16.mxu0 %v2506
        %2538 = vmatpush1.bf16.msra.mxu0 %v2505
        %2539 = vmatprep.subr.bf16.mxu0 %v2508
        %2540 = vmatpush1.bf16.msra.mxu0 %v2507
        %2541 = vmatprep.subr.bf16.mxu0 %v2510
        %2542 = vmatpush1.bf16.msra.mxu0 %v2509
        %2543 = vmatprep.subr.bf16.mxu0 %v2512
        %2544 = vmatpush1.bf16.msra.mxu0 %v2511
        %2545 = vmatprep.subr.bf16.mxu0 %v2514
        %2546 = vmatpush1.bf16.msra.mxu0 %v2513
        %2547 = vmatprep.subr.bf16.mxu0 %v2516
        %2548 = vmatpush1.bf16.msra.mxu0 %v2515
        %2549 = vmatprep.subr.bf16.mxu0 %v2518
        %2550 = vmatpush1.bf16.msra.mxu0 %v2517
        %2551 = vmatprep.subr.bf16.mxu0 0
        %2552 = vmatpush1.bf16.msra.mxu0 0
        %2553 = vmatprep.subr.bf16.mxu0 0
        %2554 = vmatpush1.bf16.msra.mxu0 0
        %2555 = vmatprep.subr.bf16.mxu0 0
        %2556 = vmatpush1.bf16.msra.mxu0 0
        %2557 = vmatprep.subr.bf16.mxu0 0
        %2558 = vmatpush1.bf16.msra.mxu0 0
        %2559 = vmatprep.subr.bf16.mxu0 0
        %2560 = vmatpush1.bf16.msra.mxu0 0
        %2561 = vmatprep.subr.bf16.mxu0 0
        %2562 = vmatpush1.bf16.msra.mxu0 0
        %2563 = vmatprep.subr.bf16.mxu0 0
        %2564 = vmatpush1.bf16.msra.mxu0 0
        %2565 = vmatprep.subr.bf16.mxu0 0
        %2566 = vmatpush1.bf16.msra.mxu0 0
        %2567 = vmatprep.mubr.bf16.mxu0 0
        %2568 = vmatmul.mubr.bf16.gmra.mrb[0].mxu0 %v2437
        %v2569 = vpop.f32.mrb[0].mxu0
        %v2570 = vadd.f32 0.0, %v2569
        %v2571 = vpop.f32.mrb[0].mxu0
        %v2572 = vadd.f32 0.0, %v2571
        %v2573 = vpop.f32.mrb[0].mxu0
        %v2574 = vadd.f32 0.0, %v2573
        %v2575 = vpop.f32.mrb[0].mxu0
        %v2576 = vadd.f32 0.0, %v2575
        %2577 = vdwg.mxu0
        %v2578 = vadd.f32 %v2431, %v2570
        %v2579 = vadd.f32 %v2432, %v2572
        %v2580 = vadd.f32 %v2433, %v2574
        %v2581 = vadd.f32 %v2434, %v2576
        %2582 = vst [vmem:[%s234] sm:$0xff] %v2578
        %2583 = vst [vmem:[%s234 + $0x8] sm:$0xff] %v2579
        %2584 = vst [vmem:[%s234 + $0x10] sm:$0x1f] %v2580
        %2585 = vst [vmem:[%s234 + $0x18] sm:$0x1f] %v2581
        %vm2586 = vcmask 1044480
        %v2587 = vsel %vm2586, %v2580, 0.0
        %v2588 = vadd.f32 %v2578, %v2587
        %v2589 = vrot.slane %v2588, 4
        %v2590 = vadd.f32 %v2588, %v2589
        %v2591 = vrot.slane %v2590, 2
        %v2592 = vadd.f32 %v2590, %v2591
        %v2593 = vrot.slane %v2592, 1
        %v2594 = vadd.f32 %v2592, %v2593
        %v2595 = vsel %vm2586, %v2581, 0.0
        %v2596 = vadd.f32 %v2579, %v2595
        %v2597 = vrot.slane %v2596, 4
        %v2598 = vadd.f32 %v2596, %v2597
        %v2599 = vrot.slane %v2598, 2
        %v2600 = vadd.f32 %v2598, %v2599
        %v2601 = vrot.slane %v2600, 1
        %v2602 = vadd.f32 %v2600, %v2601
        %v2603 = vrcp.pop 13.0
        %v2604 = vmul.f32 %v2594, %v2603
        %v2605 = vmul.f32 %v2602, %v2603
        %v2606 = vld [vmem:[%s2] sm:$0xff]
        %v2607 = vld [vmem:[%s2 + $0x8] sm:$0xff]
        %v2608 = vld [vmem:[%s2 + $0x10] sm:$0xff]
        %v2609 = vld [vmem:[%s2 + $0x18] sm:$0xff]
        %v2610 = vld [vmem:[%s2 + $0x20] sm:$0xff]
        %v2611 = vld [vmem:[%s2 + $0x28] sm:$0xff]
        %v2612 = vld [vmem:[%s2 + $0x30] sm:$0xff]
        %v2613 = vld [vmem:[%s2 + $0x38] sm:$0xff]
        %v2614 = vld [vmem:[%s2 + $0x40] sm:$0xff]
        %v2615 = vld [vmem:[%s2 + $0x48] sm:$0xff]
        %v2616 = vld [vmem:[%s2 + $0x50] sm:$0xff]
        %v2617 = vld [vmem:[%s2 + $0x58] sm:$0xff]
        %v2618 = vld [vmem:[%s2 + $0x60] sm:$0xff]
        %v2619 = vld [vmem:[%s2 + $0x68] sm:$0xff]
        %v2620 = vld [vmem:[%s2 + $0x70] sm:$0xff]
        %v2621 = vld [vmem:[%s2 + $0x78] sm:$0xff]
        %v2622 = vld [vmem:[%s2 + $0x80] sm:$0xff]
        %v2623 = vld [vmem:[%s2 + $0x88] sm:$0xff]
        %v2624 = vld [vmem:[%s2 + $0x90] sm:$0xff]
        %v2625 = vld [vmem:[%s2 + $0x98] sm:$0xff]
        %v2626 = vld [vmem:[%s2 + $0xa0] sm:$0xff]
        %v2627 = vld [vmem:[%s2 + $0xa8] sm:$0xff]
        %v2628 = vld [vmem:[%s2 + $0xb0] sm:$0xff]
        %v2629 = vld [vmem:[%s2 + $0xb8] sm:$0xff]
        %v2630 = vld [vmem:[%s2 + $0xc0] sm:$0xff]
        %v2631 = vld [vmem:[%s2 + $0xc8] sm:$0xff]
        %v2632 = vld [vmem:[%s2 + $0xd0] sm:$0xff]
        %v2633 = vld [vmem:[%s2 + $0xd8] sm:$0xff]
        %v2634 = vld [vmem:[%s2 + $0xe0] sm:$0xff]
        %v2635 = vld [vmem:[%s2 + $0xe8] sm:$0xff]
        %v2636 = vld [vmem:[%s2 + $0xf0] sm:$0xff]
        %v2637 = vld [vmem:[%s2 + $0xf8] sm:$0xff]
        %v2638 = vld [vmem:[%s3] sm:$0x1]
        %2639 = vmatprep.subr.mxu0 0.0
        %2640 = vmatpush1.msra.mxu0 %v2606
        %2641 = vmatprep.subr.mxu0 0.0
        %2642 = vmatpush1.msra.mxu0 %v2607
        %2643 = vmatprep.subr.mxu0 0.0
        %2644 = vmatpush1.msra.mxu0 %v2608
        %2645 = vmatprep.subr.mxu0 0.0
        %2646 = vmatpush1.msra.mxu0 %v2609
        %2647 = vmatprep.subr.mxu0 0.0
        %2648 = vmatpush1.msra.mxu0 %v2610
        %2649 = vmatprep.subr.mxu0 0.0
        %2650 = vmatpush1.msra.mxu0 %v2611
        %2651 = vmatprep.subr.mxu0 0.0
        %2652 = vmatpush1.msra.mxu0 %v2612
        %2653 = vmatprep.subr.mxu0 0.0
        %2654 = vmatpush1.msra.mxu0 %v2613
        %2655 = vmatprep.subr.mxu0 0.0
        %2656 = vmatpush1.msra.mxu0 %v2614
        %2657 = vmatprep.subr.mxu0 0.0
        %2658 = vmatpush1.msra.mxu0 %v2615
        %2659 = vmatprep.subr.mxu0 0.0
        %2660 = vmatpush1.msra.mxu0 %v2616
        %2661 = vmatprep.subr.mxu0 0.0
        %2662 = vmatpush1.msra.mxu0 %v2617
        %2663 = vmatprep.subr.mxu0 0.0
        %2664 = vmatpush1.msra.mxu0 %v2618
        %2665 = vmatprep.subr.mxu0 0.0
        %2666 = vmatpush1.msra.mxu0 %v2619
        %2667 = vmatprep.subr.mxu0 0.0
        %2668 = vmatpush1.msra.mxu0 %v2620
        %2669 = vmatprep.subr.mxu0 0.0
        %2670 = vmatpush1.msra.mxu0 %v2621
        %2671 = vmatprep.subr.mxu0 0.0
        %2672 = vmatpush1.msra.mxu0 %v2622
        %2673 = vmatprep.subr.mxu0 0.0
        %2674 = vmatpush1.msra.mxu0 %v2623
        %2675 = vmatprep.subr.mxu0 0.0
        %2676 = vmatpush1.msra.mxu0 %v2624
        %2677 = vmatprep.subr.mxu0 0.0
        %2678 = vmatpush1.msra.mxu0 %v2625
        %2679 = vmatprep.subr.mxu0 0.0
        %2680 = vmatpush1.msra.mxu0 %v2626
        %2681 = vmatprep.subr.mxu0 0.0
        %2682 = vmatpush1.msra.mxu0 %v2627
        %2683 = vmatprep.subr.mxu0 0.0
        %2684 = vmatpush1.msra.mxu0 %v2628
        %2685 = vmatprep.subr.mxu0 0.0
        %2686 = vmatpush1.msra.mxu0 %v2629
        %2687 = vmatprep.subr.mxu0 0.0
        %2688 = vmatpush1.msra.mxu0 %v2630
        %2689 = vmatprep.subr.mxu0 0.0
        %2690 = vmatpush1.msra.mxu0 %v2631
        %2691 = vmatprep.subr.mxu0 0.0
        %2692 = vmatpush1.msra.mxu0 %v2632
        %2693 = vmatprep.subr.mxu0 0.0
        %2694 = vmatpush1.msra.mxu0 %v2633
        %2695 = vmatprep.subr.mxu0 0.0
        %2696 = vmatpush1.msra.mxu0 %v2634
        %2697 = vmatprep.subr.mxu0 0.0
        %2698 = vmatpush1.msra.mxu0 %v2635
        %2699 = vmatprep.subr.mxu0 0.0
        %2700 = vmatpush1.msra.mxu0 %v2636
        %2701 = vmatprep.subr.mxu0 0.0
        %2702 = vmatpush1.msra.mxu0 %v2637
        %2703 = vmatprep.mubr.f32.mxu0 %v2605
        %2704 = vmatmul.mubr.f32.gmra.mrb[0].mxu0 %v2604
        %v2705 = vpop.f32.mrb[0].mxu0
        %v2706 = vadd.f32 %v2638, %v2705
        %v2707 = vpop.f32.mrb[0].mxu0
        %2708 = vdwg.mxu0
        %vm2709 = vcmask 40960
        %2710 = vst.msk [vmem:[%s224] sm:$0x1] %vm2709, %v2706
        %p2711 = scmp.lt.s32.totalorder %s20, 1
        %s2712 = scalar_select %p2711, %s20, 1
        %s2713 = smul.addr %s2712, 4
        %s2714 = smul.addr %s2713, 8
        %s2715 = scalar_lea.vmem %s4, %s2714
        %s2716 = sand.u32 %s143, 1
        %s2717 = scalar_lea.sflag [#allocation3], %s2716
        %s2718 = sand.u32 %s143, 1
        %s2719 = scalar_lea.vmem [#allocation2], %s2718
        // Predicated region
        $region37: #{conv_encoder_forward.7} parent=35 // pred_check
          %p2720 = pneg %p127
        $region38: #{conv_encoder_forward.7} parent=35 // pred_check_branch
          %2722 = sbr.rel (%p2720) target = $region40
        $region39: #{conv_encoder_forward.7} parent=35 // pred_region
          _
        $region40: #{conv_encoder_forward.7} parent=35 // pred_fallthru
          _
        // Predicated region
        $region41: #{conv_encoder_forward.7} parent=35 // pred_check
          %p2723 = pneg %p153
        $region42: #{conv_encoder_forward.7} parent=35 // pred_check_branch
          %2725 = sbr.rel (%p2723) target = $region44
        $region43: #{conv_encoder_forward.7} parent=35 // pred_region
          %s2727 = ssub.s32 16, 16
          %2728 = vsyncadd %s2717, %s2727
          %s2729 = smul.addr %s20, 16
          %s2730 = scalar_lea.hbm %s5, %s2729
          %s2732 = sshll.u32 %s2719, 4
          %s2733 = int_to_ptr.vmem [resolvable:$true] %s2732
          %2735 = dma.vmem_to_hbm [thread:$0]  %s2733, 16, %s2730, %s2717
        $region44: #{conv_encoder_forward.7} parent=35 // pred_fallthru
          _
      $region36: #{conv_encoder_forward.7} parent=5 // pred_fallthru
        _
      %p2736 = scmp.le.s32.totalorder 2, %s15
      // Predicated region
      $region45: #{conv_encoder_forward.7} parent=5 // pred_check
        %p2737 = pneg %p2736
      $region46: #{conv_encoder_forward.7} parent=5 // pred_check_branch
        %2739 = sbr.rel (%p2737) target = $region48
      $region47: #{conv_encoder_forward.7} parent=5 // pred_region
        %s2740 = ssub.s32 %s15, 2
        // Predicated region
        $region49: #{conv_encoder_forward.7} parent=47 // pred_check
          %p2741 = pneg %p133
        $region50: #{conv_encoder_forward.7} parent=47 // pred_check_branch
          %2743 = sbr.rel (%p2741) target = $region52
        $region51: #{conv_encoder_forward.7} parent=47 // pred_region
          %p2744 = scmp.lt.s32.totalorder %s21, 1
          %s2745 = scalar_select %p2744, %s21, 1
          %s2746 = smul.addr %s2745, 4
          %s2747 = smul.addr %s2746, 8
          %s2748 = scalar_lea.vmem %s4, %s2747
        $region52: #{conv_encoder_forward.7} parent=47 // pred_fallthru
          _
        // Predicated region
        $region53: #{conv_encoder_forward.7} parent=47 // pred_check
          %p2749 = pneg %p159
        $region54: #{conv_encoder_forward.7} parent=47 // pred_check_branch
          %2751 = sbr.rel (%p2749) target = $region56
        $region55: #{conv_encoder_forward.7} parent=47 // pred_region
          %s2752 = sand.u32 %s144, 1
          %s2753 = scalar_lea.sflag [#allocation3], %s2752
          %s2754 = sand.u32 %s144, 1
          %s2755 = scalar_lea.vmem [#allocation2], %s2754
          %2756 = dma.done %s2753, 16
        $region56: #{conv_encoder_forward.7} parent=47 // pred_fallthru
          _
      $region48: #{conv_encoder_forward.7} parent=5 // pred_fallthru
        _
    $region6: #{conv_encoder_forward.7} parent=1 // loop_footer
      %s19 = sadd.s32 1, %s15
    $region7: #{conv_encoder_forward.7} parent=1 // loop_footer_branch
      %14 = sbr.rel target = $region3
    $region8: #{conv_encoder_forward.7} parent=1 // loop_exit
      _
    %2757 = vsyncpa [#allocation3], 1
    %s2758 = scalar_lea.sflag [#allocation3], 1
    %2759 = vsyncpa %s2758, 1

</llo_original>
